<compile_context>
chip_gen: v7x
topology: tpu7x:2x2x1
jax: 0.10.0
libtpu: 0.0.40
codegen_flags: <defaults>
</compile_context>

<pallas_src>
import functools
import numpy as np
import jax
import jax.numpy as jnp
from jax.experimental import pallas as pl
from jax.experimental.pallas import tpu as pltpu

N_FFT = 1024
HOP = 320
SR = 32000
FMIN, FMAX = 20.0, 16000.0
N_FREQ = N_FFT // 2 + 1          # 513
N_FREQ_PAD = 640                 # padded to a multiple of 128 (padded bins contribute zero)
TAIL = N_FFT - 3 * HOP           # 64: leftover of a frame after 3 hop-sized blocks


# ----------------------- deterministic parameter construction -----------------------
def _hz_to_mel(freq):
    freq = np.asanyarray(freq, dtype=np.float64)
    f_sp = 200.0 / 3
    mels = freq / f_sp
    min_log_hz = 1000.0
    min_log_mel = min_log_hz / f_sp
    logstep = np.log(6.4) / 27.0
    return np.where(freq >= min_log_hz,
                    min_log_mel + np.log(np.maximum(freq, min_log_hz) / min_log_hz) / logstep,
                    mels)


def _mel_to_hz(mels):
    mels = np.asanyarray(mels, dtype=np.float64)
    f_sp = 200.0 / 3
    freqs = f_sp * mels
    min_log_hz = 1000.0
    min_log_mel = min_log_hz / f_sp
    logstep = np.log(6.4) / 27.0
    return np.where(mels >= min_log_mel,
                    min_log_hz * np.exp(logstep * (mels - min_log_mel)),
                    freqs)


def _mel_filterbank(sr, n_fft, n_mels, fmin, fmax):
    """librosa.filters.mel (htk=False, norm='slaney') -> (n_mels, n_freq)."""
    n_freqs = n_fft // 2 + 1
    fftfreqs = np.linspace(0.0, sr / 2.0, n_freqs)
    mel_f = _mel_to_hz(np.linspace(_hz_to_mel(fmin), _hz_to_mel(fmax), n_mels + 2))
    fdiff = np.diff(mel_f)
    ramps = mel_f[:, None] - fftfreqs[None, :]
    weights = np.zeros((n_mels, n_freqs), dtype=np.float64)
    for i in range(n_mels):
        lower = -ramps[i] / fdiff[i]
        upper = ramps[i + 2] / fdiff[i + 1]
        weights[i] = np.maximum(0.0, np.minimum(lower, upper))
    enorm = 2.0 / (mel_f[2:n_mels + 2] - mel_f[:n_mels])
    weights *= enorm[:, None]
    return weights


def build_params(n_mels):
    """Fused windowed DFT basis [real | imag] and padded mel matrix (float32 numpy)."""
    n = np.arange(N_FFT, dtype=np.float64)
    window = 0.5 - 0.5 * np.cos(2.0 * np.pi * n / N_FFT)        # periodic Hann (fftbins=True)
    k = np.arange(N_FREQ, dtype=np.float64)
    ang = 2.0 * np.pi * np.outer(n, k) / N_FFT                   # (n_fft, n_freq)
    w_real = np.cos(ang) * window[:, None]                       # matches torchlibrosa conv_real
    w_imag = -np.sin(ang) * window[:, None]                      # matches torchlibrosa conv_imag
    melw = _mel_filterbank(SR, N_FFT, n_mels, FMIN, FMAX).T      # (n_freq, n_mels)

    n_mels_pad = ((n_mels + 127) // 128) * 128
    w_ri = np.zeros((N_FFT, 2 * N_FREQ_PAD), dtype=np.float32)
    w_ri[:, :N_FREQ] = w_real
    w_ri[:, N_FREQ_PAD:N_FREQ_PAD + N_FREQ] = w_imag
    melw_p = np.zeros((N_FREQ_PAD, n_mels_pad), dtype=np.float32)
    melw_p[:N_FREQ, :n_mels] = melw
    return w_ri, melw_p


@functools.lru_cache(maxsize=None)
def _get_weights(n_mels):
    """Cached bf16 device weights (built on host once per n_mels, uploaded once)."""
    w_ri_np, melw_np = build_params(n_mels)
    return (jnp.asarray(w_ri_np, dtype=jnp.bfloat16),
            jnp.asarray(melw_np, dtype=jnp.bfloat16))


# -------------------------------------- framing --------------------------------------
def _frame(sound, dtype):
    """center=True, pad_mode='reflect' framing via slice+concat (no conv, no gather).

    n_fft = 3*hop + 64, so with blocks = reflect-padded waveform reshaped to (NB, hop):
        frame[t] = concat(block[t], block[t+1], block[t+2], block[t+3][:64])
    Returns ((B*T, n_fft) in `dtype`, T).
    """
    B, L = sound.shape
    pad = N_FFT // 2
    x = jnp.pad(sound.astype(dtype), ((0, 0), (pad, pad)), mode="reflect")   # (B, L + n_fft)
    T = L // HOP + 1
    NB = T + 3
    Lp = L + N_FFT
    target = NB * HOP
    if target >= Lp:
        x = jnp.pad(x, ((0, 0), (0, target - Lp)))     # tail zeros are never read by any frame
    else:
        x = x[:, :target]                              # trailing samples beyond the last frame
    blocks = x.reshape(B, NB, HOP)
    frames = jnp.concatenate(
        [blocks[:, 0:T, :],
         blocks[:, 1:T + 1, :],
         blocks[:, 2:T + 2, :],
         blocks[:, 3:T + 3, :TAIL]], axis=-1)          # (B, T, n_fft)
    # TODO(synk): framing/DFT conventions validated only against the in-script f32 reference,
    # not against a live torchlibrosa run (torch unavailable in this environment).
    return frames.reshape(B * T, N_FFT), T


def _pick_tile_f(F):
    """Largest frame tile that still leaves >=2 grid steps (keeps both v7x TCs busy)."""
    for t in (1024, 512, 256):
        if F >= 2 * t:
            return t
    return 256


# ---------------------------------- Pallas kernel -----------------------------------
def logmel_kernel(frames_ref, wri_ref, mel_ref, out_ref):
    # Single MXU pass for real & imag: (TILE_F, n_fft) bf16 @ (n_fft, 2*n_freq_pad) bf16 -> f32.
    ri = jnp.dot(frames_ref[...], wri_ref[...], preferred_element_type=jnp.float32)
    real = ri[:, :N_FREQ_PAD]                                    # 128-aligned split (cheap)
    imag = ri[:, N_FREQ_PAD:]
    power = real * real + imag * imag                            # power spectrogram (f32)
    mel = jnp.dot(power.astype(jnp.bfloat16), mel_ref[...],
                  preferred_element_type=jnp.float32)            # (TILE_F, n_mels_pad)
    out_ref[...] = jnp.log(1e-8 + mel) / 100.0


@functools.partial(jax.jit, static_argnames=("n_mels",))
def _logmel_impl(sound, w_ri, melw, n_mels):
    B, L = sound.shape
    frames, T = _frame(sound, jnp.bfloat16)                      # bf16 end-to-end, no f32 trip
    F = B * T
    tile_f = _pick_tile_f(F)
    F_pad = pl.cdiv(F, tile_f) * tile_f                          # zero rows; sliced off below
    frames = jnp.pad(frames, ((0, F_pad - F), (0, 0)))
    n_mels_pad = melw.shape[1]

    out = pl.pallas_call(
        logmel_kernel,
        out_shape=jax.ShapeDtypeStruct((F_pad, n_mels_pad), jnp.float32),
        grid=(F_pad // tile_f,),
        in_specs=[
            pl.BlockSpec((tile_f, N_FFT), lambda i: (i, 0)),            # streamed frame tiles
            pl.BlockSpec((N_FFT, 2 * N_FREQ_PAD), lambda i: (0, 0)),    # VMEM-resident DFT basis
            pl.BlockSpec((N_FREQ_PAD, n_mels_pad), lambda i: (0, 0)),   # VMEM-resident mel matrix
        ],
        out_specs=pl.BlockSpec((tile_f, n_mels_pad), lambda i: (i, 0)),
        compiler_params=pltpu.CompilerParams(
            dimension_semantics=("parallel",),   # shard frame tiles across TCs on v7x
            vmem_limit_bytes=32 << 20,           # ~19 MiB peak at tile_f=1024; safe on all gens
        ),
    )(frames, w_ri, melw)

    return out[:F, :n_mels].reshape(B, 1, T, n_mels)


def logmel(sound, n_mels=64):
    """sound: (B, L) float32 -> (B, 1, T, n_mels), matching the PyTorch module."""
    w_ri, melw = _get_weights(n_mels)
    return _logmel_impl(sound, w_ri, melw, n_mels)


# --------------------------- pure-JAX float32 reference -----------------------------
def logmel_reference(sound, n_mels=64):
    B, _ = sound.shape
    frames, T = _frame(sound, jnp.float32)                       # f32 framing for a stricter check
    w_ri_np, melw_np = build_params(n_mels)
    ri = jnp.dot(frames, jnp.asarray(w_ri_np), precision=jax.lax.Precision.HIGHEST)
    power = ri[:, :N_FREQ_PAD] ** 2 + ri[:, N_FREQ_PAD:] ** 2
    mel = jnp.dot(power, jnp.asarray(melw_np), precision=jax.lax.Precision.HIGHEST)
    out = jnp.log(1e-8 + mel[:, :n_mels]) / 100.0
    return out.reshape(B, 1, T, n_mels)


if __name__ == "__main__":
    key = jax.random.PRNGKey(0)

    # Small clip (single grid tile): 0.1 s of 32 kHz audio -> T = 11 frames.
    B, L = 2, 3200
    sound = jax.random.normal(key, (B, L), dtype=jnp.float32)
    out = logmel(sound, n_mels=64)
    jax.block_until_ready(out)
    assert out.shape == (B, 1, L // HOP + 1, 64)
    err = float(jnp.max(jnp.abs(out - logmel_reference(sound, n_mels=64))))
    assert err < 5e-3, f"small-clip max abs err {err}"

    # Longer clip: exercises multiple grid tiles, the zero-padded tail rows, and the
    # "parallel" frame-axis sharding path (F = 502 -> tile 256, 2 grid steps).
    B2, L2 = 2, 80000
    sound2 = jax.random.normal(jax.random.PRNGKey(1), (B2, L2), dtype=jnp.float32) * 0.05
    out2 = logmel(sound2, n_mels=64)
    jax.block_until_ready(out2)
    assert out2.shape == (B2, 1, L2 // HOP + 1, 64)
    err2 = float(jnp.max(jnp.abs(out2 - logmel_reference(sound2, n_mels=64))))
    assert err2 < 5e-3, f"long-clip max abs err {err2}"

    print("KERNEL_OK")
</pallas_src>

<mosaic_0001>
module attributes {stable_mosaic.version = 11 : i64} {
  func.func @logmel_kernel(%arg0: i32, %arg1: memref<256x1024xbf16, #tpu.memory_space<vmem>>, %arg2: memref<1024x1280xbf16, #tpu.memory_space<vmem>>, %arg3: memref<640x128xbf16, #tpu.memory_space<vmem>>, %arg4: memref<256x128xf32, #tpu.memory_space<vmem>>) attributes {dimension_semantics = [#tpu.dimension_semantics<parallel>], iteration_bounds = array<i64: 1>, scalar_prefetch = 0 : i64, scratch_operands = 0 : i64, tpu.core_type = #tpu.core_type<tc>, window_params = [{transform_indices = @transform_0, window_bounds = array<i64: 256, 1024>}, {pipeline_mode = #tpu.pipeline_mode<synchronous>, transform_indices = @transform_1, window_bounds = array<i64: 1024, 1280>}, {pipeline_mode = #tpu.pipeline_mode<synchronous>, transform_indices = @transform_2, window_bounds = array<i64: 640, 128>}, {transform_indices = @transform_3, window_bounds = array<i64: 256, 128>}]} {
    %c0 = arith.constant 0 : index
    %c0_0 = arith.constant 0 : index
    %0 = vector.load %arg1[%c0, %c0_0] : memref<256x1024xbf16, #tpu.memory_space<vmem>>, vector<256x1024xbf16>
    %c0_1 = arith.constant 0 : index
    %c0_2 = arith.constant 0 : index
    %1 = vector.load %arg2[%c0_1, %c0_2] : memref<1024x1280xbf16, #tpu.memory_space<vmem>>, vector<1024x1280xbf16>
    %cst = arith.constant dense<0.000000e+00> : vector<256x1280xf32>
    %2 = tpu.matmul %0, %1, %cst {dimension_numbers = #tpu.dot_dimension_numbers<[1], [0], [0], [1], [0, 0, 1, 1], [], []>} : vector<256x1024xbf16>, vector<1024x1280xbf16>, vector<256x1280xf32> -> vector<256x1280xf32>
    %3 = vector.extract_strided_slice %2 {offsets = [0, 0], sizes = [256, 640], strides = [1, 1]} : vector<256x1280xf32> to vector<256x640xf32>
    %4 = vector.extract_strided_slice %2 {offsets = [0, 640], sizes = [256, 640], strides = [1, 1]} : vector<256x1280xf32> to vector<256x640xf32>
    %5 = arith.mulf %3, %3 : vector<256x640xf32>
    %6 = arith.mulf %4, %4 : vector<256x640xf32>
    %7 = arith.addf %5, %6 : vector<256x640xf32>
    %8 = arith.truncf %7 : vector<256x640xf32> to vector<256x640xbf16>
    %c0_3 = arith.constant 0 : index
    %c0_4 = arith.constant 0 : index
    %9 = vector.load %arg3[%c0_3, %c0_4] : memref<640x128xbf16, #tpu.memory_space<vmem>>, vector<640x128xbf16>
    %cst_5 = arith.constant dense<0.000000e+00> : vector<256x128xf32>
    %10 = tpu.matmul %8, %9, %cst_5 {dimension_numbers = #tpu.dot_dimension_numbers<[1], [0], [0], [1], [0, 0, 1, 1], [], []>} : vector<256x640xbf16>, vector<640x128xbf16>, vector<256x128xf32> -> vector<256x128xf32>
    %cst_6 = arith.constant 9.99999993E-9 : f32
    %11 = vector.broadcast %cst_6 : f32 to vector<256x128xf32>
    %12 = arith.addf %11, %10 : vector<256x128xf32>
    %13 = math.log %12 : vector<256x128xf32>
    %cst_7 = arith.constant 1.000000e+02 : f32
    %14 = vector.broadcast %cst_7 : f32 to vector<256x128xf32>
    %15 = arith.divf %13, %14 : vector<256x128xf32>
    %c0_8 = arith.constant 0 : index
    %c0_9 = arith.constant 0 : index
    %16 = vector.load %arg4[%c0_8, %c0_9] : memref<256x128xf32, #tpu.memory_space<vmem>>, vector<256x128xf32>
    tpu.vector_store %arg4[%c0_8, %c0_9], %15 {strides = array<i32>} : memref<256x128xf32, #tpu.memory_space<vmem>>, vector<256x128xf32>,
    return
  }
  func.func @transform_0(%arg0: i32) -> (i32, i32) {
    %c0_i32 = arith.constant 0 : i32
    %c0_i32_0 = arith.constant 0 : i32
    return %arg0, %c0_i32 : i32, i32
  }
  func.func @transform_1(%arg0: i32) -> (i32, i32) {
    %c0_i32 = arith.constant 0 : i32
    %c0_i32_0 = arith.constant 0 : i32
    %c0_i32_1 = arith.constant 0 : i32
    return %c0_i32, %c0_i32_0 : i32, i32
  }
  func.func @transform_2(%arg0: i32) -> (i32, i32) {
    %c0_i32 = arith.constant 0 : i32
    %c0_i32_0 = arith.constant 0 : i32
    %c0_i32_1 = arith.constant 0 : i32
    return %c0_i32, %c0_i32_0 : i32, i32
  }
  func.func @transform_3(%arg0: i32) -> (i32, i32) {
    %c0_i32 = arith.constant 0 : i32
    %c0_i32_0 = arith.constant 0 : i32
    return %arg0, %c0_i32 : i32, i32
  }
}

</mosaic_0001>

<llo_original>
// kernel: _logmel_impl.1
$region0: #{_logmel_impl.1}
  #allocation0 [shape = 'u32[]', space=smem, size = 0x4, offset = 0x4, fixed_abs, tag = 'smem constant byte address 0x4 - core index']
  #allocation1 [shape = 'u32[144,128]{1,0:T(1,128)}', space=vmem, size = 0x12000, scoped, tag = 'internal scratch']
  %s0 = inlined_call_operand.vmem [shape: bf16[256,1024], index: 0, kind: input, shape index: {}]
  %s1 = inlined_call_operand.hbm [shape: bf16[1024,1280], index: 1, kind: input, shape index: {}]
  %s2 = inlined_call_operand.hbm [shape: bf16[640,128], index: 2, kind: input, shape index: {}]
  %s3 = inlined_call_operand.vmem [shape: f32[256,128], index: 3, kind: output, shape index: {}]
  %s4 = sld [smem:[#allocation0]]
  $region30: #{_logmel_impl.1} parent=0
    _
  %s6 = ssub.s32 1, %s4
  %s7 = scalar_select 0, %s6, %s4
  $region1: #{_logmel_impl.1} parent=0
    #allocation2 [shape = 'u8[2621440]{0}', space=vmem, size = 0x280000, scoped, tag = 'input window, operand 1, single buffered']
    #allocation3 [shape = 's32[1]{0}', space=sflag, size = 0x4, scoped, tag = 'scoped memory for _logmel_impl.1']
    #allocation4 [shape = 'u8[163840]{0}', space=vmem, size = 0x28000, scoped, tag = 'input window, operand 2, single buffered']
    #allocation5 [shape = 's32[1]{0}', space=sflag, size = 0x4, scoped, tag = 'scoped memory for _logmel_impl.1']
    %8 = vsyncpa [#allocation3], 0
    %9 = vsyncpa [#allocation5], 0
    // Predicated region
    $region2: #{_logmel_impl.1} parent=1 // pred_check
      _
    $region3: #{_logmel_impl.1} parent=1 // pred_check_branch
      %11 = sbr.rel (0) target = $region5
    $region4: #{_logmel_impl.1} parent=1 // pred_region
      _
    $region5: #{_logmel_impl.1} parent=1 // pred_fallthru
      _
    // Predicated region
    $region6: #{_logmel_impl.1} parent=1 // pred_check
      _
    $region7: #{_logmel_impl.1} parent=1 // pred_check_branch
      %13 = sbr.rel (0) target = $region9
    $region8: #{_logmel_impl.1} parent=1 // pred_region
      %s15 = ssub.s32 81920, 81920
      %16 = vsyncadd [#allocation3], %s15
      %s17 = sshll.u32 [#allocation2], 4
      %s18 = int_to_ptr.vmem [resolvable:$true] %s17
      %23 = dma.hbm_to_vmem [thread:$0]  %s1, 81920, %s18, [#allocation3], 640, 640, 40
    $region9: #{_logmel_impl.1} parent=1 // pred_fallthru
      _
    // Predicated region
    $region10: #{_logmel_impl.1} parent=1 // pred_check
      _
    $region11: #{_logmel_impl.1} parent=1 // pred_check_branch
      %25 = sbr.rel (0) target = $region13
    $region12: #{_logmel_impl.1} parent=1 // pred_region
      %s27 = ssub.s32 5120, 5120
      %28 = vsyncadd [#allocation5], %s27
      %s29 = sshll.u32 [#allocation4], 4
      %s30 = int_to_ptr.vmem [resolvable:$true] %s29
      %35 = dma.hbm_to_vmem [thread:$0]  %s2, 5120, %s30, [#allocation5], 64, 64, 4
    $region13: #{_logmel_impl.1} parent=1 // pred_fallthru
      _
    // Predicated region
    $region14: #{_logmel_impl.1} parent=1 // pred_check
      _
    $region15: #{_logmel_impl.1} parent=1 // pred_check_branch
      %37 = sbr.rel (0) target = $region17
    $region16: #{_logmel_impl.1} parent=1 // pred_region
      %38 = dma.done [#allocation3], 81920
    $region17: #{_logmel_impl.1} parent=1 // pred_fallthru
      _
    // Predicated region
    $region18: #{_logmel_impl.1} parent=1 // pred_check
      _
    $region19: #{_logmel_impl.1} parent=1 // pred_check_branch
      %40 = sbr.rel (0) target = $region21
    $region20: #{_logmel_impl.1} parent=1 // pred_region
      %41 = dma.done [#allocation5], 5120
    $region21: #{_logmel_impl.1} parent=1 // pred_fallthru
      _
    %v43 = vld [vmem:[%s0] sm:$0xff]
    %v44 = vld [vmem:[%s0 + $0x8] sm:$0xff]
    %v45 = vld [vmem:[%s0 + $0x10] sm:$0xff]
    %v46 = vld [vmem:[%s0 + $0x18] sm:$0xff]
    %v47 = vld [vmem:[%s0 + $0x20] sm:$0xff]
    %v48 = vld [vmem:[%s0 + $0x28] sm:$0xff]
    %v49 = vld [vmem:[%s0 + $0x30] sm:$0xff]
    %v50 = vld [vmem:[%s0 + $0x38] sm:$0xff]
    %v51 = vld [vmem:[%s0 + $0x40] sm:$0xff]
    %v52 = vld [vmem:[%s0 + $0x48] sm:$0xff]
    %v53 = vld [vmem:[%s0 + $0x50] sm:$0xff]
    %v54 = vld [vmem:[%s0 + $0x58] sm:$0xff]
    %v55 = vld [vmem:[%s0 + $0x60] sm:$0xff]
    %v56 = vld [vmem:[%s0 + $0x68] sm:$0xff]
    %v57 = vld [vmem:[%s0 + $0x70] sm:$0xff]
    %v58 = vld [vmem:[%s0 + $0x78] sm:$0xff]
    %v59 = vld [vmem:[%s0 + $0x80] sm:$0xff]
    %v60 = vld [vmem:[%s0 + $0x88] sm:$0xff]
    %v61 = vld [vmem:[%s0 + $0x90] sm:$0xff]
    %v62 = vld [vmem:[%s0 + $0x98] sm:$0xff]
    %v63 = vld [vmem:[%s0 + $0xa0] sm:$0xff]
    %v64 = vld [vmem:[%s0 + $0xa8] sm:$0xff]
    %v65 = vld [vmem:[%s0 + $0xb0] sm:$0xff]
    %v66 = vld [vmem:[%s0 + $0xb8] sm:$0xff]
    %v67 = vld [vmem:[%s0 + $0xc0] sm:$0xff]
    %v68 = vld [vmem:[%s0 + $0xc8] sm:$0xff]
    %v69 = vld [vmem:[%s0 + $0xd0] sm:$0xff]
    %v70 = vld [vmem:[%s0 + $0xd8] sm:$0xff]
    %v71 = vld [vmem:[%s0 + $0xe0] sm:$0xff]
    %v72 = vld [vmem:[%s0 + $0xe8] sm:$0xff]
    %v73 = vld [vmem:[%s0 + $0xf0] sm:$0xff]
    %v74 = vld [vmem:[%s0 + $0xf8] sm:$0xff]
    %v75 = vld [vmem:[%s0 + $0x100] sm:$0xff]
    %v76 = vld [vmem:[%s0 + $0x108] sm:$0xff]
    %v77 = vld [vmem:[%s0 + $0x110] sm:$0xff]
    %v78 = vld [vmem:[%s0 + $0x118] sm:$0xff]
    %v79 = vld [vmem:[%s0 + $0x120] sm:$0xff]
    %v80 = vld [vmem:[%s0 + $0x128] sm:$0xff]
    %v81 = vld [vmem:[%s0 + $0x130] sm:$0xff]
    %v82 = vld [vmem:[%s0 + $0x138] sm:$0xff]
    %v83 = vld [vmem:[%s0 + $0x140] sm:$0xff]
    %v84 = vld [vmem:[%s0 + $0x148] sm:$0xff]
    %v85 = vld [vmem:[%s0 + $0x150] sm:$0xff]
    %v86 = vld [vmem:[%s0 + $0x158] sm:$0xff]
    %v87 = vld [vmem:[%s0 + $0x160] sm:$0xff]
    %v88 = vld [vmem:[%s0 + $0x168] sm:$0xff]
    %v89 = vld [vmem:[%s0 + $0x170] sm:$0xff]
    %v90 = vld [vmem:[%s0 + $0x178] sm:$0xff]
    %v91 = vld [vmem:[%s0 + $0x180] sm:$0xff]
    %v92 = vld [vmem:[%s0 + $0x188] sm:$0xff]
    %v93 = vld [vmem:[%s0 + $0x190] sm:$0xff]
    %v94 = vld [vmem:[%s0 + $0x198] sm:$0xff]
    %v95 = vld [vmem:[%s0 + $0x1a0] sm:$0xff]
    %v96 = vld [vmem:[%s0 + $0x1a8] sm:$0xff]
    %v97 = vld [vmem:[%s0 + $0x1b0] sm:$0xff]
    %v98 = vld [vmem:[%s0 + $0x1b8] sm:$0xff]
    %v99 = vld [vmem:[%s0 + $0x1c0] sm:$0xff]
    %v100 = vld [vmem:[%s0 + $0x1c8] sm:$0xff]
    %v101 = vld [vmem:[%s0 + $0x1d0] sm:$0xff]
    %v102 = vld [vmem:[%s0 + $0x1d8] sm:$0xff]
    %v103 = vld [vmem:[%s0 + $0x1e0] sm:$0xff]
    %v104 = vld [vmem:[%s0 + $0x1e8] sm:$0xff]
    %v105 = vld [vmem:[%s0 + $0x1f0] sm:$0xff]
    %v106 = vld [vmem:[%s0 + $0x1f8] sm:$0xff]
    %v107 = vld [vmem:[%s0 + $0x200] sm:$0xff]
    %v108 = vld [vmem:[%s0 + $0x208] sm:$0xff]
    %v109 = vld [vmem:[%s0 + $0x210] sm:$0xff]
    %v110 = vld [vmem:[%s0 + $0x218] sm:$0xff]
    %v111 = vld [vmem:[%s0 + $0x220] sm:$0xff]
    %v112 = vld [vmem:[%s0 + $0x228] sm:$0xff]
    %v113 = vld [vmem:[%s0 + $0x230] sm:$0xff]
    %v114 = vld [vmem:[%s0 + $0x238] sm:$0xff]
    %v115 = vld [vmem:[%s0 + $0x240] sm:$0xff]
    %v116 = vld [vmem:[%s0 + $0x248] sm:$0xff]
    %v117 = vld [vmem:[%s0 + $0x250] sm:$0xff]
    %v118 = vld [vmem:[%s0 + $0x258] sm:$0xff]
    %v119 = vld [vmem:[%s0 + $0x260] sm:$0xff]
    %v120 = vld [vmem:[%s0 + $0x268] sm:$0xff]
    %v121 = vld [vmem:[%s0 + $0x270] sm:$0xff]
    %v122 = vld [vmem:[%s0 + $0x278] sm:$0xff]
    %v123 = vld [vmem:[%s0 + $0x280] sm:$0xff]
    %v124 = vld [vmem:[%s0 + $0x288] sm:$0xff]
    %v125 = vld [vmem:[%s0 + $0x290] sm:$0xff]
    %v126 = vld [vmem:[%s0 + $0x298] sm:$0xff]
    %v127 = vld [vmem:[%s0 + $0x2a0] sm:$0xff]
    %v128 = vld [vmem:[%s0 + $0x2a8] sm:$0xff]
    %v129 = vld [vmem:[%s0 + $0x2b0] sm:$0xff]
    %v130 = vld [vmem:[%s0 + $0x2b8] sm:$0xff]
    %v131 = vld [vmem:[%s0 + $0x2c0] sm:$0xff]
    %v132 = vld [vmem:[%s0 + $0x2c8] sm:$0xff]
    %v133 = vld [vmem:[%s0 + $0x2d0] sm:$0xff]
    %v134 = vld [vmem:[%s0 + $0x2d8] sm:$0xff]
    %v135 = vld [vmem:[%s0 + $0x2e0] sm:$0xff]
    %v136 = vld [vmem:[%s0 + $0x2e8] sm:$0xff]
    %v137 = vld [vmem:[%s0 + $0x2f0] sm:$0xff]
    %v138 = vld [vmem:[%s0 + $0x2f8] sm:$0xff]
    %v139 = vld [vmem:[%s0 + $0x300] sm:$0xff]
    %v140 = vld [vmem:[%s0 + $0x308] sm:$0xff]
    %v141 = vld [vmem:[%s0 + $0x310] sm:$0xff]
    %v142 = vld [vmem:[%s0 + $0x318] sm:$0xff]
    %v143 = vld [vmem:[%s0 + $0x320] sm:$0xff]
    %v144 = vld [vmem:[%s0 + $0x328] sm:$0xff]
    %v145 = vld [vmem:[%s0 + $0x330] sm:$0xff]
    %v146 = vld [vmem:[%s0 + $0x338] sm:$0xff]
    %v147 = vld [vmem:[%s0 + $0x340] sm:$0xff]
    %v148 = vld [vmem:[%s0 + $0x348] sm:$0xff]
    %v149 = vld [vmem:[%s0 + $0x350] sm:$0xff]
    %v150 = vld [vmem:[%s0 + $0x358] sm:$0xff]
    %v151 = vld [vmem:[%s0 + $0x360] sm:$0xff]
    %v152 = vld [vmem:[%s0 + $0x368] sm:$0xff]
    %v153 = vld [vmem:[%s0 + $0x370] sm:$0xff]
    %v154 = vld [vmem:[%s0 + $0x378] sm:$0xff]
    %v155 = vld [vmem:[%s0 + $0x380] sm:$0xff]
    %v156 = vld [vmem:[%s0 + $0x388] sm:$0xff]
    %v157 = vld [vmem:[%s0 + $0x390] sm:$0xff]
    %v158 = vld [vmem:[%s0 + $0x398] sm:$0xff]
    %v159 = vld [vmem:[%s0 + $0x3a0] sm:$0xff]
    %v160 = vld [vmem:[%s0 + $0x3a8] sm:$0xff]
    %v161 = vld [vmem:[%s0 + $0x3b0] sm:$0xff]
    %v162 = vld [vmem:[%s0 + $0x3b8] sm:$0xff]
    %v163 = vld [vmem:[%s0 + $0x3c0] sm:$0xff]
    %v164 = vld [vmem:[%s0 + $0x3c8] sm:$0xff]
    %v165 = vld [vmem:[%s0 + $0x3d0] sm:$0xff]
    %v166 = vld [vmem:[%s0 + $0x3d8] sm:$0xff]
    %v167 = vld [vmem:[%s0 + $0x3e0] sm:$0xff]
    %v168 = vld [vmem:[%s0 + $0x3e8] sm:$0xff]
    %v169 = vld [vmem:[%s0 + $0x3f0] sm:$0xff]
    %v170 = vld [vmem:[%s0 + $0x3f8] sm:$0xff]
    %v171 = vld [vmem:[#allocation2] sm:$0xff]
    %v172 = vld [vmem:[#allocation2 + $0x8] sm:$0xff]
    %v173 = vld [vmem:[#allocation2 + $0x10] sm:$0xff]
    %v174 = vld [vmem:[#allocation2 + $0x18] sm:$0xff]
    %v175 = vld [vmem:[#allocation2 + $0x20] sm:$0xff]
    %v176 = vld [vmem:[#allocation2 + $0x28] sm:$0xff]
    %v177 = vld [vmem:[#allocation2 + $0x30] sm:$0xff]
    %v178 = vld [vmem:[#allocation2 + $0x38] sm:$0xff]
    %v179 = vld [vmem:[#allocation2 + $0x40] sm:$0xff]
    %v180 = vld [vmem:[#allocation2 + $0x48] sm:$0xff]
    %v181 = vld [vmem:[#allocation2 + $0x50] sm:$0xff]
    %v182 = vld [vmem:[#allocation2 + $0x58] sm:$0xff]
    %v183 = vld [vmem:[#allocation2 + $0x60] sm:$0xff]
    %v184 = vld [vmem:[#allocation2 + $0x68] sm:$0xff]
    %v185 = vld [vmem:[#allocation2 + $0x70] sm:$0xff]
    %v186 = vld [vmem:[#allocation2 + $0x78] sm:$0xff]
    %v187 = vld [vmem:[#allocation2 + $0x80] sm:$0xff]
    %v188 = vld [vmem:[#allocation2 + $0x88] sm:$0xff]
    %v189 = vld [vmem:[#allocation2 + $0x90] sm:$0xff]
    %v190 = vld [vmem:[#allocation2 + $0x98] sm:$0xff]
    %v191 = vld [vmem:[#allocation2 + $0xa0] sm:$0xff]
    %v192 = vld [vmem:[#allocation2 + $0xa8] sm:$0xff]
    %v193 = vld [vmem:[#allocation2 + $0xb0] sm:$0xff]
    %v194 = vld [vmem:[#allocation2 + $0xb8] sm:$0xff]
    %v195 = vld [vmem:[#allocation2 + $0xc0] sm:$0xff]
    %v196 = vld [vmem:[#allocation2 + $0xc8] sm:$0xff]
    %v197 = vld [vmem:[#allocation2 + $0xd0] sm:$0xff]
    %v198 = vld [vmem:[#allocation2 + $0xd8] sm:$0xff]
    %v199 = vld [vmem:[#allocation2 + $0xe0] sm:$0xff]
    %v200 = vld [vmem:[#allocation2 + $0xe8] sm:$0xff]
    %v201 = vld [vmem:[#allocation2 + $0xf0] sm:$0xff]
    %v202 = vld [vmem:[#allocation2 + $0xf8] sm:$0xff]
    %v203 = vld [vmem:[#allocation2 + $0x100] sm:$0xff]
    %v204 = vld [vmem:[#allocation2 + $0x108] sm:$0xff]
    %v205 = vld [vmem:[#allocation2 + $0x110] sm:$0xff]
    %v206 = vld [vmem:[#allocation2 + $0x118] sm:$0xff]
    %v207 = vld [vmem:[#allocation2 + $0x120] sm:$0xff]
    %v208 = vld [vmem:[#allocation2 + $0x128] sm:$0xff]
    %v209 = vld [vmem:[#allocation2 + $0x130] sm:$0xff]
    %v210 = vld [vmem:[#allocation2 + $0x138] sm:$0xff]
    %v211 = vld [vmem:[#allocation2 + $0x140] sm:$0xff]
    %v212 = vld [vmem:[#allocation2 + $0x148] sm:$0xff]
    %v213 = vld [vmem:[#allocation2 + $0x150] sm:$0xff]
    %v214 = vld [vmem:[#allocation2 + $0x158] sm:$0xff]
    %v215 = vld [vmem:[#allocation2 + $0x160] sm:$0xff]
    %v216 = vld [vmem:[#allocation2 + $0x168] sm:$0xff]
    %v217 = vld [vmem:[#allocation2 + $0x170] sm:$0xff]
    %v218 = vld [vmem:[#allocation2 + $0x178] sm:$0xff]
    %v219 = vld [vmem:[#allocation2 + $0x180] sm:$0xff]
    %v220 = vld [vmem:[#allocation2 + $0x188] sm:$0xff]
    %v221 = vld [vmem:[#allocation2 + $0x190] sm:$0xff]
    %v222 = vld [vmem:[#allocation2 + $0x198] sm:$0xff]
    %v223 = vld [vmem:[#allocation2 + $0x1a0] sm:$0xff]
    %v224 = vld [vmem:[#allocation2 + $0x1a8] sm:$0xff]
    %v225 = vld [vmem:[#allocation2 + $0x1b0] sm:$0xff]
    %v226 = vld [vmem:[#allocation2 + $0x1b8] sm:$0xff]
    %v227 = vld [vmem:[#allocation2 + $0x1c0] sm:$0xff]
    %v228 = vld [vmem:[#allocation2 + $0x1c8] sm:$0xff]
    %v229 = vld [vmem:[#allocation2 + $0x1d0] sm:$0xff]
    %v230 = vld [vmem:[#allocation2 + $0x1d8] sm:$0xff]
    %v231 = vld [vmem:[#allocation2 + $0x1e0] sm:$0xff]
    %v232 = vld [vmem:[#allocation2 + $0x1e8] sm:$0xff]
    %v233 = vld [vmem:[#allocation2 + $0x1f0] sm:$0xff]
    %v234 = vld [vmem:[#allocation2 + $0x1f8] sm:$0xff]
    %v235 = vld [vmem:[#allocation2 + $0x200] sm:$0xff]
    %v236 = vld [vmem:[#allocation2 + $0x208] sm:$0xff]
    %v237 = vld [vmem:[#allocation2 + $0x210] sm:$0xff]
    %v238 = vld [vmem:[#allocation2 + $0x218] sm:$0xff]
    %v239 = vld [vmem:[#allocation2 + $0x220] sm:$0xff]
    %v240 = vld [vmem:[#allocation2 + $0x228] sm:$0xff]
    %v241 = vld [vmem:[#allocation2 + $0x230] sm:$0xff]
    %v242 = vld [vmem:[#allocation2 + $0x238] sm:$0xff]
    %v243 = vld [vmem:[#allocation2 + $0x240] sm:$0xff]
    %v244 = vld [vmem:[#allocation2 + $0x248] sm:$0xff]
    %v245 = vld [vmem:[#allocation2 + $0x250] sm:$0xff]
    %v246 = vld [vmem:[#allocation2 + $0x258] sm:$0xff]
    %v247 = vld [vmem:[#allocation2 + $0x260] sm:$0xff]
    %v248 = vld [vmem:[#allocation2 + $0x268] sm:$0xff]
    %v249 = vld [vmem:[#allocation2 + $0x270] sm:$0xff]
    %v250 = vld [vmem:[#allocation2 + $0x278] sm:$0xff]
    %v251 = vld [vmem:[#allocation2 + $0x280] sm:$0xff]
    %v252 = vld [vmem:[#allocation2 + $0x288] sm:$0xff]
    %v253 = vld [vmem:[#allocation2 + $0x290] sm:$0xff]
    %v254 = vld [vmem:[#allocation2 + $0x298] sm:$0xff]
    %v255 = vld [vmem:[#allocation2 + $0x2a0] sm:$0xff]
    %v256 = vld [vmem:[#allocation2 + $0x2a8] sm:$0xff]
    %v257 = vld [vmem:[#allocation2 + $0x2b0] sm:$0xff]
    %v258 = vld [vmem:[#allocation2 + $0x2b8] sm:$0xff]
    %v259 = vld [vmem:[#allocation2 + $0x2c0] sm:$0xff]
    %v260 = vld [vmem:[#allocation2 + $0x2c8] sm:$0xff]
    %v261 = vld [vmem:[#allocation2 + $0x2d0] sm:$0xff]
    %v262 = vld [vmem:[#allocation2 + $0x2d8] sm:$0xff]
    %v263 = vld [vmem:[#allocation2 + $0x2e0] sm:$0xff]
    %v264 = vld [vmem:[#allocation2 + $0x2e8] sm:$0xff]
    %v265 = vld [vmem:[#allocation2 + $0x2f0] sm:$0xff]
    %v266 = vld [vmem:[#allocation2 + $0x2f8] sm:$0xff]
    %v267 = vld [vmem:[#allocation2 + $0x300] sm:$0xff]
    %v268 = vld [vmem:[#allocation2 + $0x308] sm:$0xff]
    %v269 = vld [vmem:[#allocation2 + $0x310] sm:$0xff]
    %v270 = vld [vmem:[#allocation2 + $0x318] sm:$0xff]
    %v271 = vld [vmem:[#allocation2 + $0x320] sm:$0xff]
    %v272 = vld [vmem:[#allocation2 + $0x328] sm:$0xff]
    %v273 = vld [vmem:[#allocation2 + $0x330] sm:$0xff]
    %v274 = vld [vmem:[#allocation2 + $0x338] sm:$0xff]
    %v275 = vld [vmem:[#allocation2 + $0x340] sm:$0xff]
    %v276 = vld [vmem:[#allocation2 + $0x348] sm:$0xff]
    %v277 = vld [vmem:[#allocation2 + $0x350] sm:$0xff]
    %v278 = vld [vmem:[#allocation2 + $0x358] sm:$0xff]
    %v279 = vld [vmem:[#allocation2 + $0x360] sm:$0xff]
    %v280 = vld [vmem:[#allocation2 + $0x368] sm:$0xff]
    %v281 = vld [vmem:[#allocation2 + $0x370] sm:$0xff]
    %v282 = vld [vmem:[#allocation2 + $0x378] sm:$0xff]
    %v283 = vld [vmem:[#allocation2 + $0x380] sm:$0xff]
    %v284 = vld [vmem:[#allocation2 + $0x388] sm:$0xff]
    %v285 = vld [vmem:[#allocation2 + $0x390] sm:$0xff]
    %v286 = vld [vmem:[#allocation2 + $0x398] sm:$0xff]
    %v287 = vld [vmem:[#allocation2 + $0x3a0] sm:$0xff]
    %v288 = vld [vmem:[#allocation2 + $0x3a8] sm:$0xff]
    %v289 = vld [vmem:[#allocation2 + $0x3b0] sm:$0xff]
    %v290 = vld [vmem:[#allocation2 + $0x3b8] sm:$0xff]
    %v291 = vld [vmem:[#allocation2 + $0x3c0] sm:$0xff]
    %v292 = vld [vmem:[#allocation2 + $0x3c8] sm:$0xff]
    %v293 = vld [vmem:[#allocation2 + $0x3d0] sm:$0xff]
    %v294 = vld [vmem:[#allocation2 + $0x3d8] sm:$0xff]
    %v295 = vld [vmem:[#allocation2 + $0x3e0] sm:$0xff]
    %v296 = vld [vmem:[#allocation2 + $0x3e8] sm:$0xff]
    %v297 = vld [vmem:[#allocation2 + $0x3f0] sm:$0xff]
    %v298 = vld [vmem:[#allocation2 + $0x3f8] sm:$0xff]
    %v299 = vld [vmem:[#allocation2 + $0x400] sm:$0xff]
    %v300 = vld [vmem:[#allocation2 + $0x408] sm:$0xff]
    %v301 = vld [vmem:[#allocation2 + $0x410] sm:$0xff]
    %v302 = vld [vmem:[#allocation2 + $0x418] sm:$0xff]
    %v303 = vld [vmem:[#allocation2 + $0x420] sm:$0xff]
    %v304 = vld [vmem:[#allocation2 + $0x428] sm:$0xff]
    %v305 = vld [vmem:[#allocation2 + $0x430] sm:$0xff]
    %v306 = vld [vmem:[#allocation2 + $0x438] sm:$0xff]
    %v307 = vld [vmem:[#allocation2 + $0x440] sm:$0xff]
    %v308 = vld [vmem:[#allocation2 + $0x448] sm:$0xff]
    %v309 = vld [vmem:[#allocation2 + $0x450] sm:$0xff]
    %v310 = vld [vmem:[#allocation2 + $0x458] sm:$0xff]
    %v311 = vld [vmem:[#allocation2 + $0x460] sm:$0xff]
    %v312 = vld [vmem:[#allocation2 + $0x468] sm:$0xff]
    %v313 = vld [vmem:[#allocation2 + $0x470] sm:$0xff]
    %v314 = vld [vmem:[#allocation2 + $0x478] sm:$0xff]
    %v315 = vld [vmem:[#allocation2 + $0x480] sm:$0xff]
    %v316 = vld [vmem:[#allocation2 + $0x488] sm:$0xff]
    %v317 = vld [vmem:[#allocation2 + $0x490] sm:$0xff]
    %v318 = vld [vmem:[#allocation2 + $0x498] sm:$0xff]
    %v319 = vld [vmem:[#allocation2 + $0x4a0] sm:$0xff]
    %v320 = vld [vmem:[#allocation2 + $0x4a8] sm:$0xff]
    %v321 = vld [vmem:[#allocation2 + $0x4b0] sm:$0xff]
    %v322 = vld [vmem:[#allocation2 + $0x4b8] sm:$0xff]
    %v323 = vld [vmem:[#allocation2 + $0x4c0] sm:$0xff]
    %v324 = vld [vmem:[#allocation2 + $0x4c8] sm:$0xff]
    %v325 = vld [vmem:[#allocation2 + $0x4d0] sm:$0xff]
    %v326 = vld [vmem:[#allocation2 + $0x4d8] sm:$0xff]
    %v327 = vld [vmem:[#allocation2 + $0x4e0] sm:$0xff]
    %v328 = vld [vmem:[#allocation2 + $0x4e8] sm:$0xff]
    %v329 = vld [vmem:[#allocation2 + $0x4f0] sm:$0xff]
    %v330 = vld [vmem:[#allocation2 + $0x4f8] sm:$0xff]
    %v331 = vld [vmem:[#allocation2 + $0x500] sm:$0xff]
    %v332 = vld [vmem:[#allocation2 + $0x508] sm:$0xff]
    %v333 = vld [vmem:[#allocation2 + $0x510] sm:$0xff]
    %v334 = vld [vmem:[#allocation2 + $0x518] sm:$0xff]
    %v335 = vld [vmem:[#allocation2 + $0x520] sm:$0xff]
    %v336 = vld [vmem:[#allocation2 + $0x528] sm:$0xff]
    %v337 = vld [vmem:[#allocation2 + $0x530] sm:$0xff]
    %v338 = vld [vmem:[#allocation2 + $0x538] sm:$0xff]
    %v339 = vld [vmem:[#allocation2 + $0x540] sm:$0xff]
    %v340 = vld [vmem:[#allocation2 + $0x548] sm:$0xff]
    %v341 = vld [vmem:[#allocation2 + $0x550] sm:$0xff]
    %v342 = vld [vmem:[#allocation2 + $0x558] sm:$0xff]
    %v343 = vld [vmem:[#allocation2 + $0x560] sm:$0xff]
    %v344 = vld [vmem:[#allocation2 + $0x568] sm:$0xff]
    %v345 = vld [vmem:[#allocation2 + $0x570] sm:$0xff]
    %v346 = vld [vmem:[#allocation2 + $0x578] sm:$0xff]
    %v347 = vld [vmem:[#allocation2 + $0x580] sm:$0xff]
    %v348 = vld [vmem:[#allocation2 + $0x588] sm:$0xff]
    %v349 = vld [vmem:[#allocation2 + $0x590] sm:$0xff]
    %v350 = vld [vmem:[#allocation2 + $0x598] sm:$0xff]
    %v351 = vld [vmem:[#allocation2 + $0x5a0] sm:$0xff]
    %v352 = vld [vmem:[#allocation2 + $0x5a8] sm:$0xff]
    %v353 = vld [vmem:[#allocation2 + $0x5b0] sm:$0xff]
    %v354 = vld [vmem:[#allocation2 + $0x5b8] sm:$0xff]
    %v355 = vld [vmem:[#allocation2 + $0x5c0] sm:$0xff]
    %v356 = vld [vmem:[#allocation2 + $0x5c8] sm:$0xff]
    %v357 = vld [vmem:[#allocation2 + $0x5d0] sm:$0xff]
    %v358 = vld [vmem:[#allocation2 + $0x5d8] sm:$0xff]
    %v359 = vld [vmem:[#allocation2 + $0x5e0] sm:$0xff]
    %v360 = vld [vmem:[#allocation2 + $0x5e8] sm:$0xff]
    %v361 = vld [vmem:[#allocation2 + $0x5f0] sm:$0xff]
    %v362 = vld [vmem:[#allocation2 + $0x5f8] sm:$0xff]
    %v363 = vld [vmem:[#allocation2 + $0x600] sm:$0xff]
    %v364 = vld [vmem:[#allocation2 + $0x608] sm:$0xff]
    %v365 = vld [vmem:[#allocation2 + $0x610] sm:$0xff]
    %v366 = vld [vmem:[#allocation2 + $0x618] sm:$0xff]
    %v367 = vld [vmem:[#allocation2 + $0x620] sm:$0xff]
    %v368 = vld [vmem:[#allocation2 + $0x628] sm:$0xff]
    %v369 = vld [vmem:[#allocation2 + $0x630] sm:$0xff]
    %v370 = vld [vmem:[#allocation2 + $0x638] sm:$0xff]
    %v371 = vld [vmem:[#allocation2 + $0x640] sm:$0xff]
    %v372 = vld [vmem:[#allocation2 + $0x648] sm:$0xff]
    %v373 = vld [vmem:[#allocation2 + $0x650] sm:$0xff]
    %v374 = vld [vmem:[#allocation2 + $0x658] sm:$0xff]
    %v375 = vld [vmem:[#allocation2 + $0x660] sm:$0xff]
    %v376 = vld [vmem:[#allocation2 + $0x668] sm:$0xff]
    %v377 = vld [vmem:[#allocation2 + $0x670] sm:$0xff]
    %v378 = vld [vmem:[#allocation2 + $0x678] sm:$0xff]
    %v379 = vld [vmem:[#allocation2 + $0x680] sm:$0xff]
    %v380 = vld [vmem:[#allocation2 + $0x688] sm:$0xff]
    %v381 = vld [vmem:[#allocation2 + $0x690] sm:$0xff]
    %v382 = vld [vmem:[#allocation2 + $0x698] sm:$0xff]
    %v383 = vld [vmem:[#allocation2 + $0x6a0] sm:$0xff]
    %v384 = vld [vmem:[#allocation2 + $0x6a8] sm:$0xff]
    %v385 = vld [vmem:[#allocation2 + $0x6b0] sm:$0xff]
    %v386 = vld [vmem:[#allocation2 + $0x6b8] sm:$0xff]
    %v387 = vld [vmem:[#allocation2 + $0x6c0] sm:$0xff]
    %v388 = vld [vmem:[#allocation2 + $0x6c8] sm:$0xff]
    %v389 = vld [vmem:[#allocation2 + $0x6d0] sm:$0xff]
    %v390 = vld [vmem:[#allocation2 + $0x6d8] sm:$0xff]
    %v391 = vld [vmem:[#allocation2 + $0x6e0] sm:$0xff]
    %v392 = vld [vmem:[#allocation2 + $0x6e8] sm:$0xff]
    %v393 = vld [vmem:[#allocation2 + $0x6f0] sm:$0xff]
    %v394 = vld [vmem:[#allocation2 + $0x6f8] sm:$0xff]
    %v395 = vld [vmem:[#allocation2 + $0x700] sm:$0xff]
    %v396 = vld [vmem:[#allocation2 + $0x708] sm:$0xff]
    %v397 = vld [vmem:[#allocation2 + $0x710] sm:$0xff]
    %v398 = vld [vmem:[#allocation2 + $0x718] sm:$0xff]
    %v399 = vld [vmem:[#allocation2 + $0x720] sm:$0xff]
    %v400 = vld [vmem:[#allocation2 + $0x728] sm:$0xff]
    %v401 = vld [vmem:[#allocation2 + $0x730] sm:$0xff]
    %v402 = vld [vmem:[#allocation2 + $0x738] sm:$0xff]
    %v403 = vld [vmem:[#allocation2 + $0x740] sm:$0xff]
    %v404 = vld [vmem:[#allocation2 + $0x748] sm:$0xff]
    %v405 = vld [vmem:[#allocation2 + $0x750] sm:$0xff]
    %v406 = vld [vmem:[#allocation2 + $0x758] sm:$0xff]
    %v407 = vld [vmem:[#allocation2 + $0x760] sm:$0xff]
    %v408 = vld [vmem:[#allocation2 + $0x768] sm:$0xff]
    %v409 = vld [vmem:[#allocation2 + $0x770] sm:$0xff]
    %v410 = vld [vmem:[#allocation2 + $0x778] sm:$0xff]
    %v411 = vld [vmem:[#allocation2 + $0x780] sm:$0xff]
    %v412 = vld [vmem:[#allocation2 + $0x788] sm:$0xff]
    %v413 = vld [vmem:[#allocation2 + $0x790] sm:$0xff]
    %v414 = vld [vmem:[#allocation2 + $0x798] sm:$0xff]
    %v415 = vld [vmem:[#allocation2 + $0x7a0] sm:$0xff]
    %v416 = vld [vmem:[#allocation2 + $0x7a8] sm:$0xff]
    %v417 = vld [vmem:[#allocation2 + $0x7b0] sm:$0xff]
    %v418 = vld [vmem:[#allocation2 + $0x7b8] sm:$0xff]
    %v419 = vld [vmem:[#allocation2 + $0x7c0] sm:$0xff]
    %v420 = vld [vmem:[#allocation2 + $0x7c8] sm:$0xff]
    %v421 = vld [vmem:[#allocation2 + $0x7d0] sm:$0xff]
    %v422 = vld [vmem:[#allocation2 + $0x7d8] sm:$0xff]
    %v423 = vld [vmem:[#allocation2 + $0x7e0] sm:$0xff]
    %v424 = vld [vmem:[#allocation2 + $0x7e8] sm:$0xff]
    %v425 = vld [vmem:[#allocation2 + $0x7f0] sm:$0xff]
    %v426 = vld [vmem:[#allocation2 + $0x7f8] sm:$0xff]
    %v427 = vld [vmem:[#allocation2 + $0x800] sm:$0xff]
    %v428 = vld [vmem:[#allocation2 + $0x808] sm:$0xff]
    %v429 = vld [vmem:[#allocation2 + $0x810] sm:$0xff]
    %v430 = vld [vmem:[#allocation2 + $0x818] sm:$0xff]
    %v431 = vld [vmem:[#allocation2 + $0x820] sm:$0xff]
    %v432 = vld [vmem:[#allocation2 + $0x828] sm:$0xff]
    %v433 = vld [vmem:[#allocation2 + $0x830] sm:$0xff]
    %v434 = vld [vmem:[#allocation2 + $0x838] sm:$0xff]
    %v435 = vld [vmem:[#allocation2 + $0x840] sm:$0xff]
    %v436 = vld [vmem:[#allocation2 + $0x848] sm:$0xff]
    %v437 = vld [vmem:[#allocation2 + $0x850] sm:$0xff]
    %v438 = vld [vmem:[#allocation2 + $0x858] sm:$0xff]
    %v439 = vld [vmem:[#allocation2 + $0x860] sm:$0xff]
    %v440 = vld [vmem:[#allocation2 + $0x868] sm:$0xff]
    %v441 = vld [vmem:[#allocation2 + $0x870] sm:$0xff]
    %v442 = vld [vmem:[#allocation2 + $0x878] sm:$0xff]
    %v443 = vld [vmem:[#allocation2 + $0x880] sm:$0xff]
    %v444 = vld [vmem:[#allocation2 + $0x888] sm:$0xff]
    %v445 = vld [vmem:[#allocation2 + $0x890] sm:$0xff]
    %v446 = vld [vmem:[#allocation2 + $0x898] sm:$0xff]
    %v447 = vld [vmem:[#allocation2 + $0x8a0] sm:$0xff]
    %v448 = vld [vmem:[#allocation2 + $0x8a8] sm:$0xff]
    %v449 = vld [vmem:[#allocation2 + $0x8b0] sm:$0xff]
    %v450 = vld [vmem:[#allocation2 + $0x8b8] sm:$0xff]
    %v451 = vld [vmem:[#allocation2 + $0x8c0] sm:$0xff]
    %v452 = vld [vmem:[#allocation2 + $0x8c8] sm:$0xff]
    %v453 = vld [vmem:[#allocation2 + $0x8d0] sm:$0xff]
    %v454 = vld [vmem:[#allocation2 + $0x8d8] sm:$0xff]
    %v455 = vld [vmem:[#allocation2 + $0x8e0] sm:$0xff]
    %v456 = vld [vmem:[#allocation2 + $0x8e8] sm:$0xff]
    %v457 = vld [vmem:[#allocation2 + $0x8f0] sm:$0xff]
    %v458 = vld [vmem:[#allocation2 + $0x8f8] sm:$0xff]
    %v459 = vld [vmem:[#allocation2 + $0x900] sm:$0xff]
    %v460 = vld [vmem:[#allocation2 + $0x908] sm:$0xff]
    %v461 = vld [vmem:[#allocation2 + $0x910] sm:$0xff]
    %v462 = vld [vmem:[#allocation2 + $0x918] sm:$0xff]
    %v463 = vld [vmem:[#allocation2 + $0x920] sm:$0xff]
    %v464 = vld [vmem:[#allocation2 + $0x928] sm:$0xff]
    %v465 = vld [vmem:[#allocation2 + $0x930] sm:$0xff]
    %v466 = vld [vmem:[#allocation2 + $0x938] sm:$0xff]
    %v467 = vld [vmem:[#allocation2 + $0x940] sm:$0xff]
    %v468 = vld [vmem:[#allocation2 + $0x948] sm:$0xff]
    %v469 = vld [vmem:[#allocation2 + $0x950] sm:$0xff]
    %v470 = vld [vmem:[#allocation2 + $0x958] sm:$0xff]
    %v471 = vld [vmem:[#allocation2 + $0x960] sm:$0xff]
    %v472 = vld [vmem:[#allocation2 + $0x968] sm:$0xff]
    %v473 = vld [vmem:[#allocation2 + $0x970] sm:$0xff]
    %v474 = vld [vmem:[#allocation2 + $0x978] sm:$0xff]
    %v475 = vld [vmem:[#allocation2 + $0x980] sm:$0xff]
    %v476 = vld [vmem:[#allocation2 + $0x988] sm:$0xff]
    %v477 = vld [vmem:[#allocation2 + $0x990] sm:$0xff]
    %v478 = vld [vmem:[#allocation2 + $0x998] sm:$0xff]
    %v479 = vld [vmem:[#allocation2 + $0x9a0] sm:$0xff]
    %v480 = vld [vmem:[#allocation2 + $0x9a8] sm:$0xff]
    %v481 = vld [vmem:[#allocation2 + $0x9b0] sm:$0xff]
    %v482 = vld [vmem:[#allocation2 + $0x9b8] sm:$0xff]
    %v483 = vld [vmem:[#allocation2 + $0x9c0] sm:$0xff]
    %v484 = vld [vmem:[#allocation2 + $0x9c8] sm:$0xff]
    %v485 = vld [vmem:[#allocation2 + $0x9d0] sm:$0xff]
    %v486 = vld [vmem:[#allocation2 + $0x9d8] sm:$0xff]
    %v487 = vld [vmem:[#allocation2 + $0x9e0] sm:$0xff]
    %v488 = vld [vmem:[#allocation2 + $0x9e8] sm:$0xff]
    %v489 = vld [vmem:[#allocation2 + $0x9f0] sm:$0xff]
    %v490 = vld [vmem:[#allocation2 + $0x9f8] sm:$0xff]
    %v491 = vld [vmem:[#allocation2 + $0xa00] sm:$0xff]
    %v492 = vld [vmem:[#allocation2 + $0xa08] sm:$0xff]
    %v493 = vld [vmem:[#allocation2 + $0xa10] sm:$0xff]
    %v494 = vld [vmem:[#allocation2 + $0xa18] sm:$0xff]
    %v495 = vld [vmem:[#allocation2 + $0xa20] sm:$0xff]
    %v496 = vld [vmem:[#allocation2 + $0xa28] sm:$0xff]
    %v497 = vld [vmem:[#allocation2 + $0xa30] sm:$0xff]
    %v498 = vld [vmem:[#allocation2 + $0xa38] sm:$0xff]
    %v499 = vld [vmem:[#allocation2 + $0xa40] sm:$0xff]
    %v500 = vld [vmem:[#allocation2 + $0xa48] sm:$0xff]
    %v501 = vld [vmem:[#allocation2 + $0xa50] sm:$0xff]
    %v502 = vld [vmem:[#allocation2 + $0xa58] sm:$0xff]
    %v503 = vld [vmem:[#allocation2 + $0xa60] sm:$0xff]
    %v504 = vld [vmem:[#allocation2 + $0xa68] sm:$0xff]
    %v505 = vld [vmem:[#allocation2 + $0xa70] sm:$0xff]
    %v506 = vld [vmem:[#allocation2 + $0xa78] sm:$0xff]
    %v507 = vld [vmem:[#allocation2 + $0xa80] sm:$0xff]
    %v508 = vld [vmem:[#allocation2 + $0xa88] sm:$0xff]
    %v509 = vld [vmem:[#allocation2 + $0xa90] sm:$0xff]
    %v510 = vld [vmem:[#allocation2 + $0xa98] sm:$0xff]
    %v511 = vld [vmem:[#allocation2 + $0xaa0] sm:$0xff]
    %v512 = vld [vmem:[#allocation2 + $0xaa8] sm:$0xff]
    %v513 = vld [vmem:[#allocation2 + $0xab0] sm:$0xff]
    %v514 = vld [vmem:[#allocation2 + $0xab8] sm:$0xff]
    %v515 = vld [vmem:[#allocation2 + $0xac0] sm:$0xff]
    %v516 = vld [vmem:[#allocation2 + $0xac8] sm:$0xff]
    %v517 = vld [vmem:[#allocation2 + $0xad0] sm:$0xff]
    %v518 = vld [vmem:[#allocation2 + $0xad8] sm:$0xff]
    %v519 = vld [vmem:[#allocation2 + $0xae0] sm:$0xff]
    %v520 = vld [vmem:[#allocation2 + $0xae8] sm:$0xff]
    %v521 = vld [vmem:[#allocation2 + $0xaf0] sm:$0xff]
    %v522 = vld [vmem:[#allocation2 + $0xaf8] sm:$0xff]
    %v523 = vld [vmem:[#allocation2 + $0xb00] sm:$0xff]
    %v524 = vld [vmem:[#allocation2 + $0xb08] sm:$0xff]
    %v525 = vld [vmem:[#allocation2 + $0xb10] sm:$0xff]
    %v526 = vld [vmem:[#allocation2 + $0xb18] sm:$0xff]
    %v527 = vld [vmem:[#allocation2 + $0xb20] sm:$0xff]
    %v528 = vld [vmem:[#allocation2 + $0xb28] sm:$0xff]
    %v529 = vld [vmem:[#allocation2 + $0xb30] sm:$0xff]
    %v530 = vld [vmem:[#allocation2 + $0xb38] sm:$0xff]
    %v531 = vld [vmem:[#allocation2 + $0xb40] sm:$0xff]
    %v532 = vld [vmem:[#allocation2 + $0xb48] sm:$0xff]
    %v533 = vld [vmem:[#allocation2 + $0xb50] sm:$0xff]
    %v534 = vld [vmem:[#allocation2 + $0xb58] sm:$0xff]
    %v535 = vld [vmem:[#allocation2 + $0xb60] sm:$0xff]
    %v536 = vld [vmem:[#allocation2 + $0xb68] sm:$0xff]
    %v537 = vld [vmem:[#allocation2 + $0xb70] sm:$0xff]
    %v538 = vld [vmem:[#allocation2 + $0xb78] sm:$0xff]
    %v539 = vld [vmem:[#allocation2 + $0xb80] sm:$0xff]
    %v540 = vld [vmem:[#allocation2 + $0xb88] sm:$0xff]
    %v541 = vld [vmem:[#allocation2 + $0xb90] sm:$0xff]
    %v542 = vld [vmem:[#allocation2 + $0xb98] sm:$0xff]
    %v543 = vld [vmem:[#allocation2 + $0xba0] sm:$0xff]
    %v544 = vld [vmem:[#allocation2 + $0xba8] sm:$0xff]
    %v545 = vld [vmem:[#allocation2 + $0xbb0] sm:$0xff]
    %v546 = vld [vmem:[#allocation2 + $0xbb8] sm:$0xff]
    %v547 = vld [vmem:[#allocation2 + $0xbc0] sm:$0xff]
    %v548 = vld [vmem:[#allocation2 + $0xbc8] sm:$0xff]
    %v549 = vld [vmem:[#allocation2 + $0xbd0] sm:$0xff]
    %v550 = vld [vmem:[#allocation2 + $0xbd8] sm:$0xff]
    %v551 = vld [vmem:[#allocation2 + $0xbe0] sm:$0xff]
    %v552 = vld [vmem:[#allocation2 + $0xbe8] sm:$0xff]
    %v553 = vld [vmem:[#allocation2 + $0xbf0] sm:$0xff]
    %v554 = vld [vmem:[#allocation2 + $0xbf8] sm:$0xff]
    %v555 = vld [vmem:[#allocation2 + $0xc00] sm:$0xff]
    %v556 = vld [vmem:[#allocation2 + $0xc08] sm:$0xff]
    %v557 = vld [vmem:[#allocation2 + $0xc10] sm:$0xff]
    %v558 = vld [vmem:[#allocation2 + $0xc18] sm:$0xff]
    %v559 = vld [vmem:[#allocation2 + $0xc20] sm:$0xff]
    %v560 = vld [vmem:[#allocation2 + $0xc28] sm:$0xff]
    %v561 = vld [vmem:[#allocation2 + $0xc30] sm:$0xff]
    %v562 = vld [vmem:[#allocation2 + $0xc38] sm:$0xff]
    %v563 = vld [vmem:[#allocation2 + $0xc40] sm:$0xff]
    %v564 = vld [vmem:[#allocation2 + $0xc48] sm:$0xff]
    %v565 = vld [vmem:[#allocation2 + $0xc50] sm:$0xff]
    %v566 = vld [vmem:[#allocation2 + $0xc58] sm:$0xff]
    %v567 = vld [vmem:[#allocation2 + $0xc60] sm:$0xff]
    %v568 = vld [vmem:[#allocation2 + $0xc68] sm:$0xff]
    %v569 = vld [vmem:[#allocation2 + $0xc70] sm:$0xff]
    %v570 = vld [vmem:[#allocation2 + $0xc78] sm:$0xff]
    %v571 = vld [vmem:[#allocation2 + $0xc80] sm:$0xff]
    %v572 = vld [vmem:[#allocation2 + $0xc88] sm:$0xff]
    %v573 = vld [vmem:[#allocation2 + $0xc90] sm:$0xff]
    %v574 = vld [vmem:[#allocation2 + $0xc98] sm:$0xff]
    %v575 = vld [vmem:[#allocation2 + $0xca0] sm:$0xff]
    %v576 = vld [vmem:[#allocation2 + $0xca8] sm:$0xff]
    %v577 = vld [vmem:[#allocation2 + $0xcb0] sm:$0xff]
    %v578 = vld [vmem:[#allocation2 + $0xcb8] sm:$0xff]
    %v579 = vld [vmem:[#allocation2 + $0xcc0] sm:$0xff]
    %v580 = vld [vmem:[#allocation2 + $0xcc8] sm:$0xff]
    %v581 = vld [vmem:[#allocation2 + $0xcd0] sm:$0xff]
    %v582 = vld [vmem:[#allocation2 + $0xcd8] sm:$0xff]
    %v583 = vld [vmem:[#allocation2 + $0xce0] sm:$0xff]
    %v584 = vld [vmem:[#allocation2 + $0xce8] sm:$0xff]
    %v585 = vld [vmem:[#allocation2 + $0xcf0] sm:$0xff]
    %v586 = vld [vmem:[#allocation2 + $0xcf8] sm:$0xff]
    %v587 = vld [vmem:[#allocation2 + $0xd00] sm:$0xff]
    %v588 = vld [vmem:[#allocation2 + $0xd08] sm:$0xff]
    %v589 = vld [vmem:[#allocation2 + $0xd10] sm:$0xff]
    %v590 = vld [vmem:[#allocation2 + $0xd18] sm:$0xff]
    %v591 = vld [vmem:[#allocation2 + $0xd20] sm:$0xff]
    %v592 = vld [vmem:[#allocation2 + $0xd28] sm:$0xff]
    %v593 = vld [vmem:[#allocation2 + $0xd30] sm:$0xff]
    %v594 = vld [vmem:[#allocation2 + $0xd38] sm:$0xff]
    %v595 = vld [vmem:[#allocation2 + $0xd40] sm:$0xff]
    %v596 = vld [vmem:[#allocation2 + $0xd48] sm:$0xff]
    %v597 = vld [vmem:[#allocation2 + $0xd50] sm:$0xff]
    %v598 = vld [vmem:[#allocation2 + $0xd58] sm:$0xff]
    %v599 = vld [vmem:[#allocation2 + $0xd60] sm:$0xff]
    %v600 = vld [vmem:[#allocation2 + $0xd68] sm:$0xff]
    %v601 = vld [vmem:[#allocation2 + $0xd70] sm:$0xff]
    %v602 = vld [vmem:[#allocation2 + $0xd78] sm:$0xff]
    %v603 = vld [vmem:[#allocation2 + $0xd80] sm:$0xff]
    %v604 = vld [vmem:[#allocation2 + $0xd88] sm:$0xff]
    %v605 = vld [vmem:[#allocation2 + $0xd90] sm:$0xff]
    %v606 = vld [vmem:[#allocation2 + $0xd98] sm:$0xff]
    %v607 = vld [vmem:[#allocation2 + $0xda0] sm:$0xff]
    %v608 = vld [vmem:[#allocation2 + $0xda8] sm:$0xff]
    %v609 = vld [vmem:[#allocation2 + $0xdb0] sm:$0xff]
    %v610 = vld [vmem:[#allocation2 + $0xdb8] sm:$0xff]
    %v611 = vld [vmem:[#allocation2 + $0xdc0] sm:$0xff]
    %v612 = vld [vmem:[#allocation2 + $0xdc8] sm:$0xff]
    %v613 = vld [vmem:[#allocation2 + $0xdd0] sm:$0xff]
    %v614 = vld [vmem:[#allocation2 + $0xdd8] sm:$0xff]
    %v615 = vld [vmem:[#allocation2 + $0xde0] sm:$0xff]
    %v616 = vld [vmem:[#allocation2 + $0xde8] sm:$0xff]
    %v617 = vld [vmem:[#allocation2 + $0xdf0] sm:$0xff]
    %v618 = vld [vmem:[#allocation2 + $0xdf8] sm:$0xff]
    %v619 = vld [vmem:[#allocation2 + $0xe00] sm:$0xff]
    %v620 = vld [vmem:[#allocation2 + $0xe08] sm:$0xff]
    %v621 = vld [vmem:[#allocation2 + $0xe10] sm:$0xff]
    %v622 = vld [vmem:[#allocation2 + $0xe18] sm:$0xff]
    %v623 = vld [vmem:[#allocation2 + $0xe20] sm:$0xff]
    %v624 = vld [vmem:[#allocation2 + $0xe28] sm:$0xff]
    %v625 = vld [vmem:[#allocation2 + $0xe30] sm:$0xff]
    %v626 = vld [vmem:[#allocation2 + $0xe38] sm:$0xff]
    %v627 = vld [vmem:[#allocation2 + $0xe40] sm:$0xff]
    %v628 = vld [vmem:[#allocation2 + $0xe48] sm:$0xff]
    %v629 = vld [vmem:[#allocation2 + $0xe50] sm:$0xff]
    %v630 = vld [vmem:[#allocation2 + $0xe58] sm:$0xff]
    %v631 = vld [vmem:[#allocation2 + $0xe60] sm:$0xff]
    %v632 = vld [vmem:[#allocation2 + $0xe68] sm:$0xff]
    %v633 = vld [vmem:[#allocation2 + $0xe70] sm:$0xff]
    %v634 = vld [vmem:[#allocation2 + $0xe78] sm:$0xff]
    %v635 = vld [vmem:[#allocation2 + $0xe80] sm:$0xff]
    %v636 = vld [vmem:[#allocation2 + $0xe88] sm:$0xff]
    %v637 = vld [vmem:[#allocation2 + $0xe90] sm:$0xff]
    %v638 = vld [vmem:[#allocation2 + $0xe98] sm:$0xff]
    %v639 = vld [vmem:[#allocation2 + $0xea0] sm:$0xff]
    %v640 = vld [vmem:[#allocation2 + $0xea8] sm:$0xff]
    %v641 = vld [vmem:[#allocation2 + $0xeb0] sm:$0xff]
    %v642 = vld [vmem:[#allocation2 + $0xeb8] sm:$0xff]
    %v643 = vld [vmem:[#allocation2 + $0xec0] sm:$0xff]
    %v644 = vld [vmem:[#allocation2 + $0xec8] sm:$0xff]
    %v645 = vld [vmem:[#allocation2 + $0xed0] sm:$0xff]
    %v646 = vld [vmem:[#allocation2 + $0xed8] sm:$0xff]
    %v647 = vld [vmem:[#allocation2 + $0xee0] sm:$0xff]
    %v648 = vld [vmem:[#allocation2 + $0xee8] sm:$0xff]
    %v649 = vld [vmem:[#allocation2 + $0xef0] sm:$0xff]
    %v650 = vld [vmem:[#allocation2 + $0xef8] sm:$0xff]
    %v651 = vld [vmem:[#allocation2 + $0xf00] sm:$0xff]
    %v652 = vld [vmem:[#allocation2 + $0xf08] sm:$0xff]
    %v653 = vld [vmem:[#allocation2 + $0xf10] sm:$0xff]
    %v654 = vld [vmem:[#allocation2 + $0xf18] sm:$0xff]
    %v655 = vld [vmem:[#allocation2 + $0xf20] sm:$0xff]
    %v656 = vld [vmem:[#allocation2 + $0xf28] sm:$0xff]
    %v657 = vld [vmem:[#allocation2 + $0xf30] sm:$0xff]
    %v658 = vld [vmem:[#allocation2 + $0xf38] sm:$0xff]
    %v659 = vld [vmem:[#allocation2 + $0xf40] sm:$0xff]
    %v660 = vld [vmem:[#allocation2 + $0xf48] sm:$0xff]
    %v661 = vld [vmem:[#allocation2 + $0xf50] sm:$0xff]
    %v662 = vld [vmem:[#allocation2 + $0xf58] sm:$0xff]
    %v663 = vld [vmem:[#allocation2 + $0xf60] sm:$0xff]
    %v664 = vld [vmem:[#allocation2 + $0xf68] sm:$0xff]
    %v665 = vld [vmem:[#allocation2 + $0xf70] sm:$0xff]
    %v666 = vld [vmem:[#allocation2 + $0xf78] sm:$0xff]
    %v667 = vld [vmem:[#allocation2 + $0xf80] sm:$0xff]
    %v668 = vld [vmem:[#allocation2 + $0xf88] sm:$0xff]
    %v669 = vld [vmem:[#allocation2 + $0xf90] sm:$0xff]
    %v670 = vld [vmem:[#allocation2 + $0xf98] sm:$0xff]
    %v671 = vld [vmem:[#allocation2 + $0xfa0] sm:$0xff]
    %v672 = vld [vmem:[#allocation2 + $0xfa8] sm:$0xff]
    %v673 = vld [vmem:[#allocation2 + $0xfb0] sm:$0xff]
    %v674 = vld [vmem:[#allocation2 + $0xfb8] sm:$0xff]
    %v675 = vld [vmem:[#allocation2 + $0xfc0] sm:$0xff]
    %v676 = vld [vmem:[#allocation2 + $0xfc8] sm:$0xff]
    %v677 = vld [vmem:[#allocation2 + $0xfd0] sm:$0xff]
    %v678 = vld [vmem:[#allocation2 + $0xfd8] sm:$0xff]
    %v679 = vld [vmem:[#allocation2 + $0xfe0] sm:$0xff]
    %v680 = vld [vmem:[#allocation2 + $0xfe8] sm:$0xff]
    %v681 = vld [vmem:[#allocation2 + $0xff0] sm:$0xff]
    %v682 = vld [vmem:[#allocation2 + $0xff8] sm:$0xff]
    %v683 = vld [vmem:[#allocation2 + $0x1000] sm:$0xff]
    %v684 = vld [vmem:[#allocation2 + $0x1008] sm:$0xff]
    %v685 = vld [vmem:[#allocation2 + $0x1010] sm:$0xff]
    %v686 = vld [vmem:[#allocation2 + $0x1018] sm:$0xff]
    %v687 = vld [vmem:[#allocation2 + $0x1020] sm:$0xff]
    %v688 = vld [vmem:[#allocation2 + $0x1028] sm:$0xff]
    %v689 = vld [vmem:[#allocation2 + $0x1030] sm:$0xff]
    %v690 = vld [vmem:[#allocation2 + $0x1038] sm:$0xff]
    %v691 = vld [vmem:[#allocation2 + $0x1040] sm:$0xff]
    %v692 = vld [vmem:[#allocation2 + $0x1048] sm:$0xff]
    %v693 = vld [vmem:[#allocation2 + $0x1050] sm:$0xff]
    %v694 = vld [vmem:[#allocation2 + $0x1058] sm:$0xff]
    %v695 = vld [vmem:[#allocation2 + $0x1060] sm:$0xff]
    %v696 = vld [vmem:[#allocation2 + $0x1068] sm:$0xff]
    %v697 = vld [vmem:[#allocation2 + $0x1070] sm:$0xff]
    %v698 = vld [vmem:[#allocation2 + $0x1078] sm:$0xff]
    %v699 = vld [vmem:[#allocation2 + $0x1080] sm:$0xff]
    %v700 = vld [vmem:[#allocation2 + $0x1088] sm:$0xff]
    %v701 = vld [vmem:[#allocation2 + $0x1090] sm:$0xff]
    %v702 = vld [vmem:[#allocation2 + $0x1098] sm:$0xff]
    %v703 = vld [vmem:[#allocation2 + $0x10a0] sm:$0xff]
    %v704 = vld [vmem:[#allocation2 + $0x10a8] sm:$0xff]
    %v705 = vld [vmem:[#allocation2 + $0x10b0] sm:$0xff]
    %v706 = vld [vmem:[#allocation2 + $0x10b8] sm:$0xff]
    %v707 = vld [vmem:[#allocation2 + $0x10c0] sm:$0xff]
    %v708 = vld [vmem:[#allocation2 + $0x10c8] sm:$0xff]
    %v709 = vld [vmem:[#allocation2 + $0x10d0] sm:$0xff]
    %v710 = vld [vmem:[#allocation2 + $0x10d8] sm:$0xff]
    %v711 = vld [vmem:[#allocation2 + $0x10e0] sm:$0xff]
    %v712 = vld [vmem:[#allocation2 + $0x10e8] sm:$0xff]
    %v713 = vld [vmem:[#allocation2 + $0x10f0] sm:$0xff]
    %v714 = vld [vmem:[#allocation2 + $0x10f8] sm:$0xff]
    %v715 = vld [vmem:[#allocation2 + $0x1100] sm:$0xff]
    %v716 = vld [vmem:[#allocation2 + $0x1108] sm:$0xff]
    %v717 = vld [vmem:[#allocation2 + $0x1110] sm:$0xff]
    %v718 = vld [vmem:[#allocation2 + $0x1118] sm:$0xff]
    %v719 = vld [vmem:[#allocation2 + $0x1120] sm:$0xff]
    %v720 = vld [vmem:[#allocation2 + $0x1128] sm:$0xff]
    %v721 = vld [vmem:[#allocation2 + $0x1130] sm:$0xff]
    %v722 = vld [vmem:[#allocation2 + $0x1138] sm:$0xff]
    %v723 = vld [vmem:[#allocation2 + $0x1140] sm:$0xff]
    %v724 = vld [vmem:[#allocation2 + $0x1148] sm:$0xff]
    %v725 = vld [vmem:[#allocation2 + $0x1150] sm:$0xff]
    %v726 = vld [vmem:[#allocation2 + $0x1158] sm:$0xff]
    %v727 = vld [vmem:[#allocation2 + $0x1160] sm:$0xff]
    %v728 = vld [vmem:[#allocation2 + $0x1168] sm:$0xff]
    %v729 = vld [vmem:[#allocation2 + $0x1170] sm:$0xff]
    %v730 = vld [vmem:[#allocation2 + $0x1178] sm:$0xff]
    %v731 = vld [vmem:[#allocation2 + $0x1180] sm:$0xff]
    %v732 = vld [vmem:[#allocation2 + $0x1188] sm:$0xff]
    %v733 = vld [vmem:[#allocation2 + $0x1190] sm:$0xff]
    %v734 = vld [vmem:[#allocation2 + $0x1198] sm:$0xff]
    %v735 = vld [vmem:[#allocation2 + $0x11a0] sm:$0xff]
    %v736 = vld [vmem:[#allocation2 + $0x11a8] sm:$0xff]
    %v737 = vld [vmem:[#allocation2 + $0x11b0] sm:$0xff]
    %v738 = vld [vmem:[#allocation2 + $0x11b8] sm:$0xff]
    %v739 = vld [vmem:[#allocation2 + $0x11c0] sm:$0xff]
    %v740 = vld [vmem:[#allocation2 + $0x11c8] sm:$0xff]
    %v741 = vld [vmem:[#allocation2 + $0x11d0] sm:$0xff]
    %v742 = vld [vmem:[#allocation2 + $0x11d8] sm:$0xff]
    %v743 = vld [vmem:[#allocation2 + $0x11e0] sm:$0xff]
    %v744 = vld [vmem:[#allocation2 + $0x11e8] sm:$0xff]
    %v745 = vld [vmem:[#allocation2 + $0x11f0] sm:$0xff]
    %v746 = vld [vmem:[#allocation2 + $0x11f8] sm:$0xff]
    %v747 = vld [vmem:[#allocation2 + $0x1200] sm:$0xff]
    %v748 = vld [vmem:[#allocation2 + $0x1208] sm:$0xff]
    %v749 = vld [vmem:[#allocation2 + $0x1210] sm:$0xff]
    %v750 = vld [vmem:[#allocation2 + $0x1218] sm:$0xff]
    %v751 = vld [vmem:[#allocation2 + $0x1220] sm:$0xff]
    %v752 = vld [vmem:[#allocation2 + $0x1228] sm:$0xff]
    %v753 = vld [vmem:[#allocation2 + $0x1230] sm:$0xff]
    %v754 = vld [vmem:[#allocation2 + $0x1238] sm:$0xff]
    %v755 = vld [vmem:[#allocation2 + $0x1240] sm:$0xff]
    %v756 = vld [vmem:[#allocation2 + $0x1248] sm:$0xff]
    %v757 = vld [vmem:[#allocation2 + $0x1250] sm:$0xff]
    %v758 = vld [vmem:[#allocation2 + $0x1258] sm:$0xff]
    %v759 = vld [vmem:[#allocation2 + $0x1260] sm:$0xff]
    %v760 = vld [vmem:[#allocation2 + $0x1268] sm:$0xff]
    %v761 = vld [vmem:[#allocation2 + $0x1270] sm:$0xff]
    %v762 = vld [vmem:[#allocation2 + $0x1278] sm:$0xff]
    %v763 = vld [vmem:[#allocation2 + $0x1280] sm:$0xff]
    %v764 = vld [vmem:[#allocation2 + $0x1288] sm:$0xff]
    %v765 = vld [vmem:[#allocation2 + $0x1290] sm:$0xff]
    %v766 = vld [vmem:[#allocation2 + $0x1298] sm:$0xff]
    %v767 = vld [vmem:[#allocation2 + $0x12a0] sm:$0xff]
    %v768 = vld [vmem:[#allocation2 + $0x12a8] sm:$0xff]
    %v769 = vld [vmem:[#allocation2 + $0x12b0] sm:$0xff]
    %v770 = vld [vmem:[#allocation2 + $0x12b8] sm:$0xff]
    %v771 = vld [vmem:[#allocation2 + $0x12c0] sm:$0xff]
    %v772 = vld [vmem:[#allocation2 + $0x12c8] sm:$0xff]
    %v773 = vld [vmem:[#allocation2 + $0x12d0] sm:$0xff]
    %v774 = vld [vmem:[#allocation2 + $0x12d8] sm:$0xff]
    %v775 = vld [vmem:[#allocation2 + $0x12e0] sm:$0xff]
    %v776 = vld [vmem:[#allocation2 + $0x12e8] sm:$0xff]
    %v777 = vld [vmem:[#allocation2 + $0x12f0] sm:$0xff]
    %v778 = vld [vmem:[#allocation2 + $0x12f8] sm:$0xff]
    %v779 = vld [vmem:[#allocation2 + $0x1300] sm:$0xff]
    %v780 = vld [vmem:[#allocation2 + $0x1308] sm:$0xff]
    %v781 = vld [vmem:[#allocation2 + $0x1310] sm:$0xff]
    %v782 = vld [vmem:[#allocation2 + $0x1318] sm:$0xff]
    %v783 = vld [vmem:[#allocation2 + $0x1320] sm:$0xff]
    %v784 = vld [vmem:[#allocation2 + $0x1328] sm:$0xff]
    %v785 = vld [vmem:[#allocation2 + $0x1330] sm:$0xff]
    %v786 = vld [vmem:[#allocation2 + $0x1338] sm:$0xff]
    %v787 = vld [vmem:[#allocation2 + $0x1340] sm:$0xff]
    %v788 = vld [vmem:[#allocation2 + $0x1348] sm:$0xff]
    %v789 = vld [vmem:[#allocation2 + $0x1350] sm:$0xff]
    %v790 = vld [vmem:[#allocation2 + $0x1358] sm:$0xff]
    %v791 = vld [vmem:[#allocation2 + $0x1360] sm:$0xff]
    %v792 = vld [vmem:[#allocation2 + $0x1368] sm:$0xff]
    %v793 = vld [vmem:[#allocation2 + $0x1370] sm:$0xff]
    %v794 = vld [vmem:[#allocation2 + $0x1378] sm:$0xff]
    %v795 = vld [vmem:[#allocation2 + $0x1380] sm:$0xff]
    %v796 = vld [vmem:[#allocation2 + $0x1388] sm:$0xff]
    %v797 = vld [vmem:[#allocation2 + $0x1390] sm:$0xff]
    %v798 = vld [vmem:[#allocation2 + $0x1398] sm:$0xff]
    %v799 = vld [vmem:[#allocation2 + $0x13a0] sm:$0xff]
    %v800 = vld [vmem:[#allocation2 + $0x13a8] sm:$0xff]
    %v801 = vld [vmem:[#allocation2 + $0x13b0] sm:$0xff]
    %v802 = vld [vmem:[#allocation2 + $0x13b8] sm:$0xff]
    %v803 = vld [vmem:[#allocation2 + $0x13c0] sm:$0xff]
    %v804 = vld [vmem:[#allocation2 + $0x13c8] sm:$0xff]
    %v805 = vld [vmem:[#allocation2 + $0x13d0] sm:$0xff]
    %v806 = vld [vmem:[#allocation2 + $0x13d8] sm:$0xff]
    %v807 = vld [vmem:[#allocation2 + $0x13e0] sm:$0xff]
    %v808 = vld [vmem:[#allocation2 + $0x13e8] sm:$0xff]
    %v809 = vld [vmem:[#allocation2 + $0x13f0] sm:$0xff]
    %v810 = vld [vmem:[#allocation2 + $0x13f8] sm:$0xff]
    %v939 = vunpack.c.l.b16 %v43
    %v940 = vunpack.c.h.b16 %v43
    %v941 = vunpack.c.l.b16 %v44
    %v942 = vunpack.c.h.b16 %v44
    %v943 = vunpack.c.l.b16 %v45
    %v944 = vunpack.c.h.b16 %v45
    %v945 = vunpack.c.l.b16 %v46
    %v946 = vunpack.c.h.b16 %v46
    %v947 = vunpack.c.l.b16 %v47
    %v948 = vunpack.c.h.b16 %v47
    %v949 = vunpack.c.l.b16 %v48
    %v950 = vunpack.c.h.b16 %v48
    %v951 = vunpack.c.l.b16 %v49
    %v952 = vunpack.c.h.b16 %v49
    %v953 = vunpack.c.l.b16 %v50
    %v954 = vunpack.c.h.b16 %v50
    %v955 = vunpack.c.l.b16 %v51
    %v956 = vunpack.c.h.b16 %v51
    %v957 = vunpack.c.l.b16 %v52
    %v958 = vunpack.c.h.b16 %v52
    %v959 = vunpack.c.l.b16 %v53
    %v960 = vunpack.c.h.b16 %v53
    %v961 = vunpack.c.l.b16 %v54
    %v962 = vunpack.c.h.b16 %v54
    %v963 = vunpack.c.l.b16 %v55
    %v964 = vunpack.c.h.b16 %v55
    %v965 = vunpack.c.l.b16 %v56
    %v966 = vunpack.c.h.b16 %v56
    %v967 = vunpack.c.l.b16 %v57
    %v968 = vunpack.c.h.b16 %v57
    %v969 = vunpack.c.l.b16 %v58
    %v970 = vunpack.c.h.b16 %v58
    %v971 = vunpack.c.l.b16 %v59
    %v972 = vunpack.c.h.b16 %v59
    %v973 = vunpack.c.l.b16 %v60
    %v974 = vunpack.c.h.b16 %v60
    %v975 = vunpack.c.l.b16 %v61
    %v976 = vunpack.c.h.b16 %v61
    %v977 = vunpack.c.l.b16 %v62
    %v978 = vunpack.c.h.b16 %v62
    %v979 = vunpack.c.l.b16 %v63
    %v980 = vunpack.c.h.b16 %v63
    %v981 = vunpack.c.l.b16 %v64
    %v982 = vunpack.c.h.b16 %v64
    %v983 = vunpack.c.l.b16 %v65
    %v984 = vunpack.c.h.b16 %v65
    %v985 = vunpack.c.l.b16 %v66
    %v986 = vunpack.c.h.b16 %v66
    %v987 = vunpack.c.l.b16 %v67
    %v988 = vunpack.c.h.b16 %v67
    %v989 = vunpack.c.l.b16 %v68
    %v990 = vunpack.c.h.b16 %v68
    %v991 = vunpack.c.l.b16 %v69
    %v992 = vunpack.c.h.b16 %v69
    %v993 = vunpack.c.l.b16 %v70
    %v994 = vunpack.c.h.b16 %v70
    %v995 = vunpack.c.l.b16 %v71
    %v996 = vunpack.c.h.b16 %v71
    %v997 = vunpack.c.l.b16 %v72
    %v998 = vunpack.c.h.b16 %v72
    %v999 = vunpack.c.l.b16 %v73
    %v1000 = vunpack.c.h.b16 %v73
    %v1001 = vunpack.c.l.b16 %v74
    %v1002 = vunpack.c.h.b16 %v74
    %v1003 = vunpack.c.l.b16 %v75
    %v1004 = vunpack.c.h.b16 %v75
    %v1005 = vunpack.c.l.b16 %v76
    %v1006 = vunpack.c.h.b16 %v76
    %v1007 = vunpack.c.l.b16 %v77
    %v1008 = vunpack.c.h.b16 %v77
    %v1009 = vunpack.c.l.b16 %v78
    %v1010 = vunpack.c.h.b16 %v78
    %v1011 = vunpack.c.l.b16 %v79
    %v1012 = vunpack.c.h.b16 %v79
    %v1013 = vunpack.c.l.b16 %v80
    %v1014 = vunpack.c.h.b16 %v80
    %v1015 = vunpack.c.l.b16 %v81
    %v1016 = vunpack.c.h.b16 %v81
    %v1017 = vunpack.c.l.b16 %v82
    %v1018 = vunpack.c.h.b16 %v82
    %v1019 = vunpack.c.l.b16 %v83
    %v1020 = vunpack.c.h.b16 %v83
    %v1021 = vunpack.c.l.b16 %v84
    %v1022 = vunpack.c.h.b16 %v84
    %v1023 = vunpack.c.l.b16 %v85
    %v1024 = vunpack.c.h.b16 %v85
    %v1025 = vunpack.c.l.b16 %v86
    %v1026 = vunpack.c.h.b16 %v86
    %v1027 = vunpack.c.l.b16 %v87
    %v1028 = vunpack.c.h.b16 %v87
    %v1029 = vunpack.c.l.b16 %v88
    %v1030 = vunpack.c.h.b16 %v88
    %v1031 = vunpack.c.l.b16 %v89
    %v1032 = vunpack.c.h.b16 %v89
    %v1033 = vunpack.c.l.b16 %v90
    %v1034 = vunpack.c.h.b16 %v90
    %v1035 = vunpack.c.l.b16 %v91
    %v1036 = vunpack.c.h.b16 %v91
    %v1037 = vunpack.c.l.b16 %v92
    %v1038 = vunpack.c.h.b16 %v92
    %v1039 = vunpack.c.l.b16 %v93
    %v1040 = vunpack.c.h.b16 %v93
    %v1041 = vunpack.c.l.b16 %v94
    %v1042 = vunpack.c.h.b16 %v94
    %v1043 = vunpack.c.l.b16 %v95
    %v1044 = vunpack.c.h.b16 %v95
    %v1045 = vunpack.c.l.b16 %v96
    %v1046 = vunpack.c.h.b16 %v96
    %v1047 = vunpack.c.l.b16 %v97
    %v1048 = vunpack.c.h.b16 %v97
    %v1049 = vunpack.c.l.b16 %v98
    %v1050 = vunpack.c.h.b16 %v98
    %v1051 = vunpack.c.l.b16 %v99
    %v1052 = vunpack.c.h.b16 %v99
    %v1053 = vunpack.c.l.b16 %v100
    %v1054 = vunpack.c.h.b16 %v100
    %v1055 = vunpack.c.l.b16 %v101
    %v1056 = vunpack.c.h.b16 %v101
    %v1057 = vunpack.c.l.b16 %v102
    %v1058 = vunpack.c.h.b16 %v102
    %v1059 = vunpack.c.l.b16 %v103
    %v1060 = vunpack.c.h.b16 %v103
    %v1061 = vunpack.c.l.b16 %v104
    %v1062 = vunpack.c.h.b16 %v104
    %v1063 = vunpack.c.l.b16 %v105
    %v1064 = vunpack.c.h.b16 %v105
    %v1065 = vunpack.c.l.b16 %v106
    %v1066 = vunpack.c.h.b16 %v106
    %v1067 = vunpack.c.l.b16 %v107
    %v1068 = vunpack.c.h.b16 %v107
    %v1069 = vunpack.c.l.b16 %v108
    %v1070 = vunpack.c.h.b16 %v108
    %v1071 = vunpack.c.l.b16 %v109
    %v1072 = vunpack.c.h.b16 %v109
    %v1073 = vunpack.c.l.b16 %v110
    %v1074 = vunpack.c.h.b16 %v110
    %v1075 = vunpack.c.l.b16 %v111
    %v1076 = vunpack.c.h.b16 %v111
    %v1077 = vunpack.c.l.b16 %v112
    %v1078 = vunpack.c.h.b16 %v112
    %v1079 = vunpack.c.l.b16 %v113
    %v1080 = vunpack.c.h.b16 %v113
    %v1081 = vunpack.c.l.b16 %v114
    %v1082 = vunpack.c.h.b16 %v114
    %v1083 = vunpack.c.l.b16 %v115
    %v1084 = vunpack.c.h.b16 %v115
    %v1085 = vunpack.c.l.b16 %v116
    %v1086 = vunpack.c.h.b16 %v116
    %v1087 = vunpack.c.l.b16 %v117
    %v1088 = vunpack.c.h.b16 %v117
    %v1089 = vunpack.c.l.b16 %v118
    %v1090 = vunpack.c.h.b16 %v118
    %v1091 = vunpack.c.l.b16 %v119
    %v1092 = vunpack.c.h.b16 %v119
    %v1093 = vunpack.c.l.b16 %v120
    %v1094 = vunpack.c.h.b16 %v120
    %v1095 = vunpack.c.l.b16 %v121
    %v1096 = vunpack.c.h.b16 %v121
    %v1097 = vunpack.c.l.b16 %v122
    %v1098 = vunpack.c.h.b16 %v122
    %v1099 = vunpack.c.l.b16 %v123
    %v1100 = vunpack.c.h.b16 %v123
    %v1101 = vunpack.c.l.b16 %v124
    %v1102 = vunpack.c.h.b16 %v124
    %v1103 = vunpack.c.l.b16 %v125
    %v1104 = vunpack.c.h.b16 %v125
    %v1105 = vunpack.c.l.b16 %v126
    %v1106 = vunpack.c.h.b16 %v126
    %v1107 = vunpack.c.l.b16 %v127
    %v1108 = vunpack.c.h.b16 %v127
    %v1109 = vunpack.c.l.b16 %v128
    %v1110 = vunpack.c.h.b16 %v128
    %v1111 = vunpack.c.l.b16 %v129
    %v1112 = vunpack.c.h.b16 %v129
    %v1113 = vunpack.c.l.b16 %v130
    %v1114 = vunpack.c.h.b16 %v130
    %v1115 = vunpack.c.l.b16 %v131
    %v1116 = vunpack.c.h.b16 %v131
    %v1117 = vunpack.c.l.b16 %v132
    %v1118 = vunpack.c.h.b16 %v132
    %v1119 = vunpack.c.l.b16 %v133
    %v1120 = vunpack.c.h.b16 %v133
    %v1121 = vunpack.c.l.b16 %v134
    %v1122 = vunpack.c.h.b16 %v134
    %v1123 = vunpack.c.l.b16 %v135
    %v1124 = vunpack.c.h.b16 %v135
    %v1125 = vunpack.c.l.b16 %v136
    %v1126 = vunpack.c.h.b16 %v136
    %v1127 = vunpack.c.l.b16 %v137
    %v1128 = vunpack.c.h.b16 %v137
    %v1129 = vunpack.c.l.b16 %v138
    %v1130 = vunpack.c.h.b16 %v138
    %v1131 = vunpack.c.l.b16 %v139
    %v1132 = vunpack.c.h.b16 %v139
    %v1133 = vunpack.c.l.b16 %v140
    %v1134 = vunpack.c.h.b16 %v140
    %v1135 = vunpack.c.l.b16 %v141
    %v1136 = vunpack.c.h.b16 %v141
    %v1137 = vunpack.c.l.b16 %v142
    %v1138 = vunpack.c.h.b16 %v142
    %v1139 = vunpack.c.l.b16 %v143
    %v1140 = vunpack.c.h.b16 %v143
    %v1141 = vunpack.c.l.b16 %v144
    %v1142 = vunpack.c.h.b16 %v144
    %v1143 = vunpack.c.l.b16 %v145
    %v1144 = vunpack.c.h.b16 %v145
    %v1145 = vunpack.c.l.b16 %v146
    %v1146 = vunpack.c.h.b16 %v146
    %v1147 = vunpack.c.l.b16 %v147
    %v1148 = vunpack.c.h.b16 %v147
    %v1149 = vunpack.c.l.b16 %v148
    %v1150 = vunpack.c.h.b16 %v148
    %v1151 = vunpack.c.l.b16 %v149
    %v1152 = vunpack.c.h.b16 %v149
    %v1153 = vunpack.c.l.b16 %v150
    %v1154 = vunpack.c.h.b16 %v150
    %v1155 = vunpack.c.l.b16 %v151
    %v1156 = vunpack.c.h.b16 %v151
    %v1157 = vunpack.c.l.b16 %v152
    %v1158 = vunpack.c.h.b16 %v152
    %v1159 = vunpack.c.l.b16 %v153
    %v1160 = vunpack.c.h.b16 %v153
    %v1161 = vunpack.c.l.b16 %v154
    %v1162 = vunpack.c.h.b16 %v154
    %v1163 = vunpack.c.l.b16 %v155
    %v1164 = vunpack.c.h.b16 %v155
    %v1165 = vunpack.c.l.b16 %v156
    %v1166 = vunpack.c.h.b16 %v156
    %v1167 = vunpack.c.l.b16 %v157
    %v1168 = vunpack.c.h.b16 %v157
    %v1169 = vunpack.c.l.b16 %v158
    %v1170 = vunpack.c.h.b16 %v158
    %v1171 = vunpack.c.l.b16 %v159
    %v1172 = vunpack.c.h.b16 %v159
    %v1173 = vunpack.c.l.b16 %v160
    %v1174 = vunpack.c.h.b16 %v160
    %v1175 = vunpack.c.l.b16 %v161
    %v1176 = vunpack.c.h.b16 %v161
    %v1177 = vunpack.c.l.b16 %v162
    %v1178 = vunpack.c.h.b16 %v162
    %v1179 = vunpack.c.l.b16 %v163
    %v1180 = vunpack.c.h.b16 %v163
    %v1181 = vunpack.c.l.b16 %v164
    %v1182 = vunpack.c.h.b16 %v164
    %v1183 = vunpack.c.l.b16 %v165
    %v1184 = vunpack.c.h.b16 %v165
    %v1185 = vunpack.c.l.b16 %v166
    %v1186 = vunpack.c.h.b16 %v166
    %v1187 = vunpack.c.l.b16 %v167
    %v1188 = vunpack.c.h.b16 %v167
    %v1189 = vunpack.c.l.b16 %v168
    %v1190 = vunpack.c.h.b16 %v168
    %v1191 = vunpack.c.l.b16 %v169
    %v1192 = vunpack.c.h.b16 %v169
    %v1193 = vunpack.c.l.b16 %v170
    %v1194 = vunpack.c.h.b16 %v170
    %v1195 = vpack.c.b16 %v947, %v939
    %v1196 = vpack.c.b16 %v948, %v940
    %v1197 = vpack.c.b16 %v949, %v941
    %v1198 = vpack.c.b16 %v950, %v942
    %v1199 = vpack.c.b16 %v951, %v943
    %v1200 = vpack.c.b16 %v952, %v944
    %v1201 = vpack.c.b16 %v953, %v945
    %v1202 = vpack.c.b16 %v954, %v946
    %v1203 = vpack.c.b16 %v963, %v955
    %v1204 = vpack.c.b16 %v964, %v956
    %v1205 = vpack.c.b16 %v965, %v957
    %v1206 = vpack.c.b16 %v966, %v958
    %v1207 = vpack.c.b16 %v967, %v959
    %v1208 = vpack.c.b16 %v968, %v960
    %v1209 = vpack.c.b16 %v969, %v961
    %v1210 = vpack.c.b16 %v970, %v962
    %v1211 = vpack.c.b16 %v979, %v971
    %v1212 = vpack.c.b16 %v980, %v972
    %v1213 = vpack.c.b16 %v981, %v973
    %v1214 = vpack.c.b16 %v982, %v974
    %v1215 = vpack.c.b16 %v983, %v975
    %v1216 = vpack.c.b16 %v984, %v976
    %v1217 = vpack.c.b16 %v985, %v977
    %v1218 = vpack.c.b16 %v986, %v978
    %v1219 = vpack.c.b16 %v995, %v987
    %v1220 = vpack.c.b16 %v996, %v988
    %v1221 = vpack.c.b16 %v997, %v989
    %v1222 = vpack.c.b16 %v998, %v990
    %v1223 = vpack.c.b16 %v999, %v991
    %v1224 = vpack.c.b16 %v1000, %v992
    %v1225 = vpack.c.b16 %v1001, %v993
    %v1226 = vpack.c.b16 %v1002, %v994
    %v1227 = vpack.c.b16 %v1011, %v1003
    %v1228 = vpack.c.b16 %v1012, %v1004
    %v1229 = vpack.c.b16 %v1013, %v1005
    %v1230 = vpack.c.b16 %v1014, %v1006
    %v1231 = vpack.c.b16 %v1015, %v1007
    %v1232 = vpack.c.b16 %v1016, %v1008
    %v1233 = vpack.c.b16 %v1017, %v1009
    %v1234 = vpack.c.b16 %v1018, %v1010
    %v1235 = vpack.c.b16 %v1027, %v1019
    %v1236 = vpack.c.b16 %v1028, %v1020
    %v1237 = vpack.c.b16 %v1029, %v1021
    %v1238 = vpack.c.b16 %v1030, %v1022
    %v1239 = vpack.c.b16 %v1031, %v1023
    %v1240 = vpack.c.b16 %v1032, %v1024
    %v1241 = vpack.c.b16 %v1033, %v1025
    %v1242 = vpack.c.b16 %v1034, %v1026
    %v1243 = vpack.c.b16 %v1043, %v1035
    %v1244 = vpack.c.b16 %v1044, %v1036
    %v1245 = vpack.c.b16 %v1045, %v1037
    %v1246 = vpack.c.b16 %v1046, %v1038
    %v1247 = vpack.c.b16 %v1047, %v1039
    %v1248 = vpack.c.b16 %v1048, %v1040
    %v1249 = vpack.c.b16 %v1049, %v1041
    %v1250 = vpack.c.b16 %v1050, %v1042
    %v1251 = vpack.c.b16 %v1059, %v1051
    %v1252 = vpack.c.b16 %v1060, %v1052
    %v1253 = vpack.c.b16 %v1061, %v1053
    %v1254 = vpack.c.b16 %v1062, %v1054
    %v1255 = vpack.c.b16 %v1063, %v1055
    %v1256 = vpack.c.b16 %v1064, %v1056
    %v1257 = vpack.c.b16 %v1065, %v1057
    %v1258 = vpack.c.b16 %v1066, %v1058
    %v1259 = vpack.c.b16 %v1075, %v1067
    %v1260 = vpack.c.b16 %v1076, %v1068
    %v1261 = vpack.c.b16 %v1077, %v1069
    %v1262 = vpack.c.b16 %v1078, %v1070
    %v1263 = vpack.c.b16 %v1079, %v1071
    %v1264 = vpack.c.b16 %v1080, %v1072
    %v1265 = vpack.c.b16 %v1081, %v1073
    %v1266 = vpack.c.b16 %v1082, %v1074
    %v1267 = vpack.c.b16 %v1091, %v1083
    %v1268 = vpack.c.b16 %v1092, %v1084
    %v1269 = vpack.c.b16 %v1093, %v1085
    %v1270 = vpack.c.b16 %v1094, %v1086
    %v1271 = vpack.c.b16 %v1095, %v1087
    %v1272 = vpack.c.b16 %v1096, %v1088
    %v1273 = vpack.c.b16 %v1097, %v1089
    %v1274 = vpack.c.b16 %v1098, %v1090
    %v1275 = vpack.c.b16 %v1107, %v1099
    %v1276 = vpack.c.b16 %v1108, %v1100
    %v1277 = vpack.c.b16 %v1109, %v1101
    %v1278 = vpack.c.b16 %v1110, %v1102
    %v1279 = vpack.c.b16 %v1111, %v1103
    %v1280 = vpack.c.b16 %v1112, %v1104
    %v1281 = vpack.c.b16 %v1113, %v1105
    %v1282 = vpack.c.b16 %v1114, %v1106
    %v1283 = vpack.c.b16 %v1123, %v1115
    %v1284 = vpack.c.b16 %v1124, %v1116
    %v1285 = vpack.c.b16 %v1125, %v1117
    %v1286 = vpack.c.b16 %v1126, %v1118
    %v1287 = vpack.c.b16 %v1127, %v1119
    %v1288 = vpack.c.b16 %v1128, %v1120
    %v1289 = vpack.c.b16 %v1129, %v1121
    %v1290 = vpack.c.b16 %v1130, %v1122
    %v1291 = vpack.c.b16 %v1139, %v1131
    %v1292 = vpack.c.b16 %v1140, %v1132
    %v1293 = vpack.c.b16 %v1141, %v1133
    %v1294 = vpack.c.b16 %v1142, %v1134
    %v1295 = vpack.c.b16 %v1143, %v1135
    %v1296 = vpack.c.b16 %v1144, %v1136
    %v1297 = vpack.c.b16 %v1145, %v1137
    %v1298 = vpack.c.b16 %v1146, %v1138
    %v1299 = vpack.c.b16 %v1155, %v1147
    %v1300 = vpack.c.b16 %v1156, %v1148
    %v1301 = vpack.c.b16 %v1157, %v1149
    %v1302 = vpack.c.b16 %v1158, %v1150
    %v1303 = vpack.c.b16 %v1159, %v1151
    %v1304 = vpack.c.b16 %v1160, %v1152
    %v1305 = vpack.c.b16 %v1161, %v1153
    %v1306 = vpack.c.b16 %v1162, %v1154
    %v1307 = vpack.c.b16 %v1171, %v1163
    %v1308 = vpack.c.b16 %v1172, %v1164
    %v1309 = vpack.c.b16 %v1173, %v1165
    %v1310 = vpack.c.b16 %v1174, %v1166
    %v1311 = vpack.c.b16 %v1175, %v1167
    %v1312 = vpack.c.b16 %v1176, %v1168
    %v1313 = vpack.c.b16 %v1177, %v1169
    %v1314 = vpack.c.b16 %v1178, %v1170
    %v1315 = vpack.c.b16 %v1187, %v1179
    %v1316 = vpack.c.b16 %v1188, %v1180
    %v1317 = vpack.c.b16 %v1189, %v1181
    %v1318 = vpack.c.b16 %v1190, %v1182
    %v1319 = vpack.c.b16 %v1191, %v1183
    %v1320 = vpack.c.b16 %v1192, %v1184
    %v1321 = vpack.c.b16 %v1193, %v1185
    %v1322 = vpack.c.b16 %v1194, %v1186
    %v2091 = vunpack.c.l.b16 %v171
    %v2092 = vunpack.c.h.b16 %v171
    %v2093 = vunpack.c.l.b16 %v172
    %v2094 = vunpack.c.h.b16 %v172
    %v2095 = vunpack.c.l.b16 %v173
    %v2096 = vunpack.c.h.b16 %v173
    %v2097 = vunpack.c.l.b16 %v174
    %v2098 = vunpack.c.h.b16 %v174
    %v2099 = vunpack.c.l.b16 %v175
    %v2100 = vunpack.c.h.b16 %v175
    %v2101 = vunpack.c.l.b16 %v176
    %v2102 = vunpack.c.h.b16 %v176
    %v2103 = vunpack.c.l.b16 %v177
    %v2104 = vunpack.c.h.b16 %v177
    %v2105 = vunpack.c.l.b16 %v178
    %v2106 = vunpack.c.h.b16 %v178
    %v2107 = vunpack.c.l.b16 %v179
    %v2108 = vunpack.c.h.b16 %v179
    %v2109 = vunpack.c.l.b16 %v180
    %v2110 = vunpack.c.h.b16 %v180
    %v2111 = vunpack.c.l.b16 %v181
    %v2112 = vunpack.c.h.b16 %v181
    %v2113 = vunpack.c.l.b16 %v182
    %v2114 = vunpack.c.h.b16 %v182
    %v2115 = vunpack.c.l.b16 %v183
    %v2116 = vunpack.c.h.b16 %v183
    %v2117 = vunpack.c.l.b16 %v184
    %v2118 = vunpack.c.h.b16 %v184
    %v2119 = vunpack.c.l.b16 %v185
    %v2120 = vunpack.c.h.b16 %v185
    %v2121 = vunpack.c.l.b16 %v186
    %v2122 = vunpack.c.h.b16 %v186
    %v2123 = vunpack.c.l.b16 %v187
    %v2124 = vunpack.c.h.b16 %v187
    %v2125 = vunpack.c.l.b16 %v188
    %v2126 = vunpack.c.h.b16 %v188
    %v2127 = vunpack.c.l.b16 %v189
    %v2128 = vunpack.c.h.b16 %v189
    %v2129 = vunpack.c.l.b16 %v190
    %v2130 = vunpack.c.h.b16 %v190
    %v2131 = vunpack.c.l.b16 %v191
    %v2132 = vunpack.c.h.b16 %v191
    %v2133 = vunpack.c.l.b16 %v192
    %v2134 = vunpack.c.h.b16 %v192
    %v2135 = vunpack.c.l.b16 %v193
    %v2136 = vunpack.c.h.b16 %v193
    %v2137 = vunpack.c.l.b16 %v194
    %v2138 = vunpack.c.h.b16 %v194
    %v2139 = vunpack.c.l.b16 %v195
    %v2140 = vunpack.c.h.b16 %v195
    %v2141 = vunpack.c.l.b16 %v196
    %v2142 = vunpack.c.h.b16 %v196
    %v2143 = vunpack.c.l.b16 %v197
    %v2144 = vunpack.c.h.b16 %v197
    %v2145 = vunpack.c.l.b16 %v198
    %v2146 = vunpack.c.h.b16 %v198
    %v2147 = vunpack.c.l.b16 %v199
    %v2148 = vunpack.c.h.b16 %v199
    %v2149 = vunpack.c.l.b16 %v200
    %v2150 = vunpack.c.h.b16 %v200
    %v2151 = vunpack.c.l.b16 %v201
    %v2152 = vunpack.c.h.b16 %v201
    %v2153 = vunpack.c.l.b16 %v202
    %v2154 = vunpack.c.h.b16 %v202
    %v2155 = vunpack.c.l.b16 %v203
    %v2156 = vunpack.c.h.b16 %v203
    %v2157 = vunpack.c.l.b16 %v204
    %v2158 = vunpack.c.h.b16 %v204
    %v2159 = vunpack.c.l.b16 %v205
    %v2160 = vunpack.c.h.b16 %v205
    %v2161 = vunpack.c.l.b16 %v206
    %v2162 = vunpack.c.h.b16 %v206
    %v2163 = vunpack.c.l.b16 %v207
    %v2164 = vunpack.c.h.b16 %v207
    %v2165 = vunpack.c.l.b16 %v208
    %v2166 = vunpack.c.h.b16 %v208
    %v2167 = vunpack.c.l.b16 %v209
    %v2168 = vunpack.c.h.b16 %v209
    %v2169 = vunpack.c.l.b16 %v210
    %v2170 = vunpack.c.h.b16 %v210
    %v2171 = vunpack.c.l.b16 %v211
    %v2172 = vunpack.c.h.b16 %v211
    %v2173 = vunpack.c.l.b16 %v212
    %v2174 = vunpack.c.h.b16 %v212
    %v2175 = vunpack.c.l.b16 %v213
    %v2176 = vunpack.c.h.b16 %v213
    %v2177 = vunpack.c.l.b16 %v214
    %v2178 = vunpack.c.h.b16 %v214
    %v2179 = vunpack.c.l.b16 %v215
    %v2180 = vunpack.c.h.b16 %v215
    %v2181 = vunpack.c.l.b16 %v216
    %v2182 = vunpack.c.h.b16 %v216
    %v2183 = vunpack.c.l.b16 %v217
    %v2184 = vunpack.c.h.b16 %v217
    %v2185 = vunpack.c.l.b16 %v218
    %v2186 = vunpack.c.h.b16 %v218
    %v2187 = vunpack.c.l.b16 %v219
    %v2188 = vunpack.c.h.b16 %v219
    %v2189 = vunpack.c.l.b16 %v220
    %v2190 = vunpack.c.h.b16 %v220
    %v2191 = vunpack.c.l.b16 %v221
    %v2192 = vunpack.c.h.b16 %v221
    %v2193 = vunpack.c.l.b16 %v222
    %v2194 = vunpack.c.h.b16 %v222
    %v2195 = vunpack.c.l.b16 %v223
    %v2196 = vunpack.c.h.b16 %v223
    %v2197 = vunpack.c.l.b16 %v224
    %v2198 = vunpack.c.h.b16 %v224
    %v2199 = vunpack.c.l.b16 %v225
    %v2200 = vunpack.c.h.b16 %v225
    %v2201 = vunpack.c.l.b16 %v226
    %v2202 = vunpack.c.h.b16 %v226
    %v2203 = vunpack.c.l.b16 %v227
    %v2204 = vunpack.c.h.b16 %v227
    %v2205 = vunpack.c.l.b16 %v228
    %v2206 = vunpack.c.h.b16 %v228
    %v2207 = vunpack.c.l.b16 %v229
    %v2208 = vunpack.c.h.b16 %v229
    %v2209 = vunpack.c.l.b16 %v230
    %v2210 = vunpack.c.h.b16 %v230
    %v2211 = vunpack.c.l.b16 %v231
    %v2212 = vunpack.c.h.b16 %v231
    %v2213 = vunpack.c.l.b16 %v232
    %v2214 = vunpack.c.h.b16 %v232
    %v2215 = vunpack.c.l.b16 %v233
    %v2216 = vunpack.c.h.b16 %v233
    %v2217 = vunpack.c.l.b16 %v234
    %v2218 = vunpack.c.h.b16 %v234
    %v2219 = vunpack.c.l.b16 %v235
    %v2220 = vunpack.c.h.b16 %v235
    %v2221 = vunpack.c.l.b16 %v236
    %v2222 = vunpack.c.h.b16 %v236
    %v2223 = vunpack.c.l.b16 %v237
    %v2224 = vunpack.c.h.b16 %v237
    %v2225 = vunpack.c.l.b16 %v238
    %v2226 = vunpack.c.h.b16 %v238
    %v2227 = vunpack.c.l.b16 %v239
    %v2228 = vunpack.c.h.b16 %v239
    %v2229 = vunpack.c.l.b16 %v240
    %v2230 = vunpack.c.h.b16 %v240
    %v2231 = vunpack.c.l.b16 %v241
    %v2232 = vunpack.c.h.b16 %v241
    %v2233 = vunpack.c.l.b16 %v242
    %v2234 = vunpack.c.h.b16 %v242
    %v2235 = vunpack.c.l.b16 %v243
    %v2236 = vunpack.c.h.b16 %v243
    %v2237 = vunpack.c.l.b16 %v244
    %v2238 = vunpack.c.h.b16 %v244
    %v2239 = vunpack.c.l.b16 %v245
    %v2240 = vunpack.c.h.b16 %v245
    %v2241 = vunpack.c.l.b16 %v246
    %v2242 = vunpack.c.h.b16 %v246
    %v2243 = vunpack.c.l.b16 %v247
    %v2244 = vunpack.c.h.b16 %v247
    %v2245 = vunpack.c.l.b16 %v248
    %v2246 = vunpack.c.h.b16 %v248
    %v2247 = vunpack.c.l.b16 %v249
    %v2248 = vunpack.c.h.b16 %v249
    %v2249 = vunpack.c.l.b16 %v250
    %v2250 = vunpack.c.h.b16 %v250
    %v2251 = vunpack.c.l.b16 %v251
    %v2252 = vunpack.c.h.b16 %v251
    %v2253 = vunpack.c.l.b16 %v252
    %v2254 = vunpack.c.h.b16 %v252
    %v2255 = vunpack.c.l.b16 %v253
    %v2256 = vunpack.c.h.b16 %v253
    %v2257 = vunpack.c.l.b16 %v254
    %v2258 = vunpack.c.h.b16 %v254
    %v2259 = vunpack.c.l.b16 %v255
    %v2260 = vunpack.c.h.b16 %v255
    %v2261 = vunpack.c.l.b16 %v256
    %v2262 = vunpack.c.h.b16 %v256
    %v2263 = vunpack.c.l.b16 %v257
    %v2264 = vunpack.c.h.b16 %v257
    %v2265 = vunpack.c.l.b16 %v258
    %v2266 = vunpack.c.h.b16 %v258
    %v2267 = vunpack.c.l.b16 %v259
    %v2268 = vunpack.c.h.b16 %v259
    %v2269 = vunpack.c.l.b16 %v260
    %v2270 = vunpack.c.h.b16 %v260
    %v2271 = vunpack.c.l.b16 %v261
    %v2272 = vunpack.c.h.b16 %v261
    %v2273 = vunpack.c.l.b16 %v262
    %v2274 = vunpack.c.h.b16 %v262
    %v2275 = vunpack.c.l.b16 %v263
    %v2276 = vunpack.c.h.b16 %v263
    %v2277 = vunpack.c.l.b16 %v264
    %v2278 = vunpack.c.h.b16 %v264
    %v2279 = vunpack.c.l.b16 %v265
    %v2280 = vunpack.c.h.b16 %v265
    %v2281 = vunpack.c.l.b16 %v266
    %v2282 = vunpack.c.h.b16 %v266
    %v2283 = vunpack.c.l.b16 %v267
    %v2284 = vunpack.c.h.b16 %v267
    %v2285 = vunpack.c.l.b16 %v268
    %v2286 = vunpack.c.h.b16 %v268
    %v2287 = vunpack.c.l.b16 %v269
    %v2288 = vunpack.c.h.b16 %v269
    %v2289 = vunpack.c.l.b16 %v270
    %v2290 = vunpack.c.h.b16 %v270
    %v2291 = vunpack.c.l.b16 %v271
    %v2292 = vunpack.c.h.b16 %v271
    %v2293 = vunpack.c.l.b16 %v272
    %v2294 = vunpack.c.h.b16 %v272
    %v2295 = vunpack.c.l.b16 %v273
    %v2296 = vunpack.c.h.b16 %v273
    %v2297 = vunpack.c.l.b16 %v274
    %v2298 = vunpack.c.h.b16 %v274
    %v2299 = vunpack.c.l.b16 %v275
    %v2300 = vunpack.c.h.b16 %v275
    %v2301 = vunpack.c.l.b16 %v276
    %v2302 = vunpack.c.h.b16 %v276
    %v2303 = vunpack.c.l.b16 %v277
    %v2304 = vunpack.c.h.b16 %v277
    %v2305 = vunpack.c.l.b16 %v278
    %v2306 = vunpack.c.h.b16 %v278
    %v2307 = vunpack.c.l.b16 %v279
    %v2308 = vunpack.c.h.b16 %v279
    %v2309 = vunpack.c.l.b16 %v280
    %v2310 = vunpack.c.h.b16 %v280
    %v2311 = vunpack.c.l.b16 %v281
    %v2312 = vunpack.c.h.b16 %v281
    %v2313 = vunpack.c.l.b16 %v282
    %v2314 = vunpack.c.h.b16 %v282
    %v2315 = vunpack.c.l.b16 %v283
    %v2316 = vunpack.c.h.b16 %v283
    %v2317 = vunpack.c.l.b16 %v284
    %v2318 = vunpack.c.h.b16 %v284
    %v2319 = vunpack.c.l.b16 %v285
    %v2320 = vunpack.c.h.b16 %v285
    %v2321 = vunpack.c.l.b16 %v286
    %v2322 = vunpack.c.h.b16 %v286
    %v2323 = vunpack.c.l.b16 %v287
    %v2324 = vunpack.c.h.b16 %v287
    %v2325 = vunpack.c.l.b16 %v288
    %v2326 = vunpack.c.h.b16 %v288
    %v2327 = vunpack.c.l.b16 %v289
    %v2328 = vunpack.c.h.b16 %v289
    %v2329 = vunpack.c.l.b16 %v290
    %v2330 = vunpack.c.h.b16 %v290
    %v2331 = vunpack.c.l.b16 %v291
    %v2332 = vunpack.c.h.b16 %v291
    %v2333 = vunpack.c.l.b16 %v292
    %v2334 = vunpack.c.h.b16 %v292
    %v2335 = vunpack.c.l.b16 %v293
    %v2336 = vunpack.c.h.b16 %v293
    %v2337 = vunpack.c.l.b16 %v294
    %v2338 = vunpack.c.h.b16 %v294
    %v2339 = vunpack.c.l.b16 %v295
    %v2340 = vunpack.c.h.b16 %v295
    %v2341 = vunpack.c.l.b16 %v296
    %v2342 = vunpack.c.h.b16 %v296
    %v2343 = vunpack.c.l.b16 %v297
    %v2344 = vunpack.c.h.b16 %v297
    %v2345 = vunpack.c.l.b16 %v298
    %v2346 = vunpack.c.h.b16 %v298
    %v2347 = vunpack.c.l.b16 %v299
    %v2348 = vunpack.c.h.b16 %v299
    %v2349 = vunpack.c.l.b16 %v300
    %v2350 = vunpack.c.h.b16 %v300
    %v2351 = vunpack.c.l.b16 %v301
    %v2352 = vunpack.c.h.b16 %v301
    %v2353 = vunpack.c.l.b16 %v302
    %v2354 = vunpack.c.h.b16 %v302
    %v2355 = vunpack.c.l.b16 %v303
    %v2356 = vunpack.c.h.b16 %v303
    %v2357 = vunpack.c.l.b16 %v304
    %v2358 = vunpack.c.h.b16 %v304
    %v2359 = vunpack.c.l.b16 %v305
    %v2360 = vunpack.c.h.b16 %v305
    %v2361 = vunpack.c.l.b16 %v306
    %v2362 = vunpack.c.h.b16 %v306
    %v2363 = vunpack.c.l.b16 %v307
    %v2364 = vunpack.c.h.b16 %v307
    %v2365 = vunpack.c.l.b16 %v308
    %v2366 = vunpack.c.h.b16 %v308
    %v2367 = vunpack.c.l.b16 %v309
    %v2368 = vunpack.c.h.b16 %v309
    %v2369 = vunpack.c.l.b16 %v310
    %v2370 = vunpack.c.h.b16 %v310
    %v2371 = vunpack.c.l.b16 %v311
    %v2372 = vunpack.c.h.b16 %v311
    %v2373 = vunpack.c.l.b16 %v312
    %v2374 = vunpack.c.h.b16 %v312
    %v2375 = vunpack.c.l.b16 %v313
    %v2376 = vunpack.c.h.b16 %v313
    %v2377 = vunpack.c.l.b16 %v314
    %v2378 = vunpack.c.h.b16 %v314
    %v2379 = vunpack.c.l.b16 %v315
    %v2380 = vunpack.c.h.b16 %v315
    %v2381 = vunpack.c.l.b16 %v316
    %v2382 = vunpack.c.h.b16 %v316
    %v2383 = vunpack.c.l.b16 %v317
    %v2384 = vunpack.c.h.b16 %v317
    %v2385 = vunpack.c.l.b16 %v318
    %v2386 = vunpack.c.h.b16 %v318
    %v2387 = vunpack.c.l.b16 %v319
    %v2388 = vunpack.c.h.b16 %v319
    %v2389 = vunpack.c.l.b16 %v320
    %v2390 = vunpack.c.h.b16 %v320
    %v2391 = vunpack.c.l.b16 %v321
    %v2392 = vunpack.c.h.b16 %v321
    %v2393 = vunpack.c.l.b16 %v322
    %v2394 = vunpack.c.h.b16 %v322
    %v2395 = vunpack.c.l.b16 %v323
    %v2396 = vunpack.c.h.b16 %v323
    %v2397 = vunpack.c.l.b16 %v324
    %v2398 = vunpack.c.h.b16 %v324
    %v2399 = vunpack.c.l.b16 %v325
    %v2400 = vunpack.c.h.b16 %v325
    %v2401 = vunpack.c.l.b16 %v326
    %v2402 = vunpack.c.h.b16 %v326
    %v2403 = vunpack.c.l.b16 %v327
    %v2404 = vunpack.c.h.b16 %v327
    %v2405 = vunpack.c.l.b16 %v328
    %v2406 = vunpack.c.h.b16 %v328
    %v2407 = vunpack.c.l.b16 %v329
    %v2408 = vunpack.c.h.b16 %v329
    %v2409 = vunpack.c.l.b16 %v330
    %v2410 = vunpack.c.h.b16 %v330
    %v2411 = vunpack.c.l.b16 %v331
    %v2412 = vunpack.c.h.b16 %v331
    %v2413 = vunpack.c.l.b16 %v332
    %v2414 = vunpack.c.h.b16 %v332
    %v2415 = vunpack.c.l.b16 %v333
    %v2416 = vunpack.c.h.b16 %v333
    %v2417 = vunpack.c.l.b16 %v334
    %v2418 = vunpack.c.h.b16 %v334
    %v2419 = vunpack.c.l.b16 %v335
    %v2420 = vunpack.c.h.b16 %v335
    %v2421 = vunpack.c.l.b16 %v336
    %v2422 = vunpack.c.h.b16 %v336
    %v2423 = vunpack.c.l.b16 %v337
    %v2424 = vunpack.c.h.b16 %v337
    %v2425 = vunpack.c.l.b16 %v338
    %v2426 = vunpack.c.h.b16 %v338
    %v2427 = vunpack.c.l.b16 %v339
    %v2428 = vunpack.c.h.b16 %v339
    %v2429 = vunpack.c.l.b16 %v340
    %v2430 = vunpack.c.h.b16 %v340
    %v2431 = vunpack.c.l.b16 %v341
    %v2432 = vunpack.c.h.b16 %v341
    %v2433 = vunpack.c.l.b16 %v342
    %v2434 = vunpack.c.h.b16 %v342
    %v2435 = vunpack.c.l.b16 %v343
    %v2436 = vunpack.c.h.b16 %v343
    %v2437 = vunpack.c.l.b16 %v344
    %v2438 = vunpack.c.h.b16 %v344
    %v2439 = vunpack.c.l.b16 %v345
    %v2440 = vunpack.c.h.b16 %v345
    %v2441 = vunpack.c.l.b16 %v346
    %v2442 = vunpack.c.h.b16 %v346
    %v2443 = vunpack.c.l.b16 %v347
    %v2444 = vunpack.c.h.b16 %v347
    %v2445 = vunpack.c.l.b16 %v348
    %v2446 = vunpack.c.h.b16 %v348
    %v2447 = vunpack.c.l.b16 %v349
    %v2448 = vunpack.c.h.b16 %v349
    %v2449 = vunpack.c.l.b16 %v350
    %v2450 = vunpack.c.h.b16 %v350
    %v2451 = vunpack.c.l.b16 %v351
    %v2452 = vunpack.c.h.b16 %v351
    %v2453 = vunpack.c.l.b16 %v352
    %v2454 = vunpack.c.h.b16 %v352
    %v2455 = vunpack.c.l.b16 %v353
    %v2456 = vunpack.c.h.b16 %v353
    %v2457 = vunpack.c.l.b16 %v354
    %v2458 = vunpack.c.h.b16 %v354
    %v2459 = vunpack.c.l.b16 %v355
    %v2460 = vunpack.c.h.b16 %v355
    %v2461 = vunpack.c.l.b16 %v356
    %v2462 = vunpack.c.h.b16 %v356
    %v2463 = vunpack.c.l.b16 %v357
    %v2464 = vunpack.c.h.b16 %v357
    %v2465 = vunpack.c.l.b16 %v358
    %v2466 = vunpack.c.h.b16 %v358
    %v2467 = vunpack.c.l.b16 %v359
    %v2468 = vunpack.c.h.b16 %v359
    %v2469 = vunpack.c.l.b16 %v360
    %v2470 = vunpack.c.h.b16 %v360
    %v2471 = vunpack.c.l.b16 %v361
    %v2472 = vunpack.c.h.b16 %v361
    %v2473 = vunpack.c.l.b16 %v362
    %v2474 = vunpack.c.h.b16 %v362
    %v2475 = vunpack.c.l.b16 %v363
    %v2476 = vunpack.c.h.b16 %v363
    %v2477 = vunpack.c.l.b16 %v364
    %v2478 = vunpack.c.h.b16 %v364
    %v2479 = vunpack.c.l.b16 %v365
    %v2480 = vunpack.c.h.b16 %v365
    %v2481 = vunpack.c.l.b16 %v366
    %v2482 = vunpack.c.h.b16 %v366
    %v2483 = vunpack.c.l.b16 %v367
    %v2484 = vunpack.c.h.b16 %v367
    %v2485 = vunpack.c.l.b16 %v368
    %v2486 = vunpack.c.h.b16 %v368
    %v2487 = vunpack.c.l.b16 %v369
    %v2488 = vunpack.c.h.b16 %v369
    %v2489 = vunpack.c.l.b16 %v370
    %v2490 = vunpack.c.h.b16 %v370
    %v2491 = vunpack.c.l.b16 %v371
    %v2492 = vunpack.c.h.b16 %v371
    %v2493 = vunpack.c.l.b16 %v372
    %v2494 = vunpack.c.h.b16 %v372
    %v2495 = vunpack.c.l.b16 %v373
    %v2496 = vunpack.c.h.b16 %v373
    %v2497 = vunpack.c.l.b16 %v374
    %v2498 = vunpack.c.h.b16 %v374
    %v2499 = vunpack.c.l.b16 %v375
    %v2500 = vunpack.c.h.b16 %v375
    %v2501 = vunpack.c.l.b16 %v376
    %v2502 = vunpack.c.h.b16 %v376
    %v2503 = vunpack.c.l.b16 %v377
    %v2504 = vunpack.c.h.b16 %v377
    %v2505 = vunpack.c.l.b16 %v378
    %v2506 = vunpack.c.h.b16 %v378
    %v2507 = vunpack.c.l.b16 %v379
    %v2508 = vunpack.c.h.b16 %v379
    %v2509 = vunpack.c.l.b16 %v380
    %v2510 = vunpack.c.h.b16 %v380
    %v2511 = vunpack.c.l.b16 %v381
    %v2512 = vunpack.c.h.b16 %v381
    %v2513 = vunpack.c.l.b16 %v382
    %v2514 = vunpack.c.h.b16 %v382
    %v2515 = vunpack.c.l.b16 %v383
    %v2516 = vunpack.c.h.b16 %v383
    %v2517 = vunpack.c.l.b16 %v384
    %v2518 = vunpack.c.h.b16 %v384
    %v2519 = vunpack.c.l.b16 %v385
    %v2520 = vunpack.c.h.b16 %v385
    %v2521 = vunpack.c.l.b16 %v386
    %v2522 = vunpack.c.h.b16 %v386
    %v2523 = vunpack.c.l.b16 %v387
    %v2524 = vunpack.c.h.b16 %v387
    %v2525 = vunpack.c.l.b16 %v388
    %v2526 = vunpack.c.h.b16 %v388
    %v2527 = vunpack.c.l.b16 %v389
    %v2528 = vunpack.c.h.b16 %v389
    %v2529 = vunpack.c.l.b16 %v390
    %v2530 = vunpack.c.h.b16 %v390
    %v2531 = vunpack.c.l.b16 %v391
    %v2532 = vunpack.c.h.b16 %v391
    %v2533 = vunpack.c.l.b16 %v392
    %v2534 = vunpack.c.h.b16 %v392
    %v2535 = vunpack.c.l.b16 %v393
    %v2536 = vunpack.c.h.b16 %v393
    %v2537 = vunpack.c.l.b16 %v394
    %v2538 = vunpack.c.h.b16 %v394
    %v2539 = vunpack.c.l.b16 %v395
    %v2540 = vunpack.c.h.b16 %v395
    %v2541 = vunpack.c.l.b16 %v396
    %v2542 = vunpack.c.h.b16 %v396
    %v2543 = vunpack.c.l.b16 %v397
    %v2544 = vunpack.c.h.b16 %v397
    %v2545 = vunpack.c.l.b16 %v398
    %v2546 = vunpack.c.h.b16 %v398
    %v2547 = vunpack.c.l.b16 %v399
    %v2548 = vunpack.c.h.b16 %v399
    %v2549 = vunpack.c.l.b16 %v400
    %v2550 = vunpack.c.h.b16 %v400
    %v2551 = vunpack.c.l.b16 %v401
    %v2552 = vunpack.c.h.b16 %v401
    %v2553 = vunpack.c.l.b16 %v402
    %v2554 = vunpack.c.h.b16 %v402
    %v2555 = vunpack.c.l.b16 %v403
    %v2556 = vunpack.c.h.b16 %v403
    %v2557 = vunpack.c.l.b16 %v404
    %v2558 = vunpack.c.h.b16 %v404
    %v2559 = vunpack.c.l.b16 %v405
    %v2560 = vunpack.c.h.b16 %v405
    %v2561 = vunpack.c.l.b16 %v406
    %v2562 = vunpack.c.h.b16 %v406
    %v2563 = vunpack.c.l.b16 %v407
    %v2564 = vunpack.c.h.b16 %v407
    %v2565 = vunpack.c.l.b16 %v408
    %v2566 = vunpack.c.h.b16 %v408
    %v2567 = vunpack.c.l.b16 %v409
    %v2568 = vunpack.c.h.b16 %v409
    %v2569 = vunpack.c.l.b16 %v410
    %v2570 = vunpack.c.h.b16 %v410
    %v2571 = vunpack.c.l.b16 %v411
    %v2572 = vunpack.c.h.b16 %v411
    %v2573 = vunpack.c.l.b16 %v412
    %v2574 = vunpack.c.h.b16 %v412
    %v2575 = vunpack.c.l.b16 %v413
    %v2576 = vunpack.c.h.b16 %v413
    %v2577 = vunpack.c.l.b16 %v414
    %v2578 = vunpack.c.h.b16 %v414
    %v2579 = vunpack.c.l.b16 %v415
    %v2580 = vunpack.c.h.b16 %v415
    %v2581 = vunpack.c.l.b16 %v416
    %v2582 = vunpack.c.h.b16 %v416
    %v2583 = vunpack.c.l.b16 %v417
    %v2584 = vunpack.c.h.b16 %v417
    %v2585 = vunpack.c.l.b16 %v418
    %v2586 = vunpack.c.h.b16 %v418
    %v2587 = vunpack.c.l.b16 %v419
    %v2588 = vunpack.c.h.b16 %v419
    %v2589 = vunpack.c.l.b16 %v420
    %v2590 = vunpack.c.h.b16 %v420
    %v2591 = vunpack.c.l.b16 %v421
    %v2592 = vunpack.c.h.b16 %v421
    %v2593 = vunpack.c.l.b16 %v422
    %v2594 = vunpack.c.h.b16 %v422
    %v2595 = vunpack.c.l.b16 %v423
    %v2596 = vunpack.c.h.b16 %v423
    %v2597 = vunpack.c.l.b16 %v424
    %v2598 = vunpack.c.h.b16 %v424
    %v2599 = vunpack.c.l.b16 %v425
    %v2600 = vunpack.c.h.b16 %v425
    %v2601 = vunpack.c.l.b16 %v426
    %v2602 = vunpack.c.h.b16 %v426
    %v2603 = vunpack.c.l.b16 %v427
    %v2604 = vunpack.c.h.b16 %v427
    %v2605 = vunpack.c.l.b16 %v428
    %v2606 = vunpack.c.h.b16 %v428
    %v2607 = vunpack.c.l.b16 %v429
    %v2608 = vunpack.c.h.b16 %v429
    %v2609 = vunpack.c.l.b16 %v430
    %v2610 = vunpack.c.h.b16 %v430
    %v2611 = vunpack.c.l.b16 %v431
    %v2612 = vunpack.c.h.b16 %v431
    %v2613 = vunpack.c.l.b16 %v432
    %v2614 = vunpack.c.h.b16 %v432
    %v2615 = vunpack.c.l.b16 %v433
    %v2616 = vunpack.c.h.b16 %v433
    %v2617 = vunpack.c.l.b16 %v434
    %v2618 = vunpack.c.h.b16 %v434
    %v2619 = vunpack.c.l.b16 %v435
    %v2620 = vunpack.c.h.b16 %v435
    %v2621 = vunpack.c.l.b16 %v436
    %v2622 = vunpack.c.h.b16 %v436
    %v2623 = vunpack.c.l.b16 %v437
    %v2624 = vunpack.c.h.b16 %v437
    %v2625 = vunpack.c.l.b16 %v438
    %v2626 = vunpack.c.h.b16 %v438
    %v2627 = vunpack.c.l.b16 %v439
    %v2628 = vunpack.c.h.b16 %v439
    %v2629 = vunpack.c.l.b16 %v440
    %v2630 = vunpack.c.h.b16 %v440
    %v2631 = vunpack.c.l.b16 %v441
    %v2632 = vunpack.c.h.b16 %v441
    %v2633 = vunpack.c.l.b16 %v442
    %v2634 = vunpack.c.h.b16 %v442
    %v2635 = vunpack.c.l.b16 %v443
    %v2636 = vunpack.c.h.b16 %v443
    %v2637 = vunpack.c.l.b16 %v444
    %v2638 = vunpack.c.h.b16 %v444
    %v2639 = vunpack.c.l.b16 %v445
    %v2640 = vunpack.c.h.b16 %v445
    %v2641 = vunpack.c.l.b16 %v446
    %v2642 = vunpack.c.h.b16 %v446
    %v2643 = vunpack.c.l.b16 %v447
    %v2644 = vunpack.c.h.b16 %v447
    %v2645 = vunpack.c.l.b16 %v448
    %v2646 = vunpack.c.h.b16 %v448
    %v2647 = vunpack.c.l.b16 %v449
    %v2648 = vunpack.c.h.b16 %v449
    %v2649 = vunpack.c.l.b16 %v450
    %v2650 = vunpack.c.h.b16 %v450
    %v2651 = vunpack.c.l.b16 %v451
    %v2652 = vunpack.c.h.b16 %v451
    %v2653 = vunpack.c.l.b16 %v452
    %v2654 = vunpack.c.h.b16 %v452
    %v2655 = vunpack.c.l.b16 %v453
    %v2656 = vunpack.c.h.b16 %v453
    %v2657 = vunpack.c.l.b16 %v454
    %v2658 = vunpack.c.h.b16 %v454
    %v2659 = vunpack.c.l.b16 %v455
    %v2660 = vunpack.c.h.b16 %v455
    %v2661 = vunpack.c.l.b16 %v456
    %v2662 = vunpack.c.h.b16 %v456
    %v2663 = vunpack.c.l.b16 %v457
    %v2664 = vunpack.c.h.b16 %v457
    %v2665 = vunpack.c.l.b16 %v458
    %v2666 = vunpack.c.h.b16 %v458
    %v2667 = vunpack.c.l.b16 %v459
    %v2668 = vunpack.c.h.b16 %v459
    %v2669 = vunpack.c.l.b16 %v460
    %v2670 = vunpack.c.h.b16 %v460
    %v2671 = vunpack.c.l.b16 %v461
    %v2672 = vunpack.c.h.b16 %v461
    %v2673 = vunpack.c.l.b16 %v462
    %v2674 = vunpack.c.h.b16 %v462
    %v2675 = vunpack.c.l.b16 %v463
    %v2676 = vunpack.c.h.b16 %v463
    %v2677 = vunpack.c.l.b16 %v464
    %v2678 = vunpack.c.h.b16 %v464
    %v2679 = vunpack.c.l.b16 %v465
    %v2680 = vunpack.c.h.b16 %v465
    %v2681 = vunpack.c.l.b16 %v466
    %v2682 = vunpack.c.h.b16 %v466
    %v2683 = vunpack.c.l.b16 %v467
    %v2684 = vunpack.c.h.b16 %v467
    %v2685 = vunpack.c.l.b16 %v468
    %v2686 = vunpack.c.h.b16 %v468
    %v2687 = vunpack.c.l.b16 %v469
    %v2688 = vunpack.c.h.b16 %v469
    %v2689 = vunpack.c.l.b16 %v470
    %v2690 = vunpack.c.h.b16 %v470
    %v2691 = vunpack.c.l.b16 %v471
    %v2692 = vunpack.c.h.b16 %v471
    %v2693 = vunpack.c.l.b16 %v472
    %v2694 = vunpack.c.h.b16 %v472
    %v2695 = vunpack.c.l.b16 %v473
    %v2696 = vunpack.c.h.b16 %v473
    %v2697 = vunpack.c.l.b16 %v474
    %v2698 = vunpack.c.h.b16 %v474
    %v2699 = vunpack.c.l.b16 %v475
    %v2700 = vunpack.c.h.b16 %v475
    %v2701 = vunpack.c.l.b16 %v476
    %v2702 = vunpack.c.h.b16 %v476
    %v2703 = vunpack.c.l.b16 %v477
    %v2704 = vunpack.c.h.b16 %v477
    %v2705 = vunpack.c.l.b16 %v478
    %v2706 = vunpack.c.h.b16 %v478
    %v2707 = vunpack.c.l.b16 %v479
    %v2708 = vunpack.c.h.b16 %v479
    %v2709 = vunpack.c.l.b16 %v480
    %v2710 = vunpack.c.h.b16 %v480
    %v2711 = vunpack.c.l.b16 %v481
    %v2712 = vunpack.c.h.b16 %v481
    %v2713 = vunpack.c.l.b16 %v482
    %v2714 = vunpack.c.h.b16 %v482
    %v2715 = vunpack.c.l.b16 %v483
    %v2716 = vunpack.c.h.b16 %v483
    %v2717 = vunpack.c.l.b16 %v484
    %v2718 = vunpack.c.h.b16 %v484
    %v2719 = vunpack.c.l.b16 %v485
    %v2720 = vunpack.c.h.b16 %v485
    %v2721 = vunpack.c.l.b16 %v486
    %v2722 = vunpack.c.h.b16 %v486
    %v2723 = vunpack.c.l.b16 %v487
    %v2724 = vunpack.c.h.b16 %v487
    %v2725 = vunpack.c.l.b16 %v488
    %v2726 = vunpack.c.h.b16 %v488
    %v2727 = vunpack.c.l.b16 %v489
    %v2728 = vunpack.c.h.b16 %v489
    %v2729 = vunpack.c.l.b16 %v490
    %v2730 = vunpack.c.h.b16 %v490
    %v2731 = vunpack.c.l.b16 %v491
    %v2732 = vunpack.c.h.b16 %v491
    %v2733 = vunpack.c.l.b16 %v492
    %v2734 = vunpack.c.h.b16 %v492
    %v2735 = vunpack.c.l.b16 %v493
    %v2736 = vunpack.c.h.b16 %v493
    %v2737 = vunpack.c.l.b16 %v494
    %v2738 = vunpack.c.h.b16 %v494
    %v2739 = vunpack.c.l.b16 %v495
    %v2740 = vunpack.c.h.b16 %v495
    %v2741 = vunpack.c.l.b16 %v496
    %v2742 = vunpack.c.h.b16 %v496
    %v2743 = vunpack.c.l.b16 %v497
    %v2744 = vunpack.c.h.b16 %v497
    %v2745 = vunpack.c.l.b16 %v498
    %v2746 = vunpack.c.h.b16 %v498
    %v2747 = vunpack.c.l.b16 %v499
    %v2748 = vunpack.c.h.b16 %v499
    %v2749 = vunpack.c.l.b16 %v500
    %v2750 = vunpack.c.h.b16 %v500
    %v2751 = vunpack.c.l.b16 %v501
    %v2752 = vunpack.c.h.b16 %v501
    %v2753 = vunpack.c.l.b16 %v502
    %v2754 = vunpack.c.h.b16 %v502
    %v2755 = vunpack.c.l.b16 %v503
    %v2756 = vunpack.c.h.b16 %v503
    %v2757 = vunpack.c.l.b16 %v504
    %v2758 = vunpack.c.h.b16 %v504
    %v2759 = vunpack.c.l.b16 %v505
    %v2760 = vunpack.c.h.b16 %v505
    %v2761 = vunpack.c.l.b16 %v506
    %v2762 = vunpack.c.h.b16 %v506
    %v2763 = vunpack.c.l.b16 %v507
    %v2764 = vunpack.c.h.b16 %v507
    %v2765 = vunpack.c.l.b16 %v508
    %v2766 = vunpack.c.h.b16 %v508
    %v2767 = vunpack.c.l.b16 %v509
    %v2768 = vunpack.c.h.b16 %v509
    %v2769 = vunpack.c.l.b16 %v510
    %v2770 = vunpack.c.h.b16 %v510
    %v2771 = vunpack.c.l.b16 %v511
    %v2772 = vunpack.c.h.b16 %v511
    %v2773 = vunpack.c.l.b16 %v512
    %v2774 = vunpack.c.h.b16 %v512
    %v2775 = vunpack.c.l.b16 %v513
    %v2776 = vunpack.c.h.b16 %v513
    %v2777 = vunpack.c.l.b16 %v514
    %v2778 = vunpack.c.h.b16 %v514
    %v2779 = vunpack.c.l.b16 %v515
    %v2780 = vunpack.c.h.b16 %v515
    %v2781 = vunpack.c.l.b16 %v516
    %v2782 = vunpack.c.h.b16 %v516
    %v2783 = vunpack.c.l.b16 %v517
    %v2784 = vunpack.c.h.b16 %v517
    %v2785 = vunpack.c.l.b16 %v518
    %v2786 = vunpack.c.h.b16 %v518
    %v2787 = vunpack.c.l.b16 %v519
    %v2788 = vunpack.c.h.b16 %v519
    %v2789 = vunpack.c.l.b16 %v520
    %v2790 = vunpack.c.h.b16 %v520
    %v2791 = vunpack.c.l.b16 %v521
    %v2792 = vunpack.c.h.b16 %v521
    %v2793 = vunpack.c.l.b16 %v522
    %v2794 = vunpack.c.h.b16 %v522
    %v2795 = vunpack.c.l.b16 %v523
    %v2796 = vunpack.c.h.b16 %v523
    %v2797 = vunpack.c.l.b16 %v524
    %v2798 = vunpack.c.h.b16 %v524
    %v2799 = vunpack.c.l.b16 %v525
    %v2800 = vunpack.c.h.b16 %v525
    %v2801 = vunpack.c.l.b16 %v526
    %v2802 = vunpack.c.h.b16 %v526
    %v2803 = vunpack.c.l.b16 %v527
    %v2804 = vunpack.c.h.b16 %v527
    %v2805 = vunpack.c.l.b16 %v528
    %v2806 = vunpack.c.h.b16 %v528
    %v2807 = vunpack.c.l.b16 %v529
    %v2808 = vunpack.c.h.b16 %v529
    %v2809 = vunpack.c.l.b16 %v530
    %v2810 = vunpack.c.h.b16 %v530
    %v2811 = vunpack.c.l.b16 %v531
    %v2812 = vunpack.c.h.b16 %v531
    %v2813 = vunpack.c.l.b16 %v532
    %v2814 = vunpack.c.h.b16 %v532
    %v2815 = vunpack.c.l.b16 %v533
    %v2816 = vunpack.c.h.b16 %v533
    %v2817 = vunpack.c.l.b16 %v534
    %v2818 = vunpack.c.h.b16 %v534
    %v2819 = vunpack.c.l.b16 %v535
    %v2820 = vunpack.c.h.b16 %v535
    %v2821 = vunpack.c.l.b16 %v536
    %v2822 = vunpack.c.h.b16 %v536
    %v2823 = vunpack.c.l.b16 %v537
    %v2824 = vunpack.c.h.b16 %v537
    %v2825 = vunpack.c.l.b16 %v538
    %v2826 = vunpack.c.h.b16 %v538
    %v2827 = vunpack.c.l.b16 %v539
    %v2828 = vunpack.c.h.b16 %v539
    %v2829 = vunpack.c.l.b16 %v540
    %v2830 = vunpack.c.h.b16 %v540
    %v2831 = vunpack.c.l.b16 %v541
    %v2832 = vunpack.c.h.b16 %v541
    %v2833 = vunpack.c.l.b16 %v542
    %v2834 = vunpack.c.h.b16 %v542
    %v2835 = vunpack.c.l.b16 %v543
    %v2836 = vunpack.c.h.b16 %v543
    %v2837 = vunpack.c.l.b16 %v544
    %v2838 = vunpack.c.h.b16 %v544
    %v2839 = vunpack.c.l.b16 %v545
    %v2840 = vunpack.c.h.b16 %v545
    %v2841 = vunpack.c.l.b16 %v546
    %v2842 = vunpack.c.h.b16 %v546
    %v2843 = vunpack.c.l.b16 %v547
    %v2844 = vunpack.c.h.b16 %v547
    %v2845 = vunpack.c.l.b16 %v548
    %v2846 = vunpack.c.h.b16 %v548
    %v2847 = vunpack.c.l.b16 %v549
    %v2848 = vunpack.c.h.b16 %v549
    %v2849 = vunpack.c.l.b16 %v550
    %v2850 = vunpack.c.h.b16 %v550
    %v2851 = vunpack.c.l.b16 %v551
    %v2852 = vunpack.c.h.b16 %v551
    %v2853 = vunpack.c.l.b16 %v552
    %v2854 = vunpack.c.h.b16 %v552
    %v2855 = vunpack.c.l.b16 %v553
    %v2856 = vunpack.c.h.b16 %v553
    %v2857 = vunpack.c.l.b16 %v554
    %v2858 = vunpack.c.h.b16 %v554
    %v2859 = vunpack.c.l.b16 %v555
    %v2860 = vunpack.c.h.b16 %v555
    %v2861 = vunpack.c.l.b16 %v556
    %v2862 = vunpack.c.h.b16 %v556
    %v2863 = vunpack.c.l.b16 %v557
    %v2864 = vunpack.c.h.b16 %v557
    %v2865 = vunpack.c.l.b16 %v558
    %v2866 = vunpack.c.h.b16 %v558
    %v2867 = vunpack.c.l.b16 %v559
    %v2868 = vunpack.c.h.b16 %v559
    %v2869 = vunpack.c.l.b16 %v560
    %v2870 = vunpack.c.h.b16 %v560
    %v2871 = vunpack.c.l.b16 %v561
    %v2872 = vunpack.c.h.b16 %v561
    %v2873 = vunpack.c.l.b16 %v562
    %v2874 = vunpack.c.h.b16 %v562
    %v2875 = vunpack.c.l.b16 %v563
    %v2876 = vunpack.c.h.b16 %v563
    %v2877 = vunpack.c.l.b16 %v564
    %v2878 = vunpack.c.h.b16 %v564
    %v2879 = vunpack.c.l.b16 %v565
    %v2880 = vunpack.c.h.b16 %v565
    %v2881 = vunpack.c.l.b16 %v566
    %v2882 = vunpack.c.h.b16 %v566
    %v2883 = vunpack.c.l.b16 %v567
    %v2884 = vunpack.c.h.b16 %v567
    %v2885 = vunpack.c.l.b16 %v568
    %v2886 = vunpack.c.h.b16 %v568
    %v2887 = vunpack.c.l.b16 %v569
    %v2888 = vunpack.c.h.b16 %v569
    %v2889 = vunpack.c.l.b16 %v570
    %v2890 = vunpack.c.h.b16 %v570
    %v2891 = vunpack.c.l.b16 %v571
    %v2892 = vunpack.c.h.b16 %v571
    %v2893 = vunpack.c.l.b16 %v572
    %v2894 = vunpack.c.h.b16 %v572
    %v2895 = vunpack.c.l.b16 %v573
    %v2896 = vunpack.c.h.b16 %v573
    %v2897 = vunpack.c.l.b16 %v574
    %v2898 = vunpack.c.h.b16 %v574
    %v2899 = vunpack.c.l.b16 %v575
    %v2900 = vunpack.c.h.b16 %v575
    %v2901 = vunpack.c.l.b16 %v576
    %v2902 = vunpack.c.h.b16 %v576
    %v2903 = vunpack.c.l.b16 %v577
    %v2904 = vunpack.c.h.b16 %v577
    %v2905 = vunpack.c.l.b16 %v578
    %v2906 = vunpack.c.h.b16 %v578
    %v2907 = vunpack.c.l.b16 %v579
    %v2908 = vunpack.c.h.b16 %v579
    %v2909 = vunpack.c.l.b16 %v580
    %v2910 = vunpack.c.h.b16 %v580
    %v2911 = vunpack.c.l.b16 %v581
    %v2912 = vunpack.c.h.b16 %v581
    %v2913 = vunpack.c.l.b16 %v582
    %v2914 = vunpack.c.h.b16 %v582
    %v2915 = vunpack.c.l.b16 %v583
    %v2916 = vunpack.c.h.b16 %v583
    %v2917 = vunpack.c.l.b16 %v584
    %v2918 = vunpack.c.h.b16 %v584
    %v2919 = vunpack.c.l.b16 %v585
    %v2920 = vunpack.c.h.b16 %v585
    %v2921 = vunpack.c.l.b16 %v586
    %v2922 = vunpack.c.h.b16 %v586
    %v2923 = vunpack.c.l.b16 %v587
    %v2924 = vunpack.c.h.b16 %v587
    %v2925 = vunpack.c.l.b16 %v588
    %v2926 = vunpack.c.h.b16 %v588
    %v2927 = vunpack.c.l.b16 %v589
    %v2928 = vunpack.c.h.b16 %v589
    %v2929 = vunpack.c.l.b16 %v590
    %v2930 = vunpack.c.h.b16 %v590
    %v2931 = vunpack.c.l.b16 %v591
    %v2932 = vunpack.c.h.b16 %v591
    %v2933 = vunpack.c.l.b16 %v592
    %v2934 = vunpack.c.h.b16 %v592
    %v2935 = vunpack.c.l.b16 %v593
    %v2936 = vunpack.c.h.b16 %v593
    %v2937 = vunpack.c.l.b16 %v594
    %v2938 = vunpack.c.h.b16 %v594
    %v2939 = vunpack.c.l.b16 %v595
    %v2940 = vunpack.c.h.b16 %v595
    %v2941 = vunpack.c.l.b16 %v596
    %v2942 = vunpack.c.h.b16 %v596
    %v2943 = vunpack.c.l.b16 %v597
    %v2944 = vunpack.c.h.b16 %v597
    %v2945 = vunpack.c.l.b16 %v598
    %v2946 = vunpack.c.h.b16 %v598
    %v2947 = vunpack.c.l.b16 %v599
    %v2948 = vunpack.c.h.b16 %v599
    %v2949 = vunpack.c.l.b16 %v600
    %v2950 = vunpack.c.h.b16 %v600
    %v2951 = vunpack.c.l.b16 %v601
    %v2952 = vunpack.c.h.b16 %v601
    %v2953 = vunpack.c.l.b16 %v602
    %v2954 = vunpack.c.h.b16 %v602
    %v2955 = vunpack.c.l.b16 %v603
    %v2956 = vunpack.c.h.b16 %v603
    %v2957 = vunpack.c.l.b16 %v604
    %v2958 = vunpack.c.h.b16 %v604
    %v2959 = vunpack.c.l.b16 %v605
    %v2960 = vunpack.c.h.b16 %v605
    %v2961 = vunpack.c.l.b16 %v606
    %v2962 = vunpack.c.h.b16 %v606
    %v2963 = vunpack.c.l.b16 %v607
    %v2964 = vunpack.c.h.b16 %v607
    %v2965 = vunpack.c.l.b16 %v608
    %v2966 = vunpack.c.h.b16 %v608
    %v2967 = vunpack.c.l.b16 %v609
    %v2968 = vunpack.c.h.b16 %v609
    %v2969 = vunpack.c.l.b16 %v610
    %v2970 = vunpack.c.h.b16 %v610
    %v2971 = vunpack.c.l.b16 %v611
    %v2972 = vunpack.c.h.b16 %v611
    %v2973 = vunpack.c.l.b16 %v612
    %v2974 = vunpack.c.h.b16 %v612
    %v2975 = vunpack.c.l.b16 %v613
    %v2976 = vunpack.c.h.b16 %v613
    %v2977 = vunpack.c.l.b16 %v614
    %v2978 = vunpack.c.h.b16 %v614
    %v2979 = vunpack.c.l.b16 %v615
    %v2980 = vunpack.c.h.b16 %v615
    %v2981 = vunpack.c.l.b16 %v616
    %v2982 = vunpack.c.h.b16 %v616
    %v2983 = vunpack.c.l.b16 %v617
    %v2984 = vunpack.c.h.b16 %v617
    %v2985 = vunpack.c.l.b16 %v618
    %v2986 = vunpack.c.h.b16 %v618
    %v2987 = vunpack.c.l.b16 %v619
    %v2988 = vunpack.c.h.b16 %v619
    %v2989 = vunpack.c.l.b16 %v620
    %v2990 = vunpack.c.h.b16 %v620
    %v2991 = vunpack.c.l.b16 %v621
    %v2992 = vunpack.c.h.b16 %v621
    %v2993 = vunpack.c.l.b16 %v622
    %v2994 = vunpack.c.h.b16 %v622
    %v2995 = vunpack.c.l.b16 %v623
    %v2996 = vunpack.c.h.b16 %v623
    %v2997 = vunpack.c.l.b16 %v624
    %v2998 = vunpack.c.h.b16 %v624
    %v2999 = vunpack.c.l.b16 %v625
    %v3000 = vunpack.c.h.b16 %v625
    %v3001 = vunpack.c.l.b16 %v626
    %v3002 = vunpack.c.h.b16 %v626
    %v3003 = vunpack.c.l.b16 %v627
    %v3004 = vunpack.c.h.b16 %v627
    %v3005 = vunpack.c.l.b16 %v628
    %v3006 = vunpack.c.h.b16 %v628
    %v3007 = vunpack.c.l.b16 %v629
    %v3008 = vunpack.c.h.b16 %v629
    %v3009 = vunpack.c.l.b16 %v630
    %v3010 = vunpack.c.h.b16 %v630
    %v3011 = vunpack.c.l.b16 %v631
    %v3012 = vunpack.c.h.b16 %v631
    %v3013 = vunpack.c.l.b16 %v632
    %v3014 = vunpack.c.h.b16 %v632
    %v3015 = vunpack.c.l.b16 %v633
    %v3016 = vunpack.c.h.b16 %v633
    %v3017 = vunpack.c.l.b16 %v634
    %v3018 = vunpack.c.h.b16 %v634
    %v3019 = vunpack.c.l.b16 %v635
    %v3020 = vunpack.c.h.b16 %v635
    %v3021 = vunpack.c.l.b16 %v636
    %v3022 = vunpack.c.h.b16 %v636
    %v3023 = vunpack.c.l.b16 %v637
    %v3024 = vunpack.c.h.b16 %v637
    %v3025 = vunpack.c.l.b16 %v638
    %v3026 = vunpack.c.h.b16 %v638
    %v3027 = vunpack.c.l.b16 %v639
    %v3028 = vunpack.c.h.b16 %v639
    %v3029 = vunpack.c.l.b16 %v640
    %v3030 = vunpack.c.h.b16 %v640
    %v3031 = vunpack.c.l.b16 %v641
    %v3032 = vunpack.c.h.b16 %v641
    %v3033 = vunpack.c.l.b16 %v642
    %v3034 = vunpack.c.h.b16 %v642
    %v3035 = vunpack.c.l.b16 %v643
    %v3036 = vunpack.c.h.b16 %v643
    %v3037 = vunpack.c.l.b16 %v644
    %v3038 = vunpack.c.h.b16 %v644
    %v3039 = vunpack.c.l.b16 %v645
    %v3040 = vunpack.c.h.b16 %v645
    %v3041 = vunpack.c.l.b16 %v646
    %v3042 = vunpack.c.h.b16 %v646
    %v3043 = vunpack.c.l.b16 %v647
    %v3044 = vunpack.c.h.b16 %v647
    %v3045 = vunpack.c.l.b16 %v648
    %v3046 = vunpack.c.h.b16 %v648
    %v3047 = vunpack.c.l.b16 %v649
    %v3048 = vunpack.c.h.b16 %v649
    %v3049 = vunpack.c.l.b16 %v650
    %v3050 = vunpack.c.h.b16 %v650
    %v3051 = vunpack.c.l.b16 %v651
    %v3052 = vunpack.c.h.b16 %v651
    %v3053 = vunpack.c.l.b16 %v652
    %v3054 = vunpack.c.h.b16 %v652
    %v3055 = vunpack.c.l.b16 %v653
    %v3056 = vunpack.c.h.b16 %v653
    %v3057 = vunpack.c.l.b16 %v654
    %v3058 = vunpack.c.h.b16 %v654
    %v3059 = vunpack.c.l.b16 %v655
    %v3060 = vunpack.c.h.b16 %v655
    %v3061 = vunpack.c.l.b16 %v656
    %v3062 = vunpack.c.h.b16 %v656
    %v3063 = vunpack.c.l.b16 %v657
    %v3064 = vunpack.c.h.b16 %v657
    %v3065 = vunpack.c.l.b16 %v658
    %v3066 = vunpack.c.h.b16 %v658
    %v3067 = vunpack.c.l.b16 %v659
    %v3068 = vunpack.c.h.b16 %v659
    %v3069 = vunpack.c.l.b16 %v660
    %v3070 = vunpack.c.h.b16 %v660
    %v3071 = vunpack.c.l.b16 %v661
    %v3072 = vunpack.c.h.b16 %v661
    %v3073 = vunpack.c.l.b16 %v662
    %v3074 = vunpack.c.h.b16 %v662
    %v3075 = vunpack.c.l.b16 %v663
    %v3076 = vunpack.c.h.b16 %v663
    %v3077 = vunpack.c.l.b16 %v664
    %v3078 = vunpack.c.h.b16 %v664
    %v3079 = vunpack.c.l.b16 %v665
    %v3080 = vunpack.c.h.b16 %v665
    %v3081 = vunpack.c.l.b16 %v666
    %v3082 = vunpack.c.h.b16 %v666
    %v3083 = vunpack.c.l.b16 %v667
    %v3084 = vunpack.c.h.b16 %v667
    %v3085 = vunpack.c.l.b16 %v668
    %v3086 = vunpack.c.h.b16 %v668
    %v3087 = vunpack.c.l.b16 %v669
    %v3088 = vunpack.c.h.b16 %v669
    %v3089 = vunpack.c.l.b16 %v670
    %v3090 = vunpack.c.h.b16 %v670
    %v3091 = vunpack.c.l.b16 %v671
    %v3092 = vunpack.c.h.b16 %v671
    %v3093 = vunpack.c.l.b16 %v672
    %v3094 = vunpack.c.h.b16 %v672
    %v3095 = vunpack.c.l.b16 %v673
    %v3096 = vunpack.c.h.b16 %v673
    %v3097 = vunpack.c.l.b16 %v674
    %v3098 = vunpack.c.h.b16 %v674
    %v3099 = vunpack.c.l.b16 %v675
    %v3100 = vunpack.c.h.b16 %v675
    %v3101 = vunpack.c.l.b16 %v676
    %v3102 = vunpack.c.h.b16 %v676
    %v3103 = vunpack.c.l.b16 %v677
    %v3104 = vunpack.c.h.b16 %v677
    %v3105 = vunpack.c.l.b16 %v678
    %v3106 = vunpack.c.h.b16 %v678
    %v3107 = vunpack.c.l.b16 %v679
    %v3108 = vunpack.c.h.b16 %v679
    %v3109 = vunpack.c.l.b16 %v680
    %v3110 = vunpack.c.h.b16 %v680
    %v3111 = vunpack.c.l.b16 %v681
    %v3112 = vunpack.c.h.b16 %v681
    %v3113 = vunpack.c.l.b16 %v682
    %v3114 = vunpack.c.h.b16 %v682
    %v3115 = vunpack.c.l.b16 %v683
    %v3116 = vunpack.c.h.b16 %v683
    %v3117 = vunpack.c.l.b16 %v684
    %v3118 = vunpack.c.h.b16 %v684
    %v3119 = vunpack.c.l.b16 %v685
    %v3120 = vunpack.c.h.b16 %v685
    %v3121 = vunpack.c.l.b16 %v686
    %v3122 = vunpack.c.h.b16 %v686
    %v3123 = vunpack.c.l.b16 %v687
    %v3124 = vunpack.c.h.b16 %v687
    %v3125 = vunpack.c.l.b16 %v688
    %v3126 = vunpack.c.h.b16 %v688
    %v3127 = vunpack.c.l.b16 %v689
    %v3128 = vunpack.c.h.b16 %v689
    %v3129 = vunpack.c.l.b16 %v690
    %v3130 = vunpack.c.h.b16 %v690
    %v3131 = vunpack.c.l.b16 %v691
    %v3132 = vunpack.c.h.b16 %v691
    %v3133 = vunpack.c.l.b16 %v692
    %v3134 = vunpack.c.h.b16 %v692
    %v3135 = vunpack.c.l.b16 %v693
    %v3136 = vunpack.c.h.b16 %v693
    %v3137 = vunpack.c.l.b16 %v694
    %v3138 = vunpack.c.h.b16 %v694
    %v3139 = vunpack.c.l.b16 %v695
    %v3140 = vunpack.c.h.b16 %v695
    %v3141 = vunpack.c.l.b16 %v696
    %v3142 = vunpack.c.h.b16 %v696
    %v3143 = vunpack.c.l.b16 %v697
    %v3144 = vunpack.c.h.b16 %v697
    %v3145 = vunpack.c.l.b16 %v698
    %v3146 = vunpack.c.h.b16 %v698
    %v3147 = vunpack.c.l.b16 %v699
    %v3148 = vunpack.c.h.b16 %v699
    %v3149 = vunpack.c.l.b16 %v700
    %v3150 = vunpack.c.h.b16 %v700
    %v3151 = vunpack.c.l.b16 %v701
    %v3152 = vunpack.c.h.b16 %v701
    %v3153 = vunpack.c.l.b16 %v702
    %v3154 = vunpack.c.h.b16 %v702
    %v3155 = vunpack.c.l.b16 %v703
    %v3156 = vunpack.c.h.b16 %v703
    %v3157 = vunpack.c.l.b16 %v704
    %v3158 = vunpack.c.h.b16 %v704
    %v3159 = vunpack.c.l.b16 %v705
    %v3160 = vunpack.c.h.b16 %v705
    %v3161 = vunpack.c.l.b16 %v706
    %v3162 = vunpack.c.h.b16 %v706
    %v3163 = vunpack.c.l.b16 %v707
    %v3164 = vunpack.c.h.b16 %v707
    %v3165 = vunpack.c.l.b16 %v708
    %v3166 = vunpack.c.h.b16 %v708
    %v3167 = vunpack.c.l.b16 %v709
    %v3168 = vunpack.c.h.b16 %v709
    %v3169 = vunpack.c.l.b16 %v710
    %v3170 = vunpack.c.h.b16 %v710
    %v3171 = vunpack.c.l.b16 %v711
    %v3172 = vunpack.c.h.b16 %v711
    %v3173 = vunpack.c.l.b16 %v712
    %v3174 = vunpack.c.h.b16 %v712
    %v3175 = vunpack.c.l.b16 %v713
    %v3176 = vunpack.c.h.b16 %v713
    %v3177 = vunpack.c.l.b16 %v714
    %v3178 = vunpack.c.h.b16 %v714
    %v3179 = vunpack.c.l.b16 %v715
    %v3180 = vunpack.c.h.b16 %v715
    %v3181 = vunpack.c.l.b16 %v716
    %v3182 = vunpack.c.h.b16 %v716
    %v3183 = vunpack.c.l.b16 %v717
    %v3184 = vunpack.c.h.b16 %v717
    %v3185 = vunpack.c.l.b16 %v718
    %v3186 = vunpack.c.h.b16 %v718
    %v3187 = vunpack.c.l.b16 %v719
    %v3188 = vunpack.c.h.b16 %v719
    %v3189 = vunpack.c.l.b16 %v720
    %v3190 = vunpack.c.h.b16 %v720
    %v3191 = vunpack.c.l.b16 %v721
    %v3192 = vunpack.c.h.b16 %v721
    %v3193 = vunpack.c.l.b16 %v722
    %v3194 = vunpack.c.h.b16 %v722
    %v3195 = vunpack.c.l.b16 %v723
    %v3196 = vunpack.c.h.b16 %v723
    %v3197 = vunpack.c.l.b16 %v724
    %v3198 = vunpack.c.h.b16 %v724
    %v3199 = vunpack.c.l.b16 %v725
    %v3200 = vunpack.c.h.b16 %v725
    %v3201 = vunpack.c.l.b16 %v726
    %v3202 = vunpack.c.h.b16 %v726
    %v3203 = vunpack.c.l.b16 %v727
    %v3204 = vunpack.c.h.b16 %v727
    %v3205 = vunpack.c.l.b16 %v728
    %v3206 = vunpack.c.h.b16 %v728
    %v3207 = vunpack.c.l.b16 %v729
    %v3208 = vunpack.c.h.b16 %v729
    %v3209 = vunpack.c.l.b16 %v730
    %v3210 = vunpack.c.h.b16 %v730
    %v3211 = vunpack.c.l.b16 %v731
    %v3212 = vunpack.c.h.b16 %v731
    %v3213 = vunpack.c.l.b16 %v732
    %v3214 = vunpack.c.h.b16 %v732
    %v3215 = vunpack.c.l.b16 %v733
    %v3216 = vunpack.c.h.b16 %v733
    %v3217 = vunpack.c.l.b16 %v734
    %v3218 = vunpack.c.h.b16 %v734
    %v3219 = vunpack.c.l.b16 %v735
    %v3220 = vunpack.c.h.b16 %v735
    %v3221 = vunpack.c.l.b16 %v736
    %v3222 = vunpack.c.h.b16 %v736
    %v3223 = vunpack.c.l.b16 %v737
    %v3224 = vunpack.c.h.b16 %v737
    %v3225 = vunpack.c.l.b16 %v738
    %v3226 = vunpack.c.h.b16 %v738
    %v3227 = vunpack.c.l.b16 %v739
    %v3228 = vunpack.c.h.b16 %v739
    %v3229 = vunpack.c.l.b16 %v740
    %v3230 = vunpack.c.h.b16 %v740
    %v3231 = vunpack.c.l.b16 %v741
    %v3232 = vunpack.c.h.b16 %v741
    %v3233 = vunpack.c.l.b16 %v742
    %v3234 = vunpack.c.h.b16 %v742
    %v3235 = vunpack.c.l.b16 %v743
    %v3236 = vunpack.c.h.b16 %v743
    %v3237 = vunpack.c.l.b16 %v744
    %v3238 = vunpack.c.h.b16 %v744
    %v3239 = vunpack.c.l.b16 %v745
    %v3240 = vunpack.c.h.b16 %v745
    %v3241 = vunpack.c.l.b16 %v746
    %v3242 = vunpack.c.h.b16 %v746
    %v3243 = vunpack.c.l.b16 %v747
    %v3244 = vunpack.c.h.b16 %v747
    %v3245 = vunpack.c.l.b16 %v748
    %v3246 = vunpack.c.h.b16 %v748
    %v3247 = vunpack.c.l.b16 %v749
    %v3248 = vunpack.c.h.b16 %v749
    %v3249 = vunpack.c.l.b16 %v750
    %v3250 = vunpack.c.h.b16 %v750
    %v3251 = vunpack.c.l.b16 %v751
    %v3252 = vunpack.c.h.b16 %v751
    %v3253 = vunpack.c.l.b16 %v752
    %v3254 = vunpack.c.h.b16 %v752
    %v3255 = vunpack.c.l.b16 %v753
    %v3256 = vunpack.c.h.b16 %v753
    %v3257 = vunpack.c.l.b16 %v754
    %v3258 = vunpack.c.h.b16 %v754
    %v3259 = vunpack.c.l.b16 %v755
    %v3260 = vunpack.c.h.b16 %v755
    %v3261 = vunpack.c.l.b16 %v756
    %v3262 = vunpack.c.h.b16 %v756
    %v3263 = vunpack.c.l.b16 %v757
    %v3264 = vunpack.c.h.b16 %v757
    %v3265 = vunpack.c.l.b16 %v758
    %v3266 = vunpack.c.h.b16 %v758
    %v3267 = vunpack.c.l.b16 %v759
    %v3268 = vunpack.c.h.b16 %v759
    %v3269 = vunpack.c.l.b16 %v760
    %v3270 = vunpack.c.h.b16 %v760
    %v3271 = vunpack.c.l.b16 %v761
    %v3272 = vunpack.c.h.b16 %v761
    %v3273 = vunpack.c.l.b16 %v762
    %v3274 = vunpack.c.h.b16 %v762
    %v3275 = vunpack.c.l.b16 %v763
    %v3276 = vunpack.c.h.b16 %v763
    %v3277 = vunpack.c.l.b16 %v764
    %v3278 = vunpack.c.h.b16 %v764
    %v3279 = vunpack.c.l.b16 %v765
    %v3280 = vunpack.c.h.b16 %v765
    %v3281 = vunpack.c.l.b16 %v766
    %v3282 = vunpack.c.h.b16 %v766
    %v3283 = vunpack.c.l.b16 %v767
    %v3284 = vunpack.c.h.b16 %v767
    %v3285 = vunpack.c.l.b16 %v768
    %v3286 = vunpack.c.h.b16 %v768
    %v3287 = vunpack.c.l.b16 %v769
    %v3288 = vunpack.c.h.b16 %v769
    %v3289 = vunpack.c.l.b16 %v770
    %v3290 = vunpack.c.h.b16 %v770
    %v3291 = vunpack.c.l.b16 %v771
    %v3292 = vunpack.c.h.b16 %v771
    %v3293 = vunpack.c.l.b16 %v772
    %v3294 = vunpack.c.h.b16 %v772
    %v3295 = vunpack.c.l.b16 %v773
    %v3296 = vunpack.c.h.b16 %v773
    %v3297 = vunpack.c.l.b16 %v774
    %v3298 = vunpack.c.h.b16 %v774
    %v3299 = vunpack.c.l.b16 %v775
    %v3300 = vunpack.c.h.b16 %v775
    %v3301 = vunpack.c.l.b16 %v776
    %v3302 = vunpack.c.h.b16 %v776
    %v3303 = vunpack.c.l.b16 %v777
    %v3304 = vunpack.c.h.b16 %v777
    %v3305 = vunpack.c.l.b16 %v778
    %v3306 = vunpack.c.h.b16 %v778
    %v3307 = vunpack.c.l.b16 %v779
    %v3308 = vunpack.c.h.b16 %v779
    %v3309 = vunpack.c.l.b16 %v780
    %v3310 = vunpack.c.h.b16 %v780
    %v3311 = vunpack.c.l.b16 %v781
    %v3312 = vunpack.c.h.b16 %v781
    %v3313 = vunpack.c.l.b16 %v782
    %v3314 = vunpack.c.h.b16 %v782
    %v3315 = vunpack.c.l.b16 %v783
    %v3316 = vunpack.c.h.b16 %v783
    %v3317 = vunpack.c.l.b16 %v784
    %v3318 = vunpack.c.h.b16 %v784
    %v3319 = vunpack.c.l.b16 %v785
    %v3320 = vunpack.c.h.b16 %v785
    %v3321 = vunpack.c.l.b16 %v786
    %v3322 = vunpack.c.h.b16 %v786
    %v3323 = vunpack.c.l.b16 %v787
    %v3324 = vunpack.c.h.b16 %v787
    %v3325 = vunpack.c.l.b16 %v788
    %v3326 = vunpack.c.h.b16 %v788
    %v3327 = vunpack.c.l.b16 %v789
    %v3328 = vunpack.c.h.b16 %v789
    %v3329 = vunpack.c.l.b16 %v790
    %v3330 = vunpack.c.h.b16 %v790
    %v3331 = vunpack.c.l.b16 %v791
    %v3332 = vunpack.c.h.b16 %v791
    %v3333 = vunpack.c.l.b16 %v792
    %v3334 = vunpack.c.h.b16 %v792
    %v3335 = vunpack.c.l.b16 %v793
    %v3336 = vunpack.c.h.b16 %v793
    %v3337 = vunpack.c.l.b16 %v794
    %v3338 = vunpack.c.h.b16 %v794
    %v3339 = vunpack.c.l.b16 %v795
    %v3340 = vunpack.c.h.b16 %v795
    %v3341 = vunpack.c.l.b16 %v796
    %v3342 = vunpack.c.h.b16 %v796
    %v3343 = vunpack.c.l.b16 %v797
    %v3344 = vunpack.c.h.b16 %v797
    %v3345 = vunpack.c.l.b16 %v798
    %v3346 = vunpack.c.h.b16 %v798
    %v3347 = vunpack.c.l.b16 %v799
    %v3348 = vunpack.c.h.b16 %v799
    %v3349 = vunpack.c.l.b16 %v800
    %v3350 = vunpack.c.h.b16 %v800
    %v3351 = vunpack.c.l.b16 %v801
    %v3352 = vunpack.c.h.b16 %v801
    %v3353 = vunpack.c.l.b16 %v802
    %v3354 = vunpack.c.h.b16 %v802
    %v3355 = vunpack.c.l.b16 %v803
    %v3356 = vunpack.c.h.b16 %v803
    %v3357 = vunpack.c.l.b16 %v804
    %v3358 = vunpack.c.h.b16 %v804
    %v3359 = vunpack.c.l.b16 %v805
    %v3360 = vunpack.c.h.b16 %v805
    %v3361 = vunpack.c.l.b16 %v806
    %v3362 = vunpack.c.h.b16 %v806
    %v3363 = vunpack.c.l.b16 %v807
    %v3364 = vunpack.c.h.b16 %v807
    %v3365 = vunpack.c.l.b16 %v808
    %v3366 = vunpack.c.h.b16 %v808
    %v3367 = vunpack.c.l.b16 %v809
    %v3368 = vunpack.c.h.b16 %v809
    %v3369 = vunpack.c.l.b16 %v810
    %v3370 = vunpack.c.h.b16 %v810
    %v3371 = vpack.c.b16 %v2101, %v2091
    %v3372 = vpack.c.b16 %v2102, %v2092
    %v3373 = vpack.c.b16 %v2103, %v2093
    %v3374 = vpack.c.b16 %v2104, %v2094
    %v3375 = vpack.c.b16 %v2105, %v2095
    %v3376 = vpack.c.b16 %v2106, %v2096
    %v3377 = vpack.c.b16 %v2107, %v2097
    %v3378 = vpack.c.b16 %v2108, %v2098
    %v3379 = vpack.c.b16 %v2109, %v2099
    %v3380 = vpack.c.b16 %v2110, %v2100
    %v3381 = vpack.c.b16 %v2121, %v2111
    %v3382 = vpack.c.b16 %v2122, %v2112
    %v3383 = vpack.c.b16 %v2123, %v2113
    %v3384 = vpack.c.b16 %v2124, %v2114
    %v3385 = vpack.c.b16 %v2125, %v2115
    %v3386 = vpack.c.b16 %v2126, %v2116
    %v3387 = vpack.c.b16 %v2127, %v2117
    %v3388 = vpack.c.b16 %v2128, %v2118
    %v3389 = vpack.c.b16 %v2129, %v2119
    %v3390 = vpack.c.b16 %v2130, %v2120
    %v3391 = vpack.c.b16 %v2141, %v2131
    %v3392 = vpack.c.b16 %v2142, %v2132
    %v3393 = vpack.c.b16 %v2143, %v2133
    %v3394 = vpack.c.b16 %v2144, %v2134
    %v3395 = vpack.c.b16 %v2145, %v2135
    %v3396 = vpack.c.b16 %v2146, %v2136
    %v3397 = vpack.c.b16 %v2147, %v2137
    %v3398 = vpack.c.b16 %v2148, %v2138
    %v3399 = vpack.c.b16 %v2149, %v2139
    %v3400 = vpack.c.b16 %v2150, %v2140
    %v3401 = vpack.c.b16 %v2161, %v2151
    %v3402 = vpack.c.b16 %v2162, %v2152
    %v3403 = vpack.c.b16 %v2163, %v2153
    %v3404 = vpack.c.b16 %v2164, %v2154
    %v3405 = vpack.c.b16 %v2165, %v2155
    %v3406 = vpack.c.b16 %v2166, %v2156
    %v3407 = vpack.c.b16 %v2167, %v2157
    %v3408 = vpack.c.b16 %v2168, %v2158
    %v3409 = vpack.c.b16 %v2169, %v2159
    %v3410 = vpack.c.b16 %v2170, %v2160
    %v3411 = vpack.c.b16 %v2181, %v2171
    %v3412 = vpack.c.b16 %v2182, %v2172
    %v3413 = vpack.c.b16 %v2183, %v2173
    %v3414 = vpack.c.b16 %v2184, %v2174
    %v3415 = vpack.c.b16 %v2185, %v2175
    %v3416 = vpack.c.b16 %v2186, %v2176
    %v3417 = vpack.c.b16 %v2187, %v2177
    %v3418 = vpack.c.b16 %v2188, %v2178
    %v3419 = vpack.c.b16 %v2189, %v2179
    %v3420 = vpack.c.b16 %v2190, %v2180
    %v3421 = vpack.c.b16 %v2201, %v2191
    %v3422 = vpack.c.b16 %v2202, %v2192
    %v3423 = vpack.c.b16 %v2203, %v2193
    %v3424 = vpack.c.b16 %v2204, %v2194
    %v3425 = vpack.c.b16 %v2205, %v2195
    %v3426 = vpack.c.b16 %v2206, %v2196
    %v3427 = vpack.c.b16 %v2207, %v2197
    %v3428 = vpack.c.b16 %v2208, %v2198
    %v3429 = vpack.c.b16 %v2209, %v2199
    %v3430 = vpack.c.b16 %v2210, %v2200
    %v3431 = vpack.c.b16 %v2221, %v2211
    %v3432 = vpack.c.b16 %v2222, %v2212
    %v3433 = vpack.c.b16 %v2223, %v2213
    %v3434 = vpack.c.b16 %v2224, %v2214
    %v3435 = vpack.c.b16 %v2225, %v2215
    %v3436 = vpack.c.b16 %v2226, %v2216
    %v3437 = vpack.c.b16 %v2227, %v2217
    %v3438 = vpack.c.b16 %v2228, %v2218
    %v3439 = vpack.c.b16 %v2229, %v2219
    %v3440 = vpack.c.b16 %v2230, %v2220
    %v3441 = vpack.c.b16 %v2241, %v2231
    %v3442 = vpack.c.b16 %v2242, %v2232
    %v3443 = vpack.c.b16 %v2243, %v2233
    %v3444 = vpack.c.b16 %v2244, %v2234
    %v3445 = vpack.c.b16 %v2245, %v2235
    %v3446 = vpack.c.b16 %v2246, %v2236
    %v3447 = vpack.c.b16 %v2247, %v2237
    %v3448 = vpack.c.b16 %v2248, %v2238
    %v3449 = vpack.c.b16 %v2249, %v2239
    %v3450 = vpack.c.b16 %v2250, %v2240
    %v3451 = vpack.c.b16 %v2261, %v2251
    %v3452 = vpack.c.b16 %v2262, %v2252
    %v3453 = vpack.c.b16 %v2263, %v2253
    %v3454 = vpack.c.b16 %v2264, %v2254
    %v3455 = vpack.c.b16 %v2265, %v2255
    %v3456 = vpack.c.b16 %v2266, %v2256
    %v3457 = vpack.c.b16 %v2267, %v2257
    %v3458 = vpack.c.b16 %v2268, %v2258
    %v3459 = vpack.c.b16 %v2269, %v2259
    %v3460 = vpack.c.b16 %v2270, %v2260
    %v3461 = vpack.c.b16 %v2281, %v2271
    %v3462 = vpack.c.b16 %v2282, %v2272
    %v3463 = vpack.c.b16 %v2283, %v2273
    %v3464 = vpack.c.b16 %v2284, %v2274
    %v3465 = vpack.c.b16 %v2285, %v2275
    %v3466 = vpack.c.b16 %v2286, %v2276
    %v3467 = vpack.c.b16 %v2287, %v2277
    %v3468 = vpack.c.b16 %v2288, %v2278
    %v3469 = vpack.c.b16 %v2289, %v2279
    %v3470 = vpack.c.b16 %v2290, %v2280
    %v3471 = vpack.c.b16 %v2301, %v2291
    %v3472 = vpack.c.b16 %v2302, %v2292
    %v3473 = vpack.c.b16 %v2303, %v2293
    %v3474 = vpack.c.b16 %v2304, %v2294
    %v3475 = vpack.c.b16 %v2305, %v2295
    %v3476 = vpack.c.b16 %v2306, %v2296
    %v3477 = vpack.c.b16 %v2307, %v2297
    %v3478 = vpack.c.b16 %v2308, %v2298
    %v3479 = vpack.c.b16 %v2309, %v2299
    %v3480 = vpack.c.b16 %v2310, %v2300
    %v3481 = vpack.c.b16 %v2321, %v2311
    %v3482 = vpack.c.b16 %v2322, %v2312
    %v3483 = vpack.c.b16 %v2323, %v2313
    %v3484 = vpack.c.b16 %v2324, %v2314
    %v3485 = vpack.c.b16 %v2325, %v2315
    %v3486 = vpack.c.b16 %v2326, %v2316
    %v3487 = vpack.c.b16 %v2327, %v2317
    %v3488 = vpack.c.b16 %v2328, %v2318
    %v3489 = vpack.c.b16 %v2329, %v2319
    %v3490 = vpack.c.b16 %v2330, %v2320
    %v3491 = vpack.c.b16 %v2341, %v2331
    %v3492 = vpack.c.b16 %v2342, %v2332
    %v3493 = vpack.c.b16 %v2343, %v2333
    %v3494 = vpack.c.b16 %v2344, %v2334
    %v3495 = vpack.c.b16 %v2345, %v2335
    %v3496 = vpack.c.b16 %v2346, %v2336
    %v3497 = vpack.c.b16 %v2347, %v2337
    %v3498 = vpack.c.b16 %v2348, %v2338
    %v3499 = vpack.c.b16 %v2349, %v2339
    %v3500 = vpack.c.b16 %v2350, %v2340
    %v3501 = vpack.c.b16 %v2361, %v2351
    %v3502 = vpack.c.b16 %v2362, %v2352
    %v3503 = vpack.c.b16 %v2363, %v2353
    %v3504 = vpack.c.b16 %v2364, %v2354
    %v3505 = vpack.c.b16 %v2365, %v2355
    %v3506 = vpack.c.b16 %v2366, %v2356
    %v3507 = vpack.c.b16 %v2367, %v2357
    %v3508 = vpack.c.b16 %v2368, %v2358
    %v3509 = vpack.c.b16 %v2369, %v2359
    %v3510 = vpack.c.b16 %v2370, %v2360
    %v3511 = vpack.c.b16 %v2381, %v2371
    %v3512 = vpack.c.b16 %v2382, %v2372
    %v3513 = vpack.c.b16 %v2383, %v2373
    %v3514 = vpack.c.b16 %v2384, %v2374
    %v3515 = vpack.c.b16 %v2385, %v2375
    %v3516 = vpack.c.b16 %v2386, %v2376
    %v3517 = vpack.c.b16 %v2387, %v2377
    %v3518 = vpack.c.b16 %v2388, %v2378
    %v3519 = vpack.c.b16 %v2389, %v2379
    %v3520 = vpack.c.b16 %v2390, %v2380
    %v3521 = vpack.c.b16 %v2401, %v2391
    %v3522 = vpack.c.b16 %v2402, %v2392
    %v3523 = vpack.c.b16 %v2403, %v2393
    %v3524 = vpack.c.b16 %v2404, %v2394
    %v3525 = vpack.c.b16 %v2405, %v2395
    %v3526 = vpack.c.b16 %v2406, %v2396
    %v3527 = vpack.c.b16 %v2407, %v2397
    %v3528 = vpack.c.b16 %v2408, %v2398
    %v3529 = vpack.c.b16 %v2409, %v2399
    %v3530 = vpack.c.b16 %v2410, %v2400
    %v3531 = vpack.c.b16 %v2421, %v2411
    %v3532 = vpack.c.b16 %v2422, %v2412
    %v3533 = vpack.c.b16 %v2423, %v2413
    %v3534 = vpack.c.b16 %v2424, %v2414
    %v3535 = vpack.c.b16 %v2425, %v2415
    %v3536 = vpack.c.b16 %v2426, %v2416
    %v3537 = vpack.c.b16 %v2427, %v2417
    %v3538 = vpack.c.b16 %v2428, %v2418
    %v3539 = vpack.c.b16 %v2429, %v2419
    %v3540 = vpack.c.b16 %v2430, %v2420
    %v3541 = vpack.c.b16 %v2441, %v2431
    %v3542 = vpack.c.b16 %v2442, %v2432
    %v3543 = vpack.c.b16 %v2443, %v2433
    %v3544 = vpack.c.b16 %v2444, %v2434
    %v3545 = vpack.c.b16 %v2445, %v2435
    %v3546 = vpack.c.b16 %v2446, %v2436
    %v3547 = vpack.c.b16 %v2447, %v2437
    %v3548 = vpack.c.b16 %v2448, %v2438
    %v3549 = vpack.c.b16 %v2449, %v2439
    %v3550 = vpack.c.b16 %v2450, %v2440
    %v3551 = vpack.c.b16 %v2461, %v2451
    %v3552 = vpack.c.b16 %v2462, %v2452
    %v3553 = vpack.c.b16 %v2463, %v2453
    %v3554 = vpack.c.b16 %v2464, %v2454
    %v3555 = vpack.c.b16 %v2465, %v2455
    %v3556 = vpack.c.b16 %v2466, %v2456
    %v3557 = vpack.c.b16 %v2467, %v2457
    %v3558 = vpack.c.b16 %v2468, %v2458
    %v3559 = vpack.c.b16 %v2469, %v2459
    %v3560 = vpack.c.b16 %v2470, %v2460
    %v3561 = vpack.c.b16 %v2481, %v2471
    %v3562 = vpack.c.b16 %v2482, %v2472
    %v3563 = vpack.c.b16 %v2483, %v2473
    %v3564 = vpack.c.b16 %v2484, %v2474
    %v3565 = vpack.c.b16 %v2485, %v2475
    %v3566 = vpack.c.b16 %v2486, %v2476
    %v3567 = vpack.c.b16 %v2487, %v2477
    %v3568 = vpack.c.b16 %v2488, %v2478
    %v3569 = vpack.c.b16 %v2489, %v2479
    %v3570 = vpack.c.b16 %v2490, %v2480
    %v3571 = vpack.c.b16 %v2501, %v2491
    %v3572 = vpack.c.b16 %v2502, %v2492
    %v3573 = vpack.c.b16 %v2503, %v2493
    %v3574 = vpack.c.b16 %v2504, %v2494
    %v3575 = vpack.c.b16 %v2505, %v2495
    %v3576 = vpack.c.b16 %v2506, %v2496
    %v3577 = vpack.c.b16 %v2507, %v2497
    %v3578 = vpack.c.b16 %v2508, %v2498
    %v3579 = vpack.c.b16 %v2509, %v2499
    %v3580 = vpack.c.b16 %v2510, %v2500
    %v3581 = vpack.c.b16 %v2521, %v2511
    %v3582 = vpack.c.b16 %v2522, %v2512
    %v3583 = vpack.c.b16 %v2523, %v2513
    %v3584 = vpack.c.b16 %v2524, %v2514
    %v3585 = vpack.c.b16 %v2525, %v2515
    %v3586 = vpack.c.b16 %v2526, %v2516
    %v3587 = vpack.c.b16 %v2527, %v2517
    %v3588 = vpack.c.b16 %v2528, %v2518
    %v3589 = vpack.c.b16 %v2529, %v2519
    %v3590 = vpack.c.b16 %v2530, %v2520
    %v3591 = vpack.c.b16 %v2541, %v2531
    %v3592 = vpack.c.b16 %v2542, %v2532
    %v3593 = vpack.c.b16 %v2543, %v2533
    %v3594 = vpack.c.b16 %v2544, %v2534
    %v3595 = vpack.c.b16 %v2545, %v2535
    %v3596 = vpack.c.b16 %v2546, %v2536
    %v3597 = vpack.c.b16 %v2547, %v2537
    %v3598 = vpack.c.b16 %v2548, %v2538
    %v3599 = vpack.c.b16 %v2549, %v2539
    %v3600 = vpack.c.b16 %v2550, %v2540
    %v3601 = vpack.c.b16 %v2561, %v2551
    %v3602 = vpack.c.b16 %v2562, %v2552
    %v3603 = vpack.c.b16 %v2563, %v2553
    %v3604 = vpack.c.b16 %v2564, %v2554
    %v3605 = vpack.c.b16 %v2565, %v2555
    %v3606 = vpack.c.b16 %v2566, %v2556
    %v3607 = vpack.c.b16 %v2567, %v2557
    %v3608 = vpack.c.b16 %v2568, %v2558
    %v3609 = vpack.c.b16 %v2569, %v2559
    %v3610 = vpack.c.b16 %v2570, %v2560
    %v3611 = vpack.c.b16 %v2581, %v2571
    %v3612 = vpack.c.b16 %v2582, %v2572
    %v3613 = vpack.c.b16 %v2583, %v2573
    %v3614 = vpack.c.b16 %v2584, %v2574
    %v3615 = vpack.c.b16 %v2585, %v2575
    %v3616 = vpack.c.b16 %v2586, %v2576
    %v3617 = vpack.c.b16 %v2587, %v2577
    %v3618 = vpack.c.b16 %v2588, %v2578
    %v3619 = vpack.c.b16 %v2589, %v2579
    %v3620 = vpack.c.b16 %v2590, %v2580
    %v3621 = vpack.c.b16 %v2601, %v2591
    %v3622 = vpack.c.b16 %v2602, %v2592
    %v3623 = vpack.c.b16 %v2603, %v2593
    %v3624 = vpack.c.b16 %v2604, %v2594
    %v3625 = vpack.c.b16 %v2605, %v2595
    %v3626 = vpack.c.b16 %v2606, %v2596
    %v3627 = vpack.c.b16 %v2607, %v2597
    %v3628 = vpack.c.b16 %v2608, %v2598
    %v3629 = vpack.c.b16 %v2609, %v2599
    %v3630 = vpack.c.b16 %v2610, %v2600
    %v3631 = vpack.c.b16 %v2621, %v2611
    %v3632 = vpack.c.b16 %v2622, %v2612
    %v3633 = vpack.c.b16 %v2623, %v2613
    %v3634 = vpack.c.b16 %v2624, %v2614
    %v3635 = vpack.c.b16 %v2625, %v2615
    %v3636 = vpack.c.b16 %v2626, %v2616
    %v3637 = vpack.c.b16 %v2627, %v2617
    %v3638 = vpack.c.b16 %v2628, %v2618
    %v3639 = vpack.c.b16 %v2629, %v2619
    %v3640 = vpack.c.b16 %v2630, %v2620
    %v3641 = vpack.c.b16 %v2641, %v2631
    %v3642 = vpack.c.b16 %v2642, %v2632
    %v3643 = vpack.c.b16 %v2643, %v2633
    %v3644 = vpack.c.b16 %v2644, %v2634
    %v3645 = vpack.c.b16 %v2645, %v2635
    %v3646 = vpack.c.b16 %v2646, %v2636
    %v3647 = vpack.c.b16 %v2647, %v2637
    %v3648 = vpack.c.b16 %v2648, %v2638
    %v3649 = vpack.c.b16 %v2649, %v2639
    %v3650 = vpack.c.b16 %v2650, %v2640
    %v3651 = vpack.c.b16 %v2661, %v2651
    %v3652 = vpack.c.b16 %v2662, %v2652
    %v3653 = vpack.c.b16 %v2663, %v2653
    %v3654 = vpack.c.b16 %v2664, %v2654
    %v3655 = vpack.c.b16 %v2665, %v2655
    %v3656 = vpack.c.b16 %v2666, %v2656
    %v3657 = vpack.c.b16 %v2667, %v2657
    %v3658 = vpack.c.b16 %v2668, %v2658
    %v3659 = vpack.c.b16 %v2669, %v2659
    %v3660 = vpack.c.b16 %v2670, %v2660
    %v3661 = vpack.c.b16 %v2681, %v2671
    %v3662 = vpack.c.b16 %v2682, %v2672
    %v3663 = vpack.c.b16 %v2683, %v2673
    %v3664 = vpack.c.b16 %v2684, %v2674
    %v3665 = vpack.c.b16 %v2685, %v2675
    %v3666 = vpack.c.b16 %v2686, %v2676
    %v3667 = vpack.c.b16 %v2687, %v2677
    %v3668 = vpack.c.b16 %v2688, %v2678
    %v3669 = vpack.c.b16 %v2689, %v2679
    %v3670 = vpack.c.b16 %v2690, %v2680
    %v3671 = vpack.c.b16 %v2701, %v2691
    %v3672 = vpack.c.b16 %v2702, %v2692
    %v3673 = vpack.c.b16 %v2703, %v2693
    %v3674 = vpack.c.b16 %v2704, %v2694
    %v3675 = vpack.c.b16 %v2705, %v2695
    %v3676 = vpack.c.b16 %v2706, %v2696
    %v3677 = vpack.c.b16 %v2707, %v2697
    %v3678 = vpack.c.b16 %v2708, %v2698
    %v3679 = vpack.c.b16 %v2709, %v2699
    %v3680 = vpack.c.b16 %v2710, %v2700
    %v3681 = vpack.c.b16 %v2721, %v2711
    %v3682 = vpack.c.b16 %v2722, %v2712
    %v3683 = vpack.c.b16 %v2723, %v2713
    %v3684 = vpack.c.b16 %v2724, %v2714
    %v3685 = vpack.c.b16 %v2725, %v2715
    %v3686 = vpack.c.b16 %v2726, %v2716
    %v3687 = vpack.c.b16 %v2727, %v2717
    %v3688 = vpack.c.b16 %v2728, %v2718
    %v3689 = vpack.c.b16 %v2729, %v2719
    %v3690 = vpack.c.b16 %v2730, %v2720
    %v3691 = vpack.c.b16 %v2741, %v2731
    %v3692 = vpack.c.b16 %v2742, %v2732
    %v3693 = vpack.c.b16 %v2743, %v2733
    %v3694 = vpack.c.b16 %v2744, %v2734
    %v3695 = vpack.c.b16 %v2745, %v2735
    %v3696 = vpack.c.b16 %v2746, %v2736
    %v3697 = vpack.c.b16 %v2747, %v2737
    %v3698 = vpack.c.b16 %v2748, %v2738
    %v3699 = vpack.c.b16 %v2749, %v2739
    %v3700 = vpack.c.b16 %v2750, %v2740
    %v3701 = vpack.c.b16 %v2761, %v2751
    %v3702 = vpack.c.b16 %v2762, %v2752
    %v3703 = vpack.c.b16 %v2763, %v2753
    %v3704 = vpack.c.b16 %v2764, %v2754
    %v3705 = vpack.c.b16 %v2765, %v2755
    %v3706 = vpack.c.b16 %v2766, %v2756
    %v3707 = vpack.c.b16 %v2767, %v2757
    %v3708 = vpack.c.b16 %v2768, %v2758
    %v3709 = vpack.c.b16 %v2769, %v2759
    %v3710 = vpack.c.b16 %v2770, %v2760
    %v3711 = vpack.c.b16 %v2781, %v2771
    %v3712 = vpack.c.b16 %v2782, %v2772
    %v3713 = vpack.c.b16 %v2783, %v2773
    %v3714 = vpack.c.b16 %v2784, %v2774
    %v3715 = vpack.c.b16 %v2785, %v2775
    %v3716 = vpack.c.b16 %v2786, %v2776
    %v3717 = vpack.c.b16 %v2787, %v2777
    %v3718 = vpack.c.b16 %v2788, %v2778
    %v3719 = vpack.c.b16 %v2789, %v2779
    %v3720 = vpack.c.b16 %v2790, %v2780
    %v3721 = vpack.c.b16 %v2801, %v2791
    %v3722 = vpack.c.b16 %v2802, %v2792
    %v3723 = vpack.c.b16 %v2803, %v2793
    %v3724 = vpack.c.b16 %v2804, %v2794
    %v3725 = vpack.c.b16 %v2805, %v2795
    %v3726 = vpack.c.b16 %v2806, %v2796
    %v3727 = vpack.c.b16 %v2807, %v2797
    %v3728 = vpack.c.b16 %v2808, %v2798
    %v3729 = vpack.c.b16 %v2809, %v2799
    %v3730 = vpack.c.b16 %v2810, %v2800
    %v3731 = vpack.c.b16 %v2821, %v2811
    %v3732 = vpack.c.b16 %v2822, %v2812
    %v3733 = vpack.c.b16 %v2823, %v2813
    %v3734 = vpack.c.b16 %v2824, %v2814
    %v3735 = vpack.c.b16 %v2825, %v2815
    %v3736 = vpack.c.b16 %v2826, %v2816
    %v3737 = vpack.c.b16 %v2827, %v2817
    %v3738 = vpack.c.b16 %v2828, %v2818
    %v3739 = vpack.c.b16 %v2829, %v2819
    %v3740 = vpack.c.b16 %v2830, %v2820
    %v3741 = vpack.c.b16 %v2841, %v2831
    %v3742 = vpack.c.b16 %v2842, %v2832
    %v3743 = vpack.c.b16 %v2843, %v2833
    %v3744 = vpack.c.b16 %v2844, %v2834
    %v3745 = vpack.c.b16 %v2845, %v2835
    %v3746 = vpack.c.b16 %v2846, %v2836
    %v3747 = vpack.c.b16 %v2847, %v2837
    %v3748 = vpack.c.b16 %v2848, %v2838
    %v3749 = vpack.c.b16 %v2849, %v2839
    %v3750 = vpack.c.b16 %v2850, %v2840
    %v3751 = vpack.c.b16 %v2861, %v2851
    %v3752 = vpack.c.b16 %v2862, %v2852
    %v3753 = vpack.c.b16 %v2863, %v2853
    %v3754 = vpack.c.b16 %v2864, %v2854
    %v3755 = vpack.c.b16 %v2865, %v2855
    %v3756 = vpack.c.b16 %v2866, %v2856
    %v3757 = vpack.c.b16 %v2867, %v2857
    %v3758 = vpack.c.b16 %v2868, %v2858
    %v3759 = vpack.c.b16 %v2869, %v2859
    %v3760 = vpack.c.b16 %v2870, %v2860
    %v3761 = vpack.c.b16 %v2881, %v2871
    %v3762 = vpack.c.b16 %v2882, %v2872
    %v3763 = vpack.c.b16 %v2883, %v2873
    %v3764 = vpack.c.b16 %v2884, %v2874
    %v3765 = vpack.c.b16 %v2885, %v2875
    %v3766 = vpack.c.b16 %v2886, %v2876
    %v3767 = vpack.c.b16 %v2887, %v2877
    %v3768 = vpack.c.b16 %v2888, %v2878
    %v3769 = vpack.c.b16 %v2889, %v2879
    %v3770 = vpack.c.b16 %v2890, %v2880
    %v3771 = vpack.c.b16 %v2901, %v2891
    %v3772 = vpack.c.b16 %v2902, %v2892
    %v3773 = vpack.c.b16 %v2903, %v2893
    %v3774 = vpack.c.b16 %v2904, %v2894
    %v3775 = vpack.c.b16 %v2905, %v2895
    %v3776 = vpack.c.b16 %v2906, %v2896
    %v3777 = vpack.c.b16 %v2907, %v2897
    %v3778 = vpack.c.b16 %v2908, %v2898
    %v3779 = vpack.c.b16 %v2909, %v2899
    %v3780 = vpack.c.b16 %v2910, %v2900
    %v3781 = vpack.c.b16 %v2921, %v2911
    %v3782 = vpack.c.b16 %v2922, %v2912
    %v3783 = vpack.c.b16 %v2923, %v2913
    %v3784 = vpack.c.b16 %v2924, %v2914
    %v3785 = vpack.c.b16 %v2925, %v2915
    %v3786 = vpack.c.b16 %v2926, %v2916
    %v3787 = vpack.c.b16 %v2927, %v2917
    %v3788 = vpack.c.b16 %v2928, %v2918
    %v3789 = vpack.c.b16 %v2929, %v2919
    %v3790 = vpack.c.b16 %v2930, %v2920
    %v3791 = vpack.c.b16 %v2941, %v2931
    %v3792 = vpack.c.b16 %v2942, %v2932
    %v3793 = vpack.c.b16 %v2943, %v2933
    %v3794 = vpack.c.b16 %v2944, %v2934
    %v3795 = vpack.c.b16 %v2945, %v2935
    %v3796 = vpack.c.b16 %v2946, %v2936
    %v3797 = vpack.c.b16 %v2947, %v2937
    %v3798 = vpack.c.b16 %v2948, %v2938
    %v3799 = vpack.c.b16 %v2949, %v2939
    %v3800 = vpack.c.b16 %v2950, %v2940
    %v3801 = vpack.c.b16 %v2961, %v2951
    %v3802 = vpack.c.b16 %v2962, %v2952
    %v3803 = vpack.c.b16 %v2963, %v2953
    %v3804 = vpack.c.b16 %v2964, %v2954
    %v3805 = vpack.c.b16 %v2965, %v2955
    %v3806 = vpack.c.b16 %v2966, %v2956
    %v3807 = vpack.c.b16 %v2967, %v2957
    %v3808 = vpack.c.b16 %v2968, %v2958
    %v3809 = vpack.c.b16 %v2969, %v2959
    %v3810 = vpack.c.b16 %v2970, %v2960
    %v3811 = vpack.c.b16 %v2981, %v2971
    %v3812 = vpack.c.b16 %v2982, %v2972
    %v3813 = vpack.c.b16 %v2983, %v2973
    %v3814 = vpack.c.b16 %v2984, %v2974
    %v3815 = vpack.c.b16 %v2985, %v2975
    %v3816 = vpack.c.b16 %v2986, %v2976
    %v3817 = vpack.c.b16 %v2987, %v2977
    %v3818 = vpack.c.b16 %v2988, %v2978
    %v3819 = vpack.c.b16 %v2989, %v2979
    %v3820 = vpack.c.b16 %v2990, %v2980
    %v3821 = vpack.c.b16 %v3001, %v2991
    %v3822 = vpack.c.b16 %v3002, %v2992
    %v3823 = vpack.c.b16 %v3003, %v2993
    %v3824 = vpack.c.b16 %v3004, %v2994
    %v3825 = vpack.c.b16 %v3005, %v2995
    %v3826 = vpack.c.b16 %v3006, %v2996
    %v3827 = vpack.c.b16 %v3007, %v2997
    %v3828 = vpack.c.b16 %v3008, %v2998
    %v3829 = vpack.c.b16 %v3009, %v2999
    %v3830 = vpack.c.b16 %v3010, %v3000
    %v3831 = vpack.c.b16 %v3021, %v3011
    %v3832 = vpack.c.b16 %v3022, %v3012
    %v3833 = vpack.c.b16 %v3023, %v3013
    %v3834 = vpack.c.b16 %v3024, %v3014
    %v3835 = vpack.c.b16 %v3025, %v3015
    %v3836 = vpack.c.b16 %v3026, %v3016
    %v3837 = vpack.c.b16 %v3027, %v3017
    %v3838 = vpack.c.b16 %v3028, %v3018
    %v3839 = vpack.c.b16 %v3029, %v3019
    %v3840 = vpack.c.b16 %v3030, %v3020
    %v3841 = vpack.c.b16 %v3041, %v3031
    %v3842 = vpack.c.b16 %v3042, %v3032
    %v3843 = vpack.c.b16 %v3043, %v3033
    %v3844 = vpack.c.b16 %v3044, %v3034
    %v3845 = vpack.c.b16 %v3045, %v3035
    %v3846 = vpack.c.b16 %v3046, %v3036
    %v3847 = vpack.c.b16 %v3047, %v3037
    %v3848 = vpack.c.b16 %v3048, %v3038
    %v3849 = vpack.c.b16 %v3049, %v3039
    %v3850 = vpack.c.b16 %v3050, %v3040
    %v3851 = vpack.c.b16 %v3061, %v3051
    %v3852 = vpack.c.b16 %v3062, %v3052
    %v3853 = vpack.c.b16 %v3063, %v3053
    %v3854 = vpack.c.b16 %v3064, %v3054
    %v3855 = vpack.c.b16 %v3065, %v3055
    %v3856 = vpack.c.b16 %v3066, %v3056
    %v3857 = vpack.c.b16 %v3067, %v3057
    %v3858 = vpack.c.b16 %v3068, %v3058
    %v3859 = vpack.c.b16 %v3069, %v3059
    %v3860 = vpack.c.b16 %v3070, %v3060
    %v3861 = vpack.c.b16 %v3081, %v3071
    %v3862 = vpack.c.b16 %v3082, %v3072
    %v3863 = vpack.c.b16 %v3083, %v3073
    %v3864 = vpack.c.b16 %v3084, %v3074
    %v3865 = vpack.c.b16 %v3085, %v3075
    %v3866 = vpack.c.b16 %v3086, %v3076
    %v3867 = vpack.c.b16 %v3087, %v3077
    %v3868 = vpack.c.b16 %v3088, %v3078
    %v3869 = vpack.c.b16 %v3089, %v3079
    %v3870 = vpack.c.b16 %v3090, %v3080
    %v3871 = vpack.c.b16 %v3101, %v3091
    %v3872 = vpack.c.b16 %v3102, %v3092
    %v3873 = vpack.c.b16 %v3103, %v3093
    %v3874 = vpack.c.b16 %v3104, %v3094
    %v3875 = vpack.c.b16 %v3105, %v3095
    %v3876 = vpack.c.b16 %v3106, %v3096
    %v3877 = vpack.c.b16 %v3107, %v3097
    %v3878 = vpack.c.b16 %v3108, %v3098
    %v3879 = vpack.c.b16 %v3109, %v3099
    %v3880 = vpack.c.b16 %v3110, %v3100
    %v3881 = vpack.c.b16 %v3121, %v3111
    %v3882 = vpack.c.b16 %v3122, %v3112
    %v3883 = vpack.c.b16 %v3123, %v3113
    %v3884 = vpack.c.b16 %v3124, %v3114
    %v3885 = vpack.c.b16 %v3125, %v3115
    %v3886 = vpack.c.b16 %v3126, %v3116
    %v3887 = vpack.c.b16 %v3127, %v3117
    %v3888 = vpack.c.b16 %v3128, %v3118
    %v3889 = vpack.c.b16 %v3129, %v3119
    %v3890 = vpack.c.b16 %v3130, %v3120
    %v3891 = vpack.c.b16 %v3141, %v3131
    %v3892 = vpack.c.b16 %v3142, %v3132
    %v3893 = vpack.c.b16 %v3143, %v3133
    %v3894 = vpack.c.b16 %v3144, %v3134
    %v3895 = vpack.c.b16 %v3145, %v3135
    %v3896 = vpack.c.b16 %v3146, %v3136
    %v3897 = vpack.c.b16 %v3147, %v3137
    %v3898 = vpack.c.b16 %v3148, %v3138
    %v3899 = vpack.c.b16 %v3149, %v3139
    %v3900 = vpack.c.b16 %v3150, %v3140
    %v3901 = vpack.c.b16 %v3161, %v3151
    %v3902 = vpack.c.b16 %v3162, %v3152
    %v3903 = vpack.c.b16 %v3163, %v3153
    %v3904 = vpack.c.b16 %v3164, %v3154
    %v3905 = vpack.c.b16 %v3165, %v3155
    %v3906 = vpack.c.b16 %v3166, %v3156
    %v3907 = vpack.c.b16 %v3167, %v3157
    %v3908 = vpack.c.b16 %v3168, %v3158
    %v3909 = vpack.c.b16 %v3169, %v3159
    %v3910 = vpack.c.b16 %v3170, %v3160
    %v3911 = vpack.c.b16 %v3181, %v3171
    %v3912 = vpack.c.b16 %v3182, %v3172
    %v3913 = vpack.c.b16 %v3183, %v3173
    %v3914 = vpack.c.b16 %v3184, %v3174
    %v3915 = vpack.c.b16 %v3185, %v3175
    %v3916 = vpack.c.b16 %v3186, %v3176
    %v3917 = vpack.c.b16 %v3187, %v3177
    %v3918 = vpack.c.b16 %v3188, %v3178
    %v3919 = vpack.c.b16 %v3189, %v3179
    %v3920 = vpack.c.b16 %v3190, %v3180
    %v3921 = vpack.c.b16 %v3201, %v3191
    %v3922 = vpack.c.b16 %v3202, %v3192
    %v3923 = vpack.c.b16 %v3203, %v3193
    %v3924 = vpack.c.b16 %v3204, %v3194
    %v3925 = vpack.c.b16 %v3205, %v3195
    %v3926 = vpack.c.b16 %v3206, %v3196
    %v3927 = vpack.c.b16 %v3207, %v3197
    %v3928 = vpack.c.b16 %v3208, %v3198
    %v3929 = vpack.c.b16 %v3209, %v3199
    %v3930 = vpack.c.b16 %v3210, %v3200
    %v3931 = vpack.c.b16 %v3221, %v3211
    %v3932 = vpack.c.b16 %v3222, %v3212
    %v3933 = vpack.c.b16 %v3223, %v3213
    %v3934 = vpack.c.b16 %v3224, %v3214
    %v3935 = vpack.c.b16 %v3225, %v3215
    %v3936 = vpack.c.b16 %v3226, %v3216
    %v3937 = vpack.c.b16 %v3227, %v3217
    %v3938 = vpack.c.b16 %v3228, %v3218
    %v3939 = vpack.c.b16 %v3229, %v3219
    %v3940 = vpack.c.b16 %v3230, %v3220
    %v3941 = vpack.c.b16 %v3241, %v3231
    %v3942 = vpack.c.b16 %v3242, %v3232
    %v3943 = vpack.c.b16 %v3243, %v3233
    %v3944 = vpack.c.b16 %v3244, %v3234
    %v3945 = vpack.c.b16 %v3245, %v3235
    %v3946 = vpack.c.b16 %v3246, %v3236
    %v3947 = vpack.c.b16 %v3247, %v3237
    %v3948 = vpack.c.b16 %v3248, %v3238
    %v3949 = vpack.c.b16 %v3249, %v3239
    %v3950 = vpack.c.b16 %v3250, %v3240
    %v3951 = vpack.c.b16 %v3261, %v3251
    %v3952 = vpack.c.b16 %v3262, %v3252
    %v3953 = vpack.c.b16 %v3263, %v3253
    %v3954 = vpack.c.b16 %v3264, %v3254
    %v3955 = vpack.c.b16 %v3265, %v3255
    %v3956 = vpack.c.b16 %v3266, %v3256
    %v3957 = vpack.c.b16 %v3267, %v3257
    %v3958 = vpack.c.b16 %v3268, %v3258
    %v3959 = vpack.c.b16 %v3269, %v3259
    %v3960 = vpack.c.b16 %v3270, %v3260
    %v3961 = vpack.c.b16 %v3281, %v3271
    %v3962 = vpack.c.b16 %v3282, %v3272
    %v3963 = vpack.c.b16 %v3283, %v3273
    %v3964 = vpack.c.b16 %v3284, %v3274
    %v3965 = vpack.c.b16 %v3285, %v3275
    %v3966 = vpack.c.b16 %v3286, %v3276
    %v3967 = vpack.c.b16 %v3287, %v3277
    %v3968 = vpack.c.b16 %v3288, %v3278
    %v3969 = vpack.c.b16 %v3289, %v3279
    %v3970 = vpack.c.b16 %v3290, %v3280
    %v3971 = vpack.c.b16 %v3301, %v3291
    %v3972 = vpack.c.b16 %v3302, %v3292
    %v3973 = vpack.c.b16 %v3303, %v3293
    %v3974 = vpack.c.b16 %v3304, %v3294
    %v3975 = vpack.c.b16 %v3305, %v3295
    %v3976 = vpack.c.b16 %v3306, %v3296
    %v3977 = vpack.c.b16 %v3307, %v3297
    %v3978 = vpack.c.b16 %v3308, %v3298
    %v3979 = vpack.c.b16 %v3309, %v3299
    %v3980 = vpack.c.b16 %v3310, %v3300
    %v3981 = vpack.c.b16 %v3321, %v3311
    %v3982 = vpack.c.b16 %v3322, %v3312
    %v3983 = vpack.c.b16 %v3323, %v3313
    %v3984 = vpack.c.b16 %v3324, %v3314
    %v3985 = vpack.c.b16 %v3325, %v3315
    %v3986 = vpack.c.b16 %v3326, %v3316
    %v3987 = vpack.c.b16 %v3327, %v3317
    %v3988 = vpack.c.b16 %v3328, %v3318
    %v3989 = vpack.c.b16 %v3329, %v3319
    %v3990 = vpack.c.b16 %v3330, %v3320
    %v3991 = vpack.c.b16 %v3341, %v3331
    %v3992 = vpack.c.b16 %v3342, %v3332
    %v3993 = vpack.c.b16 %v3343, %v3333
    %v3994 = vpack.c.b16 %v3344, %v3334
    %v3995 = vpack.c.b16 %v3345, %v3335
    %v3996 = vpack.c.b16 %v3346, %v3336
    %v3997 = vpack.c.b16 %v3347, %v3337
    %v3998 = vpack.c.b16 %v3348, %v3338
    %v3999 = vpack.c.b16 %v3349, %v3339
    %v4000 = vpack.c.b16 %v3350, %v3340
    %v4001 = vpack.c.b16 %v3361, %v3351
    %v4002 = vpack.c.b16 %v3362, %v3352
    %v4003 = vpack.c.b16 %v3363, %v3353
    %v4004 = vpack.c.b16 %v3364, %v3354
    %v4005 = vpack.c.b16 %v3365, %v3355
    %v4006 = vpack.c.b16 %v3366, %v3356
    %v4007 = vpack.c.b16 %v3367, %v3357
    %v4008 = vpack.c.b16 %v3368, %v3358
    %v4009 = vpack.c.b16 %v3369, %v3359
    %v4010 = vpack.c.b16 %v3370, %v3360
    %4651 = vmatprep.subr.bf16.mxu0 %v3372
    %4652 = vmatpush1.bf16.msra.mxu0 %v3371
    %4653 = vmatprep.subr.bf16.mxu0 %v3382
    %4654 = vmatpush1.bf16.msra.mxu0 %v3381
    %4655 = vmatprep.subr.bf16.mxu0 %v3392
    %4656 = vmatpush1.bf16.msra.mxu0 %v3391
    %4657 = vmatprep.subr.bf16.mxu0 %v3402
    %4658 = vmatpush1.bf16.msra.mxu0 %v3401
    %4659 = vmatprep.subr.bf16.mxu0 %v3412
    %4660 = vmatpush1.bf16.msra.mxu0 %v3411
    %4661 = vmatprep.subr.bf16.mxu0 %v3422
    %4662 = vmatpush1.bf16.msra.mxu0 %v3421
    %4663 = vmatprep.subr.bf16.mxu0 %v3432
    %4664 = vmatpush1.bf16.msra.mxu0 %v3431
    %4665 = vmatprep.subr.bf16.mxu0 %v3442
    %4666 = vmatpush1.bf16.msra.mxu0 %v3441
    %4667 = vmatprep.subr.bf16.mxu0 %v3452
    %4668 = vmatpush1.bf16.msra.mxu0 %v3451
    %4669 = vmatprep.subr.bf16.mxu0 %v3462
    %4670 = vmatpush1.bf16.msra.mxu0 %v3461
    %4671 = vmatprep.subr.bf16.mxu0 %v3472
    %4672 = vmatpush1.bf16.msra.mxu0 %v3471
    %4673 = vmatprep.subr.bf16.mxu0 %v3482
    %4674 = vmatpush1.bf16.msra.mxu0 %v3481
    %4675 = vmatprep.subr.bf16.mxu0 %v3492
    %4676 = vmatpush1.bf16.msra.mxu0 %v3491
    %4677 = vmatprep.subr.bf16.mxu0 %v3502
    %4678 = vmatpush1.bf16.msra.mxu0 %v3501
    %4679 = vmatprep.subr.bf16.mxu0 %v3512
    %4680 = vmatpush1.bf16.msra.mxu0 %v3511
    %4681 = vmatprep.subr.bf16.mxu0 %v3522
    %4682 = vmatpush1.bf16.msra.mxu0 %v3521
    %4683 = vmatprep.mubr.bf16.mxu0 %v1196
    %4684 = vmatmul.mubr.bf16.gmra.mrb[0].mxu0 %v1195
    %v4685 = vpop.f32.mrb[0].mxu0
    %v4686 = vadd.f32 0.0, %v4685
    %v4687 = vpop.f32.mrb[0].mxu0
    %v4688 = vadd.f32 0.0, %v4687
    %v4689 = vpop.f32.mrb[0].mxu0
    %v4690 = vadd.f32 0.0, %v4689
    %v4691 = vpop.f32.mrb[0].mxu0
    %v4692 = vadd.f32 0.0, %v4691
    %4693 = vmatprep.mubr.bf16.mxu0 %v1204
    %4694 = vmatmul.mubr.bf16.gmra.mrb[0].mxu0 %v1203
    %v4695 = vpop.f32.mrb[0].mxu0
    %v4696 = vadd.f32 0.0, %v4695
    %v4697 = vpop.f32.mrb[0].mxu0
    %v4698 = vadd.f32 0.0, %v4697
    %v4699 = vpop.f32.mrb[0].mxu0
    %v4700 = vadd.f32 0.0, %v4699
    %v4701 = vpop.f32.mrb[0].mxu0
    %v4702 = vadd.f32 0.0, %v4701
    %4703 = vmatprep.mubr.bf16.mxu0 %v1212
    %4704 = vmatmul.mubr.bf16.gmra.mrb[0].mxu0 %v1211
    %v4705 = vpop.f32.mrb[0].mxu0
    %v4706 = vadd.f32 0.0, %v4705
    %v4707 = vpop.f32.mrb[0].mxu0
    %v4708 = vadd.f32 0.0, %v4707
    %v4709 = vpop.f32.mrb[0].mxu0
    %v4710 = vadd.f32 0.0, %v4709
    %v4711 = vpop.f32.mrb[0].mxu0
    %v4712 = vadd.f32 0.0, %v4711
    %4713 = vmatprep.mubr.bf16.mxu0 %v1220
    %4714 = vmatmul.mubr.bf16.gmra.mrb[0].mxu0 %v1219
    %v4715 = vpop.f32.mrb[0].mxu0
    %v4716 = vadd.f32 0.0, %v4715
    %v4717 = vpop.f32.mrb[0].mxu0
    %v4718 = vadd.f32 0.0, %v4717
    %v4719 = vpop.f32.mrb[0].mxu0
    %v4720 = vadd.f32 0.0, %v4719
    %v4721 = vpop.f32.mrb[0].mxu0
    %v4722 = vadd.f32 0.0, %v4721
    %4723 = vmatprep.mubr.bf16.mxu0 %v1228
    %4724 = vmatmul.mubr.bf16.gmra.mrb[0].mxu0 %v1227
    %v4725 = vpop.f32.mrb[0].mxu0
    %v4726 = vadd.f32 0.0, %v4725
    %v4727 = vpop.f32.mrb[0].mxu0
    %v4728 = vadd.f32 0.0, %v4727
    %v4729 = vpop.f32.mrb[0].mxu0
    %v4730 = vadd.f32 0.0, %v4729
    %v4731 = vpop.f32.mrb[0].mxu0
    %v4732 = vadd.f32 0.0, %v4731
    %4733 = vmatprep.mubr.bf16.mxu0 %v1236
    %4734 = vmatmul.mubr.bf16.gmra.mrb[0].mxu0 %v1235
    %v4735 = vpop.f32.mrb[0].mxu0
    %v4736 = vadd.f32 0.0, %v4735
    %v4737 = vpop.f32.mrb[0].mxu0
    %v4738 = vadd.f32 0.0, %v4737
    %v4739 = vpop.f32.mrb[0].mxu0
    %v4740 = vadd.f32 0.0, %v4739
    %v4741 = vpop.f32.mrb[0].mxu0
    %v4742 = vadd.f32 0.0, %v4741
    %4743 = vmatprep.mubr.bf16.mxu0 %v1244
    %4744 = vmatmul.mubr.bf16.gmra.mrb[0].mxu0 %v1243
    %v4745 = vpop.f32.mrb[0].mxu0
    %v4746 = vadd.f32 0.0, %v4745
    %v4747 = vpop.f32.mrb[0].mxu0
    %v4748 = vadd.f32 0.0, %v4747
    %v4749 = vpop.f32.mrb[0].mxu0
    %v4750 = vadd.f32 0.0, %v4749
    %v4751 = vpop.f32.mrb[0].mxu0
    %v4752 = vadd.f32 0.0, %v4751
    %4753 = vmatprep.mubr.bf16.mxu0 %v1252
    %4754 = vmatmul.mubr.bf16.gmra.mrb[0].mxu0 %v1251
    %v4755 = vpop.f32.mrb[0].mxu0
    %v4756 = vadd.f32 0.0, %v4755
    %v4757 = vpop.f32.mrb[0].mxu0
    %v4758 = vadd.f32 0.0, %v4757
    %v4759 = vpop.f32.mrb[0].mxu0
    %v4760 = vadd.f32 0.0, %v4759
    %v4761 = vpop.f32.mrb[0].mxu0
    %v4762 = vadd.f32 0.0, %v4761
    %4763 = vmatprep.mubr.bf16.mxu0 %v1260
    %4764 = vmatmul.mubr.bf16.gmra.mrb[0].mxu0 %v1259
    %v4765 = vpop.f32.mrb[0].mxu0
    %v4766 = vadd.f32 0.0, %v4765
    %v4767 = vpop.f32.mrb[0].mxu0
    %v4768 = vadd.f32 0.0, %v4767
    %v4769 = vpop.f32.mrb[0].mxu0
    %v4770 = vadd.f32 0.0, %v4769
    %v4771 = vpop.f32.mrb[0].mxu0
    %v4772 = vadd.f32 0.0, %v4771
    %4773 = vmatprep.mubr.bf16.mxu0 %v1268
    %4774 = vmatmul.mubr.bf16.gmra.mrb[0].mxu0 %v1267
    %v4775 = vpop.f32.mrb[0].mxu0
    %v4776 = vadd.f32 0.0, %v4775
    %v4777 = vpop.f32.mrb[0].mxu0
    %v4778 = vadd.f32 0.0, %v4777
    %v4779 = vpop.f32.mrb[0].mxu0
    %v4780 = vadd.f32 0.0, %v4779
    %v4781 = vpop.f32.mrb[0].mxu0
    %v4782 = vadd.f32 0.0, %v4781
    %4783 = vmatprep.mubr.bf16.mxu0 %v1276
    %4784 = vmatmul.mubr.bf16.gmra.mrb[0].mxu0 %v1275
    %v4785 = vpop.f32.mrb[0].mxu0
    %v4786 = vadd.f32 0.0, %v4785
    %v4787 = vpop.f32.mrb[0].mxu0
    %v4788 = vadd.f32 0.0, %v4787
    %v4789 = vpop.f32.mrb[0].mxu0
    %v4790 = vadd.f32 0.0, %v4789
    %v4791 = vpop.f32.mrb[0].mxu0
    %v4792 = vadd.f32 0.0, %v4791
    %4793 = vmatprep.mubr.bf16.mxu0 %v1284
    %4794 = vmatmul.mubr.bf16.gmra.mrb[0].mxu0 %v1283
    %v4795 = vpop.f32.mrb[0].mxu0
    %v4796 = vadd.f32 0.0, %v4795
    %v4797 = vpop.f32.mrb[0].mxu0
    %v4798 = vadd.f32 0.0, %v4797
    %v4799 = vpop.f32.mrb[0].mxu0
    %v4800 = vadd.f32 0.0, %v4799
    %v4801 = vpop.f32.mrb[0].mxu0
    %v4802 = vadd.f32 0.0, %v4801
    %4803 = vmatprep.mubr.bf16.mxu0 %v1292
    %4804 = vmatmul.mubr.bf16.gmra.mrb[0].mxu0 %v1291
    %v4805 = vpop.f32.mrb[0].mxu0
    %v4806 = vadd.f32 0.0, %v4805
    %v4807 = vpop.f32.mrb[0].mxu0
    %v4808 = vadd.f32 0.0, %v4807
    %v4809 = vpop.f32.mrb[0].mxu0
    %v4810 = vadd.f32 0.0, %v4809
    %v4811 = vpop.f32.mrb[0].mxu0
    %v4812 = vadd.f32 0.0, %v4811
    %4813 = vmatprep.mubr.bf16.mxu0 %v1300
    %4814 = vmatmul.mubr.bf16.gmra.mrb[0].mxu0 %v1299
    %v4815 = vpop.f32.mrb[0].mxu0
    %v4816 = vadd.f32 0.0, %v4815
    %v4817 = vpop.f32.mrb[0].mxu0
    %v4818 = vadd.f32 0.0, %v4817
    %v4819 = vpop.f32.mrb[0].mxu0
    %v4820 = vadd.f32 0.0, %v4819
    %v4821 = vpop.f32.mrb[0].mxu0
    %v4822 = vadd.f32 0.0, %v4821
    %4823 = vmatprep.mubr.bf16.mxu0 %v1308
    %4824 = vmatmul.mubr.bf16.gmra.mrb[0].mxu0 %v1307
    %v4825 = vpop.f32.mrb[0].mxu0
    %v4826 = vadd.f32 0.0, %v4825
    %v4827 = vpop.f32.mrb[0].mxu0
    %v4828 = vadd.f32 0.0, %v4827
    %v4829 = vpop.f32.mrb[0].mxu0
    %v4830 = vadd.f32 0.0, %v4829
    %v4831 = vpop.f32.mrb[0].mxu0
    %v4832 = vadd.f32 0.0, %v4831
    %4833 = vmatprep.mubr.bf16.mxu0 %v1316
    %4834 = vmatmul.mubr.bf16.gmra.mrb[0].mxu0 %v1315
    %v4835 = vpop.f32.mrb[0].mxu0
    %v4836 = vadd.f32 0.0, %v4835
    %v4837 = vpop.f32.mrb[0].mxu0
    %v4838 = vadd.f32 0.0, %v4837
    %v4839 = vpop.f32.mrb[0].mxu0
    %v4840 = vadd.f32 0.0, %v4839
    %v4841 = vpop.f32.mrb[0].mxu0
    %v4842 = vadd.f32 0.0, %v4841
    %4843 = vdwg.mxu0
    %4844 = vmatprep.subr.bf16.mxu0 %v3532
    %4845 = vmatpush1.bf16.msra.mxu0 %v3531
    %4846 = vmatprep.subr.bf16.mxu0 %v3542
    %4847 = vmatpush1.bf16.msra.mxu0 %v3541
    %4848 = vmatprep.subr.bf16.mxu0 %v3552
    %4849 = vmatpush1.bf16.msra.mxu0 %v3551
    %4850 = vmatprep.subr.bf16.mxu0 %v3562
    %4851 = vmatpush1.bf16.msra.mxu0 %v3561
    %4852 = vmatprep.subr.bf16.mxu0 %v3572
    %4853 = vmatpush1.bf16.msra.mxu0 %v3571
    %4854 = vmatprep.subr.bf16.mxu0 %v3582
    %4855 = vmatpush1.bf16.msra.mxu0 %v3581
    %4856 = vmatprep.subr.bf16.mxu0 %v3592
    %4857 = vmatpush1.bf16.msra.mxu0 %v3591
    %4858 = vmatprep.subr.bf16.mxu0 %v3602
    %4859 = vmatpush1.bf16.msra.mxu0 %v3601
    %4860 = vmatprep.subr.bf16.mxu0 %v3612
    %4861 = vmatpush1.bf16.msra.mxu0 %v3611
    %4862 = vmatprep.subr.bf16.mxu0 %v3622
    %4863 = vmatpush1.bf16.msra.mxu0 %v3621
    %4864 = vmatprep.subr.bf16.mxu0 %v3632
    %4865 = vmatpush1.bf16.msra.mxu0 %v3631
    %4866 = vmatprep.subr.bf16.mxu0 %v3642
    %4867 = vmatpush1.bf16.msra.mxu0 %v3641
    %4868 = vmatprep.subr.bf16.mxu0 %v3652
    %4869 = vmatpush1.bf16.msra.mxu0 %v3651
    %4870 = vmatprep.subr.bf16.mxu0 %v3662
    %4871 = vmatpush1.bf16.msra.mxu0 %v3661
    %4872 = vmatprep.subr.bf16.mxu0 %v3672
    %4873 = vmatpush1.bf16.msra.mxu0 %v3671
    %4874 = vmatprep.subr.bf16.mxu0 %v3682
    %4875 = vmatpush1.bf16.msra.mxu0 %v3681
    %4876 = vmatprep.mubr.bf16.mxu0 %v1198
    %4877 = vmatmul.mubr.bf16.gmra.mrb[0].mxu0 %v1197
    %v4878 = vpop.f32.mrb[0].mxu0
    %v4879 = vadd.f32 %v4686, %v4878
    %v4880 = vpop.f32.mrb[0].mxu0
    %v4881 = vadd.f32 %v4688, %v4880
    %v4882 = vpop.f32.mrb[0].mxu0
    %v4883 = vadd.f32 %v4690, %v4882
    %v4884 = vpop.f32.mrb[0].mxu0
    %v4885 = vadd.f32 %v4692, %v4884
    %4886 = vmatprep.mubr.bf16.mxu0 %v1206
    %4887 = vmatmul.mubr.bf16.gmra.mrb[0].mxu0 %v1205
    %v4888 = vpop.f32.mrb[0].mxu0
    %v4889 = vadd.f32 %v4696, %v4888
    %v4890 = vpop.f32.mrb[0].mxu0
    %v4891 = vadd.f32 %v4698, %v4890
    %v4892 = vpop.f32.mrb[0].mxu0
    %v4893 = vadd.f32 %v4700, %v4892
    %v4894 = vpop.f32.mrb[0].mxu0
    %v4895 = vadd.f32 %v4702, %v4894
    %4896 = vmatprep.mubr.bf16.mxu0 %v1214
    %4897 = vmatmul.mubr.bf16.gmra.mrb[0].mxu0 %v1213
    %v4898 = vpop.f32.mrb[0].mxu0
    %v4899 = vadd.f32 %v4706, %v4898
    %v4900 = vpop.f32.mrb[0].mxu0
    %v4901 = vadd.f32 %v4708, %v4900
    %v4902 = vpop.f32.mrb[0].mxu0
    %v4903 = vadd.f32 %v4710, %v4902
    %v4904 = vpop.f32.mrb[0].mxu0
    %v4905 = vadd.f32 %v4712, %v4904
    %4906 = vmatprep.mubr.bf16.mxu0 %v1222
    %4907 = vmatmul.mubr.bf16.gmra.mrb[0].mxu0 %v1221
    %v4908 = vpop.f32.mrb[0].mxu0
    %v4909 = vadd.f32 %v4716, %v4908
    %v4910 = vpop.f32.mrb[0].mxu0
    %v4911 = vadd.f32 %v4718, %v4910
    %v4912 = vpop.f32.mrb[0].mxu0
    %v4913 = vadd.f32 %v4720, %v4912
    %v4914 = vpop.f32.mrb[0].mxu0
    %v4915 = vadd.f32 %v4722, %v4914
    %4916 = vmatprep.mubr.bf16.mxu0 %v1230
    %4917 = vmatmul.mubr.bf16.gmra.mrb[0].mxu0 %v1229
    %v4918 = vpop.f32.mrb[0].mxu0
    %v4919 = vadd.f32 %v4726, %v4918
    %v4920 = vpop.f32.mrb[0].mxu0
    %v4921 = vadd.f32 %v4728, %v4920
    %v4922 = vpop.f32.mrb[0].mxu0
    %v4923 = vadd.f32 %v4730, %v4922
    %v4924 = vpop.f32.mrb[0].mxu0
    %v4925 = vadd.f32 %v4732, %v4924
    %4926 = vmatprep.mubr.bf16.mxu0 %v1238
    %4927 = vmatmul.mubr.bf16.gmra.mrb[0].mxu0 %v1237
    %v4928 = vpop.f32.mrb[0].mxu0
    %v4929 = vadd.f32 %v4736, %v4928
    %v4930 = vpop.f32.mrb[0].mxu0
    %v4931 = vadd.f32 %v4738, %v4930
    %v4932 = vpop.f32.mrb[0].mxu0
    %v4933 = vadd.f32 %v4740, %v4932
    %v4934 = vpop.f32.mrb[0].mxu0
    %v4935 = vadd.f32 %v4742, %v4934
    %4936 = vmatprep.mubr.bf16.mxu0 %v1246
    %4937 = vmatmul.mubr.bf16.gmra.mrb[0].mxu0 %v1245
    %v4938 = vpop.f32.mrb[0].mxu0
    %v4939 = vadd.f32 %v4746, %v4938
    %v4940 = vpop.f32.mrb[0].mxu0
    %v4941 = vadd.f32 %v4748, %v4940
    %v4942 = vpop.f32.mrb[0].mxu0
    %v4943 = vadd.f32 %v4750, %v4942
    %v4944 = vpop.f32.mrb[0].mxu0
    %v4945 = vadd.f32 %v4752, %v4944
    %4946 = vmatprep.mubr.bf16.mxu0 %v1254
    %4947 = vmatmul.mubr.bf16.gmra.mrb[0].mxu0 %v1253
    %v4948 = vpop.f32.mrb[0].mxu0
    %v4949 = vadd.f32 %v4756, %v4948
    %v4950 = vpop.f32.mrb[0].mxu0
    %v4951 = vadd.f32 %v4758, %v4950
    %v4952 = vpop.f32.mrb[0].mxu0
    %v4953 = vadd.f32 %v4760, %v4952
    %v4954 = vpop.f32.mrb[0].mxu0
    %v4955 = vadd.f32 %v4762, %v4954
    %4956 = vmatprep.mubr.bf16.mxu0 %v1262
    %4957 = vmatmul.mubr.bf16.gmra.mrb[0].mxu0 %v1261
    %v4958 = vpop.f32.mrb[0].mxu0
    %v4959 = vadd.f32 %v4766, %v4958
    %v4960 = vpop.f32.mrb[0].mxu0
    %v4961 = vadd.f32 %v4768, %v4960
    %v4962 = vpop.f32.mrb[0].mxu0
    %v4963 = vadd.f32 %v4770, %v4962
    %v4964 = vpop.f32.mrb[0].mxu0
    %v4965 = vadd.f32 %v4772, %v4964
    %4966 = vmatprep.mubr.bf16.mxu0 %v1270
    %4967 = vmatmul.mubr.bf16.gmra.mrb[0].mxu0 %v1269
    %v4968 = vpop.f32.mrb[0].mxu0
    %v4969 = vadd.f32 %v4776, %v4968
    %v4970 = vpop.f32.mrb[0].mxu0
    %v4971 = vadd.f32 %v4778, %v4970
    %v4972 = vpop.f32.mrb[0].mxu0
    %v4973 = vadd.f32 %v4780, %v4972
    %v4974 = vpop.f32.mrb[0].mxu0
    %v4975 = vadd.f32 %v4782, %v4974
    %4976 = vmatprep.mubr.bf16.mxu0 %v1278
    %4977 = vmatmul.mubr.bf16.gmra.mrb[0].mxu0 %v1277
    %v4978 = vpop.f32.mrb[0].mxu0
    %v4979 = vadd.f32 %v4786, %v4978
    %v4980 = vpop.f32.mrb[0].mxu0
    %v4981 = vadd.f32 %v4788, %v4980
    %v4982 = vpop.f32.mrb[0].mxu0
    %v4983 = vadd.f32 %v4790, %v4982
    %v4984 = vpop.f32.mrb[0].mxu0
    %v4985 = vadd.f32 %v4792, %v4984
    %4986 = vmatprep.mubr.bf16.mxu0 %v1286
    %4987 = vmatmul.mubr.bf16.gmra.mrb[0].mxu0 %v1285
    %v4988 = vpop.f32.mrb[0].mxu0
    %v4989 = vadd.f32 %v4796, %v4988
    %v4990 = vpop.f32.mrb[0].mxu0
    %v4991 = vadd.f32 %v4798, %v4990
    %v4992 = vpop.f32.mrb[0].mxu0
    %v4993 = vadd.f32 %v4800, %v4992
    %v4994 = vpop.f32.mrb[0].mxu0
    %v4995 = vadd.f32 %v4802, %v4994
    %4996 = vmatprep.mubr.bf16.mxu0 %v1294
    %4997 = vmatmul.mubr.bf16.gmra.mrb[0].mxu0 %v1293
    %v4998 = vpop.f32.mrb[0].mxu0
    %v4999 = vadd.f32 %v4806, %v4998
    %v5000 = vpop.f32.mrb[0].mxu0
    %v5001 = vadd.f32 %v4808, %v5000
    %v5002 = vpop.f32.mrb[0].mxu0
    %v5003 = vadd.f32 %v4810, %v5002
    %v5004 = vpop.f32.mrb[0].mxu0
    %v5005 = vadd.f32 %v4812, %v5004
    %5006 = vmatprep.mubr.bf16.mxu0 %v1302
    %5007 = vmatmul.mubr.bf16.gmra.mrb[0].mxu0 %v1301
    %v5008 = vpop.f32.mrb[0].mxu0
    %v5009 = vadd.f32 %v4816, %v5008
    %v5010 = vpop.f32.mrb[0].mxu0
    %v5011 = vadd.f32 %v4818, %v5010
    %v5012 = vpop.f32.mrb[0].mxu0
    %v5013 = vadd.f32 %v4820, %v5012
    %v5014 = vpop.f32.mrb[0].mxu0
    %v5015 = vadd.f32 %v4822, %v5014
    %5016 = vmatprep.mubr.bf16.mxu0 %v1310
    %5017 = vmatmul.mubr.bf16.gmra.mrb[0].mxu0 %v1309
    %v5018 = vpop.f32.mrb[0].mxu0
    %v5019 = vadd.f32 %v4826, %v5018
    %v5020 = vpop.f32.mrb[0].mxu0
    %v5021 = vadd.f32 %v4828, %v5020
    %v5022 = vpop.f32.mrb[0].mxu0
    %v5023 = vadd.f32 %v4830, %v5022
    %v5024 = vpop.f32.mrb[0].mxu0
    %v5025 = vadd.f32 %v4832, %v5024
    %5026 = vmatprep.mubr.bf16.mxu0 %v1318
    %5027 = vmatmul.mubr.bf16.gmra.mrb[0].mxu0 %v1317
    %v5028 = vpop.f32.mrb[0].mxu0
    %v5029 = vadd.f32 %v4836, %v5028
    %v5030 = vpop.f32.mrb[0].mxu0
    %v5031 = vadd.f32 %v4838, %v5030
    %v5032 = vpop.f32.mrb[0].mxu0
    %v5033 = vadd.f32 %v4840, %v5032
    %v5034 = vpop.f32.mrb[0].mxu0
    %v5035 = vadd.f32 %v4842, %v5034
    %5036 = vdwg.mxu0
    %5037 = vmatprep.subr.bf16.mxu0 %v3692
    %5038 = vmatpush1.bf16.msra.mxu0 %v3691
    %5039 = vmatprep.subr.bf16.mxu0 %v3702
    %5040 = vmatpush1.bf16.msra.mxu0 %v3701
    %5041 = vmatprep.subr.bf16.mxu0 %v3712
    %5042 = vmatpush1.bf16.msra.mxu0 %v3711
    %5043 = vmatprep.subr.bf16.mxu0 %v3722
    %5044 = vmatpush1.bf16.msra.mxu0 %v3721
    %5045 = vmatprep.subr.bf16.mxu0 %v3732
    %5046 = vmatpush1.bf16.msra.mxu0 %v3731
    %5047 = vmatprep.subr.bf16.mxu0 %v3742
    %5048 = vmatpush1.bf16.msra.mxu0 %v3741
    %5049 = vmatprep.subr.bf16.mxu0 %v3752
    %5050 = vmatpush1.bf16.msra.mxu0 %v3751
    %5051 = vmatprep.subr.bf16.mxu0 %v3762
    %5052 = vmatpush1.bf16.msra.mxu0 %v3761
    %5053 = vmatprep.subr.bf16.mxu0 %v3772
    %5054 = vmatpush1.bf16.msra.mxu0 %v3771
    %5055 = vmatprep.subr.bf16.mxu0 %v3782
    %5056 = vmatpush1.bf16.msra.mxu0 %v3781
    %5057 = vmatprep.subr.bf16.mxu0 %v3792
    %5058 = vmatpush1.bf16.msra.mxu0 %v3791
    %5059 = vmatprep.subr.bf16.mxu0 %v3802
    %5060 = vmatpush1.bf16.msra.mxu0 %v3801
    %5061 = vmatprep.subr.bf16.mxu0 %v3812
    %5062 = vmatpush1.bf16.msra.mxu0 %v3811
    %5063 = vmatprep.subr.bf16.mxu0 %v3822
    %5064 = vmatpush1.bf16.msra.mxu0 %v3821
    %5065 = vmatprep.subr.bf16.mxu0 %v3832
    %5066 = vmatpush1.bf16.msra.mxu0 %v3831
    %5067 = vmatprep.subr.bf16.mxu0 %v3842
    %5068 = vmatpush1.bf16.msra.mxu0 %v3841
    %5069 = vmatprep.mubr.bf16.mxu0 %v1200
    %5070 = vmatmul.mubr.bf16.gmra.mrb[0].mxu0 %v1199
    %v5071 = vpop.f32.mrb[0].mxu0
    %v5072 = vadd.f32 %v4879, %v5071
    %v5073 = vpop.f32.mrb[0].mxu0
    %v5074 = vadd.f32 %v4881, %v5073
    %v5075 = vpop.f32.mrb[0].mxu0
    %v5076 = vadd.f32 %v4883, %v5075
    %v5077 = vpop.f32.mrb[0].mxu0
    %v5078 = vadd.f32 %v4885, %v5077
    %5079 = vmatprep.mubr.bf16.mxu0 %v1208
    %5080 = vmatmul.mubr.bf16.gmra.mrb[0].mxu0 %v1207
    %v5081 = vpop.f32.mrb[0].mxu0
    %v5082 = vadd.f32 %v4889, %v5081
    %v5083 = vpop.f32.mrb[0].mxu0
    %v5084 = vadd.f32 %v4891, %v5083
    %v5085 = vpop.f32.mrb[0].mxu0
    %v5086 = vadd.f32 %v4893, %v5085
    %v5087 = vpop.f32.mrb[0].mxu0
    %v5088 = vadd.f32 %v4895, %v5087
    %5089 = vmatprep.mubr.bf16.mxu0 %v1216
    %5090 = vmatmul.mubr.bf16.gmra.mrb[0].mxu0 %v1215
    %v5091 = vpop.f32.mrb[0].mxu0
    %v5092 = vadd.f32 %v4899, %v5091
    %v5093 = vpop.f32.mrb[0].mxu0
    %v5094 = vadd.f32 %v4901, %v5093
    %v5095 = vpop.f32.mrb[0].mxu0
    %v5096 = vadd.f32 %v4903, %v5095
    %v5097 = vpop.f32.mrb[0].mxu0
    %v5098 = vadd.f32 %v4905, %v5097
    %5099 = vmatprep.mubr.bf16.mxu0 %v1224
    %5100 = vmatmul.mubr.bf16.gmra.mrb[0].mxu0 %v1223
    %v5101 = vpop.f32.mrb[0].mxu0
    %v5102 = vadd.f32 %v4909, %v5101
    %v5103 = vpop.f32.mrb[0].mxu0
    %v5104 = vadd.f32 %v4911, %v5103
    %v5105 = vpop.f32.mrb[0].mxu0
    %v5106 = vadd.f32 %v4913, %v5105
    %v5107 = vpop.f32.mrb[0].mxu0
    %v5108 = vadd.f32 %v4915, %v5107
    %5109 = vmatprep.mubr.bf16.mxu0 %v1232
    %5110 = vmatmul.mubr.bf16.gmra.mrb[0].mxu0 %v1231
    %v5111 = vpop.f32.mrb[0].mxu0
    %v5112 = vadd.f32 %v4919, %v5111
    %v5113 = vpop.f32.mrb[0].mxu0
    %v5114 = vadd.f32 %v4921, %v5113
    %v5115 = vpop.f32.mrb[0].mxu0
    %v5116 = vadd.f32 %v4923, %v5115
    %v5117 = vpop.f32.mrb[0].mxu0
    %v5118 = vadd.f32 %v4925, %v5117
    %5119 = vmatprep.mubr.bf16.mxu0 %v1240
    %5120 = vmatmul.mubr.bf16.gmra.mrb[0].mxu0 %v1239
    %v5121 = vpop.f32.mrb[0].mxu0
    %v5122 = vadd.f32 %v4929, %v5121
    %v5123 = vpop.f32.mrb[0].mxu0
    %v5124 = vadd.f32 %v4931, %v5123
    %v5125 = vpop.f32.mrb[0].mxu0
    %v5126 = vadd.f32 %v4933, %v5125
    %v5127 = vpop.f32.mrb[0].mxu0
    %v5128 = vadd.f32 %v4935, %v5127
    %5129 = vmatprep.mubr.bf16.mxu0 %v1248
    %5130 = vmatmul.mubr.bf16.gmra.mrb[0].mxu0 %v1247
    %v5131 = vpop.f32.mrb[0].mxu0
    %v5132 = vadd.f32 %v4939, %v5131
    %v5133 = vpop.f32.mrb[0].mxu0
    %v5134 = vadd.f32 %v4941, %v5133
    %v5135 = vpop.f32.mrb[0].mxu0
    %v5136 = vadd.f32 %v4943, %v5135
    %v5137 = vpop.f32.mrb[0].mxu0
    %v5138 = vadd.f32 %v4945, %v5137
    %5139 = vmatprep.mubr.bf16.mxu0 %v1256
    %5140 = vmatmul.mubr.bf16.gmra.mrb[0].mxu0 %v1255
    %v5141 = vpop.f32.mrb[0].mxu0
    %v5142 = vadd.f32 %v4949, %v5141
    %v5143 = vpop.f32.mrb[0].mxu0
    %v5144 = vadd.f32 %v4951, %v5143
    %v5145 = vpop.f32.mrb[0].mxu0
    %v5146 = vadd.f32 %v4953, %v5145
    %v5147 = vpop.f32.mrb[0].mxu0
    %v5148 = vadd.f32 %v4955, %v5147
    %5149 = vmatprep.mubr.bf16.mxu0 %v1264
    %5150 = vmatmul.mubr.bf16.gmra.mrb[0].mxu0 %v1263
    %v5151 = vpop.f32.mrb[0].mxu0
    %v5152 = vadd.f32 %v4959, %v5151
    %v5153 = vpop.f32.mrb[0].mxu0
    %v5154 = vadd.f32 %v4961, %v5153
    %v5155 = vpop.f32.mrb[0].mxu0
    %v5156 = vadd.f32 %v4963, %v5155
    %v5157 = vpop.f32.mrb[0].mxu0
    %v5158 = vadd.f32 %v4965, %v5157
    %5159 = vmatprep.mubr.bf16.mxu0 %v1272
    %5160 = vmatmul.mubr.bf16.gmra.mrb[0].mxu0 %v1271
    %v5161 = vpop.f32.mrb[0].mxu0
    %v5162 = vadd.f32 %v4969, %v5161
    %v5163 = vpop.f32.mrb[0].mxu0
    %v5164 = vadd.f32 %v4971, %v5163
    %v5165 = vpop.f32.mrb[0].mxu0
    %v5166 = vadd.f32 %v4973, %v5165
    %v5167 = vpop.f32.mrb[0].mxu0
    %v5168 = vadd.f32 %v4975, %v5167
    %5169 = vmatprep.mubr.bf16.mxu0 %v1280
    %5170 = vmatmul.mubr.bf16.gmra.mrb[0].mxu0 %v1279
    %v5171 = vpop.f32.mrb[0].mxu0
    %v5172 = vadd.f32 %v4979, %v5171
    %v5173 = vpop.f32.mrb[0].mxu0
    %v5174 = vadd.f32 %v4981, %v5173
    %v5175 = vpop.f32.mrb[0].mxu0
    %v5176 = vadd.f32 %v4983, %v5175
    %v5177 = vpop.f32.mrb[0].mxu0
    %v5178 = vadd.f32 %v4985, %v5177
    %5179 = vmatprep.mubr.bf16.mxu0 %v1288
    %5180 = vmatmul.mubr.bf16.gmra.mrb[0].mxu0 %v1287
    %v5181 = vpop.f32.mrb[0].mxu0
    %v5182 = vadd.f32 %v4989, %v5181
    %v5183 = vpop.f32.mrb[0].mxu0
    %v5184 = vadd.f32 %v4991, %v5183
    %v5185 = vpop.f32.mrb[0].mxu0
    %v5186 = vadd.f32 %v4993, %v5185
    %v5187 = vpop.f32.mrb[0].mxu0
    %v5188 = vadd.f32 %v4995, %v5187
    %5189 = vmatprep.mubr.bf16.mxu0 %v1296
    %5190 = vmatmul.mubr.bf16.gmra.mrb[0].mxu0 %v1295
    %v5191 = vpop.f32.mrb[0].mxu0
    %v5192 = vadd.f32 %v4999, %v5191
    %v5193 = vpop.f32.mrb[0].mxu0
    %v5194 = vadd.f32 %v5001, %v5193
    %v5195 = vpop.f32.mrb[0].mxu0
    %v5196 = vadd.f32 %v5003, %v5195
    %v5197 = vpop.f32.mrb[0].mxu0
    %v5198 = vadd.f32 %v5005, %v5197
    %5199 = vmatprep.mubr.bf16.mxu0 %v1304
    %5200 = vmatmul.mubr.bf16.gmra.mrb[0].mxu0 %v1303
    %v5201 = vpop.f32.mrb[0].mxu0
    %v5202 = vadd.f32 %v5009, %v5201
    %v5203 = vpop.f32.mrb[0].mxu0
    %v5204 = vadd.f32 %v5011, %v5203
    %v5205 = vpop.f32.mrb[0].mxu0
    %v5206 = vadd.f32 %v5013, %v5205
    %v5207 = vpop.f32.mrb[0].mxu0
    %v5208 = vadd.f32 %v5015, %v5207
    %5209 = vmatprep.mubr.bf16.mxu0 %v1312
    %5210 = vmatmul.mubr.bf16.gmra.mrb[0].mxu0 %v1311
    %v5211 = vpop.f32.mrb[0].mxu0
    %v5212 = vadd.f32 %v5019, %v5211
    %v5213 = vpop.f32.mrb[0].mxu0
    %v5214 = vadd.f32 %v5021, %v5213
    %v5215 = vpop.f32.mrb[0].mxu0
    %v5216 = vadd.f32 %v5023, %v5215
    %v5217 = vpop.f32.mrb[0].mxu0
    %v5218 = vadd.f32 %v5025, %v5217
    %5219 = vmatprep.mubr.bf16.mxu0 %v1320
    %5220 = vmatmul.mubr.bf16.gmra.mrb[0].mxu0 %v1319
    %v5221 = vpop.f32.mrb[0].mxu0
    %v5222 = vadd.f32 %v5029, %v5221
    %v5223 = vpop.f32.mrb[0].mxu0
    %v5224 = vadd.f32 %v5031, %v5223
    %v5225 = vpop.f32.mrb[0].mxu0
    %v5226 = vadd.f32 %v5033, %v5225
    %v5227 = vpop.f32.mrb[0].mxu0
    %v5228 = vadd.f32 %v5035, %v5227
    %5229 = vdwg.mxu0
    %5230 = vmatprep.subr.bf16.mxu0 %v3852
    %5231 = vmatpush1.bf16.msra.mxu0 %v3851
    %5232 = vmatprep.subr.bf16.mxu0 %v3862
    %5233 = vmatpush1.bf16.msra.mxu0 %v3861
    %5234 = vmatprep.subr.bf16.mxu0 %v3872
    %5235 = vmatpush1.bf16.msra.mxu0 %v3871
    %5236 = vmatprep.subr.bf16.mxu0 %v3882
    %5237 = vmatpush1.bf16.msra.mxu0 %v3881
    %5238 = vmatprep.subr.bf16.mxu0 %v3892
    %5239 = vmatpush1.bf16.msra.mxu0 %v3891
    %5240 = vmatprep.subr.bf16.mxu0 %v3902
    %5241 = vmatpush1.bf16.msra.mxu0 %v3901
    %5242 = vmatprep.subr.bf16.mxu0 %v3912
    %5243 = vmatpush1.bf16.msra.mxu0 %v3911
    %5244 = vmatprep.subr.bf16.mxu0 %v3922
    %5245 = vmatpush1.bf16.msra.mxu0 %v3921
    %5246 = vmatprep.subr.bf16.mxu0 %v3932
    %5247 = vmatpush1.bf16.msra.mxu0 %v3931
    %5248 = vmatprep.subr.bf16.mxu0 %v3942
    %5249 = vmatpush1.bf16.msra.mxu0 %v3941
    %5250 = vmatprep.subr.bf16.mxu0 %v3952
    %5251 = vmatpush1.bf16.msra.mxu0 %v3951
    %5252 = vmatprep.subr.bf16.mxu0 %v3962
    %5253 = vmatpush1.bf16.msra.mxu0 %v3961
    %5254 = vmatprep.subr.bf16.mxu0 %v3972
    %5255 = vmatpush1.bf16.msra.mxu0 %v3971
    %5256 = vmatprep.subr.bf16.mxu0 %v3982
    %5257 = vmatpush1.bf16.msra.mxu0 %v3981
    %5258 = vmatprep.subr.bf16.mxu0 %v3992
    %5259 = vmatpush1.bf16.msra.mxu0 %v3991
    %5260 = vmatprep.subr.bf16.mxu0 %v4002
    %5261 = vmatpush1.bf16.msra.mxu0 %v4001
    %5262 = vmatprep.mubr.bf16.mxu0 %v1202
    %5263 = vmatmul.mubr.bf16.gmra.mrb[0].mxu0 %v1201
    %v5264 = vpop.f32.mrb[0].mxu0
    %v5265 = vadd.f32 %v5072, %v5264
    %v5266 = vpop.f32.mrb[0].mxu0
    %v5267 = vadd.f32 %v5074, %v5266
    %v5268 = vpop.f32.mrb[0].mxu0
    %v5269 = vadd.f32 %v5076, %v5268
    %v5270 = vpop.f32.mrb[0].mxu0
    %v5271 = vadd.f32 %v5078, %v5270
    %5272 = vmatprep.mubr.bf16.mxu0 %v1210
    %5273 = vmatmul.mubr.bf16.gmra.mrb[0].mxu0 %v1209
    %v5274 = vpop.f32.mrb[0].mxu0
    %v5275 = vadd.f32 %v5082, %v5274
    %v5276 = vpop.f32.mrb[0].mxu0
    %v5277 = vadd.f32 %v5084, %v5276
    %v5278 = vpop.f32.mrb[0].mxu0
    %v5279 = vadd.f32 %v5086, %v5278
    %v5280 = vpop.f32.mrb[0].mxu0
    %v5281 = vadd.f32 %v5088, %v5280
    %5282 = vmatprep.mubr.bf16.mxu0 %v1218
    %5283 = vmatmul.mubr.bf16.gmra.mrb[0].mxu0 %v1217
    %v5284 = vpop.f32.mrb[0].mxu0
    %v5285 = vadd.f32 %v5092, %v5284
    %v5286 = vpop.f32.mrb[0].mxu0
    %v5287 = vadd.f32 %v5094, %v5286
    %v5288 = vpop.f32.mrb[0].mxu0
    %v5289 = vadd.f32 %v5096, %v5288
    %v5290 = vpop.f32.mrb[0].mxu0
    %v5291 = vadd.f32 %v5098, %v5290
    %5292 = vmatprep.mubr.bf16.mxu0 %v1226
    %5293 = vmatmul.mubr.bf16.gmra.mrb[0].mxu0 %v1225
    %v5294 = vpop.f32.mrb[0].mxu0
    %v5295 = vadd.f32 %v5102, %v5294
    %v5296 = vpop.f32.mrb[0].mxu0
    %v5297 = vadd.f32 %v5104, %v5296
    %v5298 = vpop.f32.mrb[0].mxu0
    %v5299 = vadd.f32 %v5106, %v5298
    %v5300 = vpop.f32.mrb[0].mxu0
    %v5301 = vadd.f32 %v5108, %v5300
    %5302 = vmatprep.mubr.bf16.mxu0 %v1234
    %5303 = vmatmul.mubr.bf16.gmra.mrb[0].mxu0 %v1233
    %v5304 = vpop.f32.mrb[0].mxu0
    %v5305 = vadd.f32 %v5112, %v5304
    %v5306 = vpop.f32.mrb[0].mxu0
    %v5307 = vadd.f32 %v5114, %v5306
    %v5308 = vpop.f32.mrb[0].mxu0
    %v5309 = vadd.f32 %v5116, %v5308
    %v5310 = vpop.f32.mrb[0].mxu0
    %v5311 = vadd.f32 %v5118, %v5310
    %5312 = vmatprep.mubr.bf16.mxu0 %v1242
    %5313 = vmatmul.mubr.bf16.gmra.mrb[0].mxu0 %v1241
    %v5314 = vpop.f32.mrb[0].mxu0
    %v5315 = vadd.f32 %v5122, %v5314
    %v5316 = vpop.f32.mrb[0].mxu0
    %v5317 = vadd.f32 %v5124, %v5316
    %v5318 = vpop.f32.mrb[0].mxu0
    %v5319 = vadd.f32 %v5126, %v5318
    %v5320 = vpop.f32.mrb[0].mxu0
    %v5321 = vadd.f32 %v5128, %v5320
    %5322 = vmatprep.mubr.bf16.mxu0 %v1250
    %5323 = vmatmul.mubr.bf16.gmra.mrb[0].mxu0 %v1249
    %v5324 = vpop.f32.mrb[0].mxu0
    %v5325 = vadd.f32 %v5132, %v5324
    %v5326 = vpop.f32.mrb[0].mxu0
    %v5327 = vadd.f32 %v5134, %v5326
    %v5328 = vpop.f32.mrb[0].mxu0
    %v5329 = vadd.f32 %v5136, %v5328
    %v5330 = vpop.f32.mrb[0].mxu0
    %v5331 = vadd.f32 %v5138, %v5330
    %5332 = vmatprep.mubr.bf16.mxu0 %v1258
    %5333 = vmatmul.mubr.bf16.gmra.mrb[0].mxu0 %v1257
    %v5334 = vpop.f32.mrb[0].mxu0
    %v5335 = vadd.f32 %v5142, %v5334
    %v5336 = vpop.f32.mrb[0].mxu0
    %v5337 = vadd.f32 %v5144, %v5336
    %v5338 = vpop.f32.mrb[0].mxu0
    %v5339 = vadd.f32 %v5146, %v5338
    %v5340 = vpop.f32.mrb[0].mxu0
    %v5341 = vadd.f32 %v5148, %v5340
    %5342 = vmatprep.mubr.bf16.mxu0 %v1266
    %5343 = vmatmul.mubr.bf16.gmra.mrb[0].mxu0 %v1265
    %v5344 = vpop.f32.mrb[0].mxu0
    %v5345 = vadd.f32 %v5152, %v5344
    %v5346 = vpop.f32.mrb[0].mxu0
    %v5347 = vadd.f32 %v5154, %v5346
    %v5348 = vpop.f32.mrb[0].mxu0
    %v5349 = vadd.f32 %v5156, %v5348
    %v5350 = vpop.f32.mrb[0].mxu0
    %v5351 = vadd.f32 %v5158, %v5350
    %5352 = vmatprep.mubr.bf16.mxu0 %v1274
    %5353 = vmatmul.mubr.bf16.gmra.mrb[0].mxu0 %v1273
    %v5354 = vpop.f32.mrb[0].mxu0
    %v5355 = vadd.f32 %v5162, %v5354
    %v5356 = vpop.f32.mrb[0].mxu0
    %v5357 = vadd.f32 %v5164, %v5356
    %v5358 = vpop.f32.mrb[0].mxu0
    %v5359 = vadd.f32 %v5166, %v5358
    %v5360 = vpop.f32.mrb[0].mxu0
    %v5361 = vadd.f32 %v5168, %v5360
    %5362 = vmatprep.mubr.bf16.mxu0 %v1282
    %5363 = vmatmul.mubr.bf16.gmra.mrb[0].mxu0 %v1281
    %v5364 = vpop.f32.mrb[0].mxu0
    %v5365 = vadd.f32 %v5172, %v5364
    %v5366 = vpop.f32.mrb[0].mxu0
    %v5367 = vadd.f32 %v5174, %v5366
    %v5368 = vpop.f32.mrb[0].mxu0
    %v5369 = vadd.f32 %v5176, %v5368
    %v5370 = vpop.f32.mrb[0].mxu0
    %v5371 = vadd.f32 %v5178, %v5370
    %5372 = vmatprep.mubr.bf16.mxu0 %v1290
    %5373 = vmatmul.mubr.bf16.gmra.mrb[0].mxu0 %v1289
    %v5374 = vpop.f32.mrb[0].mxu0
    %v5375 = vadd.f32 %v5182, %v5374
    %v5376 = vpop.f32.mrb[0].mxu0
    %v5377 = vadd.f32 %v5184, %v5376
    %v5378 = vpop.f32.mrb[0].mxu0
    %v5379 = vadd.f32 %v5186, %v5378
    %v5380 = vpop.f32.mrb[0].mxu0
    %v5381 = vadd.f32 %v5188, %v5380
    %5382 = vmatprep.mubr.bf16.mxu0 %v1298
    %5383 = vmatmul.mubr.bf16.gmra.mrb[0].mxu0 %v1297
    %v5384 = vpop.f32.mrb[0].mxu0
    %v5385 = vadd.f32 %v5192, %v5384
    %v5386 = vpop.f32.mrb[0].mxu0
    %v5387 = vadd.f32 %v5194, %v5386
    %v5388 = vpop.f32.mrb[0].mxu0
    %v5389 = vadd.f32 %v5196, %v5388
    %v5390 = vpop.f32.mrb[0].mxu0
    %v5391 = vadd.f32 %v5198, %v5390
    %5392 = vmatprep.mubr.bf16.mxu0 %v1306
    %5393 = vmatmul.mubr.bf16.gmra.mrb[0].mxu0 %v1305
    %v5394 = vpop.f32.mrb[0].mxu0
    %v5395 = vadd.f32 %v5202, %v5394
    %v5396 = vpop.f32.mrb[0].mxu0
    %v5397 = vadd.f32 %v5204, %v5396
    %v5398 = vpop.f32.mrb[0].mxu0
    %v5399 = vadd.f32 %v5206, %v5398
    %v5400 = vpop.f32.mrb[0].mxu0
    %v5401 = vadd.f32 %v5208, %v5400
    %5402 = vmatprep.mubr.bf16.mxu0 %v1314
    %5403 = vmatmul.mubr.bf16.gmra.mrb[0].mxu0 %v1313
    %v5404 = vpop.f32.mrb[0].mxu0
    %v5405 = vadd.f32 %v5212, %v5404
    %v5406 = vpop.f32.mrb[0].mxu0
    %v5407 = vadd.f32 %v5214, %v5406
    %v5408 = vpop.f32.mrb[0].mxu0
    %v5409 = vadd.f32 %v5216, %v5408
    %v5410 = vpop.f32.mrb[0].mxu0
    %v5411 = vadd.f32 %v5218, %v5410
    %5412 = vmatprep.mubr.bf16.mxu0 %v1322
    %5413 = vmatmul.mubr.bf16.gmra.mrb[0].mxu0 %v1321
    %v5414 = vpop.f32.mrb[0].mxu0
    %v5415 = vadd.f32 %v5222, %v5414
    %v5416 = vpop.f32.mrb[0].mxu0
    %v5417 = vadd.f32 %v5224, %v5416
    %v5418 = vpop.f32.mrb[0].mxu0
    %v5419 = vadd.f32 %v5226, %v5418
    %v5420 = vpop.f32.mrb[0].mxu0
    %v5421 = vadd.f32 %v5228, %v5420
    %5422 = vdwg.mxu0
    %5423 = vmatprep.subr.bf16.mxu0 %v3374
    %5424 = vmatpush1.bf16.msra.mxu0 %v3373
    %5425 = vmatprep.subr.bf16.mxu0 %v3384
    %5426 = vmatpush1.bf16.msra.mxu0 %v3383
    %5427 = vmatprep.subr.bf16.mxu0 %v3394
    %5428 = vmatpush1.bf16.msra.mxu0 %v3393
    %5429 = vmatprep.subr.bf16.mxu0 %v3404
    %5430 = vmatpush1.bf16.msra.mxu0 %v3403
    %5431 = vmatprep.subr.bf16.mxu0 %v3414
    %5432 = vmatpush1.bf16.msra.mxu0 %v3413
    %5433 = vmatprep.subr.bf16.mxu0 %v3424
    %5434 = vmatpush1.bf16.msra.mxu0 %v3423
    %5435 = vmatprep.subr.bf16.mxu0 %v3434
    %5436 = vmatpush1.bf16.msra.mxu0 %v3433
    %5437 = vmatprep.subr.bf16.mxu0 %v3444
    %5438 = vmatpush1.bf16.msra.mxu0 %v3443
    %5439 = vmatprep.subr.bf16.mxu0 %v3454
    %5440 = vmatpush1.bf16.msra.mxu0 %v3453
    %5441 = vmatprep.subr.bf16.mxu0 %v3464
    %5442 = vmatpush1.bf16.msra.mxu0 %v3463
    %5443 = vmatprep.subr.bf16.mxu0 %v3474
    %5444 = vmatpush1.bf16.msra.mxu0 %v3473
    %5445 = vmatprep.subr.bf16.mxu0 %v3484
    %5446 = vmatpush1.bf16.msra.mxu0 %v3483
    %5447 = vmatprep.subr.bf16.mxu0 %v3494
    %5448 = vmatpush1.bf16.msra.mxu0 %v3493
    %5449 = vmatprep.subr.bf16.mxu0 %v3504
    %5450 = vmatpush1.bf16.msra.mxu0 %v3503
    %5451 = vmatprep.subr.bf16.mxu0 %v3514
    %5452 = vmatpush1.bf16.msra.mxu0 %v3513
    %5453 = vmatprep.subr.bf16.mxu0 %v3524
    %5454 = vmatpush1.bf16.msra.mxu0 %v3523
    %5455 = vmatprep.mubr.bf16.mxu0 %v1196
    %5456 = vmatmul.mubr.bf16.gmra.mrb[0].mxu0 %v1195
    %v5457 = vpop.f32.mrb[0].mxu0
    %v5458 = vadd.f32 0.0, %v5457
    %v5459 = vpop.f32.mrb[0].mxu0
    %v5460 = vadd.f32 0.0, %v5459
    %v5461 = vpop.f32.mrb[0].mxu0
    %v5462 = vadd.f32 0.0, %v5461
    %v5463 = vpop.f32.mrb[0].mxu0
    %v5464 = vadd.f32 0.0, %v5463
    %5465 = vmatprep.mubr.bf16.mxu0 %v1204
    %5466 = vmatmul.mubr.bf16.gmra.mrb[0].mxu0 %v1203
    %v5467 = vpop.f32.mrb[0].mxu0
    %v5468 = vadd.f32 0.0, %v5467
    %v5469 = vpop.f32.mrb[0].mxu0
    %v5470 = vadd.f32 0.0, %v5469
    %v5471 = vpop.f32.mrb[0].mxu0
    %v5472 = vadd.f32 0.0, %v5471
    %v5473 = vpop.f32.mrb[0].mxu0
    %v5474 = vadd.f32 0.0, %v5473
    %5475 = vmatprep.mubr.bf16.mxu0 %v1212
    %5476 = vmatmul.mubr.bf16.gmra.mrb[0].mxu0 %v1211
    %v5477 = vpop.f32.mrb[0].mxu0
    %v5478 = vadd.f32 0.0, %v5477
    %v5479 = vpop.f32.mrb[0].mxu0
    %v5480 = vadd.f32 0.0, %v5479
    %v5481 = vpop.f32.mrb[0].mxu0
    %v5482 = vadd.f32 0.0, %v5481
    %v5483 = vpop.f32.mrb[0].mxu0
    %v5484 = vadd.f32 0.0, %v5483
    %5485 = vmatprep.mubr.bf16.mxu0 %v1220
    %5486 = vmatmul.mubr.bf16.gmra.mrb[0].mxu0 %v1219
    %v5487 = vpop.f32.mrb[0].mxu0
    %v5488 = vadd.f32 0.0, %v5487
    %v5489 = vpop.f32.mrb[0].mxu0
    %v5490 = vadd.f32 0.0, %v5489
    %v5491 = vpop.f32.mrb[0].mxu0
    %v5492 = vadd.f32 0.0, %v5491
    %v5493 = vpop.f32.mrb[0].mxu0
    %v5494 = vadd.f32 0.0, %v5493
    %5495 = vmatprep.mubr.bf16.mxu0 %v1228
    %5496 = vmatmul.mubr.bf16.gmra.mrb[0].mxu0 %v1227
    %v5497 = vpop.f32.mrb[0].mxu0
    %v5498 = vadd.f32 0.0, %v5497
    %v5499 = vpop.f32.mrb[0].mxu0
    %v5500 = vadd.f32 0.0, %v5499
    %v5501 = vpop.f32.mrb[0].mxu0
    %v5502 = vadd.f32 0.0, %v5501
    %v5503 = vpop.f32.mrb[0].mxu0
    %v5504 = vadd.f32 0.0, %v5503
    %5505 = vmatprep.mubr.bf16.mxu0 %v1236
    %5506 = vmatmul.mubr.bf16.gmra.mrb[0].mxu0 %v1235
    %v5507 = vpop.f32.mrb[0].mxu0
    %v5508 = vadd.f32 0.0, %v5507
    %v5509 = vpop.f32.mrb[0].mxu0
    %v5510 = vadd.f32 0.0, %v5509
    %v5511 = vpop.f32.mrb[0].mxu0
    %v5512 = vadd.f32 0.0, %v5511
    %v5513 = vpop.f32.mrb[0].mxu0
    %v5514 = vadd.f32 0.0, %v5513
    %5515 = vmatprep.mubr.bf16.mxu0 %v1244
    %5516 = vmatmul.mubr.bf16.gmra.mrb[0].mxu0 %v1243
    %v5517 = vpop.f32.mrb[0].mxu0
    %v5518 = vadd.f32 0.0, %v5517
    %v5519 = vpop.f32.mrb[0].mxu0
    %v5520 = vadd.f32 0.0, %v5519
    %v5521 = vpop.f32.mrb[0].mxu0
    %v5522 = vadd.f32 0.0, %v5521
    %v5523 = vpop.f32.mrb[0].mxu0
    %v5524 = vadd.f32 0.0, %v5523
    %5525 = vmatprep.mubr.bf16.mxu0 %v1252
    %5526 = vmatmul.mubr.bf16.gmra.mrb[0].mxu0 %v1251
    %v5527 = vpop.f32.mrb[0].mxu0
    %v5528 = vadd.f32 0.0, %v5527
    %v5529 = vpop.f32.mrb[0].mxu0
    %v5530 = vadd.f32 0.0, %v5529
    %v5531 = vpop.f32.mrb[0].mxu0
    %v5532 = vadd.f32 0.0, %v5531
    %v5533 = vpop.f32.mrb[0].mxu0
    %v5534 = vadd.f32 0.0, %v5533
    %5535 = vmatprep.mubr.bf16.mxu0 %v1260
    %5536 = vmatmul.mubr.bf16.gmra.mrb[0].mxu0 %v1259
    %v5537 = vpop.f32.mrb[0].mxu0
    %v5538 = vadd.f32 0.0, %v5537
    %v5539 = vpop.f32.mrb[0].mxu0
    %v5540 = vadd.f32 0.0, %v5539
    %v5541 = vpop.f32.mrb[0].mxu0
    %v5542 = vadd.f32 0.0, %v5541
    %v5543 = vpop.f32.mrb[0].mxu0
    %v5544 = vadd.f32 0.0, %v5543
    %5545 = vmatprep.mubr.bf16.mxu0 %v1268
    %5546 = vmatmul.mubr.bf16.gmra.mrb[0].mxu0 %v1267
    %v5547 = vpop.f32.mrb[0].mxu0
    %v5548 = vadd.f32 0.0, %v5547
    %v5549 = vpop.f32.mrb[0].mxu0
    %v5550 = vadd.f32 0.0, %v5549
    %v5551 = vpop.f32.mrb[0].mxu0
    %v5552 = vadd.f32 0.0, %v5551
    %v5553 = vpop.f32.mrb[0].mxu0
    %v5554 = vadd.f32 0.0, %v5553
    %5555 = vmatprep.mubr.bf16.mxu0 %v1276
    %5556 = vmatmul.mubr.bf16.gmra.mrb[0].mxu0 %v1275
    %v5557 = vpop.f32.mrb[0].mxu0
    %v5558 = vadd.f32 0.0, %v5557
    %v5559 = vpop.f32.mrb[0].mxu0
    %v5560 = vadd.f32 0.0, %v5559
    %v5561 = vpop.f32.mrb[0].mxu0
    %v5562 = vadd.f32 0.0, %v5561
    %v5563 = vpop.f32.mrb[0].mxu0
    %v5564 = vadd.f32 0.0, %v5563
    %5565 = vmatprep.mubr.bf16.mxu0 %v1284
    %5566 = vmatmul.mubr.bf16.gmra.mrb[0].mxu0 %v1283
    %v5567 = vpop.f32.mrb[0].mxu0
    %v5568 = vadd.f32 0.0, %v5567
    %v5569 = vpop.f32.mrb[0].mxu0
    %v5570 = vadd.f32 0.0, %v5569
    %v5571 = vpop.f32.mrb[0].mxu0
    %v5572 = vadd.f32 0.0, %v5571
    %v5573 = vpop.f32.mrb[0].mxu0
    %v5574 = vadd.f32 0.0, %v5573
    %5575 = vmatprep.mubr.bf16.mxu0 %v1292
    %5576 = vmatmul.mubr.bf16.gmra.mrb[0].mxu0 %v1291
    %v5577 = vpop.f32.mrb[0].mxu0
    %v5578 = vadd.f32 0.0, %v5577
    %v5579 = vpop.f32.mrb[0].mxu0
    %v5580 = vadd.f32 0.0, %v5579
    %v5581 = vpop.f32.mrb[0].mxu0
    %v5582 = vadd.f32 0.0, %v5581
    %v5583 = vpop.f32.mrb[0].mxu0
    %v5584 = vadd.f32 0.0, %v5583
    %5585 = vmatprep.mubr.bf16.mxu0 %v1300
    %5586 = vmatmul.mubr.bf16.gmra.mrb[0].mxu0 %v1299
    %v5587 = vpop.f32.mrb[0].mxu0
    %v5588 = vadd.f32 0.0, %v5587
    %v5589 = vpop.f32.mrb[0].mxu0
    %v5590 = vadd.f32 0.0, %v5589
    %v5591 = vpop.f32.mrb[0].mxu0
    %v5592 = vadd.f32 0.0, %v5591
    %v5593 = vpop.f32.mrb[0].mxu0
    %v5594 = vadd.f32 0.0, %v5593
    %5595 = vmatprep.mubr.bf16.mxu0 %v1308
    %5596 = vmatmul.mubr.bf16.gmra.mrb[0].mxu0 %v1307
    %v5597 = vpop.f32.mrb[0].mxu0
    %v5598 = vadd.f32 0.0, %v5597
    %v5599 = vpop.f32.mrb[0].mxu0
    %v5600 = vadd.f32 0.0, %v5599
    %v5601 = vpop.f32.mrb[0].mxu0
    %v5602 = vadd.f32 0.0, %v5601
    %v5603 = vpop.f32.mrb[0].mxu0
    %v5604 = vadd.f32 0.0, %v5603
    %5605 = vmatprep.mubr.bf16.mxu0 %v1316
    %5606 = vmatmul.mubr.bf16.gmra.mrb[0].mxu0 %v1315
    %v5607 = vpop.f32.mrb[0].mxu0
    %v5608 = vadd.f32 0.0, %v5607
    %v5609 = vpop.f32.mrb[0].mxu0
    %v5610 = vadd.f32 0.0, %v5609
    %v5611 = vpop.f32.mrb[0].mxu0
    %v5612 = vadd.f32 0.0, %v5611
    %v5613 = vpop.f32.mrb[0].mxu0
    %v5614 = vadd.f32 0.0, %v5613
    %5615 = vdwg.mxu0
    %5616 = vmatprep.subr.bf16.mxu0 %v3534
    %5617 = vmatpush1.bf16.msra.mxu0 %v3533
    %5618 = vmatprep.subr.bf16.mxu0 %v3544
    %5619 = vmatpush1.bf16.msra.mxu0 %v3543
    %5620 = vmatprep.subr.bf16.mxu0 %v3554
    %5621 = vmatpush1.bf16.msra.mxu0 %v3553
    %5622 = vmatprep.subr.bf16.mxu0 %v3564
    %5623 = vmatpush1.bf16.msra.mxu0 %v3563
    %5624 = vmatprep.subr.bf16.mxu0 %v3574
    %5625 = vmatpush1.bf16.msra.mxu0 %v3573
    %5626 = vmatprep.subr.bf16.mxu0 %v3584
    %5627 = vmatpush1.bf16.msra.mxu0 %v3583
    %5628 = vmatprep.subr.bf16.mxu0 %v3594
    %5629 = vmatpush1.bf16.msra.mxu0 %v3593
    %5630 = vmatprep.subr.bf16.mxu0 %v3604
    %5631 = vmatpush1.bf16.msra.mxu0 %v3603
    %5632 = vmatprep.subr.bf16.mxu0 %v3614
    %5633 = vmatpush1.bf16.msra.mxu0 %v3613
    %5634 = vmatprep.subr.bf16.mxu0 %v3624
    %5635 = vmatpush1.bf16.msra.mxu0 %v3623
    %5636 = vmatprep.subr.bf16.mxu0 %v3634
    %5637 = vmatpush1.bf16.msra.mxu0 %v3633
    %5638 = vmatprep.subr.bf16.mxu0 %v3644
    %5639 = vmatpush1.bf16.msra.mxu0 %v3643
    %5640 = vmatprep.subr.bf16.mxu0 %v3654
    %5641 = vmatpush1.bf16.msra.mxu0 %v3653
    %5642 = vmatprep.subr.bf16.mxu0 %v3664
    %5643 = vmatpush1.bf16.msra.mxu0 %v3663
    %5644 = vmatprep.subr.bf16.mxu0 %v3674
    %5645 = vmatpush1.bf16.msra.mxu0 %v3673
    %5646 = vmatprep.subr.bf16.mxu0 %v3684
    %5647 = vmatpush1.bf16.msra.mxu0 %v3683
    %5648 = vmatprep.mubr.bf16.mxu0 %v1198
    %5649 = vmatmul.mubr.bf16.gmra.mrb[0].mxu0 %v1197
    %v5650 = vpop.f32.mrb[0].mxu0
    %v5651 = vadd.f32 %v5458, %v5650
    %v5652 = vpop.f32.mrb[0].mxu0
    %v5653 = vadd.f32 %v5460, %v5652
    %v5654 = vpop.f32.mrb[0].mxu0
    %v5655 = vadd.f32 %v5462, %v5654
    %v5656 = vpop.f32.mrb[0].mxu0
    %v5657 = vadd.f32 %v5464, %v5656
    %5658 = vmatprep.mubr.bf16.mxu0 %v1206
    %5659 = vmatmul.mubr.bf16.gmra.mrb[0].mxu0 %v1205
    %v5660 = vpop.f32.mrb[0].mxu0
    %v5661 = vadd.f32 %v5468, %v5660
    %v5662 = vpop.f32.mrb[0].mxu0
    %v5663 = vadd.f32 %v5470, %v5662
    %v5664 = vpop.f32.mrb[0].mxu0
    %v5665 = vadd.f32 %v5472, %v5664
    %v5666 = vpop.f32.mrb[0].mxu0
    %v5667 = vadd.f32 %v5474, %v5666
    %5668 = vmatprep.mubr.bf16.mxu0 %v1214
    %5669 = vmatmul.mubr.bf16.gmra.mrb[0].mxu0 %v1213
    %v5670 = vpop.f32.mrb[0].mxu0
    %v5671 = vadd.f32 %v5478, %v5670
    %v5672 = vpop.f32.mrb[0].mxu0
    %v5673 = vadd.f32 %v5480, %v5672
    %v5674 = vpop.f32.mrb[0].mxu0
    %v5675 = vadd.f32 %v5482, %v5674
    %v5676 = vpop.f32.mrb[0].mxu0
    %v5677 = vadd.f32 %v5484, %v5676
    %5678 = vmatprep.mubr.bf16.mxu0 %v1222
    %5679 = vmatmul.mubr.bf16.gmra.mrb[0].mxu0 %v1221
    %v5680 = vpop.f32.mrb[0].mxu0
    %v5681 = vadd.f32 %v5488, %v5680
    %v5682 = vpop.f32.mrb[0].mxu0
    %v5683 = vadd.f32 %v5490, %v5682
    %v5684 = vpop.f32.mrb[0].mxu0
    %v5685 = vadd.f32 %v5492, %v5684
    %v5686 = vpop.f32.mrb[0].mxu0
    %v5687 = vadd.f32 %v5494, %v5686
    %5688 = vmatprep.mubr.bf16.mxu0 %v1230
    %5689 = vmatmul.mubr.bf16.gmra.mrb[0].mxu0 %v1229
    %v5690 = vpop.f32.mrb[0].mxu0
    %v5691 = vadd.f32 %v5498, %v5690
    %v5692 = vpop.f32.mrb[0].mxu0
    %v5693 = vadd.f32 %v5500, %v5692
    %v5694 = vpop.f32.mrb[0].mxu0
    %v5695 = vadd.f32 %v5502, %v5694
    %v5696 = vpop.f32.mrb[0].mxu0
    %v5697 = vadd.f32 %v5504, %v5696
    %5698 = vmatprep.mubr.bf16.mxu0 %v1238
    %5699 = vmatmul.mubr.bf16.gmra.mrb[0].mxu0 %v1237
    %v5700 = vpop.f32.mrb[0].mxu0
    %v5701 = vadd.f32 %v5508, %v5700
    %v5702 = vpop.f32.mrb[0].mxu0
    %v5703 = vadd.f32 %v5510, %v5702
    %v5704 = vpop.f32.mrb[0].mxu0
    %v5705 = vadd.f32 %v5512, %v5704
    %v5706 = vpop.f32.mrb[0].mxu0
    %v5707 = vadd.f32 %v5514, %v5706
    %5708 = vmatprep.mubr.bf16.mxu0 %v1246
    %5709 = vmatmul.mubr.bf16.gmra.mrb[0].mxu0 %v1245
    %v5710 = vpop.f32.mrb[0].mxu0
    %v5711 = vadd.f32 %v5518, %v5710
    %v5712 = vpop.f32.mrb[0].mxu0
    %v5713 = vadd.f32 %v5520, %v5712
    %v5714 = vpop.f32.mrb[0].mxu0
    %v5715 = vadd.f32 %v5522, %v5714
    %v5716 = vpop.f32.mrb[0].mxu0
    %v5717 = vadd.f32 %v5524, %v5716
    %5718 = vmatprep.mubr.bf16.mxu0 %v1254
    %5719 = vmatmul.mubr.bf16.gmra.mrb[0].mxu0 %v1253
    %v5720 = vpop.f32.mrb[0].mxu0
    %v5721 = vadd.f32 %v5528, %v5720
    %v5722 = vpop.f32.mrb[0].mxu0
    %v5723 = vadd.f32 %v5530, %v5722
    %v5724 = vpop.f32.mrb[0].mxu0
    %v5725 = vadd.f32 %v5532, %v5724
    %v5726 = vpop.f32.mrb[0].mxu0
    %v5727 = vadd.f32 %v5534, %v5726
    %5728 = vmatprep.mubr.bf16.mxu0 %v1262
    %5729 = vmatmul.mubr.bf16.gmra.mrb[0].mxu0 %v1261
    %v5730 = vpop.f32.mrb[0].mxu0
    %v5731 = vadd.f32 %v5538, %v5730
    %v5732 = vpop.f32.mrb[0].mxu0
    %v5733 = vadd.f32 %v5540, %v5732
    %v5734 = vpop.f32.mrb[0].mxu0
    %v5735 = vadd.f32 %v5542, %v5734
    %v5736 = vpop.f32.mrb[0].mxu0
    %v5737 = vadd.f32 %v5544, %v5736
    %5738 = vmatprep.mubr.bf16.mxu0 %v1270
    %5739 = vmatmul.mubr.bf16.gmra.mrb[0].mxu0 %v1269
    %v5740 = vpop.f32.mrb[0].mxu0
    %v5741 = vadd.f32 %v5548, %v5740
    %v5742 = vpop.f32.mrb[0].mxu0
    %v5743 = vadd.f32 %v5550, %v5742
    %v5744 = vpop.f32.mrb[0].mxu0
    %v5745 = vadd.f32 %v5552, %v5744
    %v5746 = vpop.f32.mrb[0].mxu0
    %v5747 = vadd.f32 %v5554, %v5746
    %5748 = vmatprep.mubr.bf16.mxu0 %v1278
    %5749 = vmatmul.mubr.bf16.gmra.mrb[0].mxu0 %v1277
    %v5750 = vpop.f32.mrb[0].mxu0
    %v5751 = vadd.f32 %v5558, %v5750
    %v5752 = vpop.f32.mrb[0].mxu0
    %v5753 = vadd.f32 %v5560, %v5752
    %v5754 = vpop.f32.mrb[0].mxu0
    %v5755 = vadd.f32 %v5562, %v5754
    %v5756 = vpop.f32.mrb[0].mxu0
    %v5757 = vadd.f32 %v5564, %v5756
    %5758 = vmatprep.mubr.bf16.mxu0 %v1286
    %5759 = vmatmul.mubr.bf16.gmra.mrb[0].mxu0 %v1285
    %v5760 = vpop.f32.mrb[0].mxu0
    %v5761 = vadd.f32 %v5568, %v5760
    %v5762 = vpop.f32.mrb[0].mxu0
    %v5763 = vadd.f32 %v5570, %v5762
    %v5764 = vpop.f32.mrb[0].mxu0
    %v5765 = vadd.f32 %v5572, %v5764
    %v5766 = vpop.f32.mrb[0].mxu0
    %v5767 = vadd.f32 %v5574, %v5766
    %5768 = vmatprep.mubr.bf16.mxu0 %v1294
    %5769 = vmatmul.mubr.bf16.gmra.mrb[0].mxu0 %v1293
    %v5770 = vpop.f32.mrb[0].mxu0
    %v5771 = vadd.f32 %v5578, %v5770
    %v5772 = vpop.f32.mrb[0].mxu0
    %v5773 = vadd.f32 %v5580, %v5772
    %v5774 = vpop.f32.mrb[0].mxu0
    %v5775 = vadd.f32 %v5582, %v5774
    %v5776 = vpop.f32.mrb[0].mxu0
    %v5777 = vadd.f32 %v5584, %v5776
    %5778 = vmatprep.mubr.bf16.mxu0 %v1302
    %5779 = vmatmul.mubr.bf16.gmra.mrb[0].mxu0 %v1301
    %v5780 = vpop.f32.mrb[0].mxu0
    %v5781 = vadd.f32 %v5588, %v5780
    %v5782 = vpop.f32.mrb[0].mxu0
    %v5783 = vadd.f32 %v5590, %v5782
    %v5784 = vpop.f32.mrb[0].mxu0
    %v5785 = vadd.f32 %v5592, %v5784
    %v5786 = vpop.f32.mrb[0].mxu0
    %v5787 = vadd.f32 %v5594, %v5786
    %5788 = vmatprep.mubr.bf16.mxu0 %v1310
    %5789 = vmatmul.mubr.bf16.gmra.mrb[0].mxu0 %v1309
    %v5790 = vpop.f32.mrb[0].mxu0
    %v5791 = vadd.f32 %v5598, %v5790
    %v5792 = vpop.f32.mrb[0].mxu0
    %v5793 = vadd.f32 %v5600, %v5792
    %v5794 = vpop.f32.mrb[0].mxu0
    %v5795 = vadd.f32 %v5602, %v5794
    %v5796 = vpop.f32.mrb[0].mxu0
    %v5797 = vadd.f32 %v5604, %v5796
    %5798 = vmatprep.mubr.bf16.mxu0 %v1318
    %5799 = vmatmul.mubr.bf16.gmra.mrb[0].mxu0 %v1317
    %v5800 = vpop.f32.mrb[0].mxu0
    %v5801 = vadd.f32 %v5608, %v5800
    %v5802 = vpop.f32.mrb[0].mxu0
    %v5803 = vadd.f32 %v5610, %v5802
    %v5804 = vpop.f32.mrb[0].mxu0
    %v5805 = vadd.f32 %v5612, %v5804
    %v5806 = vpop.f32.mrb[0].mxu0
    %v5807 = vadd.f32 %v5614, %v5806
    %5808 = vdwg.mxu0
    %5809 = vmatprep.subr.bf16.mxu0 %v3694
    %5810 = vmatpush1.bf16.msra.mxu0 %v3693
    %5811 = vmatprep.subr.bf16.mxu0 %v3704
    %5812 = vmatpush1.bf16.msra.mxu0 %v3703
    %5813 = vmatprep.subr.bf16.mxu0 %v3714
    %5814 = vmatpush1.bf16.msra.mxu0 %v3713
    %5815 = vmatprep.subr.bf16.mxu0 %v3724
    %5816 = vmatpush1.bf16.msra.mxu0 %v3723
    %5817 = vmatprep.subr.bf16.mxu0 %v3734
    %5818 = vmatpush1.bf16.msra.mxu0 %v3733
    %5819 = vmatprep.subr.bf16.mxu0 %v3744
    %5820 = vmatpush1.bf16.msra.mxu0 %v3743
    %5821 = vmatprep.subr.bf16.mxu0 %v3754
    %5822 = vmatpush1.bf16.msra.mxu0 %v3753
    %5823 = vmatprep.subr.bf16.mxu0 %v3764
    %5824 = vmatpush1.bf16.msra.mxu0 %v3763
    %5825 = vmatprep.subr.bf16.mxu0 %v3774
    %5826 = vmatpush1.bf16.msra.mxu0 %v3773
    %5827 = vmatprep.subr.bf16.mxu0 %v3784
    %5828 = vmatpush1.bf16.msra.mxu0 %v3783
    %5829 = vmatprep.subr.bf16.mxu0 %v3794
    %5830 = vmatpush1.bf16.msra.mxu0 %v3793
    %5831 = vmatprep.subr.bf16.mxu0 %v3804
    %5832 = vmatpush1.bf16.msra.mxu0 %v3803
    %5833 = vmatprep.subr.bf16.mxu0 %v3814
    %5834 = vmatpush1.bf16.msra.mxu0 %v3813
    %5835 = vmatprep.subr.bf16.mxu0 %v3824
    %5836 = vmatpush1.bf16.msra.mxu0 %v3823
    %5837 = vmatprep.subr.bf16.mxu0 %v3834
    %5838 = vmatpush1.bf16.msra.mxu0 %v3833
    %5839 = vmatprep.subr.bf16.mxu0 %v3844
    %5840 = vmatpush1.bf16.msra.mxu0 %v3843
    %5841 = vmatprep.mubr.bf16.mxu0 %v1200
    %5842 = vmatmul.mubr.bf16.gmra.mrb[0].mxu0 %v1199
    %v5843 = vpop.f32.mrb[0].mxu0
    %v5844 = vadd.f32 %v5651, %v5843
    %v5845 = vpop.f32.mrb[0].mxu0
    %v5846 = vadd.f32 %v5653, %v5845
    %v5847 = vpop.f32.mrb[0].mxu0
    %v5848 = vadd.f32 %v5655, %v5847
    %v5849 = vpop.f32.mrb[0].mxu0
    %v5850 = vadd.f32 %v5657, %v5849
    %5851 = vmatprep.mubr.bf16.mxu0 %v1208
    %5852 = vmatmul.mubr.bf16.gmra.mrb[0].mxu0 %v1207
    %v5853 = vpop.f32.mrb[0].mxu0
    %v5854 = vadd.f32 %v5661, %v5853
    %v5855 = vpop.f32.mrb[0].mxu0
    %v5856 = vadd.f32 %v5663, %v5855
    %v5857 = vpop.f32.mrb[0].mxu0
    %v5858 = vadd.f32 %v5665, %v5857
    %v5859 = vpop.f32.mrb[0].mxu0
    %v5860 = vadd.f32 %v5667, %v5859
    %5861 = vmatprep.mubr.bf16.mxu0 %v1216
    %5862 = vmatmul.mubr.bf16.gmra.mrb[0].mxu0 %v1215
    %v5863 = vpop.f32.mrb[0].mxu0
    %v5864 = vadd.f32 %v5671, %v5863
    %v5865 = vpop.f32.mrb[0].mxu0
    %v5866 = vadd.f32 %v5673, %v5865
    %v5867 = vpop.f32.mrb[0].mxu0
    %v5868 = vadd.f32 %v5675, %v5867
    %v5869 = vpop.f32.mrb[0].mxu0
    %v5870 = vadd.f32 %v5677, %v5869
    %5871 = vmatprep.mubr.bf16.mxu0 %v1224
    %5872 = vmatmul.mubr.bf16.gmra.mrb[0].mxu0 %v1223
    %v5873 = vpop.f32.mrb[0].mxu0
    %v5874 = vadd.f32 %v5681, %v5873
    %v5875 = vpop.f32.mrb[0].mxu0
    %v5876 = vadd.f32 %v5683, %v5875
    %v5877 = vpop.f32.mrb[0].mxu0
    %v5878 = vadd.f32 %v5685, %v5877
    %v5879 = vpop.f32.mrb[0].mxu0
    %v5880 = vadd.f32 %v5687, %v5879
    %5881 = vmatprep.mubr.bf16.mxu0 %v1232
    %5882 = vmatmul.mubr.bf16.gmra.mrb[0].mxu0 %v1231
    %v5883 = vpop.f32.mrb[0].mxu0
    %v5884 = vadd.f32 %v5691, %v5883
    %v5885 = vpop.f32.mrb[0].mxu0
    %v5886 = vadd.f32 %v5693, %v5885
    %v5887 = vpop.f32.mrb[0].mxu0
    %v5888 = vadd.f32 %v5695, %v5887
    %v5889 = vpop.f32.mrb[0].mxu0
    %v5890 = vadd.f32 %v5697, %v5889
    %5891 = vmatprep.mubr.bf16.mxu0 %v1240
    %5892 = vmatmul.mubr.bf16.gmra.mrb[0].mxu0 %v1239
    %v5893 = vpop.f32.mrb[0].mxu0
    %v5894 = vadd.f32 %v5701, %v5893
    %v5895 = vpop.f32.mrb[0].mxu0
    %v5896 = vadd.f32 %v5703, %v5895
    %v5897 = vpop.f32.mrb[0].mxu0
    %v5898 = vadd.f32 %v5705, %v5897
    %v5899 = vpop.f32.mrb[0].mxu0
    %v5900 = vadd.f32 %v5707, %v5899
    %5901 = vmatprep.mubr.bf16.mxu0 %v1248
    %5902 = vmatmul.mubr.bf16.gmra.mrb[0].mxu0 %v1247
    %v5903 = vpop.f32.mrb[0].mxu0
    %v5904 = vadd.f32 %v5711, %v5903
    %v5905 = vpop.f32.mrb[0].mxu0
    %v5906 = vadd.f32 %v5713, %v5905
    %v5907 = vpop.f32.mrb[0].mxu0
    %v5908 = vadd.f32 %v5715, %v5907
    %v5909 = vpop.f32.mrb[0].mxu0
    %v5910 = vadd.f32 %v5717, %v5909
    %5911 = vmatprep.mubr.bf16.mxu0 %v1256
    %5912 = vmatmul.mubr.bf16.gmra.mrb[0].mxu0 %v1255
    %v5913 = vpop.f32.mrb[0].mxu0
    %v5914 = vadd.f32 %v5721, %v5913
    %v5915 = vpop.f32.mrb[0].mxu0
    %v5916 = vadd.f32 %v5723, %v5915
    %v5917 = vpop.f32.mrb[0].mxu0
    %v5918 = vadd.f32 %v5725, %v5917
    %v5919 = vpop.f32.mrb[0].mxu0
    %v5920 = vadd.f32 %v5727, %v5919
    %5921 = vmatprep.mubr.bf16.mxu0 %v1264
    %5922 = vmatmul.mubr.bf16.gmra.mrb[0].mxu0 %v1263
    %v5923 = vpop.f32.mrb[0].mxu0
    %v5924 = vadd.f32 %v5731, %v5923
    %v5925 = vpop.f32.mrb[0].mxu0
    %v5926 = vadd.f32 %v5733, %v5925
    %v5927 = vpop.f32.mrb[0].mxu0
    %v5928 = vadd.f32 %v5735, %v5927
    %v5929 = vpop.f32.mrb[0].mxu0
    %v5930 = vadd.f32 %v5737, %v5929
    %5931 = vmatprep.mubr.bf16.mxu0 %v1272
    %5932 = vmatmul.mubr.bf16.gmra.mrb[0].mxu0 %v1271
    %v5933 = vpop.f32.mrb[0].mxu0
    %v5934 = vadd.f32 %v5741, %v5933
    %v5935 = vpop.f32.mrb[0].mxu0
    %v5936 = vadd.f32 %v5743, %v5935
    %v5937 = vpop.f32.mrb[0].mxu0
    %v5938 = vadd.f32 %v5745, %v5937
    %v5939 = vpop.f32.mrb[0].mxu0
    %v5940 = vadd.f32 %v5747, %v5939
    %5941 = vmatprep.mubr.bf16.mxu0 %v1280
    %5942 = vmatmul.mubr.bf16.gmra.mrb[0].mxu0 %v1279
    %v5943 = vpop.f32.mrb[0].mxu0
    %v5944 = vadd.f32 %v5751, %v5943
    %v5945 = vpop.f32.mrb[0].mxu0
    %v5946 = vadd.f32 %v5753, %v5945
    %v5947 = vpop.f32.mrb[0].mxu0
    %v5948 = vadd.f32 %v5755, %v5947
    %v5949 = vpop.f32.mrb[0].mxu0
    %v5950 = vadd.f32 %v5757, %v5949
    %5951 = vmatprep.mubr.bf16.mxu0 %v1288
    %5952 = vmatmul.mubr.bf16.gmra.mrb[0].mxu0 %v1287
    %v5953 = vpop.f32.mrb[0].mxu0
    %v5954 = vadd.f32 %v5761, %v5953
    %v5955 = vpop.f32.mrb[0].mxu0
    %v5956 = vadd.f32 %v5763, %v5955
    %v5957 = vpop.f32.mrb[0].mxu0
    %v5958 = vadd.f32 %v5765, %v5957
    %v5959 = vpop.f32.mrb[0].mxu0
    %v5960 = vadd.f32 %v5767, %v5959
    %5961 = vmatprep.mubr.bf16.mxu0 %v1296
    %5962 = vmatmul.mubr.bf16.gmra.mrb[0].mxu0 %v1295
    %v5963 = vpop.f32.mrb[0].mxu0
    %v5964 = vadd.f32 %v5771, %v5963
    %v5965 = vpop.f32.mrb[0].mxu0
    %v5966 = vadd.f32 %v5773, %v5965
    %v5967 = vpop.f32.mrb[0].mxu0
    %v5968 = vadd.f32 %v5775, %v5967
    %v5969 = vpop.f32.mrb[0].mxu0
    %v5970 = vadd.f32 %v5777, %v5969
    %5971 = vmatprep.mubr.bf16.mxu0 %v1304
    %5972 = vmatmul.mubr.bf16.gmra.mrb[0].mxu0 %v1303
    %v5973 = vpop.f32.mrb[0].mxu0
    %v5974 = vadd.f32 %v5781, %v5973
    %v5975 = vpop.f32.mrb[0].mxu0
    %v5976 = vadd.f32 %v5783, %v5975
    %v5977 = vpop.f32.mrb[0].mxu0
    %v5978 = vadd.f32 %v5785, %v5977
    %v5979 = vpop.f32.mrb[0].mxu0
    %v5980 = vadd.f32 %v5787, %v5979
    %5981 = vmatprep.mubr.bf16.mxu0 %v1312
    %5982 = vmatmul.mubr.bf16.gmra.mrb[0].mxu0 %v1311
    %v5983 = vpop.f32.mrb[0].mxu0
    %v5984 = vadd.f32 %v5791, %v5983
    %v5985 = vpop.f32.mrb[0].mxu0
    %v5986 = vadd.f32 %v5793, %v5985
    %v5987 = vpop.f32.mrb[0].mxu0
    %v5988 = vadd.f32 %v5795, %v5987
    %v5989 = vpop.f32.mrb[0].mxu0
    %v5990 = vadd.f32 %v5797, %v5989
    %5991 = vmatprep.mubr.bf16.mxu0 %v1320
    %5992 = vmatmul.mubr.bf16.gmra.mrb[0].mxu0 %v1319
    %v5993 = vpop.f32.mrb[0].mxu0
    %v5994 = vadd.f32 %v5801, %v5993
    %v5995 = vpop.f32.mrb[0].mxu0
    %v5996 = vadd.f32 %v5803, %v5995
    %v5997 = vpop.f32.mrb[0].mxu0
    %v5998 = vadd.f32 %v5805, %v5997
    %v5999 = vpop.f32.mrb[0].mxu0
    %v6000 = vadd.f32 %v5807, %v5999
    %6001 = vdwg.mxu0
    %6002 = vmatprep.subr.bf16.mxu0 %v3854
    %6003 = vmatpush1.bf16.msra.mxu0 %v3853
    %6004 = vmatprep.subr.bf16.mxu0 %v3864
    %6005 = vmatpush1.bf16.msra.mxu0 %v3863
    %6006 = vmatprep.subr.bf16.mxu0 %v3874
    %6007 = vmatpush1.bf16.msra.mxu0 %v3873
    %6008 = vmatprep.subr.bf16.mxu0 %v3884
    %6009 = vmatpush1.bf16.msra.mxu0 %v3883
    %6010 = vmatprep.subr.bf16.mxu0 %v3894
    %6011 = vmatpush1.bf16.msra.mxu0 %v3893
    %6012 = vmatprep.subr.bf16.mxu0 %v3904
    %6013 = vmatpush1.bf16.msra.mxu0 %v3903
    %6014 = vmatprep.subr.bf16.mxu0 %v3914
    %6015 = vmatpush1.bf16.msra.mxu0 %v3913
    %6016 = vmatprep.subr.bf16.mxu0 %v3924
    %6017 = vmatpush1.bf16.msra.mxu0 %v3923
    %6018 = vmatprep.subr.bf16.mxu0 %v3934
    %6019 = vmatpush1.bf16.msra.mxu0 %v3933
    %6020 = vmatprep.subr.bf16.mxu0 %v3944
    %6021 = vmatpush1.bf16.msra.mxu0 %v3943
    %6022 = vmatprep.subr.bf16.mxu0 %v3954
    %6023 = vmatpush1.bf16.msra.mxu0 %v3953
    %6024 = vmatprep.subr.bf16.mxu0 %v3964
    %6025 = vmatpush1.bf16.msra.mxu0 %v3963
    %6026 = vmatprep.subr.bf16.mxu0 %v3974
    %6027 = vmatpush1.bf16.msra.mxu0 %v3973
    %6028 = vmatprep.subr.bf16.mxu0 %v3984
    %6029 = vmatpush1.bf16.msra.mxu0 %v3983
    %6030 = vmatprep.subr.bf16.mxu0 %v3994
    %6031 = vmatpush1.bf16.msra.mxu0 %v3993
    %6032 = vmatprep.subr.bf16.mxu0 %v4004
    %6033 = vmatpush1.bf16.msra.mxu0 %v4003
    %6034 = vmatprep.mubr.bf16.mxu0 %v1202
    %6035 = vmatmul.mubr.bf16.gmra.mrb[0].mxu0 %v1201
    %v6036 = vpop.f32.mrb[0].mxu0
    %v6037 = vadd.f32 %v5844, %v6036
    %v6038 = vpop.f32.mrb[0].mxu0
    %v6039 = vadd.f32 %v5846, %v6038
    %v6040 = vpop.f32.mrb[0].mxu0
    %v6041 = vadd.f32 %v5848, %v6040
    %v6042 = vpop.f32.mrb[0].mxu0
    %v6043 = vadd.f32 %v5850, %v6042
    %6044 = vmatprep.mubr.bf16.mxu0 %v1210
    %6045 = vmatmul.mubr.bf16.gmra.mrb[0].mxu0 %v1209
    %v6046 = vpop.f32.mrb[0].mxu0
    %v6047 = vadd.f32 %v5854, %v6046
    %v6048 = vpop.f32.mrb[0].mxu0
    %v6049 = vadd.f32 %v5856, %v6048
    %v6050 = vpop.f32.mrb[0].mxu0
    %v6051 = vadd.f32 %v5858, %v6050
    %v6052 = vpop.f32.mrb[0].mxu0
    %v6053 = vadd.f32 %v5860, %v6052
    %6054 = vmatprep.mubr.bf16.mxu0 %v1218
    %6055 = vmatmul.mubr.bf16.gmra.mrb[0].mxu0 %v1217
    %v6056 = vpop.f32.mrb[0].mxu0
    %v6057 = vadd.f32 %v5864, %v6056
    %v6058 = vpop.f32.mrb[0].mxu0
    %v6059 = vadd.f32 %v5866, %v6058
    %v6060 = vpop.f32.mrb[0].mxu0
    %v6061 = vadd.f32 %v5868, %v6060
    %v6062 = vpop.f32.mrb[0].mxu0
    %v6063 = vadd.f32 %v5870, %v6062
    %6064 = vmatprep.mubr.bf16.mxu0 %v1226
    %6065 = vmatmul.mubr.bf16.gmra.mrb[0].mxu0 %v1225
    %v6066 = vpop.f32.mrb[0].mxu0
    %v6067 = vadd.f32 %v5874, %v6066
    %v6068 = vpop.f32.mrb[0].mxu0
    %v6069 = vadd.f32 %v5876, %v6068
    %v6070 = vpop.f32.mrb[0].mxu0
    %v6071 = vadd.f32 %v5878, %v6070
    %v6072 = vpop.f32.mrb[0].mxu0
    %v6073 = vadd.f32 %v5880, %v6072
    %6074 = vmatprep.mubr.bf16.mxu0 %v1234
    %6075 = vmatmul.mubr.bf16.gmra.mrb[0].mxu0 %v1233
    %v6076 = vpop.f32.mrb[0].mxu0
    %v6077 = vadd.f32 %v5884, %v6076
    %v6078 = vpop.f32.mrb[0].mxu0
    %v6079 = vadd.f32 %v5886, %v6078
    %v6080 = vpop.f32.mrb[0].mxu0
    %v6081 = vadd.f32 %v5888, %v6080
    %v6082 = vpop.f32.mrb[0].mxu0
    %v6083 = vadd.f32 %v5890, %v6082
    %6084 = vmatprep.mubr.bf16.mxu0 %v1242
    %6085 = vmatmul.mubr.bf16.gmra.mrb[0].mxu0 %v1241
    %v6086 = vpop.f32.mrb[0].mxu0
    %v6087 = vadd.f32 %v5894, %v6086
    %v6088 = vpop.f32.mrb[0].mxu0
    %v6089 = vadd.f32 %v5896, %v6088
    %v6090 = vpop.f32.mrb[0].mxu0
    %v6091 = vadd.f32 %v5898, %v6090
    %v6092 = vpop.f32.mrb[0].mxu0
    %v6093 = vadd.f32 %v5900, %v6092
    %6094 = vmatprep.mubr.bf16.mxu0 %v1250
    %6095 = vmatmul.mubr.bf16.gmra.mrb[0].mxu0 %v1249
    %v6096 = vpop.f32.mrb[0].mxu0
    %v6097 = vadd.f32 %v5904, %v6096
    %v6098 = vpop.f32.mrb[0].mxu0
    %v6099 = vadd.f32 %v5906, %v6098
    %v6100 = vpop.f32.mrb[0].mxu0
    %v6101 = vadd.f32 %v5908, %v6100
    %v6102 = vpop.f32.mrb[0].mxu0
    %v6103 = vadd.f32 %v5910, %v6102
    %6104 = vmatprep.mubr.bf16.mxu0 %v1258
    %6105 = vmatmul.mubr.bf16.gmra.mrb[0].mxu0 %v1257
    %v6106 = vpop.f32.mrb[0].mxu0
    %v6107 = vadd.f32 %v5914, %v6106
    %v6108 = vpop.f32.mrb[0].mxu0
    %v6109 = vadd.f32 %v5916, %v6108
    %v6110 = vpop.f32.mrb[0].mxu0
    %v6111 = vadd.f32 %v5918, %v6110
    %v6112 = vpop.f32.mrb[0].mxu0
    %v6113 = vadd.f32 %v5920, %v6112
    %6114 = vmatprep.mubr.bf16.mxu0 %v1266
    %6115 = vmatmul.mubr.bf16.gmra.mrb[0].mxu0 %v1265
    %v6116 = vpop.f32.mrb[0].mxu0
    %v6117 = vadd.f32 %v5924, %v6116
    %v6118 = vpop.f32.mrb[0].mxu0
    %v6119 = vadd.f32 %v5926, %v6118
    %v6120 = vpop.f32.mrb[0].mxu0
    %v6121 = vadd.f32 %v5928, %v6120
    %v6122 = vpop.f32.mrb[0].mxu0
    %v6123 = vadd.f32 %v5930, %v6122
    %6124 = vmatprep.mubr.bf16.mxu0 %v1274
    %6125 = vmatmul.mubr.bf16.gmra.mrb[0].mxu0 %v1273
    %v6126 = vpop.f32.mrb[0].mxu0
    %v6127 = vadd.f32 %v5934, %v6126
    %v6128 = vpop.f32.mrb[0].mxu0
    %v6129 = vadd.f32 %v5936, %v6128
    %v6130 = vpop.f32.mrb[0].mxu0
    %v6131 = vadd.f32 %v5938, %v6130
    %v6132 = vpop.f32.mrb[0].mxu0
    %v6133 = vadd.f32 %v5940, %v6132
    %6134 = vmatprep.mubr.bf16.mxu0 %v1282
    %6135 = vmatmul.mubr.bf16.gmra.mrb[0].mxu0 %v1281
    %v6136 = vpop.f32.mrb[0].mxu0
    %v6137 = vadd.f32 %v5944, %v6136
    %v6138 = vpop.f32.mrb[0].mxu0
    %v6139 = vadd.f32 %v5946, %v6138
    %v6140 = vpop.f32.mrb[0].mxu0
    %v6141 = vadd.f32 %v5948, %v6140
    %v6142 = vpop.f32.mrb[0].mxu0
    %v6143 = vadd.f32 %v5950, %v6142
    %6144 = vmatprep.mubr.bf16.mxu0 %v1290
    %6145 = vmatmul.mubr.bf16.gmra.mrb[0].mxu0 %v1289
    %v6146 = vpop.f32.mrb[0].mxu0
    %v6147 = vadd.f32 %v5954, %v6146
    %v6148 = vpop.f32.mrb[0].mxu0
    %v6149 = vadd.f32 %v5956, %v6148
    %v6150 = vpop.f32.mrb[0].mxu0
    %v6151 = vadd.f32 %v5958, %v6150
    %v6152 = vpop.f32.mrb[0].mxu0
    %v6153 = vadd.f32 %v5960, %v6152
    %6154 = vmatprep.mubr.bf16.mxu0 %v1298
    %6155 = vmatmul.mubr.bf16.gmra.mrb[0].mxu0 %v1297
    %v6156 = vpop.f32.mrb[0].mxu0
    %v6157 = vadd.f32 %v5964, %v6156
    %v6158 = vpop.f32.mrb[0].mxu0
    %v6159 = vadd.f32 %v5966, %v6158
    %v6160 = vpop.f32.mrb[0].mxu0
    %v6161 = vadd.f32 %v5968, %v6160
    %v6162 = vpop.f32.mrb[0].mxu0
    %v6163 = vadd.f32 %v5970, %v6162
    %6164 = vmatprep.mubr.bf16.mxu0 %v1306
    %6165 = vmatmul.mubr.bf16.gmra.mrb[0].mxu0 %v1305
    %v6166 = vpop.f32.mrb[0].mxu0
    %v6167 = vadd.f32 %v5974, %v6166
    %v6168 = vpop.f32.mrb[0].mxu0
    %v6169 = vadd.f32 %v5976, %v6168
    %v6170 = vpop.f32.mrb[0].mxu0
    %v6171 = vadd.f32 %v5978, %v6170
    %v6172 = vpop.f32.mrb[0].mxu0
    %v6173 = vadd.f32 %v5980, %v6172
    %6174 = vmatprep.mubr.bf16.mxu0 %v1314
    %6175 = vmatmul.mubr.bf16.gmra.mrb[0].mxu0 %v1313
    %v6176 = vpop.f32.mrb[0].mxu0
    %v6177 = vadd.f32 %v5984, %v6176
    %v6178 = vpop.f32.mrb[0].mxu0
    %v6179 = vadd.f32 %v5986, %v6178
    %v6180 = vpop.f32.mrb[0].mxu0
    %v6181 = vadd.f32 %v5988, %v6180
    %v6182 = vpop.f32.mrb[0].mxu0
    %v6183 = vadd.f32 %v5990, %v6182
    %6184 = vmatprep.mubr.bf16.mxu0 %v1322
    %6185 = vmatmul.mubr.bf16.gmra.mrb[0].mxu0 %v1321
    %v6186 = vpop.f32.mrb[0].mxu0
    %v6187 = vadd.f32 %v5994, %v6186
    %v6188 = vpop.f32.mrb[0].mxu0
    %v6189 = vadd.f32 %v5996, %v6188
    %v6190 = vpop.f32.mrb[0].mxu0
    %v6191 = vadd.f32 %v5998, %v6190
    %v6192 = vpop.f32.mrb[0].mxu0
    %v6193 = vadd.f32 %v6000, %v6192
    %6194 = vdwg.mxu0
    %6195 = vmatprep.subr.bf16.mxu0 %v3376
    %6196 = vmatpush1.bf16.msra.mxu0 %v3375
    %6197 = vmatprep.subr.bf16.mxu0 %v3386
    %6198 = vmatpush1.bf16.msra.mxu0 %v3385
    %6199 = vmatprep.subr.bf16.mxu0 %v3396
    %6200 = vmatpush1.bf16.msra.mxu0 %v3395
    %6201 = vmatprep.subr.bf16.mxu0 %v3406
    %6202 = vmatpush1.bf16.msra.mxu0 %v3405
    %6203 = vmatprep.subr.bf16.mxu0 %v3416
    %6204 = vmatpush1.bf16.msra.mxu0 %v3415
    %6205 = vmatprep.subr.bf16.mxu0 %v3426
    %6206 = vmatpush1.bf16.msra.mxu0 %v3425
    %6207 = vmatprep.subr.bf16.mxu0 %v3436
    %6208 = vmatpush1.bf16.msra.mxu0 %v3435
    %6209 = vmatprep.subr.bf16.mxu0 %v3446
    %6210 = vmatpush1.bf16.msra.mxu0 %v3445
    %6211 = vmatprep.subr.bf16.mxu0 %v3456
    %6212 = vmatpush1.bf16.msra.mxu0 %v3455
    %6213 = vmatprep.subr.bf16.mxu0 %v3466
    %6214 = vmatpush1.bf16.msra.mxu0 %v3465
    %6215 = vmatprep.subr.bf16.mxu0 %v3476
    %6216 = vmatpush1.bf16.msra.mxu0 %v3475
    %6217 = vmatprep.subr.bf16.mxu0 %v3486
    %6218 = vmatpush1.bf16.msra.mxu0 %v3485
    %6219 = vmatprep.subr.bf16.mxu0 %v3496
    %6220 = vmatpush1.bf16.msra.mxu0 %v3495
    %6221 = vmatprep.subr.bf16.mxu0 %v3506
    %6222 = vmatpush1.bf16.msra.mxu0 %v3505
    %6223 = vmatprep.subr.bf16.mxu0 %v3516
    %6224 = vmatpush1.bf16.msra.mxu0 %v3515
    %6225 = vmatprep.subr.bf16.mxu0 %v3526
    %6226 = vmatpush1.bf16.msra.mxu0 %v3525
    %6227 = vmatprep.mubr.bf16.mxu0 %v1196
    %6228 = vmatmul.mubr.bf16.gmra.mrb[0].mxu0 %v1195
    %v6229 = vpop.f32.mrb[0].mxu0
    %v6230 = vadd.f32 0.0, %v6229
    %v6231 = vpop.f32.mrb[0].mxu0
    %v6232 = vadd.f32 0.0, %v6231
    %v6233 = vpop.f32.mrb[0].mxu0
    %v6234 = vadd.f32 0.0, %v6233
    %v6235 = vpop.f32.mrb[0].mxu0
    %v6236 = vadd.f32 0.0, %v6235
    %6237 = vmatprep.mubr.bf16.mxu0 %v1204
    %6238 = vmatmul.mubr.bf16.gmra.mrb[0].mxu0 %v1203
    %v6239 = vpop.f32.mrb[0].mxu0
    %v6240 = vadd.f32 0.0, %v6239
    %v6241 = vpop.f32.mrb[0].mxu0
    %v6242 = vadd.f32 0.0, %v6241
    %v6243 = vpop.f32.mrb[0].mxu0
    %v6244 = vadd.f32 0.0, %v6243
    %v6245 = vpop.f32.mrb[0].mxu0
    %v6246 = vadd.f32 0.0, %v6245
    %6247 = vmatprep.mubr.bf16.mxu0 %v1212
    %6248 = vmatmul.mubr.bf16.gmra.mrb[0].mxu0 %v1211
    %v6249 = vpop.f32.mrb[0].mxu0
    %v6250 = vadd.f32 0.0, %v6249
    %v6251 = vpop.f32.mrb[0].mxu0
    %v6252 = vadd.f32 0.0, %v6251
    %v6253 = vpop.f32.mrb[0].mxu0
    %v6254 = vadd.f32 0.0, %v6253
    %v6255 = vpop.f32.mrb[0].mxu0
    %v6256 = vadd.f32 0.0, %v6255
    %6257 = vmatprep.mubr.bf16.mxu0 %v1220
    %6258 = vmatmul.mubr.bf16.gmra.mrb[0].mxu0 %v1219
    %v6259 = vpop.f32.mrb[0].mxu0
    %v6260 = vadd.f32 0.0, %v6259
    %v6261 = vpop.f32.mrb[0].mxu0
    %v6262 = vadd.f32 0.0, %v6261
    %v6263 = vpop.f32.mrb[0].mxu0
    %v6264 = vadd.f32 0.0, %v6263
    %v6265 = vpop.f32.mrb[0].mxu0
    %v6266 = vadd.f32 0.0, %v6265
    %6267 = vmatprep.mubr.bf16.mxu0 %v1228
    %6268 = vmatmul.mubr.bf16.gmra.mrb[0].mxu0 %v1227
    %v6269 = vpop.f32.mrb[0].mxu0
    %v6270 = vadd.f32 0.0, %v6269
    %v6271 = vpop.f32.mrb[0].mxu0
    %v6272 = vadd.f32 0.0, %v6271
    %v6273 = vpop.f32.mrb[0].mxu0
    %v6274 = vadd.f32 0.0, %v6273
    %v6275 = vpop.f32.mrb[0].mxu0
    %v6276 = vadd.f32 0.0, %v6275
    %6277 = vmatprep.mubr.bf16.mxu0 %v1236
    %6278 = vmatmul.mubr.bf16.gmra.mrb[0].mxu0 %v1235
    %v6279 = vpop.f32.mrb[0].mxu0
    %v6280 = vadd.f32 0.0, %v6279
    %v6281 = vpop.f32.mrb[0].mxu0
    %v6282 = vadd.f32 0.0, %v6281
    %v6283 = vpop.f32.mrb[0].mxu0
    %v6284 = vadd.f32 0.0, %v6283
    %v6285 = vpop.f32.mrb[0].mxu0
    %v6286 = vadd.f32 0.0, %v6285
    %6287 = vmatprep.mubr.bf16.mxu0 %v1244
    %6288 = vmatmul.mubr.bf16.gmra.mrb[0].mxu0 %v1243
    %v6289 = vpop.f32.mrb[0].mxu0
    %v6290 = vadd.f32 0.0, %v6289
    %v6291 = vpop.f32.mrb[0].mxu0
    %v6292 = vadd.f32 0.0, %v6291
    %v6293 = vpop.f32.mrb[0].mxu0
    %v6294 = vadd.f32 0.0, %v6293
    %v6295 = vpop.f32.mrb[0].mxu0
    %v6296 = vadd.f32 0.0, %v6295
    %6297 = vmatprep.mubr.bf16.mxu0 %v1252
    %6298 = vmatmul.mubr.bf16.gmra.mrb[0].mxu0 %v1251
    %v6299 = vpop.f32.mrb[0].mxu0
    %v6300 = vadd.f32 0.0, %v6299
    %v6301 = vpop.f32.mrb[0].mxu0
    %v6302 = vadd.f32 0.0, %v6301
    %v6303 = vpop.f32.mrb[0].mxu0
    %v6304 = vadd.f32 0.0, %v6303
    %v6305 = vpop.f32.mrb[0].mxu0
    %v6306 = vadd.f32 0.0, %v6305
    %6307 = vmatprep.mubr.bf16.mxu0 %v1260
    %6308 = vmatmul.mubr.bf16.gmra.mrb[0].mxu0 %v1259
    %v6309 = vpop.f32.mrb[0].mxu0
    %v6310 = vadd.f32 0.0, %v6309
    %v6311 = vpop.f32.mrb[0].mxu0
    %v6312 = vadd.f32 0.0, %v6311
    %v6313 = vpop.f32.mrb[0].mxu0
    %v6314 = vadd.f32 0.0, %v6313
    %v6315 = vpop.f32.mrb[0].mxu0
    %v6316 = vadd.f32 0.0, %v6315
    %6317 = vmatprep.mubr.bf16.mxu0 %v1268
    %6318 = vmatmul.mubr.bf16.gmra.mrb[0].mxu0 %v1267
    %v6319 = vpop.f32.mrb[0].mxu0
    %v6320 = vadd.f32 0.0, %v6319
    %v6321 = vpop.f32.mrb[0].mxu0
    %v6322 = vadd.f32 0.0, %v6321
    %v6323 = vpop.f32.mrb[0].mxu0
    %v6324 = vadd.f32 0.0, %v6323
    %v6325 = vpop.f32.mrb[0].mxu0
    %v6326 = vadd.f32 0.0, %v6325
    %6327 = vmatprep.mubr.bf16.mxu0 %v1276
    %6328 = vmatmul.mubr.bf16.gmra.mrb[0].mxu0 %v1275
    %v6329 = vpop.f32.mrb[0].mxu0
    %v6330 = vadd.f32 0.0, %v6329
    %v6331 = vpop.f32.mrb[0].mxu0
    %v6332 = vadd.f32 0.0, %v6331
    %v6333 = vpop.f32.mrb[0].mxu0
    %v6334 = vadd.f32 0.0, %v6333
    %v6335 = vpop.f32.mrb[0].mxu0
    %v6336 = vadd.f32 0.0, %v6335
    %6337 = vmatprep.mubr.bf16.mxu0 %v1284
    %6338 = vmatmul.mubr.bf16.gmra.mrb[0].mxu0 %v1283
    %v6339 = vpop.f32.mrb[0].mxu0
    %v6340 = vadd.f32 0.0, %v6339
    %v6341 = vpop.f32.mrb[0].mxu0
    %v6342 = vadd.f32 0.0, %v6341
    %v6343 = vpop.f32.mrb[0].mxu0
    %v6344 = vadd.f32 0.0, %v6343
    %v6345 = vpop.f32.mrb[0].mxu0
    %v6346 = vadd.f32 0.0, %v6345
    %6347 = vmatprep.mubr.bf16.mxu0 %v1292
    %6348 = vmatmul.mubr.bf16.gmra.mrb[0].mxu0 %v1291
    %v6349 = vpop.f32.mrb[0].mxu0
    %v6350 = vadd.f32 0.0, %v6349
    %v6351 = vpop.f32.mrb[0].mxu0
    %v6352 = vadd.f32 0.0, %v6351
    %v6353 = vpop.f32.mrb[0].mxu0
    %v6354 = vadd.f32 0.0, %v6353
    %v6355 = vpop.f32.mrb[0].mxu0
    %v6356 = vadd.f32 0.0, %v6355
    %6357 = vmatprep.mubr.bf16.mxu0 %v1300
    %6358 = vmatmul.mubr.bf16.gmra.mrb[0].mxu0 %v1299
    %v6359 = vpop.f32.mrb[0].mxu0
    %v6360 = vadd.f32 0.0, %v6359
    %v6361 = vpop.f32.mrb[0].mxu0
    %v6362 = vadd.f32 0.0, %v6361
    %v6363 = vpop.f32.mrb[0].mxu0
    %v6364 = vadd.f32 0.0, %v6363
    %v6365 = vpop.f32.mrb[0].mxu0
    %v6366 = vadd.f32 0.0, %v6365
    %6367 = vmatprep.mubr.bf16.mxu0 %v1308
    %6368 = vmatmul.mubr.bf16.gmra.mrb[0].mxu0 %v1307
    %v6369 = vpop.f32.mrb[0].mxu0
    %v6370 = vadd.f32 0.0, %v6369
    %v6371 = vpop.f32.mrb[0].mxu0
    %v6372 = vadd.f32 0.0, %v6371
    %v6373 = vpop.f32.mrb[0].mxu0
    %v6374 = vadd.f32 0.0, %v6373
    %v6375 = vpop.f32.mrb[0].mxu0
    %v6376 = vadd.f32 0.0, %v6375
    %6377 = vmatprep.mubr.bf16.mxu0 %v1316
    %6378 = vmatmul.mubr.bf16.gmra.mrb[0].mxu0 %v1315
    %v6379 = vpop.f32.mrb[0].mxu0
    %v6380 = vadd.f32 0.0, %v6379
    %v6381 = vpop.f32.mrb[0].mxu0
    %v6382 = vadd.f32 0.0, %v6381
    %v6383 = vpop.f32.mrb[0].mxu0
    %v6384 = vadd.f32 0.0, %v6383
    %v6385 = vpop.f32.mrb[0].mxu0
    %v6386 = vadd.f32 0.0, %v6385
    %6387 = vdwg.mxu0
    %6388 = vmatprep.subr.bf16.mxu0 %v3536
    %6389 = vmatpush1.bf16.msra.mxu0 %v3535
    %6390 = vmatprep.subr.bf16.mxu0 %v3546
    %6391 = vmatpush1.bf16.msra.mxu0 %v3545
    %6392 = vmatprep.subr.bf16.mxu0 %v3556
    %6393 = vmatpush1.bf16.msra.mxu0 %v3555
    %6394 = vmatprep.subr.bf16.mxu0 %v3566
    %6395 = vmatpush1.bf16.msra.mxu0 %v3565
    %6396 = vmatprep.subr.bf16.mxu0 %v3576
    %6397 = vmatpush1.bf16.msra.mxu0 %v3575
    %6398 = vmatprep.subr.bf16.mxu0 %v3586
    %6399 = vmatpush1.bf16.msra.mxu0 %v3585
    %6400 = vmatprep.subr.bf16.mxu0 %v3596
    %6401 = vmatpush1.bf16.msra.mxu0 %v3595
    %6402 = vmatprep.subr.bf16.mxu0 %v3606
    %6403 = vmatpush1.bf16.msra.mxu0 %v3605
    %6404 = vmatprep.subr.bf16.mxu0 %v3616
    %6405 = vmatpush1.bf16.msra.mxu0 %v3615
    %6406 = vmatprep.subr.bf16.mxu0 %v3626
    %6407 = vmatpush1.bf16.msra.mxu0 %v3625
    %6408 = vmatprep.subr.bf16.mxu0 %v3636
    %6409 = vmatpush1.bf16.msra.mxu0 %v3635
    %6410 = vmatprep.subr.bf16.mxu0 %v3646
    %6411 = vmatpush1.bf16.msra.mxu0 %v3645
    %6412 = vmatprep.subr.bf16.mxu0 %v3656
    %6413 = vmatpush1.bf16.msra.mxu0 %v3655
    %6414 = vmatprep.subr.bf16.mxu0 %v3666
    %6415 = vmatpush1.bf16.msra.mxu0 %v3665
    %6416 = vmatprep.subr.bf16.mxu0 %v3676
    %6417 = vmatpush1.bf16.msra.mxu0 %v3675
    %6418 = vmatprep.subr.bf16.mxu0 %v3686
    %6419 = vmatpush1.bf16.msra.mxu0 %v3685
    %6420 = vmatprep.mubr.bf16.mxu0 %v1198
    %6421 = vmatmul.mubr.bf16.gmra.mrb[0].mxu0 %v1197
    %v6422 = vpop.f32.mrb[0].mxu0
    %v6423 = vadd.f32 %v6230, %v6422
    %v6424 = vpop.f32.mrb[0].mxu0
    %v6425 = vadd.f32 %v6232, %v6424
    %v6426 = vpop.f32.mrb[0].mxu0
    %v6427 = vadd.f32 %v6234, %v6426
    %v6428 = vpop.f32.mrb[0].mxu0
    %v6429 = vadd.f32 %v6236, %v6428
    %6430 = vmatprep.mubr.bf16.mxu0 %v1206
    %6431 = vmatmul.mubr.bf16.gmra.mrb[0].mxu0 %v1205
    %v6432 = vpop.f32.mrb[0].mxu0
    %v6433 = vadd.f32 %v6240, %v6432
    %v6434 = vpop.f32.mrb[0].mxu0
    %v6435 = vadd.f32 %v6242, %v6434
    %v6436 = vpop.f32.mrb[0].mxu0
    %v6437 = vadd.f32 %v6244, %v6436
    %v6438 = vpop.f32.mrb[0].mxu0
    %v6439 = vadd.f32 %v6246, %v6438
    %6440 = vmatprep.mubr.bf16.mxu0 %v1214
    %6441 = vmatmul.mubr.bf16.gmra.mrb[0].mxu0 %v1213
    %v6442 = vpop.f32.mrb[0].mxu0
    %v6443 = vadd.f32 %v6250, %v6442
    %v6444 = vpop.f32.mrb[0].mxu0
    %v6445 = vadd.f32 %v6252, %v6444
    %v6446 = vpop.f32.mrb[0].mxu0
    %v6447 = vadd.f32 %v6254, %v6446
    %v6448 = vpop.f32.mrb[0].mxu0
    %v6449 = vadd.f32 %v6256, %v6448
    %6450 = vmatprep.mubr.bf16.mxu0 %v1222
    %6451 = vmatmul.mubr.bf16.gmra.mrb[0].mxu0 %v1221
    %v6452 = vpop.f32.mrb[0].mxu0
    %v6453 = vadd.f32 %v6260, %v6452
    %v6454 = vpop.f32.mrb[0].mxu0
    %v6455 = vadd.f32 %v6262, %v6454
    %v6456 = vpop.f32.mrb[0].mxu0
    %v6457 = vadd.f32 %v6264, %v6456
    %v6458 = vpop.f32.mrb[0].mxu0
    %v6459 = vadd.f32 %v6266, %v6458
    %6460 = vmatprep.mubr.bf16.mxu0 %v1230
    %6461 = vmatmul.mubr.bf16.gmra.mrb[0].mxu0 %v1229
    %v6462 = vpop.f32.mrb[0].mxu0
    %v6463 = vadd.f32 %v6270, %v6462
    %v6464 = vpop.f32.mrb[0].mxu0
    %v6465 = vadd.f32 %v6272, %v6464
    %v6466 = vpop.f32.mrb[0].mxu0
    %v6467 = vadd.f32 %v6274, %v6466
    %v6468 = vpop.f32.mrb[0].mxu0
    %v6469 = vadd.f32 %v6276, %v6468
    %6470 = vmatprep.mubr.bf16.mxu0 %v1238
    %6471 = vmatmul.mubr.bf16.gmra.mrb[0].mxu0 %v1237
    %v6472 = vpop.f32.mrb[0].mxu0
    %v6473 = vadd.f32 %v6280, %v6472
    %v6474 = vpop.f32.mrb[0].mxu0
    %v6475 = vadd.f32 %v6282, %v6474
    %v6476 = vpop.f32.mrb[0].mxu0
    %v6477 = vadd.f32 %v6284, %v6476
    %v6478 = vpop.f32.mrb[0].mxu0
    %v6479 = vadd.f32 %v6286, %v6478
    %6480 = vmatprep.mubr.bf16.mxu0 %v1246
    %6481 = vmatmul.mubr.bf16.gmra.mrb[0].mxu0 %v1245
    %v6482 = vpop.f32.mrb[0].mxu0
    %v6483 = vadd.f32 %v6290, %v6482
    %v6484 = vpop.f32.mrb[0].mxu0
    %v6485 = vadd.f32 %v6292, %v6484
    %v6486 = vpop.f32.mrb[0].mxu0
    %v6487 = vadd.f32 %v6294, %v6486
    %v6488 = vpop.f32.mrb[0].mxu0
    %v6489 = vadd.f32 %v6296, %v6488
    %6490 = vmatprep.mubr.bf16.mxu0 %v1254
    %6491 = vmatmul.mubr.bf16.gmra.mrb[0].mxu0 %v1253
    %v6492 = vpop.f32.mrb[0].mxu0
    %v6493 = vadd.f32 %v6300, %v6492
    %v6494 = vpop.f32.mrb[0].mxu0
    %v6495 = vadd.f32 %v6302, %v6494
    %v6496 = vpop.f32.mrb[0].mxu0
    %v6497 = vadd.f32 %v6304, %v6496
    %v6498 = vpop.f32.mrb[0].mxu0
    %v6499 = vadd.f32 %v6306, %v6498
    %6500 = vmatprep.mubr.bf16.mxu0 %v1262
    %6501 = vmatmul.mubr.bf16.gmra.mrb[0].mxu0 %v1261
    %v6502 = vpop.f32.mrb[0].mxu0
    %v6503 = vadd.f32 %v6310, %v6502
    %v6504 = vpop.f32.mrb[0].mxu0
    %v6505 = vadd.f32 %v6312, %v6504
    %v6506 = vpop.f32.mrb[0].mxu0
    %v6507 = vadd.f32 %v6314, %v6506
    %v6508 = vpop.f32.mrb[0].mxu0
    %v6509 = vadd.f32 %v6316, %v6508
    %6510 = vmatprep.mubr.bf16.mxu0 %v1270
    %6511 = vmatmul.mubr.bf16.gmra.mrb[0].mxu0 %v1269
    %v6512 = vpop.f32.mrb[0].mxu0
    %v6513 = vadd.f32 %v6320, %v6512
    %v6514 = vpop.f32.mrb[0].mxu0
    %v6515 = vadd.f32 %v6322, %v6514
    %v6516 = vpop.f32.mrb[0].mxu0
    %v6517 = vadd.f32 %v6324, %v6516
    %v6518 = vpop.f32.mrb[0].mxu0
    %v6519 = vadd.f32 %v6326, %v6518
    %6520 = vmatprep.mubr.bf16.mxu0 %v1278
    %6521 = vmatmul.mubr.bf16.gmra.mrb[0].mxu0 %v1277
    %v6522 = vpop.f32.mrb[0].mxu0
    %v6523 = vadd.f32 %v6330, %v6522
    %v6524 = vpop.f32.mrb[0].mxu0
    %v6525 = vadd.f32 %v6332, %v6524
    %v6526 = vpop.f32.mrb[0].mxu0
    %v6527 = vadd.f32 %v6334, %v6526
    %v6528 = vpop.f32.mrb[0].mxu0
    %v6529 = vadd.f32 %v6336, %v6528
    %6530 = vmatprep.mubr.bf16.mxu0 %v1286
    %6531 = vmatmul.mubr.bf16.gmra.mrb[0].mxu0 %v1285
    %v6532 = vpop.f32.mrb[0].mxu0
    %v6533 = vadd.f32 %v6340, %v6532
    %v6534 = vpop.f32.mrb[0].mxu0
    %v6535 = vadd.f32 %v6342, %v6534
    %v6536 = vpop.f32.mrb[0].mxu0
    %v6537 = vadd.f32 %v6344, %v6536
    %v6538 = vpop.f32.mrb[0].mxu0
    %v6539 = vadd.f32 %v6346, %v6538
    %6540 = vmatprep.mubr.bf16.mxu0 %v1294
    %6541 = vmatmul.mubr.bf16.gmra.mrb[0].mxu0 %v1293
    %v6542 = vpop.f32.mrb[0].mxu0
    %v6543 = vadd.f32 %v6350, %v6542
    %v6544 = vpop.f32.mrb[0].mxu0
    %v6545 = vadd.f32 %v6352, %v6544
    %v6546 = vpop.f32.mrb[0].mxu0
    %v6547 = vadd.f32 %v6354, %v6546
    %v6548 = vpop.f32.mrb[0].mxu0
    %v6549 = vadd.f32 %v6356, %v6548
    %6550 = vmatprep.mubr.bf16.mxu0 %v1302
    %6551 = vmatmul.mubr.bf16.gmra.mrb[0].mxu0 %v1301
    %v6552 = vpop.f32.mrb[0].mxu0
    %v6553 = vadd.f32 %v6360, %v6552
    %v6554 = vpop.f32.mrb[0].mxu0
    %v6555 = vadd.f32 %v6362, %v6554
    %v6556 = vpop.f32.mrb[0].mxu0
    %v6557 = vadd.f32 %v6364, %v6556
    %v6558 = vpop.f32.mrb[0].mxu0
    %v6559 = vadd.f32 %v6366, %v6558
    %6560 = vmatprep.mubr.bf16.mxu0 %v1310
    %6561 = vmatmul.mubr.bf16.gmra.mrb[0].mxu0 %v1309
    %v6562 = vpop.f32.mrb[0].mxu0
    %v6563 = vadd.f32 %v6370, %v6562
    %v6564 = vpop.f32.mrb[0].mxu0
    %v6565 = vadd.f32 %v6372, %v6564
    %v6566 = vpop.f32.mrb[0].mxu0
    %v6567 = vadd.f32 %v6374, %v6566
    %v6568 = vpop.f32.mrb[0].mxu0
    %v6569 = vadd.f32 %v6376, %v6568
    %6570 = vmatprep.mubr.bf16.mxu0 %v1318
    %6571 = vmatmul.mubr.bf16.gmra.mrb[0].mxu0 %v1317
    %v6572 = vpop.f32.mrb[0].mxu0
    %v6573 = vadd.f32 %v6380, %v6572
    %v6574 = vpop.f32.mrb[0].mxu0
    %v6575 = vadd.f32 %v6382, %v6574
    %v6576 = vpop.f32.mrb[0].mxu0
    %v6577 = vadd.f32 %v6384, %v6576
    %v6578 = vpop.f32.mrb[0].mxu0
    %v6579 = vadd.f32 %v6386, %v6578
    %6580 = vdwg.mxu0
    %6581 = vmatprep.subr.bf16.mxu0 %v3696
    %6582 = vmatpush1.bf16.msra.mxu0 %v3695
    %6583 = vmatprep.subr.bf16.mxu0 %v3706
    %6584 = vmatpush1.bf16.msra.mxu0 %v3705
    %6585 = vmatprep.subr.bf16.mxu0 %v3716
    %6586 = vmatpush1.bf16.msra.mxu0 %v3715
    %6587 = vmatprep.subr.bf16.mxu0 %v3726
    %6588 = vmatpush1.bf16.msra.mxu0 %v3725
    %6589 = vmatprep.subr.bf16.mxu0 %v3736
    %6590 = vmatpush1.bf16.msra.mxu0 %v3735
    %6591 = vmatprep.subr.bf16.mxu0 %v3746
    %6592 = vmatpush1.bf16.msra.mxu0 %v3745
    %6593 = vmatprep.subr.bf16.mxu0 %v3756
    %6594 = vmatpush1.bf16.msra.mxu0 %v3755
    %6595 = vmatprep.subr.bf16.mxu0 %v3766
    %6596 = vmatpush1.bf16.msra.mxu0 %v3765
    %6597 = vmatprep.subr.bf16.mxu0 %v3776
    %6598 = vmatpush1.bf16.msra.mxu0 %v3775
    %6599 = vmatprep.subr.bf16.mxu0 %v3786
    %6600 = vmatpush1.bf16.msra.mxu0 %v3785
    %6601 = vmatprep.subr.bf16.mxu0 %v3796
    %6602 = vmatpush1.bf16.msra.mxu0 %v3795
    %6603 = vmatprep.subr.bf16.mxu0 %v3806
    %6604 = vmatpush1.bf16.msra.mxu0 %v3805
    %6605 = vmatprep.subr.bf16.mxu0 %v3816
    %6606 = vmatpush1.bf16.msra.mxu0 %v3815
    %6607 = vmatprep.subr.bf16.mxu0 %v3826
    %6608 = vmatpush1.bf16.msra.mxu0 %v3825
    %6609 = vmatprep.subr.bf16.mxu0 %v3836
    %6610 = vmatpush1.bf16.msra.mxu0 %v3835
    %6611 = vmatprep.subr.bf16.mxu0 %v3846
    %6612 = vmatpush1.bf16.msra.mxu0 %v3845
    %6613 = vmatprep.mubr.bf16.mxu0 %v1200
    %6614 = vmatmul.mubr.bf16.gmra.mrb[0].mxu0 %v1199
    %v6615 = vpop.f32.mrb[0].mxu0
    %v6616 = vadd.f32 %v6423, %v6615
    %v6617 = vpop.f32.mrb[0].mxu0
    %v6618 = vadd.f32 %v6425, %v6617
    %v6619 = vpop.f32.mrb[0].mxu0
    %v6620 = vadd.f32 %v6427, %v6619
    %v6621 = vpop.f32.mrb[0].mxu0
    %v6622 = vadd.f32 %v6429, %v6621
    %6623 = vmatprep.mubr.bf16.mxu0 %v1208
    %6624 = vmatmul.mubr.bf16.gmra.mrb[0].mxu0 %v1207
    %v6625 = vpop.f32.mrb[0].mxu0
    %v6626 = vadd.f32 %v6433, %v6625
    %v6627 = vpop.f32.mrb[0].mxu0
    %v6628 = vadd.f32 %v6435, %v6627
    %v6629 = vpop.f32.mrb[0].mxu0
    %v6630 = vadd.f32 %v6437, %v6629
    %v6631 = vpop.f32.mrb[0].mxu0
    %v6632 = vadd.f32 %v6439, %v6631
    %6633 = vmatprep.mubr.bf16.mxu0 %v1216
    %6634 = vmatmul.mubr.bf16.gmra.mrb[0].mxu0 %v1215
    %v6635 = vpop.f32.mrb[0].mxu0
    %v6636 = vadd.f32 %v6443, %v6635
    %v6637 = vpop.f32.mrb[0].mxu0
    %v6638 = vadd.f32 %v6445, %v6637
    %v6639 = vpop.f32.mrb[0].mxu0
    %v6640 = vadd.f32 %v6447, %v6639
    %v6641 = vpop.f32.mrb[0].mxu0
    %v6642 = vadd.f32 %v6449, %v6641
    %6643 = vmatprep.mubr.bf16.mxu0 %v1224
    %6644 = vmatmul.mubr.bf16.gmra.mrb[0].mxu0 %v1223
    %v6645 = vpop.f32.mrb[0].mxu0
    %v6646 = vadd.f32 %v6453, %v6645
    %v6647 = vpop.f32.mrb[0].mxu0
    %v6648 = vadd.f32 %v6455, %v6647
    %v6649 = vpop.f32.mrb[0].mxu0
    %v6650 = vadd.f32 %v6457, %v6649
    %v6651 = vpop.f32.mrb[0].mxu0
    %v6652 = vadd.f32 %v6459, %v6651
    %6653 = vmatprep.mubr.bf16.mxu0 %v1232
    %6654 = vmatmul.mubr.bf16.gmra.mrb[0].mxu0 %v1231
    %v6655 = vpop.f32.mrb[0].mxu0
    %v6656 = vadd.f32 %v6463, %v6655
    %v6657 = vpop.f32.mrb[0].mxu0
    %v6658 = vadd.f32 %v6465, %v6657
    %v6659 = vpop.f32.mrb[0].mxu0
    %v6660 = vadd.f32 %v6467, %v6659
    %v6661 = vpop.f32.mrb[0].mxu0
    %v6662 = vadd.f32 %v6469, %v6661
    %6663 = vmatprep.mubr.bf16.mxu0 %v1240
    %6664 = vmatmul.mubr.bf16.gmra.mrb[0].mxu0 %v1239
    %v6665 = vpop.f32.mrb[0].mxu0
    %v6666 = vadd.f32 %v6473, %v6665
    %v6667 = vpop.f32.mrb[0].mxu0
    %v6668 = vadd.f32 %v6475, %v6667
    %v6669 = vpop.f32.mrb[0].mxu0
    %v6670 = vadd.f32 %v6477, %v6669
    %v6671 = vpop.f32.mrb[0].mxu0
    %v6672 = vadd.f32 %v6479, %v6671
    %6673 = vmatprep.mubr.bf16.mxu0 %v1248
    %6674 = vmatmul.mubr.bf16.gmra.mrb[0].mxu0 %v1247
    %v6675 = vpop.f32.mrb[0].mxu0
    %v6676 = vadd.f32 %v6483, %v6675
    %v6677 = vpop.f32.mrb[0].mxu0
    %v6678 = vadd.f32 %v6485, %v6677
    %v6679 = vpop.f32.mrb[0].mxu0
    %v6680 = vadd.f32 %v6487, %v6679
    %v6681 = vpop.f32.mrb[0].mxu0
    %v6682 = vadd.f32 %v6489, %v6681
    %6683 = vmatprep.mubr.bf16.mxu0 %v1256
    %6684 = vmatmul.mubr.bf16.gmra.mrb[0].mxu0 %v1255
    %v6685 = vpop.f32.mrb[0].mxu0
    %v6686 = vadd.f32 %v6493, %v6685
    %v6687 = vpop.f32.mrb[0].mxu0
    %v6688 = vadd.f32 %v6495, %v6687
    %v6689 = vpop.f32.mrb[0].mxu0
    %v6690 = vadd.f32 %v6497, %v6689
    %v6691 = vpop.f32.mrb[0].mxu0
    %v6692 = vadd.f32 %v6499, %v6691
    %6693 = vmatprep.mubr.bf16.mxu0 %v1264
    %6694 = vmatmul.mubr.bf16.gmra.mrb[0].mxu0 %v1263
    %v6695 = vpop.f32.mrb[0].mxu0
    %v6696 = vadd.f32 %v6503, %v6695
    %v6697 = vpop.f32.mrb[0].mxu0
    %v6698 = vadd.f32 %v6505, %v6697
    %v6699 = vpop.f32.mrb[0].mxu0
    %v6700 = vadd.f32 %v6507, %v6699
    %v6701 = vpop.f32.mrb[0].mxu0
    %v6702 = vadd.f32 %v6509, %v6701
    %6703 = vmatprep.mubr.bf16.mxu0 %v1272
    %6704 = vmatmul.mubr.bf16.gmra.mrb[0].mxu0 %v1271
    %v6705 = vpop.f32.mrb[0].mxu0
    %v6706 = vadd.f32 %v6513, %v6705
    %v6707 = vpop.f32.mrb[0].mxu0
    %v6708 = vadd.f32 %v6515, %v6707
    %v6709 = vpop.f32.mrb[0].mxu0
    %v6710 = vadd.f32 %v6517, %v6709
    %v6711 = vpop.f32.mrb[0].mxu0
    %v6712 = vadd.f32 %v6519, %v6711
    %6713 = vmatprep.mubr.bf16.mxu0 %v1280
    %6714 = vmatmul.mubr.bf16.gmra.mrb[0].mxu0 %v1279
    %v6715 = vpop.f32.mrb[0].mxu0
    %v6716 = vadd.f32 %v6523, %v6715
    %v6717 = vpop.f32.mrb[0].mxu0
    %v6718 = vadd.f32 %v6525, %v6717
    %v6719 = vpop.f32.mrb[0].mxu0
    %v6720 = vadd.f32 %v6527, %v6719
    %v6721 = vpop.f32.mrb[0].mxu0
    %v6722 = vadd.f32 %v6529, %v6721
    %6723 = vmatprep.mubr.bf16.mxu0 %v1288
    %6724 = vmatmul.mubr.bf16.gmra.mrb[0].mxu0 %v1287
    %v6725 = vpop.f32.mrb[0].mxu0
    %v6726 = vadd.f32 %v6533, %v6725
    %v6727 = vpop.f32.mrb[0].mxu0
    %v6728 = vadd.f32 %v6535, %v6727
    %v6729 = vpop.f32.mrb[0].mxu0
    %v6730 = vadd.f32 %v6537, %v6729
    %v6731 = vpop.f32.mrb[0].mxu0
    %v6732 = vadd.f32 %v6539, %v6731
    %6733 = vmatprep.mubr.bf16.mxu0 %v1296
    %6734 = vmatmul.mubr.bf16.gmra.mrb[0].mxu0 %v1295
    %v6735 = vpop.f32.mrb[0].mxu0
    %v6736 = vadd.f32 %v6543, %v6735
    %v6737 = vpop.f32.mrb[0].mxu0
    %v6738 = vadd.f32 %v6545, %v6737
    %v6739 = vpop.f32.mrb[0].mxu0
    %v6740 = vadd.f32 %v6547, %v6739
    %v6741 = vpop.f32.mrb[0].mxu0
    %v6742 = vadd.f32 %v6549, %v6741
    %6743 = vmatprep.mubr.bf16.mxu0 %v1304
    %6744 = vmatmul.mubr.bf16.gmra.mrb[0].mxu0 %v1303
    %v6745 = vpop.f32.mrb[0].mxu0
    %v6746 = vadd.f32 %v6553, %v6745
    %v6747 = vpop.f32.mrb[0].mxu0
    %v6748 = vadd.f32 %v6555, %v6747
    %v6749 = vpop.f32.mrb[0].mxu0
    %v6750 = vadd.f32 %v6557, %v6749
    %v6751 = vpop.f32.mrb[0].mxu0
    %v6752 = vadd.f32 %v6559, %v6751
    %6753 = vmatprep.mubr.bf16.mxu0 %v1312
    %6754 = vmatmul.mubr.bf16.gmra.mrb[0].mxu0 %v1311
    %v6755 = vpop.f32.mrb[0].mxu0
    %v6756 = vadd.f32 %v6563, %v6755
    %v6757 = vpop.f32.mrb[0].mxu0
    %v6758 = vadd.f32 %v6565, %v6757
    %v6759 = vpop.f32.mrb[0].mxu0
    %v6760 = vadd.f32 %v6567, %v6759
    %v6761 = vpop.f32.mrb[0].mxu0
    %v6762 = vadd.f32 %v6569, %v6761
    %6763 = vmatprep.mubr.bf16.mxu0 %v1320
    %6764 = vmatmul.mubr.bf16.gmra.mrb[0].mxu0 %v1319
    %v6765 = vpop.f32.mrb[0].mxu0
    %v6766 = vadd.f32 %v6573, %v6765
    %v6767 = vpop.f32.mrb[0].mxu0
    %v6768 = vadd.f32 %v6575, %v6767
    %v6769 = vpop.f32.mrb[0].mxu0
    %v6770 = vadd.f32 %v6577, %v6769
    %v6771 = vpop.f32.mrb[0].mxu0
    %v6772 = vadd.f32 %v6579, %v6771
    %6773 = vdwg.mxu0
    %6774 = vmatprep.subr.bf16.mxu0 %v3856
    %6775 = vmatpush1.bf16.msra.mxu0 %v3855
    %6776 = vmatprep.subr.bf16.mxu0 %v3866
    %6777 = vmatpush1.bf16.msra.mxu0 %v3865
    %6778 = vmatprep.subr.bf16.mxu0 %v3876
    %6779 = vmatpush1.bf16.msra.mxu0 %v3875
    %6780 = vmatprep.subr.bf16.mxu0 %v3886
    %6781 = vmatpush1.bf16.msra.mxu0 %v3885
    %6782 = vmatprep.subr.bf16.mxu0 %v3896
    %6783 = vmatpush1.bf16.msra.mxu0 %v3895
    %6784 = vmatprep.subr.bf16.mxu0 %v3906
    %6785 = vmatpush1.bf16.msra.mxu0 %v3905
    %6786 = vmatprep.subr.bf16.mxu0 %v3916
    %6787 = vmatpush1.bf16.msra.mxu0 %v3915
    %6788 = vmatprep.subr.bf16.mxu0 %v3926
    %6789 = vmatpush1.bf16.msra.mxu0 %v3925
    %6790 = vmatprep.subr.bf16.mxu0 %v3936
    %6791 = vmatpush1.bf16.msra.mxu0 %v3935
    %6792 = vmatprep.subr.bf16.mxu0 %v3946
    %6793 = vmatpush1.bf16.msra.mxu0 %v3945
    %6794 = vmatprep.subr.bf16.mxu0 %v3956
    %6795 = vmatpush1.bf16.msra.mxu0 %v3955
    %6796 = vmatprep.subr.bf16.mxu0 %v3966
    %6797 = vmatpush1.bf16.msra.mxu0 %v3965
    %6798 = vmatprep.subr.bf16.mxu0 %v3976
    %6799 = vmatpush1.bf16.msra.mxu0 %v3975
    %6800 = vmatprep.subr.bf16.mxu0 %v3986
    %6801 = vmatpush1.bf16.msra.mxu0 %v3985
    %6802 = vmatprep.subr.bf16.mxu0 %v3996
    %6803 = vmatpush1.bf16.msra.mxu0 %v3995
    %6804 = vmatprep.subr.bf16.mxu0 %v4006
    %6805 = vmatpush1.bf16.msra.mxu0 %v4005
    %6806 = vmatprep.mubr.bf16.mxu0 %v1202
    %6807 = vmatmul.mubr.bf16.gmra.mrb[0].mxu0 %v1201
    %v6808 = vpop.f32.mrb[0].mxu0
    %v6809 = vadd.f32 %v6616, %v6808
    %v6810 = vpop.f32.mrb[0].mxu0
    %v6811 = vadd.f32 %v6618, %v6810
    %v6812 = vpop.f32.mrb[0].mxu0
    %v6813 = vadd.f32 %v6620, %v6812
    %v6814 = vpop.f32.mrb[0].mxu0
    %v6815 = vadd.f32 %v6622, %v6814
    %6816 = vmatprep.mubr.bf16.mxu0 %v1210
    %6817 = vmatmul.mubr.bf16.gmra.mrb[0].mxu0 %v1209
    %v6818 = vpop.f32.mrb[0].mxu0
    %v6819 = vadd.f32 %v6626, %v6818
    %v6820 = vpop.f32.mrb[0].mxu0
    %v6821 = vadd.f32 %v6628, %v6820
    %v6822 = vpop.f32.mrb[0].mxu0
    %v6823 = vadd.f32 %v6630, %v6822
    %v6824 = vpop.f32.mrb[0].mxu0
    %v6825 = vadd.f32 %v6632, %v6824
    %6826 = vmatprep.mubr.bf16.mxu0 %v1218
    %6827 = vmatmul.mubr.bf16.gmra.mrb[0].mxu0 %v1217
    %v6828 = vpop.f32.mrb[0].mxu0
    %v6829 = vadd.f32 %v6636, %v6828
    %v6830 = vpop.f32.mrb[0].mxu0
    %v6831 = vadd.f32 %v6638, %v6830
    %v6832 = vpop.f32.mrb[0].mxu0
    %v6833 = vadd.f32 %v6640, %v6832
    %v6834 = vpop.f32.mrb[0].mxu0
    %v6835 = vadd.f32 %v6642, %v6834
    %6836 = vmatprep.mubr.bf16.mxu0 %v1226
    %6837 = vmatmul.mubr.bf16.gmra.mrb[0].mxu0 %v1225
    %v6838 = vpop.f32.mrb[0].mxu0
    %v6839 = vadd.f32 %v6646, %v6838
    %v6840 = vpop.f32.mrb[0].mxu0
    %v6841 = vadd.f32 %v6648, %v6840
    %v6842 = vpop.f32.mrb[0].mxu0
    %v6843 = vadd.f32 %v6650, %v6842
    %v6844 = vpop.f32.mrb[0].mxu0
    %v6845 = vadd.f32 %v6652, %v6844
    %6846 = vmatprep.mubr.bf16.mxu0 %v1234
    %6847 = vmatmul.mubr.bf16.gmra.mrb[0].mxu0 %v1233
    %v6848 = vpop.f32.mrb[0].mxu0
    %v6849 = vadd.f32 %v6656, %v6848
    %v6850 = vpop.f32.mrb[0].mxu0
    %v6851 = vadd.f32 %v6658, %v6850
    %v6852 = vpop.f32.mrb[0].mxu0
    %v6853 = vadd.f32 %v6660, %v6852
    %v6854 = vpop.f32.mrb[0].mxu0
    %v6855 = vadd.f32 %v6662, %v6854
    %6856 = vmatprep.mubr.bf16.mxu0 %v1242
    %6857 = vmatmul.mubr.bf16.gmra.mrb[0].mxu0 %v1241
    %v6858 = vpop.f32.mrb[0].mxu0
    %v6859 = vadd.f32 %v6666, %v6858
    %v6860 = vpop.f32.mrb[0].mxu0
    %v6861 = vadd.f32 %v6668, %v6860
    %v6862 = vpop.f32.mrb[0].mxu0
    %v6863 = vadd.f32 %v6670, %v6862
    %v6864 = vpop.f32.mrb[0].mxu0
    %v6865 = vadd.f32 %v6672, %v6864
    %6866 = vmatprep.mubr.bf16.mxu0 %v1250
    %6867 = vmatmul.mubr.bf16.gmra.mrb[0].mxu0 %v1249
    %v6868 = vpop.f32.mrb[0].mxu0
    %v6869 = vadd.f32 %v6676, %v6868
    %v6870 = vpop.f32.mrb[0].mxu0
    %v6871 = vadd.f32 %v6678, %v6870
    %v6872 = vpop.f32.mrb[0].mxu0
    %v6873 = vadd.f32 %v6680, %v6872
    %v6874 = vpop.f32.mrb[0].mxu0
    %v6875 = vadd.f32 %v6682, %v6874
    %6876 = vmatprep.mubr.bf16.mxu0 %v1258
    %6877 = vmatmul.mubr.bf16.gmra.mrb[0].mxu0 %v1257
    %v6878 = vpop.f32.mrb[0].mxu0
    %v6879 = vadd.f32 %v6686, %v6878
    %v6880 = vpop.f32.mrb[0].mxu0
    %v6881 = vadd.f32 %v6688, %v6880
    %v6882 = vpop.f32.mrb[0].mxu0
    %v6883 = vadd.f32 %v6690, %v6882
    %v6884 = vpop.f32.mrb[0].mxu0
    %v6885 = vadd.f32 %v6692, %v6884
    %6886 = vmatprep.mubr.bf16.mxu0 %v1266
    %6887 = vmatmul.mubr.bf16.gmra.mrb[0].mxu0 %v1265
    %v6888 = vpop.f32.mrb[0].mxu0
    %v6889 = vadd.f32 %v6696, %v6888
    %v6890 = vpop.f32.mrb[0].mxu0
    %v6891 = vadd.f32 %v6698, %v6890
    %v6892 = vpop.f32.mrb[0].mxu0
    %v6893 = vadd.f32 %v6700, %v6892
    %v6894 = vpop.f32.mrb[0].mxu0
    %v6895 = vadd.f32 %v6702, %v6894
    %6896 = vmatprep.mubr.bf16.mxu0 %v1274
    %6897 = vmatmul.mubr.bf16.gmra.mrb[0].mxu0 %v1273
    %v6898 = vpop.f32.mrb[0].mxu0
    %v6899 = vadd.f32 %v6706, %v6898
    %v6900 = vpop.f32.mrb[0].mxu0
    %v6901 = vadd.f32 %v6708, %v6900
    %v6902 = vpop.f32.mrb[0].mxu0
    %v6903 = vadd.f32 %v6710, %v6902
    %v6904 = vpop.f32.mrb[0].mxu0
    %v6905 = vadd.f32 %v6712, %v6904
    %6906 = vmatprep.mubr.bf16.mxu0 %v1282
    %6907 = vmatmul.mubr.bf16.gmra.mrb[0].mxu0 %v1281
    %v6908 = vpop.f32.mrb[0].mxu0
    %v6909 = vadd.f32 %v6716, %v6908
    %v6910 = vpop.f32.mrb[0].mxu0
    %v6911 = vadd.f32 %v6718, %v6910
    %v6912 = vpop.f32.mrb[0].mxu0
    %v6913 = vadd.f32 %v6720, %v6912
    %v6914 = vpop.f32.mrb[0].mxu0
    %v6915 = vadd.f32 %v6722, %v6914
    %6916 = vmatprep.mubr.bf16.mxu0 %v1290
    %6917 = vmatmul.mubr.bf16.gmra.mrb[0].mxu0 %v1289
    %v6918 = vpop.f32.mrb[0].mxu0
    %v6919 = vadd.f32 %v6726, %v6918
    %v6920 = vpop.f32.mrb[0].mxu0
    %v6921 = vadd.f32 %v6728, %v6920
    %v6922 = vpop.f32.mrb[0].mxu0
    %v6923 = vadd.f32 %v6730, %v6922
    %v6924 = vpop.f32.mrb[0].mxu0
    %v6925 = vadd.f32 %v6732, %v6924
    %6926 = vmatprep.mubr.bf16.mxu0 %v1298
    %6927 = vmatmul.mubr.bf16.gmra.mrb[0].mxu0 %v1297
    %v6928 = vpop.f32.mrb[0].mxu0
    %v6929 = vadd.f32 %v6736, %v6928
    %v6930 = vpop.f32.mrb[0].mxu0
    %v6931 = vadd.f32 %v6738, %v6930
    %v6932 = vpop.f32.mrb[0].mxu0
    %v6933 = vadd.f32 %v6740, %v6932
    %v6934 = vpop.f32.mrb[0].mxu0
    %v6935 = vadd.f32 %v6742, %v6934
    %6936 = vmatprep.mubr.bf16.mxu0 %v1306
    %6937 = vmatmul.mubr.bf16.gmra.mrb[0].mxu0 %v1305
    %v6938 = vpop.f32.mrb[0].mxu0
    %v6939 = vadd.f32 %v6746, %v6938
    %v6940 = vpop.f32.mrb[0].mxu0
    %v6941 = vadd.f32 %v6748, %v6940
    %v6942 = vpop.f32.mrb[0].mxu0
    %v6943 = vadd.f32 %v6750, %v6942
    %v6944 = vpop.f32.mrb[0].mxu0
    %v6945 = vadd.f32 %v6752, %v6944
    %6946 = vmatprep.mubr.bf16.mxu0 %v1314
    %6947 = vmatmul.mubr.bf16.gmra.mrb[0].mxu0 %v1313
    %v6948 = vpop.f32.mrb[0].mxu0
    %v6949 = vadd.f32 %v6756, %v6948
    %v6950 = vpop.f32.mrb[0].mxu0
    %v6951 = vadd.f32 %v6758, %v6950
    %v6952 = vpop.f32.mrb[0].mxu0
    %v6953 = vadd.f32 %v6760, %v6952
    %v6954 = vpop.f32.mrb[0].mxu0
    %v6955 = vadd.f32 %v6762, %v6954
    %6956 = vmatprep.mubr.bf16.mxu0 %v1322
    %6957 = vmatmul.mubr.bf16.gmra.mrb[0].mxu0 %v1321
    %v6958 = vpop.f32.mrb[0].mxu0
    %v6959 = vadd.f32 %v6766, %v6958
    %v6960 = vpop.f32.mrb[0].mxu0
    %v6961 = vadd.f32 %v6768, %v6960
    %v6962 = vpop.f32.mrb[0].mxu0
    %v6963 = vadd.f32 %v6770, %v6962
    %v6964 = vpop.f32.mrb[0].mxu0
    %v6965 = vadd.f32 %v6772, %v6964
    %6966 = vdwg.mxu0
    %6967 = vmatprep.subr.bf16.mxu0 %v3378
    %6968 = vmatpush1.bf16.msra.mxu0 %v3377
    %6969 = vmatprep.subr.bf16.mxu0 %v3388
    %6970 = vmatpush1.bf16.msra.mxu0 %v3387
    %6971 = vmatprep.subr.bf16.mxu0 %v3398
    %6972 = vmatpush1.bf16.msra.mxu0 %v3397
    %6973 = vmatprep.subr.bf16.mxu0 %v3408
    %6974 = vmatpush1.bf16.msra.mxu0 %v3407
    %6975 = vmatprep.subr.bf16.mxu0 %v3418
    %6976 = vmatpush1.bf16.msra.mxu0 %v3417
    %6977 = vmatprep.subr.bf16.mxu0 %v3428
    %6978 = vmatpush1.bf16.msra.mxu0 %v3427
    %6979 = vmatprep.subr.bf16.mxu0 %v3438
    %6980 = vmatpush1.bf16.msra.mxu0 %v3437
    %6981 = vmatprep.subr.bf16.mxu0 %v3448
    %6982 = vmatpush1.bf16.msra.mxu0 %v3447
    %6983 = vmatprep.subr.bf16.mxu0 %v3458
    %6984 = vmatpush1.bf16.msra.mxu0 %v3457
    %6985 = vmatprep.subr.bf16.mxu0 %v3468
    %6986 = vmatpush1.bf16.msra.mxu0 %v3467
    %6987 = vmatprep.subr.bf16.mxu0 %v3478
    %6988 = vmatpush1.bf16.msra.mxu0 %v3477
    %6989 = vmatprep.subr.bf16.mxu0 %v3488
    %6990 = vmatpush1.bf16.msra.mxu0 %v3487
    %6991 = vmatprep.subr.bf16.mxu0 %v3498
    %6992 = vmatpush1.bf16.msra.mxu0 %v3497
    %6993 = vmatprep.subr.bf16.mxu0 %v3508
    %6994 = vmatpush1.bf16.msra.mxu0 %v3507
    %6995 = vmatprep.subr.bf16.mxu0 %v3518
    %6996 = vmatpush1.bf16.msra.mxu0 %v3517
    %6997 = vmatprep.subr.bf16.mxu0 %v3528
    %6998 = vmatpush1.bf16.msra.mxu0 %v3527
    %6999 = vmatprep.mubr.bf16.mxu0 %v1196
    %7000 = vmatmul.mubr.bf16.gmra.mrb[0].mxu0 %v1195
    %v7001 = vpop.f32.mrb[0].mxu0
    %v7002 = vadd.f32 0.0, %v7001
    %v7003 = vpop.f32.mrb[0].mxu0
    %v7004 = vadd.f32 0.0, %v7003
    %v7005 = vpop.f32.mrb[0].mxu0
    %v7006 = vadd.f32 0.0, %v7005
    %v7007 = vpop.f32.mrb[0].mxu0
    %v7008 = vadd.f32 0.0, %v7007
    %7009 = vmatprep.mubr.bf16.mxu0 %v1204
    %7010 = vmatmul.mubr.bf16.gmra.mrb[0].mxu0 %v1203
    %v7011 = vpop.f32.mrb[0].mxu0
    %v7012 = vadd.f32 0.0, %v7011
    %v7013 = vpop.f32.mrb[0].mxu0
    %v7014 = vadd.f32 0.0, %v7013
    %v7015 = vpop.f32.mrb[0].mxu0
    %v7016 = vadd.f32 0.0, %v7015
    %v7017 = vpop.f32.mrb[0].mxu0
    %v7018 = vadd.f32 0.0, %v7017
    %7019 = vmatprep.mubr.bf16.mxu0 %v1212
    %7020 = vmatmul.mubr.bf16.gmra.mrb[0].mxu0 %v1211
    %v7021 = vpop.f32.mrb[0].mxu0
    %v7022 = vadd.f32 0.0, %v7021
    %v7023 = vpop.f32.mrb[0].mxu0
    %v7024 = vadd.f32 0.0, %v7023
    %v7025 = vpop.f32.mrb[0].mxu0
    %v7026 = vadd.f32 0.0, %v7025
    %v7027 = vpop.f32.mrb[0].mxu0
    %v7028 = vadd.f32 0.0, %v7027
    %7029 = vmatprep.mubr.bf16.mxu0 %v1220
    %7030 = vmatmul.mubr.bf16.gmra.mrb[0].mxu0 %v1219
    %v7031 = vpop.f32.mrb[0].mxu0
    %v7032 = vadd.f32 0.0, %v7031
    %v7033 = vpop.f32.mrb[0].mxu0
    %v7034 = vadd.f32 0.0, %v7033
    %v7035 = vpop.f32.mrb[0].mxu0
    %v7036 = vadd.f32 0.0, %v7035
    %v7037 = vpop.f32.mrb[0].mxu0
    %v7038 = vadd.f32 0.0, %v7037
    %7039 = vmatprep.mubr.bf16.mxu0 %v1228
    %7040 = vmatmul.mubr.bf16.gmra.mrb[0].mxu0 %v1227
    %v7041 = vpop.f32.mrb[0].mxu0
    %v7042 = vadd.f32 0.0, %v7041
    %v7043 = vpop.f32.mrb[0].mxu0
    %v7044 = vadd.f32 0.0, %v7043
    %v7045 = vpop.f32.mrb[0].mxu0
    %v7046 = vadd.f32 0.0, %v7045
    %v7047 = vpop.f32.mrb[0].mxu0
    %v7048 = vadd.f32 0.0, %v7047
    %7049 = vmatprep.mubr.bf16.mxu0 %v1236
    %7050 = vmatmul.mubr.bf16.gmra.mrb[0].mxu0 %v1235
    %v7051 = vpop.f32.mrb[0].mxu0
    %v7052 = vadd.f32 0.0, %v7051
    %v7053 = vpop.f32.mrb[0].mxu0
    %v7054 = vadd.f32 0.0, %v7053
    %v7055 = vpop.f32.mrb[0].mxu0
    %v7056 = vadd.f32 0.0, %v7055
    %v7057 = vpop.f32.mrb[0].mxu0
    %v7058 = vadd.f32 0.0, %v7057
    %7059 = vmatprep.mubr.bf16.mxu0 %v1244
    %7060 = vmatmul.mubr.bf16.gmra.mrb[0].mxu0 %v1243
    %v7061 = vpop.f32.mrb[0].mxu0
    %v7062 = vadd.f32 0.0, %v7061
    %v7063 = vpop.f32.mrb[0].mxu0
    %v7064 = vadd.f32 0.0, %v7063
    %v7065 = vpop.f32.mrb[0].mxu0
    %v7066 = vadd.f32 0.0, %v7065
    %v7067 = vpop.f32.mrb[0].mxu0
    %v7068 = vadd.f32 0.0, %v7067
    %7069 = vmatprep.mubr.bf16.mxu0 %v1252
    %7070 = vmatmul.mubr.bf16.gmra.mrb[0].mxu0 %v1251
    %v7071 = vpop.f32.mrb[0].mxu0
    %v7072 = vadd.f32 0.0, %v7071
    %v7073 = vpop.f32.mrb[0].mxu0
    %v7074 = vadd.f32 0.0, %v7073
    %v7075 = vpop.f32.mrb[0].mxu0
    %v7076 = vadd.f32 0.0, %v7075
    %v7077 = vpop.f32.mrb[0].mxu0
    %v7078 = vadd.f32 0.0, %v7077
    %7079 = vmatprep.mubr.bf16.mxu0 %v1260
    %7080 = vmatmul.mubr.bf16.gmra.mrb[0].mxu0 %v1259
    %v7081 = vpop.f32.mrb[0].mxu0
    %v7082 = vadd.f32 0.0, %v7081
    %v7083 = vpop.f32.mrb[0].mxu0
    %v7084 = vadd.f32 0.0, %v7083
    %v7085 = vpop.f32.mrb[0].mxu0
    %v7086 = vadd.f32 0.0, %v7085
    %v7087 = vpop.f32.mrb[0].mxu0
    %v7088 = vadd.f32 0.0, %v7087
    %7089 = vmatprep.mubr.bf16.mxu0 %v1268
    %7090 = vmatmul.mubr.bf16.gmra.mrb[0].mxu0 %v1267
    %v7091 = vpop.f32.mrb[0].mxu0
    %v7092 = vadd.f32 0.0, %v7091
    %v7093 = vpop.f32.mrb[0].mxu0
    %v7094 = vadd.f32 0.0, %v7093
    %v7095 = vpop.f32.mrb[0].mxu0
    %v7096 = vadd.f32 0.0, %v7095
    %v7097 = vpop.f32.mrb[0].mxu0
    %v7098 = vadd.f32 0.0, %v7097
    %7099 = vmatprep.mubr.bf16.mxu0 %v1276
    %7100 = vmatmul.mubr.bf16.gmra.mrb[0].mxu0 %v1275
    %v7101 = vpop.f32.mrb[0].mxu0
    %v7102 = vadd.f32 0.0, %v7101
    %v7103 = vpop.f32.mrb[0].mxu0
    %v7104 = vadd.f32 0.0, %v7103
    %v7105 = vpop.f32.mrb[0].mxu0
    %v7106 = vadd.f32 0.0, %v7105
    %v7107 = vpop.f32.mrb[0].mxu0
    %v7108 = vadd.f32 0.0, %v7107
    %7109 = vmatprep.mubr.bf16.mxu0 %v1284
    %7110 = vmatmul.mubr.bf16.gmra.mrb[0].mxu0 %v1283
    %v7111 = vpop.f32.mrb[0].mxu0
    %v7112 = vadd.f32 0.0, %v7111
    %v7113 = vpop.f32.mrb[0].mxu0
    %v7114 = vadd.f32 0.0, %v7113
    %v7115 = vpop.f32.mrb[0].mxu0
    %v7116 = vadd.f32 0.0, %v7115
    %v7117 = vpop.f32.mrb[0].mxu0
    %v7118 = vadd.f32 0.0, %v7117
    %7119 = vmatprep.mubr.bf16.mxu0 %v1292
    %7120 = vmatmul.mubr.bf16.gmra.mrb[0].mxu0 %v1291
    %v7121 = vpop.f32.mrb[0].mxu0
    %v7122 = vadd.f32 0.0, %v7121
    %v7123 = vpop.f32.mrb[0].mxu0
    %v7124 = vadd.f32 0.0, %v7123
    %v7125 = vpop.f32.mrb[0].mxu0
    %v7126 = vadd.f32 0.0, %v7125
    %v7127 = vpop.f32.mrb[0].mxu0
    %v7128 = vadd.f32 0.0, %v7127
    %7129 = vmatprep.mubr.bf16.mxu0 %v1300
    %7130 = vmatmul.mubr.bf16.gmra.mrb[0].mxu0 %v1299
    %v7131 = vpop.f32.mrb[0].mxu0
    %v7132 = vadd.f32 0.0, %v7131
    %v7133 = vpop.f32.mrb[0].mxu0
    %v7134 = vadd.f32 0.0, %v7133
    %v7135 = vpop.f32.mrb[0].mxu0
    %v7136 = vadd.f32 0.0, %v7135
    %v7137 = vpop.f32.mrb[0].mxu0
    %v7138 = vadd.f32 0.0, %v7137
    %7139 = vmatprep.mubr.bf16.mxu0 %v1308
    %7140 = vmatmul.mubr.bf16.gmra.mrb[0].mxu0 %v1307
    %v7141 = vpop.f32.mrb[0].mxu0
    %v7142 = vadd.f32 0.0, %v7141
    %v7143 = vpop.f32.mrb[0].mxu0
    %v7144 = vadd.f32 0.0, %v7143
    %v7145 = vpop.f32.mrb[0].mxu0
    %v7146 = vadd.f32 0.0, %v7145
    %v7147 = vpop.f32.mrb[0].mxu0
    %v7148 = vadd.f32 0.0, %v7147
    %7149 = vmatprep.mubr.bf16.mxu0 %v1316
    %7150 = vmatmul.mubr.bf16.gmra.mrb[0].mxu0 %v1315
    %v7151 = vpop.f32.mrb[0].mxu0
    %v7152 = vadd.f32 0.0, %v7151
    %v7153 = vpop.f32.mrb[0].mxu0
    %v7154 = vadd.f32 0.0, %v7153
    %v7155 = vpop.f32.mrb[0].mxu0
    %v7156 = vadd.f32 0.0, %v7155
    %v7157 = vpop.f32.mrb[0].mxu0
    %v7158 = vadd.f32 0.0, %v7157
    %7159 = vdwg.mxu0
    %7160 = vmatprep.subr.bf16.mxu0 %v3538
    %7161 = vmatpush1.bf16.msra.mxu0 %v3537
    %7162 = vmatprep.subr.bf16.mxu0 %v3548
    %7163 = vmatpush1.bf16.msra.mxu0 %v3547
    %7164 = vmatprep.subr.bf16.mxu0 %v3558
    %7165 = vmatpush1.bf16.msra.mxu0 %v3557
    %7166 = vmatprep.subr.bf16.mxu0 %v3568
    %7167 = vmatpush1.bf16.msra.mxu0 %v3567
    %7168 = vmatprep.subr.bf16.mxu0 %v3578
    %7169 = vmatpush1.bf16.msra.mxu0 %v3577
    %7170 = vmatprep.subr.bf16.mxu0 %v3588
    %7171 = vmatpush1.bf16.msra.mxu0 %v3587
    %7172 = vmatprep.subr.bf16.mxu0 %v3598
    %7173 = vmatpush1.bf16.msra.mxu0 %v3597
    %7174 = vmatprep.subr.bf16.mxu0 %v3608
    %7175 = vmatpush1.bf16.msra.mxu0 %v3607
    %7176 = vmatprep.subr.bf16.mxu0 %v3618
    %7177 = vmatpush1.bf16.msra.mxu0 %v3617
    %7178 = vmatprep.subr.bf16.mxu0 %v3628
    %7179 = vmatpush1.bf16.msra.mxu0 %v3627
    %7180 = vmatprep.subr.bf16.mxu0 %v3638
    %7181 = vmatpush1.bf16.msra.mxu0 %v3637
    %7182 = vmatprep.subr.bf16.mxu0 %v3648
    %7183 = vmatpush1.bf16.msra.mxu0 %v3647
    %7184 = vmatprep.subr.bf16.mxu0 %v3658
    %7185 = vmatpush1.bf16.msra.mxu0 %v3657
    %7186 = vmatprep.subr.bf16.mxu0 %v3668
    %7187 = vmatpush1.bf16.msra.mxu0 %v3667
    %7188 = vmatprep.subr.bf16.mxu0 %v3678
    %7189 = vmatpush1.bf16.msra.mxu0 %v3677
    %7190 = vmatprep.subr.bf16.mxu0 %v3688
    %7191 = vmatpush1.bf16.msra.mxu0 %v3687
    %7192 = vmatprep.mubr.bf16.mxu0 %v1198
    %7193 = vmatmul.mubr.bf16.gmra.mrb[0].mxu0 %v1197
    %v7194 = vpop.f32.mrb[0].mxu0
    %v7195 = vadd.f32 %v7002, %v7194
    %v7196 = vpop.f32.mrb[0].mxu0
    %v7197 = vadd.f32 %v7004, %v7196
    %v7198 = vpop.f32.mrb[0].mxu0
    %v7199 = vadd.f32 %v7006, %v7198
    %v7200 = vpop.f32.mrb[0].mxu0
    %v7201 = vadd.f32 %v7008, %v7200
    %7202 = vmatprep.mubr.bf16.mxu0 %v1206
    %7203 = vmatmul.mubr.bf16.gmra.mrb[0].mxu0 %v1205
    %v7204 = vpop.f32.mrb[0].mxu0
    %v7205 = vadd.f32 %v7012, %v7204
    %v7206 = vpop.f32.mrb[0].mxu0
    %v7207 = vadd.f32 %v7014, %v7206
    %v7208 = vpop.f32.mrb[0].mxu0
    %v7209 = vadd.f32 %v7016, %v7208
    %v7210 = vpop.f32.mrb[0].mxu0
    %v7211 = vadd.f32 %v7018, %v7210
    %7212 = vmatprep.mubr.bf16.mxu0 %v1214
    %7213 = vmatmul.mubr.bf16.gmra.mrb[0].mxu0 %v1213
    %v7214 = vpop.f32.mrb[0].mxu0
    %v7215 = vadd.f32 %v7022, %v7214
    %v7216 = vpop.f32.mrb[0].mxu0
    %v7217 = vadd.f32 %v7024, %v7216
    %v7218 = vpop.f32.mrb[0].mxu0
    %v7219 = vadd.f32 %v7026, %v7218
    %v7220 = vpop.f32.mrb[0].mxu0
    %v7221 = vadd.f32 %v7028, %v7220
    %7222 = vmatprep.mubr.bf16.mxu0 %v1222
    %7223 = vmatmul.mubr.bf16.gmra.mrb[0].mxu0 %v1221
    %v7224 = vpop.f32.mrb[0].mxu0
    %v7225 = vadd.f32 %v7032, %v7224
    %v7226 = vpop.f32.mrb[0].mxu0
    %v7227 = vadd.f32 %v7034, %v7226
    %v7228 = vpop.f32.mrb[0].mxu0
    %v7229 = vadd.f32 %v7036, %v7228
    %v7230 = vpop.f32.mrb[0].mxu0
    %v7231 = vadd.f32 %v7038, %v7230
    %7232 = vmatprep.mubr.bf16.mxu0 %v1230
    %7233 = vmatmul.mubr.bf16.gmra.mrb[0].mxu0 %v1229
    %v7234 = vpop.f32.mrb[0].mxu0
    %v7235 = vadd.f32 %v7042, %v7234
    %v7236 = vpop.f32.mrb[0].mxu0
    %v7237 = vadd.f32 %v7044, %v7236
    %v7238 = vpop.f32.mrb[0].mxu0
    %v7239 = vadd.f32 %v7046, %v7238
    %v7240 = vpop.f32.mrb[0].mxu0
    %v7241 = vadd.f32 %v7048, %v7240
    %7242 = vmatprep.mubr.bf16.mxu0 %v1238
    %7243 = vmatmul.mubr.bf16.gmra.mrb[0].mxu0 %v1237
    %v7244 = vpop.f32.mrb[0].mxu0
    %v7245 = vadd.f32 %v7052, %v7244
    %v7246 = vpop.f32.mrb[0].mxu0
    %v7247 = vadd.f32 %v7054, %v7246
    %v7248 = vpop.f32.mrb[0].mxu0
    %v7249 = vadd.f32 %v7056, %v7248
    %v7250 = vpop.f32.mrb[0].mxu0
    %v7251 = vadd.f32 %v7058, %v7250
    %7252 = vmatprep.mubr.bf16.mxu0 %v1246
    %7253 = vmatmul.mubr.bf16.gmra.mrb[0].mxu0 %v1245
    %v7254 = vpop.f32.mrb[0].mxu0
    %v7255 = vadd.f32 %v7062, %v7254
    %v7256 = vpop.f32.mrb[0].mxu0
    %v7257 = vadd.f32 %v7064, %v7256
    %v7258 = vpop.f32.mrb[0].mxu0
    %v7259 = vadd.f32 %v7066, %v7258
    %v7260 = vpop.f32.mrb[0].mxu0
    %v7261 = vadd.f32 %v7068, %v7260
    %7262 = vmatprep.mubr.bf16.mxu0 %v1254
    %7263 = vmatmul.mubr.bf16.gmra.mrb[0].mxu0 %v1253
    %v7264 = vpop.f32.mrb[0].mxu0
    %v7265 = vadd.f32 %v7072, %v7264
    %v7266 = vpop.f32.mrb[0].mxu0
    %v7267 = vadd.f32 %v7074, %v7266
    %v7268 = vpop.f32.mrb[0].mxu0
    %v7269 = vadd.f32 %v7076, %v7268
    %v7270 = vpop.f32.mrb[0].mxu0
    %v7271 = vadd.f32 %v7078, %v7270
    %7272 = vmatprep.mubr.bf16.mxu0 %v1262
    %7273 = vmatmul.mubr.bf16.gmra.mrb[0].mxu0 %v1261
    %v7274 = vpop.f32.mrb[0].mxu0
    %v7275 = vadd.f32 %v7082, %v7274
    %v7276 = vpop.f32.mrb[0].mxu0
    %v7277 = vadd.f32 %v7084, %v7276
    %v7278 = vpop.f32.mrb[0].mxu0
    %v7279 = vadd.f32 %v7086, %v7278
    %v7280 = vpop.f32.mrb[0].mxu0
    %v7281 = vadd.f32 %v7088, %v7280
    %7282 = vmatprep.mubr.bf16.mxu0 %v1270
    %7283 = vmatmul.mubr.bf16.gmra.mrb[0].mxu0 %v1269
    %v7284 = vpop.f32.mrb[0].mxu0
    %v7285 = vadd.f32 %v7092, %v7284
    %v7286 = vpop.f32.mrb[0].mxu0
    %v7287 = vadd.f32 %v7094, %v7286
    %v7288 = vpop.f32.mrb[0].mxu0
    %v7289 = vadd.f32 %v7096, %v7288
    %v7290 = vpop.f32.mrb[0].mxu0
    %v7291 = vadd.f32 %v7098, %v7290
    %7292 = vmatprep.mubr.bf16.mxu0 %v1278
    %7293 = vmatmul.mubr.bf16.gmra.mrb[0].mxu0 %v1277
    %v7294 = vpop.f32.mrb[0].mxu0
    %v7295 = vadd.f32 %v7102, %v7294
    %v7296 = vpop.f32.mrb[0].mxu0
    %v7297 = vadd.f32 %v7104, %v7296
    %v7298 = vpop.f32.mrb[0].mxu0
    %v7299 = vadd.f32 %v7106, %v7298
    %v7300 = vpop.f32.mrb[0].mxu0
    %v7301 = vadd.f32 %v7108, %v7300
    %7302 = vmatprep.mubr.bf16.mxu0 %v1286
    %7303 = vmatmul.mubr.bf16.gmra.mrb[0].mxu0 %v1285
    %v7304 = vpop.f32.mrb[0].mxu0
    %v7305 = vadd.f32 %v7112, %v7304
    %v7306 = vpop.f32.mrb[0].mxu0
    %v7307 = vadd.f32 %v7114, %v7306
    %v7308 = vpop.f32.mrb[0].mxu0
    %v7309 = vadd.f32 %v7116, %v7308
    %v7310 = vpop.f32.mrb[0].mxu0
    %v7311 = vadd.f32 %v7118, %v7310
    %7312 = vmatprep.mubr.bf16.mxu0 %v1294
    %7313 = vmatmul.mubr.bf16.gmra.mrb[0].mxu0 %v1293
    %v7314 = vpop.f32.mrb[0].mxu0
    %v7315 = vadd.f32 %v7122, %v7314
    %v7316 = vpop.f32.mrb[0].mxu0
    %v7317 = vadd.f32 %v7124, %v7316
    %v7318 = vpop.f32.mrb[0].mxu0
    %v7319 = vadd.f32 %v7126, %v7318
    %v7320 = vpop.f32.mrb[0].mxu0
    %v7321 = vadd.f32 %v7128, %v7320
    %7322 = vmatprep.mubr.bf16.mxu0 %v1302
    %7323 = vmatmul.mubr.bf16.gmra.mrb[0].mxu0 %v1301
    %v7324 = vpop.f32.mrb[0].mxu0
    %v7325 = vadd.f32 %v7132, %v7324
    %v7326 = vpop.f32.mrb[0].mxu0
    %v7327 = vadd.f32 %v7134, %v7326
    %v7328 = vpop.f32.mrb[0].mxu0
    %v7329 = vadd.f32 %v7136, %v7328
    %v7330 = vpop.f32.mrb[0].mxu0
    %v7331 = vadd.f32 %v7138, %v7330
    %7332 = vmatprep.mubr.bf16.mxu0 %v1310
    %7333 = vmatmul.mubr.bf16.gmra.mrb[0].mxu0 %v1309
    %v7334 = vpop.f32.mrb[0].mxu0
    %v7335 = vadd.f32 %v7142, %v7334
    %v7336 = vpop.f32.mrb[0].mxu0
    %v7337 = vadd.f32 %v7144, %v7336
    %v7338 = vpop.f32.mrb[0].mxu0
    %v7339 = vadd.f32 %v7146, %v7338
    %v7340 = vpop.f32.mrb[0].mxu0
    %v7341 = vadd.f32 %v7148, %v7340
    %7342 = vmatprep.mubr.bf16.mxu0 %v1318
    %7343 = vmatmul.mubr.bf16.gmra.mrb[0].mxu0 %v1317
    %v7344 = vpop.f32.mrb[0].mxu0
    %v7345 = vadd.f32 %v7152, %v7344
    %v7346 = vpop.f32.mrb[0].mxu0
    %v7347 = vadd.f32 %v7154, %v7346
    %v7348 = vpop.f32.mrb[0].mxu0
    %v7349 = vadd.f32 %v7156, %v7348
    %v7350 = vpop.f32.mrb[0].mxu0
    %v7351 = vadd.f32 %v7158, %v7350
    %7352 = vdwg.mxu0
    %7353 = vmatprep.subr.bf16.mxu0 %v3698
    %7354 = vmatpush1.bf16.msra.mxu0 %v3697
    %7355 = vmatprep.subr.bf16.mxu0 %v3708
    %7356 = vmatpush1.bf16.msra.mxu0 %v3707
    %7357 = vmatprep.subr.bf16.mxu0 %v3718
    %7358 = vmatpush1.bf16.msra.mxu0 %v3717
    %7359 = vmatprep.subr.bf16.mxu0 %v3728
    %7360 = vmatpush1.bf16.msra.mxu0 %v3727
    %7361 = vmatprep.subr.bf16.mxu0 %v3738
    %7362 = vmatpush1.bf16.msra.mxu0 %v3737
    %7363 = vmatprep.subr.bf16.mxu0 %v3748
    %7364 = vmatpush1.bf16.msra.mxu0 %v3747
    %7365 = vmatprep.subr.bf16.mxu0 %v3758
    %7366 = vmatpush1.bf16.msra.mxu0 %v3757
    %7367 = vmatprep.subr.bf16.mxu0 %v3768
    %7368 = vmatpush1.bf16.msra.mxu0 %v3767
    %7369 = vmatprep.subr.bf16.mxu0 %v3778
    %7370 = vmatpush1.bf16.msra.mxu0 %v3777
    %7371 = vmatprep.subr.bf16.mxu0 %v3788
    %7372 = vmatpush1.bf16.msra.mxu0 %v3787
    %7373 = vmatprep.subr.bf16.mxu0 %v3798
    %7374 = vmatpush1.bf16.msra.mxu0 %v3797
    %7375 = vmatprep.subr.bf16.mxu0 %v3808
    %7376 = vmatpush1.bf16.msra.mxu0 %v3807
    %7377 = vmatprep.subr.bf16.mxu0 %v3818
    %7378 = vmatpush1.bf16.msra.mxu0 %v3817
    %7379 = vmatprep.subr.bf16.mxu0 %v3828
    %7380 = vmatpush1.bf16.msra.mxu0 %v3827
    %7381 = vmatprep.subr.bf16.mxu0 %v3838
    %7382 = vmatpush1.bf16.msra.mxu0 %v3837
    %7383 = vmatprep.subr.bf16.mxu0 %v3848
    %7384 = vmatpush1.bf16.msra.mxu0 %v3847
    %7385 = vmatprep.mubr.bf16.mxu0 %v1200
    %7386 = vmatmul.mubr.bf16.gmra.mrb[0].mxu0 %v1199
    %v7387 = vpop.f32.mrb[0].mxu0
    %v7388 = vadd.f32 %v7195, %v7387
    %v7389 = vpop.f32.mrb[0].mxu0
    %v7390 = vadd.f32 %v7197, %v7389
    %v7391 = vpop.f32.mrb[0].mxu0
    %v7392 = vadd.f32 %v7199, %v7391
    %v7393 = vpop.f32.mrb[0].mxu0
    %v7394 = vadd.f32 %v7201, %v7393
    %7395 = vmatprep.mubr.bf16.mxu0 %v1208
    %7396 = vmatmul.mubr.bf16.gmra.mrb[0].mxu0 %v1207
    %v7397 = vpop.f32.mrb[0].mxu0
    %v7398 = vadd.f32 %v7205, %v7397
    %v7399 = vpop.f32.mrb[0].mxu0
    %v7400 = vadd.f32 %v7207, %v7399
    %v7401 = vpop.f32.mrb[0].mxu0
    %v7402 = vadd.f32 %v7209, %v7401
    %v7403 = vpop.f32.mrb[0].mxu0
    %v7404 = vadd.f32 %v7211, %v7403
    %7405 = vmatprep.mubr.bf16.mxu0 %v1216
    %7406 = vmatmul.mubr.bf16.gmra.mrb[0].mxu0 %v1215
    %v7407 = vpop.f32.mrb[0].mxu0
    %v7408 = vadd.f32 %v7215, %v7407
    %v7409 = vpop.f32.mrb[0].mxu0
    %v7410 = vadd.f32 %v7217, %v7409
    %v7411 = vpop.f32.mrb[0].mxu0
    %v7412 = vadd.f32 %v7219, %v7411
    %v7413 = vpop.f32.mrb[0].mxu0
    %v7414 = vadd.f32 %v7221, %v7413
    %7415 = vmatprep.mubr.bf16.mxu0 %v1224
    %7416 = vmatmul.mubr.bf16.gmra.mrb[0].mxu0 %v1223
    %v7417 = vpop.f32.mrb[0].mxu0
    %v7418 = vadd.f32 %v7225, %v7417
    %v7419 = vpop.f32.mrb[0].mxu0
    %v7420 = vadd.f32 %v7227, %v7419
    %v7421 = vpop.f32.mrb[0].mxu0
    %v7422 = vadd.f32 %v7229, %v7421
    %v7423 = vpop.f32.mrb[0].mxu0
    %v7424 = vadd.f32 %v7231, %v7423
    %7425 = vmatprep.mubr.bf16.mxu0 %v1232
    %7426 = vmatmul.mubr.bf16.gmra.mrb[0].mxu0 %v1231
    %v7427 = vpop.f32.mrb[0].mxu0
    %v7428 = vadd.f32 %v7235, %v7427
    %v7429 = vpop.f32.mrb[0].mxu0
    %v7430 = vadd.f32 %v7237, %v7429
    %v7431 = vpop.f32.mrb[0].mxu0
    %v7432 = vadd.f32 %v7239, %v7431
    %v7433 = vpop.f32.mrb[0].mxu0
    %v7434 = vadd.f32 %v7241, %v7433
    %7435 = vmatprep.mubr.bf16.mxu0 %v1240
    %7436 = vmatmul.mubr.bf16.gmra.mrb[0].mxu0 %v1239
    %v7437 = vpop.f32.mrb[0].mxu0
    %v7438 = vadd.f32 %v7245, %v7437
    %v7439 = vpop.f32.mrb[0].mxu0
    %v7440 = vadd.f32 %v7247, %v7439
    %v7441 = vpop.f32.mrb[0].mxu0
    %v7442 = vadd.f32 %v7249, %v7441
    %v7443 = vpop.f32.mrb[0].mxu0
    %v7444 = vadd.f32 %v7251, %v7443
    %7445 = vmatprep.mubr.bf16.mxu0 %v1248
    %7446 = vmatmul.mubr.bf16.gmra.mrb[0].mxu0 %v1247
    %v7447 = vpop.f32.mrb[0].mxu0
    %v7448 = vadd.f32 %v7255, %v7447
    %v7449 = vpop.f32.mrb[0].mxu0
    %v7450 = vadd.f32 %v7257, %v7449
    %v7451 = vpop.f32.mrb[0].mxu0
    %v7452 = vadd.f32 %v7259, %v7451
    %v7453 = vpop.f32.mrb[0].mxu0
    %v7454 = vadd.f32 %v7261, %v7453
    %7455 = vmatprep.mubr.bf16.mxu0 %v1256
    %7456 = vmatmul.mubr.bf16.gmra.mrb[0].mxu0 %v1255
    %v7457 = vpop.f32.mrb[0].mxu0
    %v7458 = vadd.f32 %v7265, %v7457
    %v7459 = vpop.f32.mrb[0].mxu0
    %v7460 = vadd.f32 %v7267, %v7459
    %v7461 = vpop.f32.mrb[0].mxu0
    %v7462 = vadd.f32 %v7269, %v7461
    %v7463 = vpop.f32.mrb[0].mxu0
    %v7464 = vadd.f32 %v7271, %v7463
    %7465 = vmatprep.mubr.bf16.mxu0 %v1264
    %7466 = vmatmul.mubr.bf16.gmra.mrb[0].mxu0 %v1263
    %v7467 = vpop.f32.mrb[0].mxu0
    %v7468 = vadd.f32 %v7275, %v7467
    %v7469 = vpop.f32.mrb[0].mxu0
    %v7470 = vadd.f32 %v7277, %v7469
    %v7471 = vpop.f32.mrb[0].mxu0
    %v7472 = vadd.f32 %v7279, %v7471
    %v7473 = vpop.f32.mrb[0].mxu0
    %v7474 = vadd.f32 %v7281, %v7473
    %7475 = vmatprep.mubr.bf16.mxu0 %v1272
    %7476 = vmatmul.mubr.bf16.gmra.mrb[0].mxu0 %v1271
    %v7477 = vpop.f32.mrb[0].mxu0
    %v7478 = vadd.f32 %v7285, %v7477
    %v7479 = vpop.f32.mrb[0].mxu0
    %v7480 = vadd.f32 %v7287, %v7479
    %v7481 = vpop.f32.mrb[0].mxu0
    %v7482 = vadd.f32 %v7289, %v7481
    %v7483 = vpop.f32.mrb[0].mxu0
    %v7484 = vadd.f32 %v7291, %v7483
    %7485 = vmatprep.mubr.bf16.mxu0 %v1280
    %7486 = vmatmul.mubr.bf16.gmra.mrb[0].mxu0 %v1279
    %v7487 = vpop.f32.mrb[0].mxu0
    %v7488 = vadd.f32 %v7295, %v7487
    %v7489 = vpop.f32.mrb[0].mxu0
    %v7490 = vadd.f32 %v7297, %v7489
    %v7491 = vpop.f32.mrb[0].mxu0
    %v7492 = vadd.f32 %v7299, %v7491
    %v7493 = vpop.f32.mrb[0].mxu0
    %v7494 = vadd.f32 %v7301, %v7493
    %7495 = vmatprep.mubr.bf16.mxu0 %v1288
    %7496 = vmatmul.mubr.bf16.gmra.mrb[0].mxu0 %v1287
    %v7497 = vpop.f32.mrb[0].mxu0
    %v7498 = vadd.f32 %v7305, %v7497
    %v7499 = vpop.f32.mrb[0].mxu0
    %v7500 = vadd.f32 %v7307, %v7499
    %v7501 = vpop.f32.mrb[0].mxu0
    %v7502 = vadd.f32 %v7309, %v7501
    %v7503 = vpop.f32.mrb[0].mxu0
    %v7504 = vadd.f32 %v7311, %v7503
    %7505 = vmatprep.mubr.bf16.mxu0 %v1296
    %7506 = vmatmul.mubr.bf16.gmra.mrb[0].mxu0 %v1295
    %v7507 = vpop.f32.mrb[0].mxu0
    %v7508 = vadd.f32 %v7315, %v7507
    %v7509 = vpop.f32.mrb[0].mxu0
    %v7510 = vadd.f32 %v7317, %v7509
    %v7511 = vpop.f32.mrb[0].mxu0
    %v7512 = vadd.f32 %v7319, %v7511
    %v7513 = vpop.f32.mrb[0].mxu0
    %v7514 = vadd.f32 %v7321, %v7513
    %7515 = vmatprep.mubr.bf16.mxu0 %v1304
    %7516 = vmatmul.mubr.bf16.gmra.mrb[0].mxu0 %v1303
    %v7517 = vpop.f32.mrb[0].mxu0
    %v7518 = vadd.f32 %v7325, %v7517
    %v7519 = vpop.f32.mrb[0].mxu0
    %v7520 = vadd.f32 %v7327, %v7519
    %v7521 = vpop.f32.mrb[0].mxu0
    %v7522 = vadd.f32 %v7329, %v7521
    %v7523 = vpop.f32.mrb[0].mxu0
    %v7524 = vadd.f32 %v7331, %v7523
    %7525 = vmatprep.mubr.bf16.mxu0 %v1312
    %7526 = vmatmul.mubr.bf16.gmra.mrb[0].mxu0 %v1311
    %v7527 = vpop.f32.mrb[0].mxu0
    %v7528 = vadd.f32 %v7335, %v7527
    %v7529 = vpop.f32.mrb[0].mxu0
    %v7530 = vadd.f32 %v7337, %v7529
    %v7531 = vpop.f32.mrb[0].mxu0
    %v7532 = vadd.f32 %v7339, %v7531
    %v7533 = vpop.f32.mrb[0].mxu0
    %v7534 = vadd.f32 %v7341, %v7533
    %7535 = vmatprep.mubr.bf16.mxu0 %v1320
    %7536 = vmatmul.mubr.bf16.gmra.mrb[0].mxu0 %v1319
    %v7537 = vpop.f32.mrb[0].mxu0
    %v7538 = vadd.f32 %v7345, %v7537
    %v7539 = vpop.f32.mrb[0].mxu0
    %v7540 = vadd.f32 %v7347, %v7539
    %v7541 = vpop.f32.mrb[0].mxu0
    %v7542 = vadd.f32 %v7349, %v7541
    %v7543 = vpop.f32.mrb[0].mxu0
    %v7544 = vadd.f32 %v7351, %v7543
    %7545 = vdwg.mxu0
    %7546 = vmatprep.subr.bf16.mxu0 %v3858
    %7547 = vmatpush1.bf16.msra.mxu0 %v3857
    %7548 = vmatprep.subr.bf16.mxu0 %v3868
    %7549 = vmatpush1.bf16.msra.mxu0 %v3867
    %7550 = vmatprep.subr.bf16.mxu0 %v3878
    %7551 = vmatpush1.bf16.msra.mxu0 %v3877
    %7552 = vmatprep.subr.bf16.mxu0 %v3888
    %7553 = vmatpush1.bf16.msra.mxu0 %v3887
    %7554 = vmatprep.subr.bf16.mxu0 %v3898
    %7555 = vmatpush1.bf16.msra.mxu0 %v3897
    %7556 = vmatprep.subr.bf16.mxu0 %v3908
    %7557 = vmatpush1.bf16.msra.mxu0 %v3907
    %7558 = vmatprep.subr.bf16.mxu0 %v3918
    %7559 = vmatpush1.bf16.msra.mxu0 %v3917
    %7560 = vmatprep.subr.bf16.mxu0 %v3928
    %7561 = vmatpush1.bf16.msra.mxu0 %v3927
    %7562 = vmatprep.subr.bf16.mxu0 %v3938
    %7563 = vmatpush1.bf16.msra.mxu0 %v3937
    %7564 = vmatprep.subr.bf16.mxu0 %v3948
    %7565 = vmatpush1.bf16.msra.mxu0 %v3947
    %7566 = vmatprep.subr.bf16.mxu0 %v3958
    %7567 = vmatpush1.bf16.msra.mxu0 %v3957
    %7568 = vmatprep.subr.bf16.mxu0 %v3968
    %7569 = vmatpush1.bf16.msra.mxu0 %v3967
    %7570 = vmatprep.subr.bf16.mxu0 %v3978
    %7571 = vmatpush1.bf16.msra.mxu0 %v3977
    %7572 = vmatprep.subr.bf16.mxu0 %v3988
    %7573 = vmatpush1.bf16.msra.mxu0 %v3987
    %7574 = vmatprep.subr.bf16.mxu0 %v3998
    %7575 = vmatpush1.bf16.msra.mxu0 %v3997
    %7576 = vmatprep.subr.bf16.mxu0 %v4008
    %7577 = vmatpush1.bf16.msra.mxu0 %v4007
    %7578 = vmatprep.mubr.bf16.mxu0 %v1202
    %7579 = vmatmul.mubr.bf16.gmra.mrb[0].mxu0 %v1201
    %v7580 = vpop.f32.mrb[0].mxu0
    %v7581 = vadd.f32 %v7388, %v7580
    %v7582 = vpop.f32.mrb[0].mxu0
    %v7583 = vadd.f32 %v7390, %v7582
    %v7584 = vpop.f32.mrb[0].mxu0
    %v7585 = vadd.f32 %v7392, %v7584
    %v7586 = vpop.f32.mrb[0].mxu0
    %v7587 = vadd.f32 %v7394, %v7586
    %7588 = vmatprep.mubr.bf16.mxu0 %v1210
    %7589 = vmatmul.mubr.bf16.gmra.mrb[0].mxu0 %v1209
    %v7590 = vpop.f32.mrb[0].mxu0
    %v7591 = vadd.f32 %v7398, %v7590
    %v7592 = vpop.f32.mrb[0].mxu0
    %v7593 = vadd.f32 %v7400, %v7592
    %v7594 = vpop.f32.mrb[0].mxu0
    %v7595 = vadd.f32 %v7402, %v7594
    %v7596 = vpop.f32.mrb[0].mxu0
    %v7597 = vadd.f32 %v7404, %v7596
    %7598 = vmatprep.mubr.bf16.mxu0 %v1218
    %7599 = vmatmul.mubr.bf16.gmra.mrb[0].mxu0 %v1217
    %v7600 = vpop.f32.mrb[0].mxu0
    %v7601 = vadd.f32 %v7408, %v7600
    %v7602 = vpop.f32.mrb[0].mxu0
    %v7603 = vadd.f32 %v7410, %v7602
    %v7604 = vpop.f32.mrb[0].mxu0
    %v7605 = vadd.f32 %v7412, %v7604
    %v7606 = vpop.f32.mrb[0].mxu0
    %v7607 = vadd.f32 %v7414, %v7606
    %7608 = vmatprep.mubr.bf16.mxu0 %v1226
    %7609 = vmatmul.mubr.bf16.gmra.mrb[0].mxu0 %v1225
    %v7610 = vpop.f32.mrb[0].mxu0
    %v7611 = vadd.f32 %v7418, %v7610
    %v7612 = vpop.f32.mrb[0].mxu0
    %v7613 = vadd.f32 %v7420, %v7612
    %v7614 = vpop.f32.mrb[0].mxu0
    %v7615 = vadd.f32 %v7422, %v7614
    %v7616 = vpop.f32.mrb[0].mxu0
    %v7617 = vadd.f32 %v7424, %v7616
    %7618 = vmatprep.mubr.bf16.mxu0 %v1234
    %7619 = vmatmul.mubr.bf16.gmra.mrb[0].mxu0 %v1233
    %v7620 = vpop.f32.mrb[0].mxu0
    %v7621 = vadd.f32 %v7428, %v7620
    %v7622 = vpop.f32.mrb[0].mxu0
    %v7623 = vadd.f32 %v7430, %v7622
    %v7624 = vpop.f32.mrb[0].mxu0
    %v7625 = vadd.f32 %v7432, %v7624
    %v7626 = vpop.f32.mrb[0].mxu0
    %v7627 = vadd.f32 %v7434, %v7626
    %7628 = vmatprep.mubr.bf16.mxu0 %v1242
    %7629 = vmatmul.mubr.bf16.gmra.mrb[0].mxu0 %v1241
    %v7630 = vpop.f32.mrb[0].mxu0
    %v7631 = vadd.f32 %v7438, %v7630
    %v7632 = vpop.f32.mrb[0].mxu0
    %v7633 = vadd.f32 %v7440, %v7632
    %v7634 = vpop.f32.mrb[0].mxu0
    %v7635 = vadd.f32 %v7442, %v7634
    %v7636 = vpop.f32.mrb[0].mxu0
    %v7637 = vadd.f32 %v7444, %v7636
    %7638 = vmatprep.mubr.bf16.mxu0 %v1250
    %7639 = vmatmul.mubr.bf16.gmra.mrb[0].mxu0 %v1249
    %v7640 = vpop.f32.mrb[0].mxu0
    %v7641 = vadd.f32 %v7448, %v7640
    %v7642 = vpop.f32.mrb[0].mxu0
    %v7643 = vadd.f32 %v7450, %v7642
    %v7644 = vpop.f32.mrb[0].mxu0
    %v7645 = vadd.f32 %v7452, %v7644
    %v7646 = vpop.f32.mrb[0].mxu0
    %v7647 = vadd.f32 %v7454, %v7646
    %7648 = vmatprep.mubr.bf16.mxu0 %v1258
    %7649 = vmatmul.mubr.bf16.gmra.mrb[0].mxu0 %v1257
    %v7650 = vpop.f32.mrb[0].mxu0
    %v7651 = vadd.f32 %v7458, %v7650
    %v7652 = vpop.f32.mrb[0].mxu0
    %v7653 = vadd.f32 %v7460, %v7652
    %v7654 = vpop.f32.mrb[0].mxu0
    %v7655 = vadd.f32 %v7462, %v7654
    %v7656 = vpop.f32.mrb[0].mxu0
    %v7657 = vadd.f32 %v7464, %v7656
    %7658 = vmatprep.mubr.bf16.mxu0 %v1266
    %7659 = vmatmul.mubr.bf16.gmra.mrb[0].mxu0 %v1265
    %v7660 = vpop.f32.mrb[0].mxu0
    %v7661 = vadd.f32 %v7468, %v7660
    %v7662 = vpop.f32.mrb[0].mxu0
    %v7663 = vadd.f32 %v7470, %v7662
    %v7664 = vpop.f32.mrb[0].mxu0
    %v7665 = vadd.f32 %v7472, %v7664
    %v7666 = vpop.f32.mrb[0].mxu0
    %v7667 = vadd.f32 %v7474, %v7666
    %7668 = vmatprep.mubr.bf16.mxu0 %v1274
    %7669 = vmatmul.mubr.bf16.gmra.mrb[0].mxu0 %v1273
    %v7670 = vpop.f32.mrb[0].mxu0
    %v7671 = vadd.f32 %v7478, %v7670
    %v7672 = vpop.f32.mrb[0].mxu0
    %v7673 = vadd.f32 %v7480, %v7672
    %v7674 = vpop.f32.mrb[0].mxu0
    %v7675 = vadd.f32 %v7482, %v7674
    %v7676 = vpop.f32.mrb[0].mxu0
    %v7677 = vadd.f32 %v7484, %v7676
    %7678 = vmatprep.mubr.bf16.mxu0 %v1282
    %7679 = vmatmul.mubr.bf16.gmra.mrb[0].mxu0 %v1281
    %v7680 = vpop.f32.mrb[0].mxu0
    %v7681 = vadd.f32 %v7488, %v7680
    %v7682 = vpop.f32.mrb[0].mxu0
    %v7683 = vadd.f32 %v7490, %v7682
    %v7684 = vpop.f32.mrb[0].mxu0
    %v7685 = vadd.f32 %v7492, %v7684
    %v7686 = vpop.f32.mrb[0].mxu0
    %v7687 = vadd.f32 %v7494, %v7686
    %7688 = vmatprep.mubr.bf16.mxu0 %v1290
    %7689 = vmatmul.mubr.bf16.gmra.mrb[0].mxu0 %v1289
    %v7690 = vpop.f32.mrb[0].mxu0
    %v7691 = vadd.f32 %v7498, %v7690
    %v7692 = vpop.f32.mrb[0].mxu0
    %v7693 = vadd.f32 %v7500, %v7692
    %v7694 = vpop.f32.mrb[0].mxu0
    %v7695 = vadd.f32 %v7502, %v7694
    %v7696 = vpop.f32.mrb[0].mxu0
    %v7697 = vadd.f32 %v7504, %v7696
    %7698 = vmatprep.mubr.bf16.mxu0 %v1298
    %7699 = vmatmul.mubr.bf16.gmra.mrb[0].mxu0 %v1297
    %v7700 = vpop.f32.mrb[0].mxu0
    %v7701 = vadd.f32 %v7508, %v7700
    %v7702 = vpop.f32.mrb[0].mxu0
    %v7703 = vadd.f32 %v7510, %v7702
    %v7704 = vpop.f32.mrb[0].mxu0
    %v7705 = vadd.f32 %v7512, %v7704
    %v7706 = vpop.f32.mrb[0].mxu0
    %v7707 = vadd.f32 %v7514, %v7706
    %7708 = vmatprep.mubr.bf16.mxu0 %v1306
    %7709 = vmatmul.mubr.bf16.gmra.mrb[0].mxu0 %v1305
    %v7710 = vpop.f32.mrb[0].mxu0
    %v7711 = vadd.f32 %v7518, %v7710
    %v7712 = vpop.f32.mrb[0].mxu0
    %v7713 = vadd.f32 %v7520, %v7712
    %v7714 = vpop.f32.mrb[0].mxu0
    %v7715 = vadd.f32 %v7522, %v7714
    %v7716 = vpop.f32.mrb[0].mxu0
    %v7717 = vadd.f32 %v7524, %v7716
    %7718 = vmatprep.mubr.bf16.mxu0 %v1314
    %7719 = vmatmul.mubr.bf16.gmra.mrb[0].mxu0 %v1313
    %v7720 = vpop.f32.mrb[0].mxu0
    %v7721 = vadd.f32 %v7528, %v7720
    %v7722 = vpop.f32.mrb[0].mxu0
    %v7723 = vadd.f32 %v7530, %v7722
    %v7724 = vpop.f32.mrb[0].mxu0
    %v7725 = vadd.f32 %v7532, %v7724
    %v7726 = vpop.f32.mrb[0].mxu0
    %v7727 = vadd.f32 %v7534, %v7726
    %7728 = vmatprep.mubr.bf16.mxu0 %v1322
    %7729 = vmatmul.mubr.bf16.gmra.mrb[0].mxu0 %v1321
    %v7730 = vpop.f32.mrb[0].mxu0
    %v7731 = vadd.f32 %v7538, %v7730
    %v7732 = vpop.f32.mrb[0].mxu0
    %v7733 = vadd.f32 %v7540, %v7732
    %v7734 = vpop.f32.mrb[0].mxu0
    %v7735 = vadd.f32 %v7542, %v7734
    %v7736 = vpop.f32.mrb[0].mxu0
    %v7737 = vadd.f32 %v7544, %v7736
    %7738 = vdwg.mxu0
    %7739 = vmatprep.subr.bf16.mxu0 %v3380
    %7740 = vmatpush1.bf16.msra.mxu0 %v3379
    %7741 = vmatprep.subr.bf16.mxu0 %v3390
    %7742 = vmatpush1.bf16.msra.mxu0 %v3389
    %7743 = vmatprep.subr.bf16.mxu0 %v3400
    %7744 = vmatpush1.bf16.msra.mxu0 %v3399
    %7745 = vmatprep.subr.bf16.mxu0 %v3410
    %7746 = vmatpush1.bf16.msra.mxu0 %v3409
    %7747 = vmatprep.subr.bf16.mxu0 %v3420
    %7748 = vmatpush1.bf16.msra.mxu0 %v3419
    %7749 = vmatprep.subr.bf16.mxu0 %v3430
    %7750 = vmatpush1.bf16.msra.mxu0 %v3429
    %7751 = vmatprep.subr.bf16.mxu0 %v3440
    %7752 = vmatpush1.bf16.msra.mxu0 %v3439
    %7753 = vmatprep.subr.bf16.mxu0 %v3450
    %7754 = vmatpush1.bf16.msra.mxu0 %v3449
    %7755 = vmatprep.subr.bf16.mxu0 %v3460
    %7756 = vmatpush1.bf16.msra.mxu0 %v3459
    %7757 = vmatprep.subr.bf16.mxu0 %v3470
    %7758 = vmatpush1.bf16.msra.mxu0 %v3469
    %7759 = vmatprep.subr.bf16.mxu0 %v3480
    %7760 = vmatpush1.bf16.msra.mxu0 %v3479
    %7761 = vmatprep.subr.bf16.mxu0 %v3490
    %7762 = vmatpush1.bf16.msra.mxu0 %v3489
    %7763 = vmatprep.subr.bf16.mxu0 %v3500
    %7764 = vmatpush1.bf16.msra.mxu0 %v3499
    %7765 = vmatprep.subr.bf16.mxu0 %v3510
    %7766 = vmatpush1.bf16.msra.mxu0 %v3509
    %7767 = vmatprep.subr.bf16.mxu0 %v3520
    %7768 = vmatpush1.bf16.msra.mxu0 %v3519
    %7769 = vmatprep.subr.bf16.mxu0 %v3530
    %7770 = vmatpush1.bf16.msra.mxu0 %v3529
    %7771 = vmatprep.mubr.bf16.mxu0 %v1196
    %7772 = vmatmul.mubr.bf16.gmra.mrb[0].mxu0 %v1195
    %v7773 = vpop.f32.mrb[0].mxu0
    %v7774 = vadd.f32 0.0, %v7773
    %v7775 = vpop.f32.mrb[0].mxu0
    %v7776 = vadd.f32 0.0, %v7775
    %v7777 = vpop.f32.mrb[0].mxu0
    %v7778 = vadd.f32 0.0, %v7777
    %v7779 = vpop.f32.mrb[0].mxu0
    %v7780 = vadd.f32 0.0, %v7779
    %7781 = vmatprep.mubr.bf16.mxu0 %v1204
    %7782 = vmatmul.mubr.bf16.gmra.mrb[0].mxu0 %v1203
    %v7783 = vpop.f32.mrb[0].mxu0
    %v7784 = vadd.f32 0.0, %v7783
    %v7785 = vpop.f32.mrb[0].mxu0
    %v7786 = vadd.f32 0.0, %v7785
    %v7787 = vpop.f32.mrb[0].mxu0
    %v7788 = vadd.f32 0.0, %v7787
    %v7789 = vpop.f32.mrb[0].mxu0
    %v7790 = vadd.f32 0.0, %v7789
    %7791 = vmatprep.mubr.bf16.mxu0 %v1212
    %7792 = vmatmul.mubr.bf16.gmra.mrb[0].mxu0 %v1211
    %v7793 = vpop.f32.mrb[0].mxu0
    %v7794 = vadd.f32 0.0, %v7793
    %v7795 = vpop.f32.mrb[0].mxu0
    %v7796 = vadd.f32 0.0, %v7795
    %v7797 = vpop.f32.mrb[0].mxu0
    %v7798 = vadd.f32 0.0, %v7797
    %v7799 = vpop.f32.mrb[0].mxu0
    %v7800 = vadd.f32 0.0, %v7799
    %7801 = vmatprep.mubr.bf16.mxu0 %v1220
    %7802 = vmatmul.mubr.bf16.gmra.mrb[0].mxu0 %v1219
    %v7803 = vpop.f32.mrb[0].mxu0
    %v7804 = vadd.f32 0.0, %v7803
    %v7805 = vpop.f32.mrb[0].mxu0
    %v7806 = vadd.f32 0.0, %v7805
    %v7807 = vpop.f32.mrb[0].mxu0
    %v7808 = vadd.f32 0.0, %v7807
    %v7809 = vpop.f32.mrb[0].mxu0
    %v7810 = vadd.f32 0.0, %v7809
    %7811 = vmatprep.mubr.bf16.mxu0 %v1228
    %7812 = vmatmul.mubr.bf16.gmra.mrb[0].mxu0 %v1227
    %v7813 = vpop.f32.mrb[0].mxu0
    %v7814 = vadd.f32 0.0, %v7813
    %v7815 = vpop.f32.mrb[0].mxu0
    %v7816 = vadd.f32 0.0, %v7815
    %v7817 = vpop.f32.mrb[0].mxu0
    %v7818 = vadd.f32 0.0, %v7817
    %v7819 = vpop.f32.mrb[0].mxu0
    %v7820 = vadd.f32 0.0, %v7819
    %7821 = vmatprep.mubr.bf16.mxu0 %v1236
    %7822 = vmatmul.mubr.bf16.gmra.mrb[0].mxu0 %v1235
    %v7823 = vpop.f32.mrb[0].mxu0
    %v7824 = vadd.f32 0.0, %v7823
    %v7825 = vpop.f32.mrb[0].mxu0
    %v7826 = vadd.f32 0.0, %v7825
    %v7827 = vpop.f32.mrb[0].mxu0
    %v7828 = vadd.f32 0.0, %v7827
    %v7829 = vpop.f32.mrb[0].mxu0
    %v7830 = vadd.f32 0.0, %v7829
    %7831 = vmatprep.mubr.bf16.mxu0 %v1244
    %7832 = vmatmul.mubr.bf16.gmra.mrb[0].mxu0 %v1243
    %v7833 = vpop.f32.mrb[0].mxu0
    %v7834 = vadd.f32 0.0, %v7833
    %v7835 = vpop.f32.mrb[0].mxu0
    %v7836 = vadd.f32 0.0, %v7835
    %v7837 = vpop.f32.mrb[0].mxu0
    %v7838 = vadd.f32 0.0, %v7837
    %v7839 = vpop.f32.mrb[0].mxu0
    %v7840 = vadd.f32 0.0, %v7839
    %7841 = vmatprep.mubr.bf16.mxu0 %v1252
    %7842 = vmatmul.mubr.bf16.gmra.mrb[0].mxu0 %v1251
    %v7843 = vpop.f32.mrb[0].mxu0
    %v7844 = vadd.f32 0.0, %v7843
    %v7845 = vpop.f32.mrb[0].mxu0
    %v7846 = vadd.f32 0.0, %v7845
    %v7847 = vpop.f32.mrb[0].mxu0
    %v7848 = vadd.f32 0.0, %v7847
    %v7849 = vpop.f32.mrb[0].mxu0
    %v7850 = vadd.f32 0.0, %v7849
    %7851 = vmatprep.mubr.bf16.mxu0 %v1260
    %7852 = vmatmul.mubr.bf16.gmra.mrb[0].mxu0 %v1259
    %v7853 = vpop.f32.mrb[0].mxu0
    %v7854 = vadd.f32 0.0, %v7853
    %v7855 = vpop.f32.mrb[0].mxu0
    %v7856 = vadd.f32 0.0, %v7855
    %v7857 = vpop.f32.mrb[0].mxu0
    %v7858 = vadd.f32 0.0, %v7857
    %v7859 = vpop.f32.mrb[0].mxu0
    %v7860 = vadd.f32 0.0, %v7859
    %7861 = vmatprep.mubr.bf16.mxu0 %v1268
    %7862 = vmatmul.mubr.bf16.gmra.mrb[0].mxu0 %v1267
    %v7863 = vpop.f32.mrb[0].mxu0
    %v7864 = vadd.f32 0.0, %v7863
    %v7865 = vpop.f32.mrb[0].mxu0
    %v7866 = vadd.f32 0.0, %v7865
    %v7867 = vpop.f32.mrb[0].mxu0
    %v7868 = vadd.f32 0.0, %v7867
    %v7869 = vpop.f32.mrb[0].mxu0
    %v7870 = vadd.f32 0.0, %v7869
    %7871 = vmatprep.mubr.bf16.mxu0 %v1276
    %7872 = vmatmul.mubr.bf16.gmra.mrb[0].mxu0 %v1275
    %v7873 = vpop.f32.mrb[0].mxu0
    %v7874 = vadd.f32 0.0, %v7873
    %v7875 = vpop.f32.mrb[0].mxu0
    %v7876 = vadd.f32 0.0, %v7875
    %v7877 = vpop.f32.mrb[0].mxu0
    %v7878 = vadd.f32 0.0, %v7877
    %v7879 = vpop.f32.mrb[0].mxu0
    %v7880 = vadd.f32 0.0, %v7879
    %7881 = vmatprep.mubr.bf16.mxu0 %v1284
    %7882 = vmatmul.mubr.bf16.gmra.mrb[0].mxu0 %v1283
    %v7883 = vpop.f32.mrb[0].mxu0
    %v7884 = vadd.f32 0.0, %v7883
    %v7885 = vpop.f32.mrb[0].mxu0
    %v7886 = vadd.f32 0.0, %v7885
    %v7887 = vpop.f32.mrb[0].mxu0
    %v7888 = vadd.f32 0.0, %v7887
    %v7889 = vpop.f32.mrb[0].mxu0
    %v7890 = vadd.f32 0.0, %v7889
    %7891 = vmatprep.mubr.bf16.mxu0 %v1292
    %7892 = vmatmul.mubr.bf16.gmra.mrb[0].mxu0 %v1291
    %v7893 = vpop.f32.mrb[0].mxu0
    %v7894 = vadd.f32 0.0, %v7893
    %v7895 = vpop.f32.mrb[0].mxu0
    %v7896 = vadd.f32 0.0, %v7895
    %v7897 = vpop.f32.mrb[0].mxu0
    %v7898 = vadd.f32 0.0, %v7897
    %v7899 = vpop.f32.mrb[0].mxu0
    %v7900 = vadd.f32 0.0, %v7899
    %7901 = vmatprep.mubr.bf16.mxu0 %v1300
    %7902 = vmatmul.mubr.bf16.gmra.mrb[0].mxu0 %v1299
    %v7903 = vpop.f32.mrb[0].mxu0
    %v7904 = vadd.f32 0.0, %v7903
    %v7905 = vpop.f32.mrb[0].mxu0
    %v7906 = vadd.f32 0.0, %v7905
    %v7907 = vpop.f32.mrb[0].mxu0
    %v7908 = vadd.f32 0.0, %v7907
    %v7909 = vpop.f32.mrb[0].mxu0
    %v7910 = vadd.f32 0.0, %v7909
    %7911 = vmatprep.mubr.bf16.mxu0 %v1308
    %7912 = vmatmul.mubr.bf16.gmra.mrb[0].mxu0 %v1307
    %v7913 = vpop.f32.mrb[0].mxu0
    %v7914 = vadd.f32 0.0, %v7913
    %v7915 = vpop.f32.mrb[0].mxu0
    %v7916 = vadd.f32 0.0, %v7915
    %v7917 = vpop.f32.mrb[0].mxu0
    %v7918 = vadd.f32 0.0, %v7917
    %v7919 = vpop.f32.mrb[0].mxu0
    %v7920 = vadd.f32 0.0, %v7919
    %7921 = vmatprep.mubr.bf16.mxu0 %v1316
    %7922 = vmatmul.mubr.bf16.gmra.mrb[0].mxu0 %v1315
    %v7923 = vpop.f32.mrb[0].mxu0
    %v7924 = vadd.f32 0.0, %v7923
    %v7925 = vpop.f32.mrb[0].mxu0
    %v7926 = vadd.f32 0.0, %v7925
    %v7927 = vpop.f32.mrb[0].mxu0
    %v7928 = vadd.f32 0.0, %v7927
    %v7929 = vpop.f32.mrb[0].mxu0
    %v7930 = vadd.f32 0.0, %v7929
    %7931 = vdwg.mxu0
    %7932 = vmatprep.subr.bf16.mxu0 %v3540
    %7933 = vmatpush1.bf16.msra.mxu0 %v3539
    %7934 = vmatprep.subr.bf16.mxu0 %v3550
    %7935 = vmatpush1.bf16.msra.mxu0 %v3549
    %7936 = vmatprep.subr.bf16.mxu0 %v3560
    %7937 = vmatpush1.bf16.msra.mxu0 %v3559
    %7938 = vmatprep.subr.bf16.mxu0 %v3570
    %7939 = vmatpush1.bf16.msra.mxu0 %v3569
    %7940 = vmatprep.subr.bf16.mxu0 %v3580
    %7941 = vmatpush1.bf16.msra.mxu0 %v3579
    %7942 = vmatprep.subr.bf16.mxu0 %v3590
    %7943 = vmatpush1.bf16.msra.mxu0 %v3589
    %7944 = vmatprep.subr.bf16.mxu0 %v3600
    %7945 = vmatpush1.bf16.msra.mxu0 %v3599
    %7946 = vmatprep.subr.bf16.mxu0 %v3610
    %7947 = vmatpush1.bf16.msra.mxu0 %v3609
    %7948 = vmatprep.subr.bf16.mxu0 %v3620
    %7949 = vmatpush1.bf16.msra.mxu0 %v3619
    %7950 = vmatprep.subr.bf16.mxu0 %v3630
    %7951 = vmatpush1.bf16.msra.mxu0 %v3629
    %7952 = vmatprep.subr.bf16.mxu0 %v3640
    %7953 = vmatpush1.bf16.msra.mxu0 %v3639
    %7954 = vmatprep.subr.bf16.mxu0 %v3650
    %7955 = vmatpush1.bf16.msra.mxu0 %v3649
    %7956 = vmatprep.subr.bf16.mxu0 %v3660
    %7957 = vmatpush1.bf16.msra.mxu0 %v3659
    %7958 = vmatprep.subr.bf16.mxu0 %v3670
    %7959 = vmatpush1.bf16.msra.mxu0 %v3669
    %7960 = vmatprep.subr.bf16.mxu0 %v3680
    %7961 = vmatpush1.bf16.msra.mxu0 %v3679
    %7962 = vmatprep.subr.bf16.mxu0 %v3690
    %7963 = vmatpush1.bf16.msra.mxu0 %v3689
    %7964 = vmatprep.mubr.bf16.mxu0 %v1198
    %7965 = vmatmul.mubr.bf16.gmra.mrb[0].mxu0 %v1197
    %v7966 = vpop.f32.mrb[0].mxu0
    %v7967 = vadd.f32 %v7774, %v7966
    %v7968 = vpop.f32.mrb[0].mxu0
    %v7969 = vadd.f32 %v7776, %v7968
    %v7970 = vpop.f32.mrb[0].mxu0
    %v7971 = vadd.f32 %v7778, %v7970
    %v7972 = vpop.f32.mrb[0].mxu0
    %v7973 = vadd.f32 %v7780, %v7972
    %7974 = vmatprep.mubr.bf16.mxu0 %v1206
    %7975 = vmatmul.mubr.bf16.gmra.mrb[0].mxu0 %v1205
    %v7976 = vpop.f32.mrb[0].mxu0
    %v7977 = vadd.f32 %v7784, %v7976
    %v7978 = vpop.f32.mrb[0].mxu0
    %v7979 = vadd.f32 %v7786, %v7978
    %v7980 = vpop.f32.mrb[0].mxu0
    %v7981 = vadd.f32 %v7788, %v7980
    %v7982 = vpop.f32.mrb[0].mxu0
    %v7983 = vadd.f32 %v7790, %v7982
    %7984 = vmatprep.mubr.bf16.mxu0 %v1214
    %7985 = vmatmul.mubr.bf16.gmra.mrb[0].mxu0 %v1213
    %v7986 = vpop.f32.mrb[0].mxu0
    %v7987 = vadd.f32 %v7794, %v7986
    %v7988 = vpop.f32.mrb[0].mxu0
    %v7989 = vadd.f32 %v7796, %v7988
    %v7990 = vpop.f32.mrb[0].mxu0
    %v7991 = vadd.f32 %v7798, %v7990
    %v7992 = vpop.f32.mrb[0].mxu0
    %v7993 = vadd.f32 %v7800, %v7992
    %7994 = vmatprep.mubr.bf16.mxu0 %v1222
    %7995 = vmatmul.mubr.bf16.gmra.mrb[0].mxu0 %v1221
    %v7996 = vpop.f32.mrb[0].mxu0
    %v7997 = vadd.f32 %v7804, %v7996
    %v7998 = vpop.f32.mrb[0].mxu0
    %v7999 = vadd.f32 %v7806, %v7998
    %v8000 = vpop.f32.mrb[0].mxu0
    %v8001 = vadd.f32 %v7808, %v8000
    %v8002 = vpop.f32.mrb[0].mxu0
    %v8003 = vadd.f32 %v7810, %v8002
    %8004 = vmatprep.mubr.bf16.mxu0 %v1230
    %8005 = vmatmul.mubr.bf16.gmra.mrb[0].mxu0 %v1229
    %v8006 = vpop.f32.mrb[0].mxu0
    %v8007 = vadd.f32 %v7814, %v8006
    %v8008 = vpop.f32.mrb[0].mxu0
    %v8009 = vadd.f32 %v7816, %v8008
    %v8010 = vpop.f32.mrb[0].mxu0
    %v8011 = vadd.f32 %v7818, %v8010
    %v8012 = vpop.f32.mrb[0].mxu0
    %v8013 = vadd.f32 %v7820, %v8012
    %8014 = vmatprep.mubr.bf16.mxu0 %v1238
    %8015 = vmatmul.mubr.bf16.gmra.mrb[0].mxu0 %v1237
    %v8016 = vpop.f32.mrb[0].mxu0
    %v8017 = vadd.f32 %v7824, %v8016
    %v8018 = vpop.f32.mrb[0].mxu0
    %v8019 = vadd.f32 %v7826, %v8018
    %v8020 = vpop.f32.mrb[0].mxu0
    %v8021 = vadd.f32 %v7828, %v8020
    %v8022 = vpop.f32.mrb[0].mxu0
    %v8023 = vadd.f32 %v7830, %v8022
    %8024 = vmatprep.mubr.bf16.mxu0 %v1246
    %8025 = vmatmul.mubr.bf16.gmra.mrb[0].mxu0 %v1245
    %v8026 = vpop.f32.mrb[0].mxu0
    %v8027 = vadd.f32 %v7834, %v8026
    %v8028 = vpop.f32.mrb[0].mxu0
    %v8029 = vadd.f32 %v7836, %v8028
    %v8030 = vpop.f32.mrb[0].mxu0
    %v8031 = vadd.f32 %v7838, %v8030
    %v8032 = vpop.f32.mrb[0].mxu0
    %v8033 = vadd.f32 %v7840, %v8032
    %8034 = vmatprep.mubr.bf16.mxu0 %v1254
    %8035 = vmatmul.mubr.bf16.gmra.mrb[0].mxu0 %v1253
    %v8036 = vpop.f32.mrb[0].mxu0
    %v8037 = vadd.f32 %v7844, %v8036
    %v8038 = vpop.f32.mrb[0].mxu0
    %v8039 = vadd.f32 %v7846, %v8038
    %v8040 = vpop.f32.mrb[0].mxu0
    %v8041 = vadd.f32 %v7848, %v8040
    %v8042 = vpop.f32.mrb[0].mxu0
    %v8043 = vadd.f32 %v7850, %v8042
    %8044 = vmatprep.mubr.bf16.mxu0 %v1262
    %8045 = vmatmul.mubr.bf16.gmra.mrb[0].mxu0 %v1261
    %v8046 = vpop.f32.mrb[0].mxu0
    %v8047 = vadd.f32 %v7854, %v8046
    %v8048 = vpop.f32.mrb[0].mxu0
    %v8049 = vadd.f32 %v7856, %v8048
    %v8050 = vpop.f32.mrb[0].mxu0
    %v8051 = vadd.f32 %v7858, %v8050
    %v8052 = vpop.f32.mrb[0].mxu0
    %v8053 = vadd.f32 %v7860, %v8052
    %8054 = vmatprep.mubr.bf16.mxu0 %v1270
    %8055 = vmatmul.mubr.bf16.gmra.mrb[0].mxu0 %v1269
    %v8056 = vpop.f32.mrb[0].mxu0
    %v8057 = vadd.f32 %v7864, %v8056
    %v8058 = vpop.f32.mrb[0].mxu0
    %v8059 = vadd.f32 %v7866, %v8058
    %v8060 = vpop.f32.mrb[0].mxu0
    %v8061 = vadd.f32 %v7868, %v8060
    %v8062 = vpop.f32.mrb[0].mxu0
    %v8063 = vadd.f32 %v7870, %v8062
    %8064 = vmatprep.mubr.bf16.mxu0 %v1278
    %8065 = vmatmul.mubr.bf16.gmra.mrb[0].mxu0 %v1277
    %v8066 = vpop.f32.mrb[0].mxu0
    %v8067 = vadd.f32 %v7874, %v8066
    %v8068 = vpop.f32.mrb[0].mxu0
    %v8069 = vadd.f32 %v7876, %v8068
    %v8070 = vpop.f32.mrb[0].mxu0
    %v8071 = vadd.f32 %v7878, %v8070
    %v8072 = vpop.f32.mrb[0].mxu0
    %v8073 = vadd.f32 %v7880, %v8072
    %8074 = vmatprep.mubr.bf16.mxu0 %v1286
    %8075 = vmatmul.mubr.bf16.gmra.mrb[0].mxu0 %v1285
    %v8076 = vpop.f32.mrb[0].mxu0
    %v8077 = vadd.f32 %v7884, %v8076
    %v8078 = vpop.f32.mrb[0].mxu0
    %v8079 = vadd.f32 %v7886, %v8078
    %v8080 = vpop.f32.mrb[0].mxu0
    %v8081 = vadd.f32 %v7888, %v8080
    %v8082 = vpop.f32.mrb[0].mxu0
    %v8083 = vadd.f32 %v7890, %v8082
    %8084 = vmatprep.mubr.bf16.mxu0 %v1294
    %8085 = vmatmul.mubr.bf16.gmra.mrb[0].mxu0 %v1293
    %v8086 = vpop.f32.mrb[0].mxu0
    %v8087 = vadd.f32 %v7894, %v8086
    %v8088 = vpop.f32.mrb[0].mxu0
    %v8089 = vadd.f32 %v7896, %v8088
    %v8090 = vpop.f32.mrb[0].mxu0
    %v8091 = vadd.f32 %v7898, %v8090
    %v8092 = vpop.f32.mrb[0].mxu0
    %v8093 = vadd.f32 %v7900, %v8092
    %8094 = vmatprep.mubr.bf16.mxu0 %v1302
    %8095 = vmatmul.mubr.bf16.gmra.mrb[0].mxu0 %v1301
    %v8096 = vpop.f32.mrb[0].mxu0
    %v8097 = vadd.f32 %v7904, %v8096
    %v8098 = vpop.f32.mrb[0].mxu0
    %v8099 = vadd.f32 %v7906, %v8098
    %v8100 = vpop.f32.mrb[0].mxu0
    %v8101 = vadd.f32 %v7908, %v8100
    %v8102 = vpop.f32.mrb[0].mxu0
    %v8103 = vadd.f32 %v7910, %v8102
    %8104 = vmatprep.mubr.bf16.mxu0 %v1310
    %8105 = vmatmul.mubr.bf16.gmra.mrb[0].mxu0 %v1309
    %v8106 = vpop.f32.mrb[0].mxu0
    %v8107 = vadd.f32 %v7914, %v8106
    %v8108 = vpop.f32.mrb[0].mxu0
    %v8109 = vadd.f32 %v7916, %v8108
    %v8110 = vpop.f32.mrb[0].mxu0
    %v8111 = vadd.f32 %v7918, %v8110
    %v8112 = vpop.f32.mrb[0].mxu0
    %v8113 = vadd.f32 %v7920, %v8112
    %8114 = vmatprep.mubr.bf16.mxu0 %v1318
    %8115 = vmatmul.mubr.bf16.gmra.mrb[0].mxu0 %v1317
    %v8116 = vpop.f32.mrb[0].mxu0
    %v8117 = vadd.f32 %v7924, %v8116
    %v8118 = vpop.f32.mrb[0].mxu0
    %v8119 = vadd.f32 %v7926, %v8118
    %v8120 = vpop.f32.mrb[0].mxu0
    %v8121 = vadd.f32 %v7928, %v8120
    %v8122 = vpop.f32.mrb[0].mxu0
    %v8123 = vadd.f32 %v7930, %v8122
    %8124 = vdwg.mxu0
    %8125 = vmatprep.subr.bf16.mxu0 %v3700
    %8126 = vmatpush1.bf16.msra.mxu0 %v3699
    %8127 = vmatprep.subr.bf16.mxu0 %v3710
    %8128 = vmatpush1.bf16.msra.mxu0 %v3709
    %8129 = vmatprep.subr.bf16.mxu0 %v3720
    %8130 = vmatpush1.bf16.msra.mxu0 %v3719
    %8131 = vmatprep.subr.bf16.mxu0 %v3730
    %8132 = vmatpush1.bf16.msra.mxu0 %v3729
    %8133 = vmatprep.subr.bf16.mxu0 %v3740
    %8134 = vmatpush1.bf16.msra.mxu0 %v3739
    %8135 = vmatprep.subr.bf16.mxu0 %v3750
    %8136 = vmatpush1.bf16.msra.mxu0 %v3749
    %8137 = vmatprep.subr.bf16.mxu0 %v3760
    %8138 = vmatpush1.bf16.msra.mxu0 %v3759
    %8139 = vmatprep.subr.bf16.mxu0 %v3770
    %8140 = vmatpush1.bf16.msra.mxu0 %v3769
    %8141 = vmatprep.subr.bf16.mxu0 %v3780
    %8142 = vmatpush1.bf16.msra.mxu0 %v3779
    %8143 = vmatprep.subr.bf16.mxu0 %v3790
    %8144 = vmatpush1.bf16.msra.mxu0 %v3789
    %8145 = vmatprep.subr.bf16.mxu0 %v3800
    %8146 = vmatpush1.bf16.msra.mxu0 %v3799
    %8147 = vmatprep.subr.bf16.mxu0 %v3810
    %8148 = vmatpush1.bf16.msra.mxu0 %v3809
    %8149 = vmatprep.subr.bf16.mxu0 %v3820
    %8150 = vmatpush1.bf16.msra.mxu0 %v3819
    %8151 = vmatprep.subr.bf16.mxu0 %v3830
    %8152 = vmatpush1.bf16.msra.mxu0 %v3829
    %8153 = vmatprep.subr.bf16.mxu0 %v3840
    %8154 = vmatpush1.bf16.msra.mxu0 %v3839
    %8155 = vmatprep.subr.bf16.mxu0 %v3850
    %8156 = vmatpush1.bf16.msra.mxu0 %v3849
    %8157 = vmatprep.mubr.bf16.mxu0 %v1200
    %8158 = vmatmul.mubr.bf16.gmra.mrb[0].mxu0 %v1199
    %v8159 = vpop.f32.mrb[0].mxu0
    %v8160 = vadd.f32 %v7967, %v8159
    %v8161 = vpop.f32.mrb[0].mxu0
    %v8162 = vadd.f32 %v7969, %v8161
    %v8163 = vpop.f32.mrb[0].mxu0
    %v8164 = vadd.f32 %v7971, %v8163
    %v8165 = vpop.f32.mrb[0].mxu0
    %v8166 = vadd.f32 %v7973, %v8165
    %8167 = vmatprep.mubr.bf16.mxu0 %v1208
    %8168 = vmatmul.mubr.bf16.gmra.mrb[0].mxu0 %v1207
    %v8169 = vpop.f32.mrb[0].mxu0
    %v8170 = vadd.f32 %v7977, %v8169
    %v8171 = vpop.f32.mrb[0].mxu0
    %v8172 = vadd.f32 %v7979, %v8171
    %v8173 = vpop.f32.mrb[0].mxu0
    %v8174 = vadd.f32 %v7981, %v8173
    %v8175 = vpop.f32.mrb[0].mxu0
    %v8176 = vadd.f32 %v7983, %v8175
    %8177 = vmatprep.mubr.bf16.mxu0 %v1216
    %8178 = vmatmul.mubr.bf16.gmra.mrb[0].mxu0 %v1215
    %v8179 = vpop.f32.mrb[0].mxu0
    %v8180 = vadd.f32 %v7987, %v8179
    %v8181 = vpop.f32.mrb[0].mxu0
    %v8182 = vadd.f32 %v7989, %v8181
    %v8183 = vpop.f32.mrb[0].mxu0
    %v8184 = vadd.f32 %v7991, %v8183
    %v8185 = vpop.f32.mrb[0].mxu0
    %v8186 = vadd.f32 %v7993, %v8185
    %8187 = vmatprep.mubr.bf16.mxu0 %v1224
    %8188 = vmatmul.mubr.bf16.gmra.mrb[0].mxu0 %v1223
    %v8189 = vpop.f32.mrb[0].mxu0
    %v8190 = vadd.f32 %v7997, %v8189
    %v8191 = vpop.f32.mrb[0].mxu0
    %v8192 = vadd.f32 %v7999, %v8191
    %v8193 = vpop.f32.mrb[0].mxu0
    %v8194 = vadd.f32 %v8001, %v8193
    %v8195 = vpop.f32.mrb[0].mxu0
    %v8196 = vadd.f32 %v8003, %v8195
    %8197 = vmatprep.mubr.bf16.mxu0 %v1232
    %8198 = vmatmul.mubr.bf16.gmra.mrb[0].mxu0 %v1231
    %v8199 = vpop.f32.mrb[0].mxu0
    %v8200 = vadd.f32 %v8007, %v8199
    %v8201 = vpop.f32.mrb[0].mxu0
    %v8202 = vadd.f32 %v8009, %v8201
    %v8203 = vpop.f32.mrb[0].mxu0
    %v8204 = vadd.f32 %v8011, %v8203
    %v8205 = vpop.f32.mrb[0].mxu0
    %v8206 = vadd.f32 %v8013, %v8205
    %8207 = vmatprep.mubr.bf16.mxu0 %v1240
    %8208 = vmatmul.mubr.bf16.gmra.mrb[0].mxu0 %v1239
    %v8209 = vpop.f32.mrb[0].mxu0
    %v8210 = vadd.f32 %v8017, %v8209
    %v8211 = vpop.f32.mrb[0].mxu0
    %v8212 = vadd.f32 %v8019, %v8211
    %v8213 = vpop.f32.mrb[0].mxu0
    %v8214 = vadd.f32 %v8021, %v8213
    %v8215 = vpop.f32.mrb[0].mxu0
    %v8216 = vadd.f32 %v8023, %v8215
    %8217 = vmatprep.mubr.bf16.mxu0 %v1248
    %8218 = vmatmul.mubr.bf16.gmra.mrb[0].mxu0 %v1247
    %v8219 = vpop.f32.mrb[0].mxu0
    %v8220 = vadd.f32 %v8027, %v8219
    %v8221 = vpop.f32.mrb[0].mxu0
    %v8222 = vadd.f32 %v8029, %v8221
    %v8223 = vpop.f32.mrb[0].mxu0
    %v8224 = vadd.f32 %v8031, %v8223
    %v8225 = vpop.f32.mrb[0].mxu0
    %v8226 = vadd.f32 %v8033, %v8225
    %8227 = vmatprep.mubr.bf16.mxu0 %v1256
    %8228 = vmatmul.mubr.bf16.gmra.mrb[0].mxu0 %v1255
    %v8229 = vpop.f32.mrb[0].mxu0
    %v8230 = vadd.f32 %v8037, %v8229
    %v8231 = vpop.f32.mrb[0].mxu0
    %v8232 = vadd.f32 %v8039, %v8231
    %v8233 = vpop.f32.mrb[0].mxu0
    %v8234 = vadd.f32 %v8041, %v8233
    %v8235 = vpop.f32.mrb[0].mxu0
    %v8236 = vadd.f32 %v8043, %v8235
    %8237 = vmatprep.mubr.bf16.mxu0 %v1264
    %8238 = vmatmul.mubr.bf16.gmra.mrb[0].mxu0 %v1263
    %v8239 = vpop.f32.mrb[0].mxu0
    %v8240 = vadd.f32 %v8047, %v8239
    %v8241 = vpop.f32.mrb[0].mxu0
    %v8242 = vadd.f32 %v8049, %v8241
    %v8243 = vpop.f32.mrb[0].mxu0
    %v8244 = vadd.f32 %v8051, %v8243
    %v8245 = vpop.f32.mrb[0].mxu0
    %v8246 = vadd.f32 %v8053, %v8245
    %8247 = vmatprep.mubr.bf16.mxu0 %v1272
    %8248 = vmatmul.mubr.bf16.gmra.mrb[0].mxu0 %v1271
    %v8249 = vpop.f32.mrb[0].mxu0
    %v8250 = vadd.f32 %v8057, %v8249
    %v8251 = vpop.f32.mrb[0].mxu0
    %v8252 = vadd.f32 %v8059, %v8251
    %v8253 = vpop.f32.mrb[0].mxu0
    %v8254 = vadd.f32 %v8061, %v8253
    %v8255 = vpop.f32.mrb[0].mxu0
    %v8256 = vadd.f32 %v8063, %v8255
    %8257 = vmatprep.mubr.bf16.mxu0 %v1280
    %8258 = vmatmul.mubr.bf16.gmra.mrb[0].mxu0 %v1279
    %v8259 = vpop.f32.mrb[0].mxu0
    %v8260 = vadd.f32 %v8067, %v8259
    %v8261 = vpop.f32.mrb[0].mxu0
    %v8262 = vadd.f32 %v8069, %v8261
    %v8263 = vpop.f32.mrb[0].mxu0
    %v8264 = vadd.f32 %v8071, %v8263
    %v8265 = vpop.f32.mrb[0].mxu0
    %v8266 = vadd.f32 %v8073, %v8265
    %8267 = vmatprep.mubr.bf16.mxu0 %v1288
    %8268 = vmatmul.mubr.bf16.gmra.mrb[0].mxu0 %v1287
    %v8269 = vpop.f32.mrb[0].mxu0
    %v8270 = vadd.f32 %v8077, %v8269
    %v8271 = vpop.f32.mrb[0].mxu0
    %v8272 = vadd.f32 %v8079, %v8271
    %v8273 = vpop.f32.mrb[0].mxu0
    %v8274 = vadd.f32 %v8081, %v8273
    %v8275 = vpop.f32.mrb[0].mxu0
    %v8276 = vadd.f32 %v8083, %v8275
    %8277 = vmatprep.mubr.bf16.mxu0 %v1296
    %8278 = vmatmul.mubr.bf16.gmra.mrb[0].mxu0 %v1295
    %v8279 = vpop.f32.mrb[0].mxu0
    %v8280 = vadd.f32 %v8087, %v8279
    %v8281 = vpop.f32.mrb[0].mxu0
    %v8282 = vadd.f32 %v8089, %v8281
    %v8283 = vpop.f32.mrb[0].mxu0
    %v8284 = vadd.f32 %v8091, %v8283
    %v8285 = vpop.f32.mrb[0].mxu0
    %v8286 = vadd.f32 %v8093, %v8285
    %8287 = vmatprep.mubr.bf16.mxu0 %v1304
    %8288 = vmatmul.mubr.bf16.gmra.mrb[0].mxu0 %v1303
    %v8289 = vpop.f32.mrb[0].mxu0
    %v8290 = vadd.f32 %v8097, %v8289
    %v8291 = vpop.f32.mrb[0].mxu0
    %v8292 = vadd.f32 %v8099, %v8291
    %v8293 = vpop.f32.mrb[0].mxu0
    %v8294 = vadd.f32 %v8101, %v8293
    %v8295 = vpop.f32.mrb[0].mxu0
    %v8296 = vadd.f32 %v8103, %v8295
    %8297 = vmatprep.mubr.bf16.mxu0 %v1312
    %8298 = vmatmul.mubr.bf16.gmra.mrb[0].mxu0 %v1311
    %v8299 = vpop.f32.mrb[0].mxu0
    %v8300 = vadd.f32 %v8107, %v8299
    %v8301 = vpop.f32.mrb[0].mxu0
    %v8302 = vadd.f32 %v8109, %v8301
    %v8303 = vpop.f32.mrb[0].mxu0
    %v8304 = vadd.f32 %v8111, %v8303
    %v8305 = vpop.f32.mrb[0].mxu0
    %v8306 = vadd.f32 %v8113, %v8305
    %8307 = vmatprep.mubr.bf16.mxu0 %v1320
    %8308 = vmatmul.mubr.bf16.gmra.mrb[0].mxu0 %v1319
    %v8309 = vpop.f32.mrb[0].mxu0
    %v8310 = vadd.f32 %v8117, %v8309
    %v8311 = vpop.f32.mrb[0].mxu0
    %v8312 = vadd.f32 %v8119, %v8311
    %v8313 = vpop.f32.mrb[0].mxu0
    %v8314 = vadd.f32 %v8121, %v8313
    %v8315 = vpop.f32.mrb[0].mxu0
    %v8316 = vadd.f32 %v8123, %v8315
    %8317 = vdwg.mxu0
    %8318 = vmatprep.subr.bf16.mxu0 %v3860
    %8319 = vmatpush1.bf16.msra.mxu0 %v3859
    %8320 = vmatprep.subr.bf16.mxu0 %v3870
    %8321 = vmatpush1.bf16.msra.mxu0 %v3869
    %8322 = vmatprep.subr.bf16.mxu0 %v3880
    %8323 = vmatpush1.bf16.msra.mxu0 %v3879
    %8324 = vmatprep.subr.bf16.mxu0 %v3890
    %8325 = vmatpush1.bf16.msra.mxu0 %v3889
    %8326 = vmatprep.subr.bf16.mxu0 %v3900
    %8327 = vmatpush1.bf16.msra.mxu0 %v3899
    %8328 = vmatprep.subr.bf16.mxu0 %v3910
    %8329 = vmatpush1.bf16.msra.mxu0 %v3909
    %8330 = vmatprep.subr.bf16.mxu0 %v3920
    %8331 = vmatpush1.bf16.msra.mxu0 %v3919
    %8332 = vmatprep.subr.bf16.mxu0 %v3930
    %8333 = vmatpush1.bf16.msra.mxu0 %v3929
    %8334 = vmatprep.subr.bf16.mxu0 %v3940
    %8335 = vmatpush1.bf16.msra.mxu0 %v3939
    %8336 = vmatprep.subr.bf16.mxu0 %v3950
    %8337 = vmatpush1.bf16.msra.mxu0 %v3949
    %8338 = vmatprep.subr.bf16.mxu0 %v3960
    %8339 = vmatpush1.bf16.msra.mxu0 %v3959
    %8340 = vmatprep.subr.bf16.mxu0 %v3970
    %8341 = vmatpush1.bf16.msra.mxu0 %v3969
    %8342 = vmatprep.subr.bf16.mxu0 %v3980
    %8343 = vmatpush1.bf16.msra.mxu0 %v3979
    %8344 = vmatprep.subr.bf16.mxu0 %v3990
    %8345 = vmatpush1.bf16.msra.mxu0 %v3989
    %8346 = vmatprep.subr.bf16.mxu0 %v4000
    %8347 = vmatpush1.bf16.msra.mxu0 %v3999
    %8348 = vmatprep.subr.bf16.mxu0 %v4010
    %8349 = vmatpush1.bf16.msra.mxu0 %v4009
    %8350 = vmatprep.mubr.bf16.mxu0 %v1202
    %8351 = vmatmul.mubr.bf16.gmra.mrb[0].mxu0 %v1201
    %v8352 = vpop.f32.mrb[0].mxu0
    %v8353 = vadd.f32 %v8160, %v8352
    %v8354 = vpop.f32.mrb[0].mxu0
    %v8355 = vadd.f32 %v8162, %v8354
    %v8356 = vpop.f32.mrb[0].mxu0
    %v8357 = vadd.f32 %v8164, %v8356
    %v8358 = vpop.f32.mrb[0].mxu0
    %v8359 = vadd.f32 %v8166, %v8358
    %8360 = vmatprep.mubr.bf16.mxu0 %v1210
    %8361 = vmatmul.mubr.bf16.gmra.mrb[0].mxu0 %v1209
    %v8362 = vpop.f32.mrb[0].mxu0
    %v8363 = vadd.f32 %v8170, %v8362
    %v8364 = vpop.f32.mrb[0].mxu0
    %v8365 = vadd.f32 %v8172, %v8364
    %v8366 = vpop.f32.mrb[0].mxu0
    %v8367 = vadd.f32 %v8174, %v8366
    %v8368 = vpop.f32.mrb[0].mxu0
    %v8369 = vadd.f32 %v8176, %v8368
    %8370 = vmatprep.mubr.bf16.mxu0 %v1218
    %8371 = vmatmul.mubr.bf16.gmra.mrb[0].mxu0 %v1217
    %v8372 = vpop.f32.mrb[0].mxu0
    %v8373 = vadd.f32 %v8180, %v8372
    %v8374 = vpop.f32.mrb[0].mxu0
    %v8375 = vadd.f32 %v8182, %v8374
    %v8376 = vpop.f32.mrb[0].mxu0
    %v8377 = vadd.f32 %v8184, %v8376
    %v8378 = vpop.f32.mrb[0].mxu0
    %v8379 = vadd.f32 %v8186, %v8378
    %8380 = vmatprep.mubr.bf16.mxu0 %v1226
    %8381 = vmatmul.mubr.bf16.gmra.mrb[0].mxu0 %v1225
    %v8382 = vpop.f32.mrb[0].mxu0
    %v8383 = vadd.f32 %v8190, %v8382
    %v8384 = vpop.f32.mrb[0].mxu0
    %v8385 = vadd.f32 %v8192, %v8384
    %v8386 = vpop.f32.mrb[0].mxu0
    %v8387 = vadd.f32 %v8194, %v8386
    %v8388 = vpop.f32.mrb[0].mxu0
    %v8389 = vadd.f32 %v8196, %v8388
    %8390 = vmatprep.mubr.bf16.mxu0 %v1234
    %8391 = vmatmul.mubr.bf16.gmra.mrb[0].mxu0 %v1233
    %v8392 = vpop.f32.mrb[0].mxu0
    %v8393 = vadd.f32 %v8200, %v8392
    %v8394 = vpop.f32.mrb[0].mxu0
    %v8395 = vadd.f32 %v8202, %v8394
    %v8396 = vpop.f32.mrb[0].mxu0
    %v8397 = vadd.f32 %v8204, %v8396
    %v8398 = vpop.f32.mrb[0].mxu0
    %v8399 = vadd.f32 %v8206, %v8398
    %8400 = vmatprep.mubr.bf16.mxu0 %v1242
    %8401 = vmatmul.mubr.bf16.gmra.mrb[0].mxu0 %v1241
    %v8402 = vpop.f32.mrb[0].mxu0
    %v8403 = vadd.f32 %v8210, %v8402
    %v8404 = vpop.f32.mrb[0].mxu0
    %v8405 = vadd.f32 %v8212, %v8404
    %v8406 = vpop.f32.mrb[0].mxu0
    %v8407 = vadd.f32 %v8214, %v8406
    %v8408 = vpop.f32.mrb[0].mxu0
    %v8409 = vadd.f32 %v8216, %v8408
    %8410 = vmatprep.mubr.bf16.mxu0 %v1250
    %8411 = vmatmul.mubr.bf16.gmra.mrb[0].mxu0 %v1249
    %v8412 = vpop.f32.mrb[0].mxu0
    %v8413 = vadd.f32 %v8220, %v8412
    %v8414 = vpop.f32.mrb[0].mxu0
    %v8415 = vadd.f32 %v8222, %v8414
    %v8416 = vpop.f32.mrb[0].mxu0
    %v8417 = vadd.f32 %v8224, %v8416
    %v8418 = vpop.f32.mrb[0].mxu0
    %v8419 = vadd.f32 %v8226, %v8418
    %8420 = vmatprep.mubr.bf16.mxu0 %v1258
    %8421 = vmatmul.mubr.bf16.gmra.mrb[0].mxu0 %v1257
    %v8422 = vpop.f32.mrb[0].mxu0
    %v8423 = vadd.f32 %v8230, %v8422
    %v8424 = vpop.f32.mrb[0].mxu0
    %v8425 = vadd.f32 %v8232, %v8424
    %v8426 = vpop.f32.mrb[0].mxu0
    %v8427 = vadd.f32 %v8234, %v8426
    %v8428 = vpop.f32.mrb[0].mxu0
    %v8429 = vadd.f32 %v8236, %v8428
    %8430 = vmatprep.mubr.bf16.mxu0 %v1266
    %8431 = vmatmul.mubr.bf16.gmra.mrb[0].mxu0 %v1265
    %v8432 = vpop.f32.mrb[0].mxu0
    %v8433 = vadd.f32 %v8240, %v8432
    %v8434 = vpop.f32.mrb[0].mxu0
    %v8435 = vadd.f32 %v8242, %v8434
    %v8436 = vpop.f32.mrb[0].mxu0
    %v8437 = vadd.f32 %v8244, %v8436
    %v8438 = vpop.f32.mrb[0].mxu0
    %v8439 = vadd.f32 %v8246, %v8438
    %8440 = vmatprep.mubr.bf16.mxu0 %v1274
    %8441 = vmatmul.mubr.bf16.gmra.mrb[0].mxu0 %v1273
    %v8442 = vpop.f32.mrb[0].mxu0
    %v8443 = vadd.f32 %v8250, %v8442
    %v8444 = vpop.f32.mrb[0].mxu0
    %v8445 = vadd.f32 %v8252, %v8444
    %v8446 = vpop.f32.mrb[0].mxu0
    %v8447 = vadd.f32 %v8254, %v8446
    %v8448 = vpop.f32.mrb[0].mxu0
    %v8449 = vadd.f32 %v8256, %v8448
    %8450 = vmatprep.mubr.bf16.mxu0 %v1282
    %8451 = vmatmul.mubr.bf16.gmra.mrb[0].mxu0 %v1281
    %v8452 = vpop.f32.mrb[0].mxu0
    %v8453 = vadd.f32 %v8260, %v8452
    %v8454 = vpop.f32.mrb[0].mxu0
    %v8455 = vadd.f32 %v8262, %v8454
    %v8456 = vpop.f32.mrb[0].mxu0
    %v8457 = vadd.f32 %v8264, %v8456
    %v8458 = vpop.f32.mrb[0].mxu0
    %v8459 = vadd.f32 %v8266, %v8458
    %8460 = vmatprep.mubr.bf16.mxu0 %v1290
    %8461 = vmatmul.mubr.bf16.gmra.mrb[0].mxu0 %v1289
    %v8462 = vpop.f32.mrb[0].mxu0
    %v8463 = vadd.f32 %v8270, %v8462
    %v8464 = vpop.f32.mrb[0].mxu0
    %v8465 = vadd.f32 %v8272, %v8464
    %v8466 = vpop.f32.mrb[0].mxu0
    %v8467 = vadd.f32 %v8274, %v8466
    %v8468 = vpop.f32.mrb[0].mxu0
    %v8469 = vadd.f32 %v8276, %v8468
    %8470 = vmatprep.mubr.bf16.mxu0 %v1298
    %8471 = vmatmul.mubr.bf16.gmra.mrb[0].mxu0 %v1297
    %v8472 = vpop.f32.mrb[0].mxu0
    %v8473 = vadd.f32 %v8280, %v8472
    %v8474 = vpop.f32.mrb[0].mxu0
    %v8475 = vadd.f32 %v8282, %v8474
    %v8476 = vpop.f32.mrb[0].mxu0
    %v8477 = vadd.f32 %v8284, %v8476
    %v8478 = vpop.f32.mrb[0].mxu0
    %v8479 = vadd.f32 %v8286, %v8478
    %8480 = vmatprep.mubr.bf16.mxu0 %v1306
    %8481 = vmatmul.mubr.bf16.gmra.mrb[0].mxu0 %v1305
    %v8482 = vpop.f32.mrb[0].mxu0
    %v8483 = vadd.f32 %v8290, %v8482
    %v8484 = vpop.f32.mrb[0].mxu0
    %v8485 = vadd.f32 %v8292, %v8484
    %v8486 = vpop.f32.mrb[0].mxu0
    %v8487 = vadd.f32 %v8294, %v8486
    %v8488 = vpop.f32.mrb[0].mxu0
    %v8489 = vadd.f32 %v8296, %v8488
    %8490 = vmatprep.mubr.bf16.mxu0 %v1314
    %8491 = vmatmul.mubr.bf16.gmra.mrb[0].mxu0 %v1313
    %v8492 = vpop.f32.mrb[0].mxu0
    %v8493 = vadd.f32 %v8300, %v8492
    %v8494 = vpop.f32.mrb[0].mxu0
    %v8495 = vadd.f32 %v8302, %v8494
    %v8496 = vpop.f32.mrb[0].mxu0
    %v8497 = vadd.f32 %v8304, %v8496
    %v8498 = vpop.f32.mrb[0].mxu0
    %v8499 = vadd.f32 %v8306, %v8498
    %8500 = vmatprep.mubr.bf16.mxu0 %v1322
    %8501 = vmatmul.mubr.bf16.gmra.mrb[0].mxu0 %v1321
    %v8502 = vpop.f32.mrb[0].mxu0
    %v8503 = vadd.f32 %v8310, %v8502
    %v8504 = vpop.f32.mrb[0].mxu0
    %v8505 = vadd.f32 %v8312, %v8504
    %v8506 = vpop.f32.mrb[0].mxu0
    %v8507 = vadd.f32 %v8314, %v8506
    %v8508 = vpop.f32.mrb[0].mxu0
    %v8509 = vadd.f32 %v8316, %v8508
    %8510 = vdwg.mxu0
    %v8511 = vmul.f32 %v5265, %v5265
    %v8512 = vmul.f32 %v5267, %v5267
    %v8513 = vmul.f32 %v6037, %v6037
    %v8514 = vmul.f32 %v6039, %v6039
    %v8515 = vmul.f32 %v6809, %v6809
    %v8516 = vmul.f32 %v5269, %v5269
    %v8517 = vmul.f32 %v5271, %v5271
    %v8518 = vmul.f32 %v6041, %v6041
    %v8519 = vmul.f32 %v6043, %v6043
    %v8520 = vmul.f32 %v6813, %v6813
    %v8521 = vmul.f32 %v5275, %v5275
    %v8522 = vmul.f32 %v5277, %v5277
    %v8523 = vmul.f32 %v6047, %v6047
    %v8524 = vmul.f32 %v6049, %v6049
    %v8525 = vmul.f32 %v6819, %v6819
    %v8526 = vmul.f32 %v5279, %v5279
    %v8527 = vmul.f32 %v5281, %v5281
    %v8528 = vmul.f32 %v6051, %v6051
    %v8529 = vmul.f32 %v6053, %v6053
    %v8530 = vmul.f32 %v6823, %v6823
    %v8531 = vmul.f32 %v5285, %v5285
    %v8532 = vmul.f32 %v5287, %v5287
    %v8533 = vmul.f32 %v6057, %v6057
    %v8534 = vmul.f32 %v6059, %v6059
    %v8535 = vmul.f32 %v6829, %v6829
    %v8536 = vmul.f32 %v5289, %v5289
    %v8537 = vmul.f32 %v5291, %v5291
    %v8538 = vmul.f32 %v6061, %v6061
    %v8539 = vmul.f32 %v6063, %v6063
    %v8540 = vmul.f32 %v6833, %v6833
    %v8541 = vmul.f32 %v5295, %v5295
    %v8542 = vmul.f32 %v5297, %v5297
    %v8543 = vmul.f32 %v6067, %v6067
    %v8544 = vmul.f32 %v6069, %v6069
    %v8545 = vmul.f32 %v6839, %v6839
    %v8546 = vmul.f32 %v5299, %v5299
    %v8547 = vmul.f32 %v5301, %v5301
    %v8548 = vmul.f32 %v6071, %v6071
    %v8549 = vmul.f32 %v6073, %v6073
    %v8550 = vmul.f32 %v6843, %v6843
    %v8551 = vmul.f32 %v5305, %v5305
    %v8552 = vmul.f32 %v5307, %v5307
    %v8553 = vmul.f32 %v6077, %v6077
    %v8554 = vmul.f32 %v6079, %v6079
    %v8555 = vmul.f32 %v6849, %v6849
    %v8556 = vmul.f32 %v5309, %v5309
    %v8557 = vmul.f32 %v5311, %v5311
    %v8558 = vmul.f32 %v6081, %v6081
    %v8559 = vmul.f32 %v6083, %v6083
    %v8560 = vmul.f32 %v6853, %v6853
    %v8561 = vmul.f32 %v5315, %v5315
    %v8562 = vmul.f32 %v5317, %v5317
    %v8563 = vmul.f32 %v6087, %v6087
    %v8564 = vmul.f32 %v6089, %v6089
    %v8565 = vmul.f32 %v6859, %v6859
    %v8566 = vmul.f32 %v5319, %v5319
    %v8567 = vmul.f32 %v5321, %v5321
    %v8568 = vmul.f32 %v6091, %v6091
    %v8569 = vmul.f32 %v6093, %v6093
    %v8570 = vmul.f32 %v6863, %v6863
    %v8571 = vmul.f32 %v5325, %v5325
    %v8572 = vmul.f32 %v5327, %v5327
    %v8573 = vmul.f32 %v6097, %v6097
    %v8574 = vmul.f32 %v6099, %v6099
    %v8575 = vmul.f32 %v6869, %v6869
    %v8576 = vmul.f32 %v5329, %v5329
    %v8577 = vmul.f32 %v5331, %v5331
    %v8578 = vmul.f32 %v6101, %v6101
    %v8579 = vmul.f32 %v6103, %v6103
    %v8580 = vmul.f32 %v6873, %v6873
    %v8581 = vmul.f32 %v5335, %v5335
    %v8582 = vmul.f32 %v5337, %v5337
    %v8583 = vmul.f32 %v6107, %v6107
    %v8584 = vmul.f32 %v6109, %v6109
    %v8585 = vmul.f32 %v6879, %v6879
    %v8586 = vmul.f32 %v5339, %v5339
    %v8587 = vmul.f32 %v5341, %v5341
    %v8588 = vmul.f32 %v6111, %v6111
    %v8589 = vmul.f32 %v6113, %v6113
    %v8590 = vmul.f32 %v6883, %v6883
    %v8591 = vmul.f32 %v5345, %v5345
    %v8592 = vmul.f32 %v5347, %v5347
    %v8593 = vmul.f32 %v6117, %v6117
    %v8594 = vmul.f32 %v6119, %v6119
    %v8595 = vmul.f32 %v6889, %v6889
    %v8596 = vmul.f32 %v5349, %v5349
    %v8597 = vmul.f32 %v5351, %v5351
    %v8598 = vmul.f32 %v6121, %v6121
    %v8599 = vmul.f32 %v6123, %v6123
    %v8600 = vmul.f32 %v6893, %v6893
    %v8601 = vmul.f32 %v5355, %v5355
    %v8602 = vmul.f32 %v5357, %v5357
    %v8603 = vmul.f32 %v6127, %v6127
    %v8604 = vmul.f32 %v6129, %v6129
    %v8605 = vmul.f32 %v6899, %v6899
    %v8606 = vmul.f32 %v5359, %v5359
    %v8607 = vmul.f32 %v5361, %v5361
    %v8608 = vmul.f32 %v6131, %v6131
    %v8609 = vmul.f32 %v6133, %v6133
    %v8610 = vmul.f32 %v6903, %v6903
    %v8611 = vmul.f32 %v5365, %v5365
    %v8612 = vmul.f32 %v5367, %v5367
    %v8613 = vmul.f32 %v6137, %v6137
    %v8614 = vmul.f32 %v6139, %v6139
    %v8615 = vmul.f32 %v6909, %v6909
    %v8616 = vmul.f32 %v5369, %v5369
    %v8617 = vmul.f32 %v5371, %v5371
    %v8618 = vmul.f32 %v6141, %v6141
    %v8619 = vmul.f32 %v6143, %v6143
    %v8620 = vmul.f32 %v6913, %v6913
    %v8621 = vmul.f32 %v5375, %v5375
    %v8622 = vmul.f32 %v5377, %v5377
    %v8623 = vmul.f32 %v6147, %v6147
    %v8624 = vmul.f32 %v6149, %v6149
    %v8625 = vmul.f32 %v6919, %v6919
    %v8626 = vmul.f32 %v5379, %v5379
    %v8627 = vmul.f32 %v5381, %v5381
    %v8628 = vmul.f32 %v6151, %v6151
    %v8629 = vmul.f32 %v6153, %v6153
    %v8630 = vmul.f32 %v6923, %v6923
    %v8631 = vmul.f32 %v5385, %v5385
    %v8632 = vmul.f32 %v5387, %v5387
    %v8633 = vmul.f32 %v6157, %v6157
    %v8634 = vmul.f32 %v6159, %v6159
    %v8635 = vmul.f32 %v6929, %v6929
    %v8636 = vmul.f32 %v5389, %v5389
    %v8637 = vmul.f32 %v5391, %v5391
    %v8638 = vmul.f32 %v6161, %v6161
    %v8639 = vmul.f32 %v6163, %v6163
    %v8640 = vmul.f32 %v6933, %v6933
    %v8641 = vmul.f32 %v5395, %v5395
    %v8642 = vmul.f32 %v5397, %v5397
    %v8643 = vmul.f32 %v6167, %v6167
    %v8644 = vmul.f32 %v6169, %v6169
    %v8645 = vmul.f32 %v6939, %v6939
    %v8646 = vmul.f32 %v5399, %v5399
    %v8647 = vmul.f32 %v5401, %v5401
    %v8648 = vmul.f32 %v6171, %v6171
    %v8649 = vmul.f32 %v6173, %v6173
    %v8650 = vmul.f32 %v6943, %v6943
    %v8651 = vmul.f32 %v5405, %v5405
    %v8652 = vmul.f32 %v5407, %v5407
    %v8653 = vmul.f32 %v6177, %v6177
    %v8654 = vmul.f32 %v6179, %v6179
    %v8655 = vmul.f32 %v6949, %v6949
    %v8656 = vmul.f32 %v5409, %v5409
    %v8657 = vmul.f32 %v5411, %v5411
    %v8658 = vmul.f32 %v6181, %v6181
    %v8659 = vmul.f32 %v6183, %v6183
    %v8660 = vmul.f32 %v6953, %v6953
    %v8661 = vmul.f32 %v5415, %v5415
    %v8662 = vmul.f32 %v5417, %v5417
    %v8663 = vmul.f32 %v6187, %v6187
    %v8664 = vmul.f32 %v6189, %v6189
    %v8665 = vmul.f32 %v6959, %v6959
    %v8666 = vmul.f32 %v5419, %v5419
    %v8667 = vmul.f32 %v5421, %v5421
    %v8668 = vmul.f32 %v6191, %v6191
    %v8669 = vmul.f32 %v6193, %v6193
    %v8670 = vmul.f32 %v6963, %v6963
    %v8671 = vmul.f32 %v6811, %v6811
    %v8672 = vmul.f32 %v7581, %v7581
    %v8673 = vmul.f32 %v7583, %v7583
    %v8674 = vmul.f32 %v8353, %v8353
    %v8675 = vmul.f32 %v8355, %v8355
    %v8676 = vmul.f32 %v6815, %v6815
    %v8677 = vmul.f32 %v7585, %v7585
    %v8678 = vmul.f32 %v7587, %v7587
    %v8679 = vmul.f32 %v8357, %v8357
    %v8680 = vmul.f32 %v8359, %v8359
    %v8681 = vmul.f32 %v6821, %v6821
    %v8682 = vmul.f32 %v7591, %v7591
    %v8683 = vmul.f32 %v7593, %v7593
    %v8684 = vmul.f32 %v8363, %v8363
    %v8685 = vmul.f32 %v8365, %v8365
    %v8686 = vmul.f32 %v6825, %v6825
    %v8687 = vmul.f32 %v7595, %v7595
    %v8688 = vmul.f32 %v7597, %v7597
    %v8689 = vmul.f32 %v8367, %v8367
    %v8690 = vmul.f32 %v8369, %v8369
    %v8691 = vmul.f32 %v6831, %v6831
    %v8692 = vmul.f32 %v7601, %v7601
    %v8693 = vmul.f32 %v7603, %v7603
    %v8694 = vmul.f32 %v8373, %v8373
    %v8695 = vmul.f32 %v8375, %v8375
    %v8696 = vmul.f32 %v6835, %v6835
    %v8697 = vmul.f32 %v7605, %v7605
    %v8698 = vmul.f32 %v7607, %v7607
    %v8699 = vmul.f32 %v8377, %v8377
    %v8700 = vmul.f32 %v8379, %v8379
    %v8701 = vmul.f32 %v6841, %v6841
    %v8702 = vmul.f32 %v7611, %v7611
    %v8703 = vmul.f32 %v7613, %v7613
    %v8704 = vmul.f32 %v8383, %v8383
    %v8705 = vmul.f32 %v8385, %v8385
    %v8706 = vmul.f32 %v6845, %v6845
    %v8707 = vmul.f32 %v7615, %v7615
    %v8708 = vmul.f32 %v7617, %v7617
    %v8709 = vmul.f32 %v8387, %v8387
    %v8710 = vmul.f32 %v8389, %v8389
    %v8711 = vmul.f32 %v6851, %v6851
    %v8712 = vmul.f32 %v7621, %v7621
    %v8713 = vmul.f32 %v7623, %v7623
    %v8714 = vmul.f32 %v8393, %v8393
    %v8715 = vmul.f32 %v8395, %v8395
    %v8716 = vmul.f32 %v6855, %v6855
    %v8717 = vmul.f32 %v7625, %v7625
    %v8718 = vmul.f32 %v7627, %v7627
    %v8719 = vmul.f32 %v8397, %v8397
    %v8720 = vmul.f32 %v8399, %v8399
    %v8721 = vmul.f32 %v6861, %v6861
    %v8722 = vmul.f32 %v7631, %v7631
    %v8723 = vmul.f32 %v7633, %v7633
    %v8724 = vmul.f32 %v8403, %v8403
    %v8725 = vmul.f32 %v8405, %v8405
    %v8726 = vmul.f32 %v6865, %v6865
    %v8727 = vmul.f32 %v7635, %v7635
    %v8728 = vmul.f32 %v7637, %v7637
    %v8729 = vmul.f32 %v8407, %v8407
    %v8730 = vmul.f32 %v8409, %v8409
    %v8731 = vmul.f32 %v6871, %v6871
    %v8732 = vmul.f32 %v7641, %v7641
    %v8733 = vmul.f32 %v7643, %v7643
    %v8734 = vmul.f32 %v8413, %v8413
    %v8735 = vmul.f32 %v8415, %v8415
    %v8736 = vmul.f32 %v6875, %v6875
    %v8737 = vmul.f32 %v7645, %v7645
    %v8738 = vmul.f32 %v7647, %v7647
    %v8739 = vmul.f32 %v8417, %v8417
    %v8740 = vmul.f32 %v8419, %v8419
    %v8741 = vmul.f32 %v6881, %v6881
    %v8742 = vmul.f32 %v7651, %v7651
    %v8743 = vmul.f32 %v7653, %v7653
    %v8744 = vmul.f32 %v8423, %v8423
    %v8745 = vmul.f32 %v8425, %v8425
    %v8746 = vmul.f32 %v6885, %v6885
    %v8747 = vmul.f32 %v7655, %v7655
    %v8748 = vmul.f32 %v7657, %v7657
    %v8749 = vmul.f32 %v8427, %v8427
    %v8750 = vmul.f32 %v8429, %v8429
    %v8751 = vmul.f32 %v6891, %v6891
    %v8752 = vmul.f32 %v7661, %v7661
    %v8753 = vmul.f32 %v7663, %v7663
    %v8754 = vmul.f32 %v8433, %v8433
    %v8755 = vmul.f32 %v8435, %v8435
    %v8756 = vmul.f32 %v6895, %v6895
    %v8757 = vmul.f32 %v7665, %v7665
    %v8758 = vmul.f32 %v7667, %v7667
    %v8759 = vmul.f32 %v8437, %v8437
    %v8760 = vmul.f32 %v8439, %v8439
    %v8761 = vmul.f32 %v6901, %v6901
    %v8762 = vmul.f32 %v7671, %v7671
    %v8763 = vmul.f32 %v7673, %v7673
    %v8764 = vmul.f32 %v8443, %v8443
    %v8765 = vmul.f32 %v8445, %v8445
    %v8766 = vmul.f32 %v6905, %v6905
    %v8767 = vmul.f32 %v7675, %v7675
    %v8768 = vmul.f32 %v7677, %v7677
    %v8769 = vmul.f32 %v8447, %v8447
    %v8770 = vmul.f32 %v8449, %v8449
    %v8771 = vmul.f32 %v6911, %v6911
    %v8772 = vmul.f32 %v7681, %v7681
    %v8773 = vmul.f32 %v7683, %v7683
    %v8774 = vmul.f32 %v8453, %v8453
    %v8775 = vmul.f32 %v8455, %v8455
    %v8776 = vmul.f32 %v6915, %v6915
    %v8777 = vmul.f32 %v7685, %v7685
    %v8778 = vmul.f32 %v7687, %v7687
    %v8779 = vmul.f32 %v8457, %v8457
    %v8780 = vmul.f32 %v8459, %v8459
    %v8781 = vmul.f32 %v6921, %v6921
    %v8782 = vmul.f32 %v7691, %v7691
    %v8783 = vmul.f32 %v7693, %v7693
    %v8784 = vmul.f32 %v8463, %v8463
    %v8785 = vmul.f32 %v8465, %v8465
    %v8786 = vmul.f32 %v6925, %v6925
    %v8787 = vmul.f32 %v7695, %v7695
    %v8788 = vmul.f32 %v7697, %v7697
    %v8789 = vmul.f32 %v8467, %v8467
    %v8790 = vmul.f32 %v8469, %v8469
    %v8791 = vmul.f32 %v6931, %v6931
    %v8792 = vmul.f32 %v7701, %v7701
    %v8793 = vmul.f32 %v7703, %v7703
    %v8794 = vmul.f32 %v8473, %v8473
    %v8795 = vmul.f32 %v8475, %v8475
    %v8796 = vmul.f32 %v6935, %v6935
    %v8797 = vmul.f32 %v7705, %v7705
    %v8798 = vmul.f32 %v7707, %v7707
    %v8799 = vmul.f32 %v8477, %v8477
    %v8800 = vmul.f32 %v8479, %v8479
    %v8801 = vmul.f32 %v6941, %v6941
    %v8802 = vmul.f32 %v7711, %v7711
    %v8803 = vmul.f32 %v7713, %v7713
    %v8804 = vmul.f32 %v8483, %v8483
    %v8805 = vmul.f32 %v8485, %v8485
    %v8806 = vmul.f32 %v6945, %v6945
    %v8807 = vmul.f32 %v7715, %v7715
    %v8808 = vmul.f32 %v7717, %v7717
    %v8809 = vmul.f32 %v8487, %v8487
    %v8810 = vmul.f32 %v8489, %v8489
    %v8811 = vmul.f32 %v6951, %v6951
    %v8812 = vmul.f32 %v7721, %v7721
    %v8813 = vmul.f32 %v7723, %v7723
    %v8814 = vmul.f32 %v8493, %v8493
    %v8815 = vmul.f32 %v8495, %v8495
    %v8816 = vmul.f32 %v6955, %v6955
    %v8817 = vmul.f32 %v7725, %v7725
    %v8818 = vmul.f32 %v7727, %v7727
    %v8819 = vmul.f32 %v8497, %v8497
    %v8820 = vmul.f32 %v8499, %v8499
    %v8821 = vmul.f32 %v6961, %v6961
    %v8822 = vmul.f32 %v7731, %v7731
    %v8823 = vmul.f32 %v7733, %v7733
    %v8824 = vmul.f32 %v8503, %v8503
    %v8825 = vmul.f32 %v8505, %v8505
    %v8826 = vmul.f32 %v6965, %v6965
    %v8827 = vmul.f32 %v7735, %v7735
    %v8828 = vmul.f32 %v7737, %v7737
    %v8829 = vmul.f32 %v8507, %v8507
    %v8830 = vmul.f32 %v8509, %v8509
    %v8831 = vadd.f32 %v8511, %v8671
    %v8832 = vadd.f32 %v8512, %v8672
    %v8833 = vadd.f32 %v8513, %v8673
    %v8834 = vadd.f32 %v8514, %v8674
    %v8835 = vadd.f32 %v8515, %v8675
    %v8836 = vadd.f32 %v8516, %v8676
    %v8837 = vadd.f32 %v8517, %v8677
    %v8838 = vadd.f32 %v8518, %v8678
    %v8839 = vadd.f32 %v8519, %v8679
    %v8840 = vadd.f32 %v8520, %v8680
    %v8841 = vadd.f32 %v8521, %v8681
    %v8842 = vadd.f32 %v8522, %v8682
    %v8843 = vadd.f32 %v8523, %v8683
    %v8844 = vadd.f32 %v8524, %v8684
    %v8845 = vadd.f32 %v8525, %v8685
    %v8846 = vadd.f32 %v8526, %v8686
    %v8847 = vadd.f32 %v8527, %v8687
    %v8848 = vadd.f32 %v8528, %v8688
    %v8849 = vadd.f32 %v8529, %v8689
    %v8850 = vadd.f32 %v8530, %v8690
    %v8851 = vadd.f32 %v8531, %v8691
    %v8852 = vadd.f32 %v8532, %v8692
    %v8853 = vadd.f32 %v8533, %v8693
    %v8854 = vadd.f32 %v8534, %v8694
    %v8855 = vadd.f32 %v8535, %v8695
    %v8856 = vadd.f32 %v8536, %v8696
    %v8857 = vadd.f32 %v8537, %v8697
    %v8858 = vadd.f32 %v8538, %v8698
    %v8859 = vadd.f32 %v8539, %v8699
    %v8860 = vadd.f32 %v8540, %v8700
    %v8861 = vadd.f32 %v8541, %v8701
    %v8862 = vadd.f32 %v8542, %v8702
    %v8863 = vadd.f32 %v8543, %v8703
    %v8864 = vadd.f32 %v8544, %v8704
    %v8865 = vadd.f32 %v8545, %v8705
    %v8866 = vadd.f32 %v8546, %v8706
    %v8867 = vadd.f32 %v8547, %v8707
    %v8868 = vadd.f32 %v8548, %v8708
    %v8869 = vadd.f32 %v8549, %v8709
    %v8870 = vadd.f32 %v8550, %v8710
    %v8871 = vadd.f32 %v8551, %v8711
    %v8872 = vadd.f32 %v8552, %v8712
    %v8873 = vadd.f32 %v8553, %v8713
    %v8874 = vadd.f32 %v8554, %v8714
    %v8875 = vadd.f32 %v8555, %v8715
    %v8876 = vadd.f32 %v8556, %v8716
    %v8877 = vadd.f32 %v8557, %v8717
    %v8878 = vadd.f32 %v8558, %v8718
    %v8879 = vadd.f32 %v8559, %v8719
    %v8880 = vadd.f32 %v8560, %v8720
    %v8881 = vadd.f32 %v8561, %v8721
    %v8882 = vadd.f32 %v8562, %v8722
    %v8883 = vadd.f32 %v8563, %v8723
    %v8884 = vadd.f32 %v8564, %v8724
    %v8885 = vadd.f32 %v8565, %v8725
    %v8886 = vadd.f32 %v8566, %v8726
    %v8887 = vadd.f32 %v8567, %v8727
    %v8888 = vadd.f32 %v8568, %v8728
    %v8889 = vadd.f32 %v8569, %v8729
    %v8890 = vadd.f32 %v8570, %v8730
    %v8891 = vadd.f32 %v8571, %v8731
    %v8892 = vadd.f32 %v8572, %v8732
    %v8893 = vadd.f32 %v8573, %v8733
    %v8894 = vadd.f32 %v8574, %v8734
    %v8895 = vadd.f32 %v8575, %v8735
    %v8896 = vadd.f32 %v8576, %v8736
    %v8897 = vadd.f32 %v8577, %v8737
    %v8898 = vadd.f32 %v8578, %v8738
    %v8899 = vadd.f32 %v8579, %v8739
    %v8900 = vadd.f32 %v8580, %v8740
    %v8901 = vadd.f32 %v8581, %v8741
    %v8902 = vadd.f32 %v8582, %v8742
    %v8903 = vadd.f32 %v8583, %v8743
    %v8904 = vadd.f32 %v8584, %v8744
    %v8905 = vadd.f32 %v8585, %v8745
    %v8906 = vadd.f32 %v8586, %v8746
    %v8907 = vadd.f32 %v8587, %v8747
    %v8908 = vadd.f32 %v8588, %v8748
    %v8909 = vadd.f32 %v8589, %v8749
    %v8910 = vadd.f32 %v8590, %v8750
    %v8911 = vadd.f32 %v8591, %v8751
    %v8912 = vadd.f32 %v8592, %v8752
    %v8913 = vadd.f32 %v8593, %v8753
    %v8914 = vadd.f32 %v8594, %v8754
    %v8915 = vadd.f32 %v8595, %v8755
    %v8916 = vadd.f32 %v8596, %v8756
    %v8917 = vadd.f32 %v8597, %v8757
    %v8918 = vadd.f32 %v8598, %v8758
    %v8919 = vadd.f32 %v8599, %v8759
    %v8920 = vadd.f32 %v8600, %v8760
    %v8921 = vadd.f32 %v8601, %v8761
    %v8922 = vadd.f32 %v8602, %v8762
    %v8923 = vadd.f32 %v8603, %v8763
    %v8924 = vadd.f32 %v8604, %v8764
    %v8925 = vadd.f32 %v8605, %v8765
    %v8926 = vadd.f32 %v8606, %v8766
    %v8927 = vadd.f32 %v8607, %v8767
    %v8928 = vadd.f32 %v8608, %v8768
    %v8929 = vadd.f32 %v8609, %v8769
    %v8930 = vadd.f32 %v8610, %v8770
    %v8931 = vadd.f32 %v8611, %v8771
    %v8932 = vadd.f32 %v8612, %v8772
    %v8933 = vadd.f32 %v8613, %v8773
    %v8934 = vadd.f32 %v8614, %v8774
    %v8935 = vadd.f32 %v8615, %v8775
    %v8936 = vadd.f32 %v8616, %v8776
    %v8937 = vadd.f32 %v8617, %v8777
    %v8938 = vadd.f32 %v8618, %v8778
    %v8939 = vadd.f32 %v8619, %v8779
    %v8940 = vadd.f32 %v8620, %v8780
    %v8941 = vadd.f32 %v8621, %v8781
    %v8942 = vadd.f32 %v8622, %v8782
    %v8943 = vadd.f32 %v8623, %v8783
    %v8944 = vadd.f32 %v8624, %v8784
    %v8945 = vadd.f32 %v8625, %v8785
    %v8946 = vadd.f32 %v8626, %v8786
    %v8947 = vadd.f32 %v8627, %v8787
    %v8948 = vadd.f32 %v8628, %v8788
    %v8949 = vadd.f32 %v8629, %v8789
    %v8950 = vadd.f32 %v8630, %v8790
    %v8951 = vadd.f32 %v8631, %v8791
    %v8952 = vadd.f32 %v8632, %v8792
    %v8953 = vadd.f32 %v8633, %v8793
    %v8954 = vadd.f32 %v8634, %v8794
    %v8955 = vadd.f32 %v8635, %v8795
    %v8956 = vadd.f32 %v8636, %v8796
    %v8957 = vadd.f32 %v8637, %v8797
    %v8958 = vadd.f32 %v8638, %v8798
    %v8959 = vadd.f32 %v8639, %v8799
    %v8960 = vadd.f32 %v8640, %v8800
    %v8961 = vadd.f32 %v8641, %v8801
    %v8962 = vadd.f32 %v8642, %v8802
    %v8963 = vadd.f32 %v8643, %v8803
    %v8964 = vadd.f32 %v8644, %v8804
    %v8965 = vadd.f32 %v8645, %v8805
    %v8966 = vadd.f32 %v8646, %v8806
    %v8967 = vadd.f32 %v8647, %v8807
    %v8968 = vadd.f32 %v8648, %v8808
    %v8969 = vadd.f32 %v8649, %v8809
    %v8970 = vadd.f32 %v8650, %v8810
    %v8971 = vadd.f32 %v8651, %v8811
    %v8972 = vadd.f32 %v8652, %v8812
    %v8973 = vadd.f32 %v8653, %v8813
    %v8974 = vadd.f32 %v8654, %v8814
    %v8975 = vadd.f32 %v8655, %v8815
    %v8976 = vadd.f32 %v8656, %v8816
    %v8977 = vadd.f32 %v8657, %v8817
    %v8978 = vadd.f32 %v8658, %v8818
    %v8979 = vadd.f32 %v8659, %v8819
    %v8980 = vadd.f32 %v8660, %v8820
    %v8981 = vadd.f32 %v8661, %v8821
    %v8982 = vadd.f32 %v8662, %v8822
    %v8983 = vadd.f32 %v8663, %v8823
    %v8984 = vadd.f32 %v8664, %v8824
    %v8985 = vadd.f32 %v8665, %v8825
    %v8986 = vadd.f32 %v8666, %v8826
    %v8987 = vadd.f32 %v8667, %v8827
    %v8988 = vadd.f32 %v8668, %v8828
    %v8989 = vadd.f32 %v8669, %v8829
    %v8990 = vadd.f32 %v8670, %v8830
    %v8991 = vpack.c.bf16 %v8836, %v8831
    %v8992 = vpack.c.bf16 %v8837, %v8832
    %v8993 = vpack.c.bf16 %v8838, %v8833
    %v8994 = vpack.c.bf16 %v8839, %v8834
    %v8995 = vpack.c.bf16 %v8840, %v8835
    %v8996 = vpack.c.bf16 %v8846, %v8841
    %v8997 = vpack.c.bf16 %v8847, %v8842
    %v8998 = vpack.c.bf16 %v8848, %v8843
    %v8999 = vpack.c.bf16 %v8849, %v8844
    %v9000 = vpack.c.bf16 %v8850, %v8845
    %v9001 = vpack.c.bf16 %v8856, %v8851
    %v9002 = vpack.c.bf16 %v8857, %v8852
    %v9003 = vpack.c.bf16 %v8858, %v8853
    %v9004 = vpack.c.bf16 %v8859, %v8854
    %v9005 = vpack.c.bf16 %v8860, %v8855
    %v9006 = vpack.c.bf16 %v8866, %v8861
    %v9007 = vpack.c.bf16 %v8867, %v8862
    %v9008 = vpack.c.bf16 %v8868, %v8863
    %v9009 = vpack.c.bf16 %v8869, %v8864
    %v9010 = vpack.c.bf16 %v8870, %v8865
    %v9011 = vpack.c.bf16 %v8876, %v8871
    %v9012 = vpack.c.bf16 %v8877, %v8872
    %v9013 = vpack.c.bf16 %v8878, %v8873
    %v9014 = vpack.c.bf16 %v8879, %v8874
    %v9015 = vpack.c.bf16 %v8880, %v8875
    %v9016 = vpack.c.bf16 %v8886, %v8881
    %v9017 = vpack.c.bf16 %v8887, %v8882
    %v9018 = vpack.c.bf16 %v8888, %v8883
    %v9019 = vpack.c.bf16 %v8889, %v8884
    %v9020 = vpack.c.bf16 %v8890, %v8885
    %v9021 = vpack.c.bf16 %v8896, %v8891
    %v9022 = vpack.c.bf16 %v8897, %v8892
    %v9023 = vpack.c.bf16 %v8898, %v8893
    %v9024 = vpack.c.bf16 %v8899, %v8894
    %v9025 = vpack.c.bf16 %v8900, %v8895
    %v9026 = vpack.c.bf16 %v8906, %v8901
    %v9027 = vpack.c.bf16 %v8907, %v8902
    %v9028 = vpack.c.bf16 %v8908, %v8903
    %v9029 = vpack.c.bf16 %v8909, %v8904
    %v9030 = vpack.c.bf16 %v8910, %v8905
    %v9031 = vpack.c.bf16 %v8916, %v8911
    %v9032 = vpack.c.bf16 %v8917, %v8912
    %v9033 = vpack.c.bf16 %v8918, %v8913
    %v9034 = vpack.c.bf16 %v8919, %v8914
    %v9035 = vpack.c.bf16 %v8920, %v8915
    %v9036 = vpack.c.bf16 %v8926, %v8921
    %v9037 = vpack.c.bf16 %v8927, %v8922
    %v9038 = vpack.c.bf16 %v8928, %v8923
    %v9039 = vpack.c.bf16 %v8929, %v8924
    %v9040 = vpack.c.bf16 %v8930, %v8925
    %v9041 = vpack.c.bf16 %v8936, %v8931
    %v9042 = vpack.c.bf16 %v8937, %v8932
    %v9043 = vpack.c.bf16 %v8938, %v8933
    %v9044 = vpack.c.bf16 %v8939, %v8934
    %v9045 = vpack.c.bf16 %v8940, %v8935
    %v9046 = vpack.c.bf16 %v8946, %v8941
    %v9047 = vpack.c.bf16 %v8947, %v8942
    %v9048 = vpack.c.bf16 %v8948, %v8943
    %v9049 = vpack.c.bf16 %v8949, %v8944
    %v9050 = vpack.c.bf16 %v8950, %v8945
    %v9051 = vpack.c.bf16 %v8956, %v8951
    %v9052 = vpack.c.bf16 %v8957, %v8952
    %v9053 = vpack.c.bf16 %v8958, %v8953
    %v9054 = vpack.c.bf16 %v8959, %v8954
    %v9055 = vpack.c.bf16 %v8960, %v8955
    %v9056 = vpack.c.bf16 %v8966, %v8961
    %v9057 = vpack.c.bf16 %v8967, %v8962
    %v9058 = vpack.c.bf16 %v8968, %v8963
    %v9059 = vpack.c.bf16 %v8969, %v8964
    %v9060 = vpack.c.bf16 %v8970, %v8965
    %v9061 = vpack.c.bf16 %v8976, %v8971
    %v9062 = vpack.c.bf16 %v8977, %v8972
    %v9063 = vpack.c.bf16 %v8978, %v8973
    %v9064 = vpack.c.bf16 %v8979, %v8974
    %v9065 = vpack.c.bf16 %v8980, %v8975
    %v9066 = vpack.c.bf16 %v8986, %v8981
    %v9067 = vpack.c.bf16 %v8987, %v8982
    %v9068 = vpack.c.bf16 %v8988, %v8983
    %v9069 = vpack.c.bf16 %v8989, %v8984
    %v9070 = vpack.c.bf16 %v8990, %v8985
    %v9071 = vld [vmem:[#allocation4] sm:$0xf]
    %v9072 = vld [vmem:[#allocation4 + $0x4] sm:$0xf]
    %v9073 = vld [vmem:[#allocation4 + $0x8] sm:$0xf]
    %v9074 = vld [vmem:[#allocation4 + $0xc] sm:$0xf]
    %v9075 = vld [vmem:[#allocation4 + $0x10] sm:$0xf]
    %v9076 = vld [vmem:[#allocation4 + $0x14] sm:$0xf]
    %v9077 = vld [vmem:[#allocation4 + $0x18] sm:$0xf]
    %v9078 = vld [vmem:[#allocation4 + $0x1c] sm:$0xf]
    %v9079 = vld [vmem:[#allocation4 + $0x20] sm:$0xf]
    %v9080 = vld [vmem:[#allocation4 + $0x24] sm:$0xf]
    %v9081 = vld [vmem:[#allocation4 + $0x28] sm:$0xf]
    %v9082 = vld [vmem:[#allocation4 + $0x2c] sm:$0xf]
    %v9083 = vld [vmem:[#allocation4 + $0x30] sm:$0xf]
    %v9084 = vld [vmem:[#allocation4 + $0x34] sm:$0xf]
    %v9085 = vld [vmem:[#allocation4 + $0x38] sm:$0xf]
    %v9086 = vld [vmem:[#allocation4 + $0x3c] sm:$0xf]
    %v9087 = vld [vmem:[#allocation4 + $0x40] sm:$0xf]
    %v9088 = vld [vmem:[#allocation4 + $0x44] sm:$0xf]
    %v9089 = vld [vmem:[#allocation4 + $0x48] sm:$0xf]
    %v9090 = vld [vmem:[#allocation4 + $0x4c] sm:$0xf]
    %v9091 = vld [vmem:[#allocation4 + $0x50] sm:$0xf]
    %v9092 = vld [vmem:[#allocation4 + $0x54] sm:$0xf]
    %v9093 = vld [vmem:[#allocation4 + $0x58] sm:$0xf]
    %v9094 = vld [vmem:[#allocation4 + $0x5c] sm:$0xf]
    %v9095 = vld [vmem:[#allocation4 + $0x60] sm:$0xf]
    %v9096 = vld [vmem:[#allocation4 + $0x64] sm:$0xf]
    %v9097 = vld [vmem:[#allocation4 + $0x68] sm:$0xf]
    %v9098 = vld [vmem:[#allocation4 + $0x6c] sm:$0xf]
    %v9099 = vld [vmem:[#allocation4 + $0x70] sm:$0xf]
    %v9100 = vld [vmem:[#allocation4 + $0x74] sm:$0xf]
    %v9101 = vld [vmem:[#allocation4 + $0x78] sm:$0xf]
    %v9102 = vld [vmem:[#allocation4 + $0x7c] sm:$0xf]
    %v9103 = vld [vmem:[#allocation4 + $0x80] sm:$0xf]
    %v9104 = vld [vmem:[#allocation4 + $0x84] sm:$0xf]
    %v9105 = vld [vmem:[#allocation4 + $0x88] sm:$0xf]
    %v9106 = vld [vmem:[#allocation4 + $0x8c] sm:$0xf]
    %v9107 = vld [vmem:[#allocation4 + $0x90] sm:$0xf]
    %v9108 = vld [vmem:[#allocation4 + $0x94] sm:$0xf]
    %v9109 = vld [vmem:[#allocation4 + $0x98] sm:$0xf]
    %v9110 = vld [vmem:[#allocation4 + $0x9c] sm:$0xf]
    %v9111 = vld [vmem:[#allocation4 + $0xa0] sm:$0xf]
    %v9112 = vld [vmem:[#allocation4 + $0xa4] sm:$0xf]
    %v9113 = vld [vmem:[#allocation4 + $0xa8] sm:$0xf]
    %v9114 = vld [vmem:[#allocation4 + $0xac] sm:$0xf]
    %v9115 = vld [vmem:[#allocation4 + $0xb0] sm:$0xf]
    %v9116 = vld [vmem:[#allocation4 + $0xb4] sm:$0xf]
    %v9117 = vld [vmem:[#allocation4 + $0xb8] sm:$0xf]
    %v9118 = vld [vmem:[#allocation4 + $0xbc] sm:$0xf]
    %v9119 = vld [vmem:[#allocation4 + $0xc0] sm:$0xf]
    %v9120 = vld [vmem:[#allocation4 + $0xc4] sm:$0xf]
    %v9121 = vld [vmem:[#allocation4 + $0xc8] sm:$0xf]
    %v9122 = vld [vmem:[#allocation4 + $0xcc] sm:$0xf]
    %v9123 = vld [vmem:[#allocation4 + $0xd0] sm:$0xf]
    %v9124 = vld [vmem:[#allocation4 + $0xd4] sm:$0xf]
    %v9125 = vld [vmem:[#allocation4 + $0xd8] sm:$0xf]
    %v9126 = vld [vmem:[#allocation4 + $0xdc] sm:$0xf]
    %v9127 = vld [vmem:[#allocation4 + $0xe0] sm:$0xf]
    %v9128 = vld [vmem:[#allocation4 + $0xe4] sm:$0xf]
    %v9129 = vld [vmem:[#allocation4 + $0xe8] sm:$0xf]
    %v9130 = vld [vmem:[#allocation4 + $0xec] sm:$0xf]
    %v9131 = vld [vmem:[#allocation4 + $0xf0] sm:$0xf]
    %v9132 = vld [vmem:[#allocation4 + $0xf4] sm:$0xf]
    %v9133 = vld [vmem:[#allocation4 + $0xf8] sm:$0xf]
    %v9134 = vld [vmem:[#allocation4 + $0xfc] sm:$0xf]
    %v9135 = vld [vmem:[#allocation4 + $0x100] sm:$0xf]
    %v9136 = vld [vmem:[#allocation4 + $0x104] sm:$0xf]
    %v9137 = vld [vmem:[#allocation4 + $0x108] sm:$0xf]
    %v9138 = vld [vmem:[#allocation4 + $0x10c] sm:$0xf]
    %v9139 = vld [vmem:[#allocation4 + $0x110] sm:$0xf]
    %v9140 = vld [vmem:[#allocation4 + $0x114] sm:$0xf]
    %v9141 = vld [vmem:[#allocation4 + $0x118] sm:$0xf]
    %v9142 = vld [vmem:[#allocation4 + $0x11c] sm:$0xf]
    %v9143 = vld [vmem:[#allocation4 + $0x120] sm:$0xf]
    %v9144 = vld [vmem:[#allocation4 + $0x124] sm:$0xf]
    %v9145 = vld [vmem:[#allocation4 + $0x128] sm:$0xf]
    %v9146 = vld [vmem:[#allocation4 + $0x12c] sm:$0xf]
    %v9147 = vld [vmem:[#allocation4 + $0x130] sm:$0xf]
    %v9148 = vld [vmem:[#allocation4 + $0x134] sm:$0xf]
    %v9149 = vld [vmem:[#allocation4 + $0x138] sm:$0xf]
    %v9150 = vld [vmem:[#allocation4 + $0x13c] sm:$0xf]
    %v9231 = vunpack.c.l.b16 %v9071
    %v9232 = vunpack.c.l.b16 %v9072
    %v9233 = vunpack.c.l.b16 %v9073
    %v9234 = vunpack.c.l.b16 %v9074
    %v9235 = vunpack.c.l.b16 %v9075
    %v9236 = vunpack.c.l.b16 %v9076
    %v9237 = vunpack.c.l.b16 %v9077
    %v9238 = vunpack.c.l.b16 %v9078
    %v9239 = vunpack.c.l.b16 %v9079
    %v9240 = vunpack.c.l.b16 %v9080
    %v9241 = vunpack.c.l.b16 %v9081
    %v9242 = vunpack.c.l.b16 %v9082
    %v9243 = vunpack.c.l.b16 %v9083
    %v9244 = vunpack.c.l.b16 %v9084
    %v9245 = vunpack.c.l.b16 %v9085
    %v9246 = vunpack.c.l.b16 %v9086
    %v9247 = vunpack.c.l.b16 %v9087
    %v9248 = vunpack.c.l.b16 %v9088
    %v9249 = vunpack.c.l.b16 %v9089
    %v9250 = vunpack.c.l.b16 %v9090
    %v9251 = vunpack.c.l.b16 %v9091
    %v9252 = vunpack.c.l.b16 %v9092
    %v9253 = vunpack.c.l.b16 %v9093
    %v9254 = vunpack.c.l.b16 %v9094
    %v9255 = vunpack.c.l.b16 %v9095
    %v9256 = vunpack.c.l.b16 %v9096
    %v9257 = vunpack.c.l.b16 %v9097
    %v9258 = vunpack.c.l.b16 %v9098
    %v9259 = vunpack.c.l.b16 %v9099
    %v9260 = vunpack.c.l.b16 %v9100
    %v9261 = vunpack.c.l.b16 %v9101
    %v9262 = vunpack.c.l.b16 %v9102
    %v9263 = vunpack.c.l.b16 %v9103
    %v9264 = vunpack.c.l.b16 %v9104
    %v9265 = vunpack.c.l.b16 %v9105
    %v9266 = vunpack.c.l.b16 %v9106
    %v9267 = vunpack.c.l.b16 %v9107
    %v9268 = vunpack.c.l.b16 %v9108
    %v9269 = vunpack.c.l.b16 %v9109
    %v9270 = vunpack.c.l.b16 %v9110
    %v9271 = vunpack.c.l.b16 %v9111
    %v9272 = vunpack.c.l.b16 %v9112
    %v9273 = vunpack.c.l.b16 %v9113
    %v9274 = vunpack.c.l.b16 %v9114
    %v9275 = vunpack.c.l.b16 %v9115
    %v9276 = vunpack.c.l.b16 %v9116
    %v9277 = vunpack.c.l.b16 %v9117
    %v9278 = vunpack.c.l.b16 %v9118
    %v9279 = vunpack.c.l.b16 %v9119
    %v9280 = vunpack.c.l.b16 %v9120
    %v9281 = vunpack.c.l.b16 %v9121
    %v9282 = vunpack.c.l.b16 %v9122
    %v9283 = vunpack.c.l.b16 %v9123
    %v9284 = vunpack.c.l.b16 %v9124
    %v9285 = vunpack.c.l.b16 %v9125
    %v9286 = vunpack.c.l.b16 %v9126
    %v9287 = vunpack.c.l.b16 %v9127
    %v9288 = vunpack.c.l.b16 %v9128
    %v9289 = vunpack.c.l.b16 %v9129
    %v9290 = vunpack.c.l.b16 %v9130
    %v9291 = vunpack.c.l.b16 %v9131
    %v9292 = vunpack.c.l.b16 %v9132
    %v9293 = vunpack.c.l.b16 %v9133
    %v9294 = vunpack.c.l.b16 %v9134
    %v9295 = vunpack.c.l.b16 %v9135
    %v9296 = vunpack.c.l.b16 %v9136
    %v9297 = vunpack.c.l.b16 %v9137
    %v9298 = vunpack.c.l.b16 %v9138
    %v9299 = vunpack.c.l.b16 %v9139
    %v9300 = vunpack.c.l.b16 %v9140
    %v9301 = vunpack.c.l.b16 %v9141
    %v9302 = vunpack.c.l.b16 %v9142
    %v9303 = vunpack.c.l.b16 %v9143
    %v9304 = vunpack.c.l.b16 %v9144
    %v9305 = vunpack.c.l.b16 %v9145
    %v9306 = vunpack.c.l.b16 %v9146
    %v9307 = vunpack.c.l.b16 %v9147
    %v9308 = vunpack.c.l.b16 %v9148
    %v9309 = vunpack.c.l.b16 %v9149
    %v9310 = vunpack.c.l.b16 %v9150
    %v9311 = vpack.c.b16 %v9232, %v9231
    %v9312 = vpack.c.b16 %v9234, %v9233
    %v9313 = vpack.c.b16 %v9236, %v9235
    %v9314 = vpack.c.b16 %v9238, %v9237
    %v9315 = vpack.c.b16 %v9240, %v9239
    %v9316 = vpack.c.b16 %v9242, %v9241
    %v9317 = vpack.c.b16 %v9244, %v9243
    %v9318 = vpack.c.b16 %v9246, %v9245
    %v9319 = vpack.c.b16 %v9248, %v9247
    %v9320 = vpack.c.b16 %v9250, %v9249
    %v9321 = vpack.c.b16 %v9252, %v9251
    %v9322 = vpack.c.b16 %v9254, %v9253
    %v9323 = vpack.c.b16 %v9256, %v9255
    %v9324 = vpack.c.b16 %v9258, %v9257
    %v9325 = vpack.c.b16 %v9260, %v9259
    %v9326 = vpack.c.b16 %v9262, %v9261
    %v9327 = vpack.c.b16 %v9264, %v9263
    %v9328 = vpack.c.b16 %v9266, %v9265
    %v9329 = vpack.c.b16 %v9268, %v9267
    %v9330 = vpack.c.b16 %v9270, %v9269
    %v9331 = vpack.c.b16 %v9272, %v9271
    %v9332 = vpack.c.b16 %v9274, %v9273
    %v9333 = vpack.c.b16 %v9276, %v9275
    %v9334 = vpack.c.b16 %v9278, %v9277
    %v9335 = vpack.c.b16 %v9280, %v9279
    %v9336 = vpack.c.b16 %v9282, %v9281
    %v9337 = vpack.c.b16 %v9284, %v9283
    %v9338 = vpack.c.b16 %v9286, %v9285
    %v9339 = vpack.c.b16 %v9288, %v9287
    %v9340 = vpack.c.b16 %v9290, %v9289
    %v9341 = vpack.c.b16 %v9292, %v9291
    %v9342 = vpack.c.b16 %v9294, %v9293
    %v9343 = vpack.c.b16 %v9296, %v9295
    %v9344 = vpack.c.b16 %v9298, %v9297
    %v9345 = vpack.c.b16 %v9300, %v9299
    %v9346 = vpack.c.b16 %v9302, %v9301
    %v9347 = vpack.c.b16 %v9304, %v9303
    %v9348 = vpack.c.b16 %v9306, %v9305
    %v9349 = vpack.c.b16 %v9308, %v9307
    %v9350 = vpack.c.b16 %v9310, %v9309
    %9391 = vmatprep.subr.bf16.mxu0 0
    %9392 = vmatpush1.bf16.msra.mxu0 %v9311
    %9393 = vmatprep.subr.bf16.mxu0 0
    %9394 = vmatpush1.bf16.msra.mxu0 %v9312
    %9395 = vmatprep.subr.bf16.mxu0 0
    %9396 = vmatpush1.bf16.msra.mxu0 %v9313
    %9397 = vmatprep.subr.bf16.mxu0 0
    %9398 = vmatpush1.bf16.msra.mxu0 %v9314
    %9399 = vmatprep.subr.bf16.mxu0 0
    %9400 = vmatpush1.bf16.msra.mxu0 %v9315
    %9401 = vmatprep.subr.bf16.mxu0 0
    %9402 = vmatpush1.bf16.msra.mxu0 %v9316
    %9403 = vmatprep.subr.bf16.mxu0 0
    %9404 = vmatpush1.bf16.msra.mxu0 %v9317
    %9405 = vmatprep.subr.bf16.mxu0 0
    %9406 = vmatpush1.bf16.msra.mxu0 %v9318
    %9407 = vmatprep.subr.bf16.mxu0 0
    %9408 = vmatpush1.bf16.msra.mxu0 %v9319
    %9409 = vmatprep.subr.bf16.mxu0 0
    %9410 = vmatpush1.bf16.msra.mxu0 %v9320
    %9411 = vmatprep.subr.bf16.mxu0 0
    %9412 = vmatpush1.bf16.msra.mxu0 %v9321
    %9413 = vmatprep.subr.bf16.mxu0 0
    %9414 = vmatpush1.bf16.msra.mxu0 %v9322
    %9415 = vmatprep.subr.bf16.mxu0 0
    %9416 = vmatpush1.bf16.msra.mxu0 %v9323
    %9417 = vmatprep.subr.bf16.mxu0 0
    %9418 = vmatpush1.bf16.msra.mxu0 %v9324
    %9419 = vmatprep.subr.bf16.mxu0 0
    %9420 = vmatpush1.bf16.msra.mxu0 %v9325
    %9421 = vmatprep.subr.bf16.mxu0 0
    %9422 = vmatpush1.bf16.msra.mxu0 %v9326
    %9423 = vmatprep.mubr.bf16.mxu0 %v8992
    %9424 = vmatmul.mubr.bf16.gmra.mrb[0].mxu0 %v8991
    %v9425 = vpop.f32.mrb[0].mxu0
    %v9426 = vadd.f32 1e-08, %v9425
    %v9427 = vpop.f32.mrb[0].mxu0
    %v9428 = vpop.f32.mrb[0].mxu0
    %v9429 = vadd.f32 1e-08, %v9428
    %v9430 = vpop.f32.mrb[0].mxu0
    %9431 = vmatprep.mubr.bf16.mxu0 %v8997
    %9432 = vmatmul.mubr.bf16.gmra.mrb[0].mxu0 %v8996
    %v9433 = vpop.f32.mrb[0].mxu0
    %v9434 = vadd.f32 1e-08, %v9433
    %v9435 = vpop.f32.mrb[0].mxu0
    %v9436 = vpop.f32.mrb[0].mxu0
    %v9437 = vadd.f32 1e-08, %v9436
    %v9438 = vpop.f32.mrb[0].mxu0
    %9439 = vmatprep.mubr.bf16.mxu0 %v9002
    %9440 = vmatmul.mubr.bf16.gmra.mrb[0].mxu0 %v9001
    %v9441 = vpop.f32.mrb[0].mxu0
    %v9442 = vadd.f32 1e-08, %v9441
    %v9443 = vpop.f32.mrb[0].mxu0
    %v9444 = vpop.f32.mrb[0].mxu0
    %v9445 = vadd.f32 1e-08, %v9444
    %v9446 = vpop.f32.mrb[0].mxu0
    %9447 = vmatprep.mubr.bf16.mxu0 %v9007
    %9448 = vmatmul.mubr.bf16.gmra.mrb[0].mxu0 %v9006
    %v9449 = vpop.f32.mrb[0].mxu0
    %v9450 = vadd.f32 1e-08, %v9449
    %v9451 = vpop.f32.mrb[0].mxu0
    %v9452 = vpop.f32.mrb[0].mxu0
    %v9453 = vadd.f32 1e-08, %v9452
    %v9454 = vpop.f32.mrb[0].mxu0
    %9455 = vmatprep.mubr.bf16.mxu0 %v9012
    %9456 = vmatmul.mubr.bf16.gmra.mrb[0].mxu0 %v9011
    %v9457 = vpop.f32.mrb[0].mxu0
    %v9458 = vadd.f32 1e-08, %v9457
    %v9459 = vpop.f32.mrb[0].mxu0
    %v9460 = vpop.f32.mrb[0].mxu0
    %v9461 = vadd.f32 1e-08, %v9460
    %v9462 = vpop.f32.mrb[0].mxu0
    %9463 = vmatprep.mubr.bf16.mxu0 %v9017
    %9464 = vmatmul.mubr.bf16.gmra.mrb[0].mxu0 %v9016
    %v9465 = vpop.f32.mrb[0].mxu0
    %v9466 = vadd.f32 1e-08, %v9465
    %v9467 = vpop.f32.mrb[0].mxu0
    %v9468 = vpop.f32.mrb[0].mxu0
    %v9469 = vadd.f32 1e-08, %v9468
    %v9470 = vpop.f32.mrb[0].mxu0
    %9471 = vmatprep.mubr.bf16.mxu0 %v9022
    %9472 = vmatmul.mubr.bf16.gmra.mrb[0].mxu0 %v9021
    %v9473 = vpop.f32.mrb[0].mxu0
    %v9474 = vadd.f32 1e-08, %v9473
    %v9475 = vpop.f32.mrb[0].mxu0
    %v9476 = vpop.f32.mrb[0].mxu0
    %v9477 = vadd.f32 1e-08, %v9476
    %v9478 = vpop.f32.mrb[0].mxu0
    %9479 = vmatprep.mubr.bf16.mxu0 %v9027
    %9480 = vmatmul.mubr.bf16.gmra.mrb[0].mxu0 %v9026
    %v9481 = vpop.f32.mrb[0].mxu0
    %v9482 = vadd.f32 1e-08, %v9481
    %v9483 = vpop.f32.mrb[0].mxu0
    %v9484 = vpop.f32.mrb[0].mxu0
    %v9485 = vadd.f32 1e-08, %v9484
    %v9486 = vpop.f32.mrb[0].mxu0
    %9487 = vmatprep.mubr.bf16.mxu0 %v9032
    %9488 = vmatmul.mubr.bf16.gmra.mrb[0].mxu0 %v9031
    %v9489 = vpop.f32.mrb[0].mxu0
    %v9490 = vadd.f32 1e-08, %v9489
    %v9491 = vpop.f32.mrb[0].mxu0
    %v9492 = vpop.f32.mrb[0].mxu0
    %v9493 = vadd.f32 1e-08, %v9492
    %v9494 = vpop.f32.mrb[0].mxu0
    %9495 = vmatprep.mubr.bf16.mxu0 %v9037
    %9496 = vmatmul.mubr.bf16.gmra.mrb[0].mxu0 %v9036
    %v9497 = vpop.f32.mrb[0].mxu0
    %v9498 = vadd.f32 1e-08, %v9497
    %v9499 = vpop.f32.mrb[0].mxu0
    %v9500 = vpop.f32.mrb[0].mxu0
    %v9501 = vadd.f32 1e-08, %v9500
    %v9502 = vpop.f32.mrb[0].mxu0
    %9503 = vmatprep.mubr.bf16.mxu0 %v9042
    %9504 = vmatmul.mubr.bf16.gmra.mrb[0].mxu0 %v9041
    %v9505 = vpop.f32.mrb[0].mxu0
    %v9506 = vadd.f32 1e-08, %v9505
    %v9507 = vpop.f32.mrb[0].mxu0
    %v9508 = vpop.f32.mrb[0].mxu0
    %v9509 = vadd.f32 1e-08, %v9508
    %v9510 = vpop.f32.mrb[0].mxu0
    %9511 = vmatprep.mubr.bf16.mxu0 %v9047
    %9512 = vmatmul.mubr.bf16.gmra.mrb[0].mxu0 %v9046
    %v9513 = vpop.f32.mrb[0].mxu0
    %v9514 = vadd.f32 1e-08, %v9513
    %v9515 = vpop.f32.mrb[0].mxu0
    %v9516 = vpop.f32.mrb[0].mxu0
    %v9517 = vadd.f32 1e-08, %v9516
    %v9518 = vpop.f32.mrb[0].mxu0
    %9519 = vmatprep.mubr.bf16.mxu0 %v9052
    %9520 = vmatmul.mubr.bf16.gmra.mrb[0].mxu0 %v9051
    %v9521 = vpop.f32.mrb[0].mxu0
    %v9522 = vadd.f32 1e-08, %v9521
    %v9523 = vpop.f32.mrb[0].mxu0
    %v9524 = vpop.f32.mrb[0].mxu0
    %v9525 = vadd.f32 1e-08, %v9524
    %v9526 = vpop.f32.mrb[0].mxu0
    %9527 = vmatprep.mubr.bf16.mxu0 %v9057
    %9528 = vmatmul.mubr.bf16.gmra.mrb[0].mxu0 %v9056
    %v9529 = vpop.f32.mrb[0].mxu0
    %v9530 = vadd.f32 1e-08, %v9529
    %v9531 = vpop.f32.mrb[0].mxu0
    %v9532 = vpop.f32.mrb[0].mxu0
    %v9533 = vadd.f32 1e-08, %v9532
    %v9534 = vpop.f32.mrb[0].mxu0
    %9535 = vmatprep.mubr.bf16.mxu0 %v9062
    %9536 = vmatmul.mubr.bf16.gmra.mrb[0].mxu0 %v9061
    %v9537 = vpop.f32.mrb[0].mxu0
    %v9538 = vadd.f32 1e-08, %v9537
    %v9539 = vpop.f32.mrb[0].mxu0
    %v9540 = vpop.f32.mrb[0].mxu0
    %v9541 = vadd.f32 1e-08, %v9540
    %v9542 = vpop.f32.mrb[0].mxu0
    %9543 = vmatprep.mubr.bf16.mxu0 %v9067
    %9544 = vmatmul.mubr.bf16.gmra.mrb[0].mxu0 %v9066
    %v9545 = vpop.f32.mrb[0].mxu0
    %v9546 = vadd.f32 1e-08, %v9545
    %v9547 = vpop.f32.mrb[0].mxu0
    %v9548 = vpop.f32.mrb[0].mxu0
    %v9549 = vadd.f32 1e-08, %v9548
    %v9550 = vpop.f32.mrb[0].mxu0
    %9551 = vdwg.mxu0
    %9552 = vmatprep.subr.bf16.mxu0 0
    %9553 = vmatpush1.bf16.msra.mxu0 %v9327
    %9554 = vmatprep.subr.bf16.mxu0 0
    %9555 = vmatpush1.bf16.msra.mxu0 %v9328
    %9556 = vmatprep.subr.bf16.mxu0 0
    %9557 = vmatpush1.bf16.msra.mxu0 %v9329
    %9558 = vmatprep.subr.bf16.mxu0 0
    %9559 = vmatpush1.bf16.msra.mxu0 %v9330
    %9560 = vmatprep.subr.bf16.mxu0 0
    %9561 = vmatpush1.bf16.msra.mxu0 %v9331
    %9562 = vmatprep.subr.bf16.mxu0 0
    %9563 = vmatpush1.bf16.msra.mxu0 %v9332
    %9564 = vmatprep.subr.bf16.mxu0 0
    %9565 = vmatpush1.bf16.msra.mxu0 %v9333
    %9566 = vmatprep.subr.bf16.mxu0 0
    %9567 = vmatpush1.bf16.msra.mxu0 %v9334
    %9568 = vmatprep.subr.bf16.mxu0 0
    %9569 = vmatpush1.bf16.msra.mxu0 %v9335
    %9570 = vmatprep.subr.bf16.mxu0 0
    %9571 = vmatpush1.bf16.msra.mxu0 %v9336
    %9572 = vmatprep.subr.bf16.mxu0 0
    %9573 = vmatpush1.bf16.msra.mxu0 %v9337
    %9574 = vmatprep.subr.bf16.mxu0 0
    %9575 = vmatpush1.bf16.msra.mxu0 %v9338
    %9576 = vmatprep.subr.bf16.mxu0 0
    %9577 = vmatpush1.bf16.msra.mxu0 %v9339
    %9578 = vmatprep.subr.bf16.mxu0 0
    %9579 = vmatpush1.bf16.msra.mxu0 %v9340
    %9580 = vmatprep.subr.bf16.mxu0 0
    %9581 = vmatpush1.bf16.msra.mxu0 %v9341
    %9582 = vmatprep.subr.bf16.mxu0 0
    %9583 = vmatpush1.bf16.msra.mxu0 %v9342
    %9584 = vmatprep.mubr.bf16.mxu0 %v8994
    %9585 = vmatmul.mubr.bf16.gmra.mrb[0].mxu0 %v8993
    %v9586 = vpop.f32.mrb[0].mxu0
    %v9587 = vadd.f32 %v9426, %v9586
    %v9588 = vpop.f32.mrb[0].mxu0
    %v9589 = vpop.f32.mrb[0].mxu0
    %v9590 = vadd.f32 %v9429, %v9589
    %v9591 = vpop.f32.mrb[0].mxu0
    %9592 = vmatprep.mubr.bf16.mxu0 %v8999
    %9593 = vmatmul.mubr.bf16.gmra.mrb[0].mxu0 %v8998
    %v9594 = vpop.f32.mrb[0].mxu0
    %v9595 = vadd.f32 %v9434, %v9594
    %v9596 = vpop.f32.mrb[0].mxu0
    %v9597 = vpop.f32.mrb[0].mxu0
    %v9598 = vadd.f32 %v9437, %v9597
    %v9599 = vpop.f32.mrb[0].mxu0
    %9600 = vmatprep.mubr.bf16.mxu0 %v9004
    %9601 = vmatmul.mubr.bf16.gmra.mrb[0].mxu0 %v9003
    %v9602 = vpop.f32.mrb[0].mxu0
    %v9603 = vadd.f32 %v9442, %v9602
    %v9604 = vpop.f32.mrb[0].mxu0
    %v9605 = vpop.f32.mrb[0].mxu0
    %v9606 = vadd.f32 %v9445, %v9605
    %v9607 = vpop.f32.mrb[0].mxu0
    %9608 = vmatprep.mubr.bf16.mxu0 %v9009
    %9609 = vmatmul.mubr.bf16.gmra.mrb[0].mxu0 %v9008
    %v9610 = vpop.f32.mrb[0].mxu0
    %v9611 = vadd.f32 %v9450, %v9610
    %v9612 = vpop.f32.mrb[0].mxu0
    %v9613 = vpop.f32.mrb[0].mxu0
    %v9614 = vadd.f32 %v9453, %v9613
    %v9615 = vpop.f32.mrb[0].mxu0
    %9616 = vmatprep.mubr.bf16.mxu0 %v9014
    %9617 = vmatmul.mubr.bf16.gmra.mrb[0].mxu0 %v9013
    %v9618 = vpop.f32.mrb[0].mxu0
    %v9619 = vadd.f32 %v9458, %v9618
    %v9620 = vpop.f32.mrb[0].mxu0
    %v9621 = vpop.f32.mrb[0].mxu0
    %v9622 = vadd.f32 %v9461, %v9621
    %v9623 = vpop.f32.mrb[0].mxu0
    %9624 = vmatprep.mubr.bf16.mxu0 %v9019
    %9625 = vmatmul.mubr.bf16.gmra.mrb[0].mxu0 %v9018
    %v9626 = vpop.f32.mrb[0].mxu0
    %v9627 = vadd.f32 %v9466, %v9626
    %v9628 = vpop.f32.mrb[0].mxu0
    %v9629 = vpop.f32.mrb[0].mxu0
    %v9630 = vadd.f32 %v9469, %v9629
    %v9631 = vpop.f32.mrb[0].mxu0
    %9632 = vmatprep.mubr.bf16.mxu0 %v9024
    %9633 = vmatmul.mubr.bf16.gmra.mrb[0].mxu0 %v9023
    %v9634 = vpop.f32.mrb[0].mxu0
    %v9635 = vadd.f32 %v9474, %v9634
    %v9636 = vpop.f32.mrb[0].mxu0
    %v9637 = vpop.f32.mrb[0].mxu0
    %v9638 = vadd.f32 %v9477, %v9637
    %v9639 = vpop.f32.mrb[0].mxu0
    %9640 = vmatprep.mubr.bf16.mxu0 %v9029
    %9641 = vmatmul.mubr.bf16.gmra.mrb[0].mxu0 %v9028
    %v9642 = vpop.f32.mrb[0].mxu0
    %v9643 = vadd.f32 %v9482, %v9642
    %v9644 = vpop.f32.mrb[0].mxu0
    %v9645 = vpop.f32.mrb[0].mxu0
    %v9646 = vadd.f32 %v9485, %v9645
    %v9647 = vpop.f32.mrb[0].mxu0
    %9648 = vmatprep.mubr.bf16.mxu0 %v9034
    %9649 = vmatmul.mubr.bf16.gmra.mrb[0].mxu0 %v9033
    %v9650 = vpop.f32.mrb[0].mxu0
    %v9651 = vadd.f32 %v9490, %v9650
    %v9652 = vpop.f32.mrb[0].mxu0
    %v9653 = vpop.f32.mrb[0].mxu0
    %v9654 = vadd.f32 %v9493, %v9653
    %v9655 = vpop.f32.mrb[0].mxu0
    %9656 = vmatprep.mubr.bf16.mxu0 %v9039
    %9657 = vmatmul.mubr.bf16.gmra.mrb[0].mxu0 %v9038
    %v9658 = vpop.f32.mrb[0].mxu0
    %v9659 = vadd.f32 %v9498, %v9658
    %v9660 = vpop.f32.mrb[0].mxu0
    %v9661 = vpop.f32.mrb[0].mxu0
    %v9662 = vadd.f32 %v9501, %v9661
    %v9663 = vpop.f32.mrb[0].mxu0
    %9664 = vmatprep.mubr.bf16.mxu0 %v9044
    %9665 = vmatmul.mubr.bf16.gmra.mrb[0].mxu0 %v9043
    %v9666 = vpop.f32.mrb[0].mxu0
    %v9667 = vadd.f32 %v9506, %v9666
    %v9668 = vpop.f32.mrb[0].mxu0
    %v9669 = vpop.f32.mrb[0].mxu0
    %v9670 = vadd.f32 %v9509, %v9669
    %v9671 = vpop.f32.mrb[0].mxu0
    %9672 = vmatprep.mubr.bf16.mxu0 %v9049
    %9673 = vmatmul.mubr.bf16.gmra.mrb[0].mxu0 %v9048
    %v9674 = vpop.f32.mrb[0].mxu0
    %v9675 = vadd.f32 %v9514, %v9674
    %v9676 = vpop.f32.mrb[0].mxu0
    %v9677 = vpop.f32.mrb[0].mxu0
    %v9678 = vadd.f32 %v9517, %v9677
    %v9679 = vpop.f32.mrb[0].mxu0
    %9680 = vmatprep.mubr.bf16.mxu0 %v9054
    %9681 = vmatmul.mubr.bf16.gmra.mrb[0].mxu0 %v9053
    %v9682 = vpop.f32.mrb[0].mxu0
    %v9683 = vadd.f32 %v9522, %v9682
    %v9684 = vpop.f32.mrb[0].mxu0
    %v9685 = vpop.f32.mrb[0].mxu0
    %v9686 = vadd.f32 %v9525, %v9685
    %v9687 = vpop.f32.mrb[0].mxu0
    %9688 = vmatprep.mubr.bf16.mxu0 %v9059
    %9689 = vmatmul.mubr.bf16.gmra.mrb[0].mxu0 %v9058
    %v9690 = vpop.f32.mrb[0].mxu0
    %v9691 = vadd.f32 %v9530, %v9690
    %v9692 = vpop.f32.mrb[0].mxu0
    %v9693 = vpop.f32.mrb[0].mxu0
    %v9694 = vadd.f32 %v9533, %v9693
    %v9695 = vpop.f32.mrb[0].mxu0
    %9696 = vmatprep.mubr.bf16.mxu0 %v9064
    %9697 = vmatmul.mubr.bf16.gmra.mrb[0].mxu0 %v9063
    %v9698 = vpop.f32.mrb[0].mxu0
    %v9699 = vadd.f32 %v9538, %v9698
    %v9700 = vpop.f32.mrb[0].mxu0
    %v9701 = vpop.f32.mrb[0].mxu0
    %v9702 = vadd.f32 %v9541, %v9701
    %v9703 = vpop.f32.mrb[0].mxu0
    %9704 = vmatprep.mubr.bf16.mxu0 %v9069
    %9705 = vmatmul.mubr.bf16.gmra.mrb[0].mxu0 %v9068
    %v9706 = vpop.f32.mrb[0].mxu0
    %v9707 = vadd.f32 %v9546, %v9706
    %v9708 = vpop.f32.mrb[0].mxu0
    %v9709 = vpop.f32.mrb[0].mxu0
    %v9710 = vadd.f32 %v9549, %v9709
    %v9711 = vpop.f32.mrb[0].mxu0
    %9712 = vdwg.mxu0
    %9713 = vmatprep.subr.bf16.mxu0 0
    %9714 = vmatpush1.bf16.msra.mxu0 %v9343
    %9715 = vmatprep.subr.bf16.mxu0 0
    %9716 = vmatpush1.bf16.msra.mxu0 %v9344
    %9717 = vmatprep.subr.bf16.mxu0 0
    %9718 = vmatpush1.bf16.msra.mxu0 %v9345
    %9719 = vmatprep.subr.bf16.mxu0 0
    %9720 = vmatpush1.bf16.msra.mxu0 %v9346
    %9721 = vmatprep.subr.bf16.mxu0 0
    %9722 = vmatpush1.bf16.msra.mxu0 %v9347
    %9723 = vmatprep.subr.bf16.mxu0 0
    %9724 = vmatpush1.bf16.msra.mxu0 %v9348
    %9725 = vmatprep.subr.bf16.mxu0 0
    %9726 = vmatpush1.bf16.msra.mxu0 %v9349
    %9727 = vmatprep.subr.bf16.mxu0 0
    %9728 = vmatpush1.bf16.msra.mxu0 %v9350
    %9729 = vmatprep.subr.bf16.mxu0 0
    %9730 = vmatpush1.bf16.msra.mxu0 0
    %9731 = vmatprep.subr.bf16.mxu0 0
    %9732 = vmatpush1.bf16.msra.mxu0 0
    %9733 = vmatprep.subr.bf16.mxu0 0
    %9734 = vmatpush1.bf16.msra.mxu0 0
    %9735 = vmatprep.subr.bf16.mxu0 0
    %9736 = vmatpush1.bf16.msra.mxu0 0
    %9737 = vmatprep.subr.bf16.mxu0 0
    %9738 = vmatpush1.bf16.msra.mxu0 0
    %9739 = vmatprep.subr.bf16.mxu0 0
    %9740 = vmatpush1.bf16.msra.mxu0 0
    %9741 = vmatprep.subr.bf16.mxu0 0
    %9742 = vmatpush1.bf16.msra.mxu0 0
    %9743 = vmatprep.subr.bf16.mxu0 0
    %9744 = vmatpush1.bf16.msra.mxu0 0
    %9745 = vmatprep.mubr.bf16.mxu0 0
    %9746 = vmatmul.mubr.bf16.gmra.mrb[0].mxu0 %v8995
    %v9747 = vpop.f32.mrb[0].mxu0
    %v9748 = vadd.f32 %v9587, %v9747
    %v9749 = vpop.f32.mrb[0].mxu0
    %v9750 = vpop.f32.mrb[0].mxu0
    %v9751 = vadd.f32 %v9590, %v9750
    %v9752 = vpop.f32.mrb[0].mxu0
    %9753 = vmatprep.mubr.bf16.mxu0 0
    %9754 = vmatmul.mubr.bf16.gmra.mrb[0].mxu0 %v9000
    %v9755 = vpop.f32.mrb[0].mxu0
    %v9756 = vadd.f32 %v9595, %v9755
    %v9757 = vpop.f32.mrb[0].mxu0
    %v9758 = vpop.f32.mrb[0].mxu0
    %v9759 = vadd.f32 %v9598, %v9758
    %v9760 = vpop.f32.mrb[0].mxu0
    %9761 = vmatprep.mubr.bf16.mxu0 0
    %9762 = vmatmul.mubr.bf16.gmra.mrb[0].mxu0 %v9005
    %v9763 = vpop.f32.mrb[0].mxu0
    %v9764 = vadd.f32 %v9603, %v9763
    %v9765 = vpop.f32.mrb[0].mxu0
    %v9766 = vpop.f32.mrb[0].mxu0
    %v9767 = vadd.f32 %v9606, %v9766
    %v9768 = vpop.f32.mrb[0].mxu0
    %9769 = vmatprep.mubr.bf16.mxu0 0
    %9770 = vmatmul.mubr.bf16.gmra.mrb[0].mxu0 %v9010
    %v9771 = vpop.f32.mrb[0].mxu0
    %v9772 = vadd.f32 %v9611, %v9771
    %v9773 = vpop.f32.mrb[0].mxu0
    %v9774 = vpop.f32.mrb[0].mxu0
    %v9775 = vadd.f32 %v9614, %v9774
    %v9776 = vpop.f32.mrb[0].mxu0
    %9777 = vmatprep.mubr.bf16.mxu0 0
    %9778 = vmatmul.mubr.bf16.gmra.mrb[0].mxu0 %v9015
    %v9779 = vpop.f32.mrb[0].mxu0
    %v9780 = vadd.f32 %v9619, %v9779
    %v9781 = vpop.f32.mrb[0].mxu0
    %v9782 = vpop.f32.mrb[0].mxu0
    %v9783 = vadd.f32 %v9622, %v9782
    %v9784 = vpop.f32.mrb[0].mxu0
    %9785 = vmatprep.mubr.bf16.mxu0 0
    %9786 = vmatmul.mubr.bf16.gmra.mrb[0].mxu0 %v9020
    %v9787 = vpop.f32.mrb[0].mxu0
    %v9788 = vadd.f32 %v9627, %v9787
    %v9789 = vpop.f32.mrb[0].mxu0
    %v9790 = vpop.f32.mrb[0].mxu0
    %v9791 = vadd.f32 %v9630, %v9790
    %v9792 = vpop.f32.mrb[0].mxu0
    %9793 = vmatprep.mubr.bf16.mxu0 0
    %9794 = vmatmul.mubr.bf16.gmra.mrb[0].mxu0 %v9025
    %v9795 = vpop.f32.mrb[0].mxu0
    %v9796 = vadd.f32 %v9635, %v9795
    %v9797 = vpop.f32.mrb[0].mxu0
    %v9798 = vpop.f32.mrb[0].mxu0
    %v9799 = vadd.f32 %v9638, %v9798
    %v9800 = vpop.f32.mrb[0].mxu0
    %9801 = vmatprep.mubr.bf16.mxu0 0
    %9802 = vmatmul.mubr.bf16.gmra.mrb[0].mxu0 %v9030
    %v9803 = vpop.f32.mrb[0].mxu0
    %v9804 = vadd.f32 %v9643, %v9803
    %v9805 = vpop.f32.mrb[0].mxu0
    %v9806 = vpop.f32.mrb[0].mxu0
    %v9807 = vadd.f32 %v9646, %v9806
    %v9808 = vpop.f32.mrb[0].mxu0
    %9809 = vmatprep.mubr.bf16.mxu0 0
    %9810 = vmatmul.mubr.bf16.gmra.mrb[0].mxu0 %v9035
    %v9811 = vpop.f32.mrb[0].mxu0
    %v9812 = vadd.f32 %v9651, %v9811
    %v9813 = vpop.f32.mrb[0].mxu0
    %v9814 = vpop.f32.mrb[0].mxu0
    %v9815 = vadd.f32 %v9654, %v9814
    %v9816 = vpop.f32.mrb[0].mxu0
    %9817 = vmatprep.mubr.bf16.mxu0 0
    %9818 = vmatmul.mubr.bf16.gmra.mrb[0].mxu0 %v9040
    %v9819 = vpop.f32.mrb[0].mxu0
    %v9820 = vadd.f32 %v9659, %v9819
    %v9821 = vpop.f32.mrb[0].mxu0
    %v9822 = vpop.f32.mrb[0].mxu0
    %v9823 = vadd.f32 %v9662, %v9822
    %v9824 = vpop.f32.mrb[0].mxu0
    %9825 = vmatprep.mubr.bf16.mxu0 0
    %9826 = vmatmul.mubr.bf16.gmra.mrb[0].mxu0 %v9045
    %v9827 = vpop.f32.mrb[0].mxu0
    %v9828 = vadd.f32 %v9667, %v9827
    %v9829 = vpop.f32.mrb[0].mxu0
    %v9830 = vpop.f32.mrb[0].mxu0
    %v9831 = vadd.f32 %v9670, %v9830
    %v9832 = vpop.f32.mrb[0].mxu0
    %9833 = vmatprep.mubr.bf16.mxu0 0
    %9834 = vmatmul.mubr.bf16.gmra.mrb[0].mxu0 %v9050
    %v9835 = vpop.f32.mrb[0].mxu0
    %v9836 = vadd.f32 %v9675, %v9835
    %v9837 = vpop.f32.mrb[0].mxu0
    %v9838 = vpop.f32.mrb[0].mxu0
    %v9839 = vadd.f32 %v9678, %v9838
    %v9840 = vpop.f32.mrb[0].mxu0
    %9841 = vmatprep.mubr.bf16.mxu0 0
    %9842 = vmatmul.mubr.bf16.gmra.mrb[0].mxu0 %v9055
    %v9843 = vpop.f32.mrb[0].mxu0
    %v9844 = vadd.f32 %v9683, %v9843
    %v9845 = vpop.f32.mrb[0].mxu0
    %v9846 = vpop.f32.mrb[0].mxu0
    %v9847 = vadd.f32 %v9686, %v9846
    %v9848 = vpop.f32.mrb[0].mxu0
    %9849 = vmatprep.mubr.bf16.mxu0 0
    %9850 = vmatmul.mubr.bf16.gmra.mrb[0].mxu0 %v9060
    %v9851 = vpop.f32.mrb[0].mxu0
    %v9852 = vadd.f32 %v9691, %v9851
    %v9853 = vpop.f32.mrb[0].mxu0
    %v9854 = vpop.f32.mrb[0].mxu0
    %v9855 = vadd.f32 %v9694, %v9854
    %v9856 = vpop.f32.mrb[0].mxu0
    %9857 = vmatprep.mubr.bf16.mxu0 0
    %9858 = vmatmul.mubr.bf16.gmra.mrb[0].mxu0 %v9065
    %v9859 = vpop.f32.mrb[0].mxu0
    %v9860 = vadd.f32 %v9699, %v9859
    %v9861 = vpop.f32.mrb[0].mxu0
    %v9862 = vpop.f32.mrb[0].mxu0
    %v9863 = vadd.f32 %v9702, %v9862
    %v9864 = vpop.f32.mrb[0].mxu0
    %9865 = vmatprep.mubr.bf16.mxu0 0
    %9866 = vmatmul.mubr.bf16.gmra.mrb[0].mxu0 %v9070
    %v9867 = vpop.f32.mrb[0].mxu0
    %v9868 = vadd.f32 %v9707, %v9867
    %v9869 = vpop.f32.mrb[0].mxu0
    %v9870 = vpop.f32.mrb[0].mxu0
    %v9871 = vadd.f32 %v9710, %v9870
    %v9872 = vpop.f32.mrb[0].mxu0
    %9873 = vdwg.mxu0
    %v9874 = vlog2.pop %v9748
    %v9875 = vmul.f32 %v9874, 0.6931472
    %v9876 = vlog2.pop %v9751
    %v9877 = vmul.f32 %v9876, 0.6931472
    %v9878 = vlog2.pop %v9756
    %v9879 = vmul.f32 %v9878, 0.6931472
    %v9880 = vlog2.pop %v9759
    %v9881 = vmul.f32 %v9880, 0.6931472
    %v9882 = vlog2.pop %v9764
    %v9883 = vmul.f32 %v9882, 0.6931472
    %v9884 = vlog2.pop %v9767
    %v9885 = vmul.f32 %v9884, 0.6931472
    %v9886 = vlog2.pop %v9772
    %v9887 = vmul.f32 %v9886, 0.6931472
    %v9888 = vlog2.pop %v9775
    %v9889 = vmul.f32 %v9888, 0.6931472
    %v9890 = vlog2.pop %v9780
    %v9891 = vmul.f32 %v9890, 0.6931472
    %v9892 = vlog2.pop %v9783
    %v9893 = vmul.f32 %v9892, 0.6931472
    %v9894 = vlog2.pop %v9788
    %v9895 = vmul.f32 %v9894, 0.6931472
    %v9896 = vlog2.pop %v9791
    %v9897 = vmul.f32 %v9896, 0.6931472
    %v9898 = vlog2.pop %v9796
    %v9899 = vmul.f32 %v9898, 0.6931472
    %v9900 = vlog2.pop %v9799
    %v9901 = vmul.f32 %v9900, 0.6931472
    %v9902 = vlog2.pop %v9804
    %v9903 = vmul.f32 %v9902, 0.6931472
    %v9904 = vlog2.pop %v9807
    %v9905 = vmul.f32 %v9904, 0.6931472
    %v9906 = vlog2.pop %v9812
    %v9907 = vmul.f32 %v9906, 0.6931472
    %v9908 = vlog2.pop %v9815
    %v9909 = vmul.f32 %v9908, 0.6931472
    %v9910 = vlog2.pop %v9820
    %v9911 = vmul.f32 %v9910, 0.6931472
    %v9912 = vlog2.pop %v9823
    %v9913 = vmul.f32 %v9912, 0.6931472
    %v9914 = vlog2.pop %v9828
    %v9915 = vmul.f32 %v9914, 0.6931472
    %v9916 = vlog2.pop %v9831
    %v9917 = vmul.f32 %v9916, 0.6931472
    %v9918 = vlog2.pop %v9836
    %v9919 = vmul.f32 %v9918, 0.6931472
    %v9920 = vlog2.pop %v9839
    %v9921 = vmul.f32 %v9920, 0.6931472
    %v9922 = vlog2.pop %v9844
    %v9923 = vmul.f32 %v9922, 0.6931472
    %v9924 = vlog2.pop %v9847
    %v9925 = vmul.f32 %v9924, 0.6931472
    %v9926 = vlog2.pop %v9852
    %v9927 = vmul.f32 %v9926, 0.6931472
    %v9928 = vlog2.pop %v9855
    %v9929 = vmul.f32 %v9928, 0.6931472
    %v9930 = vlog2.pop %v9860
    %v9931 = vmul.f32 %v9930, 0.6931472
    %v9932 = vlog2.pop %v9863
    %v9933 = vmul.f32 %v9932, 0.6931472
    %v9934 = vlog2.pop %v9868
    %v9935 = vmul.f32 %v9934, 0.6931472
    %v9936 = vlog2.pop %v9871
    %v9937 = vmul.f32 %v9936, 0.6931472
    %v9938 = vrcp.pop 100.0
    %v9939 = vmul.f32 %v9875, %v9938
    %v9940 = vmul.f32 %v9877, %v9938
    %v9941 = vmul.f32 %v9879, %v9938
    %v9942 = vmul.f32 %v9881, %v9938
    %v9943 = vmul.f32 %v9883, %v9938
    %v9944 = vmul.f32 %v9885, %v9938
    %v9945 = vmul.f32 %v9887, %v9938
    %v9946 = vmul.f32 %v9889, %v9938
    %v9947 = vmul.f32 %v9891, %v9938
    %v9948 = vmul.f32 %v9893, %v9938
    %v9949 = vmul.f32 %v9895, %v9938
    %v9950 = vmul.f32 %v9897, %v9938
    %v9951 = vmul.f32 %v9899, %v9938
    %v9952 = vmul.f32 %v9901, %v9938
    %v9953 = vmul.f32 %v9903, %v9938
    %v9954 = vmul.f32 %v9905, %v9938
    %v9955 = vmul.f32 %v9907, %v9938
    %v9956 = vmul.f32 %v9909, %v9938
    %v9957 = vmul.f32 %v9911, %v9938
    %v9958 = vmul.f32 %v9913, %v9938
    %v9959 = vmul.f32 %v9915, %v9938
    %v9960 = vmul.f32 %v9917, %v9938
    %v9961 = vmul.f32 %v9919, %v9938
    %v9962 = vmul.f32 %v9921, %v9938
    %v9963 = vmul.f32 %v9923, %v9938
    %v9964 = vmul.f32 %v9925, %v9938
    %v9965 = vmul.f32 %v9927, %v9938
    %v9966 = vmul.f32 %v9929, %v9938
    %v9967 = vmul.f32 %v9931, %v9938
    %v9968 = vmul.f32 %v9933, %v9938
    %v9969 = vmul.f32 %v9935, %v9938
    %v9970 = vmul.f32 %v9937, %v9938
    %9971 = vst [vmem:[%s3] sm:$0xff] %v9939
    %9972 = vst [vmem:[%s3 + $0x8] sm:$0xff] %v9940
    %9973 = vst [vmem:[%s3 + $0x10] sm:$0xff] %v9941
    %9974 = vst [vmem:[%s3 + $0x18] sm:$0xff] %v9942
    %9975 = vst [vmem:[%s3 + $0x20] sm:$0xff] %v9943
    %9976 = vst [vmem:[%s3 + $0x28] sm:$0xff] %v9944
    %9977 = vst [vmem:[%s3 + $0x30] sm:$0xff] %v9945
    %9978 = vst [vmem:[%s3 + $0x38] sm:$0xff] %v9946
    %9979 = vst [vmem:[%s3 + $0x40] sm:$0xff] %v9947
    %9980 = vst [vmem:[%s3 + $0x48] sm:$0xff] %v9948
    %9981 = vst [vmem:[%s3 + $0x50] sm:$0xff] %v9949
    %9982 = vst [vmem:[%s3 + $0x58] sm:$0xff] %v9950
    %9983 = vst [vmem:[%s3 + $0x60] sm:$0xff] %v9951
    %9984 = vst [vmem:[%s3 + $0x68] sm:$0xff] %v9952
    %9985 = vst [vmem:[%s3 + $0x70] sm:$0xff] %v9953
    %9986 = vst [vmem:[%s3 + $0x78] sm:$0xff] %v9954
    %9987 = vst [vmem:[%s3 + $0x80] sm:$0xff] %v9955
    %9988 = vst [vmem:[%s3 + $0x88] sm:$0xff] %v9956
    %9989 = vst [vmem:[%s3 + $0x90] sm:$0xff] %v9957
    %9990 = vst [vmem:[%s3 + $0x98] sm:$0xff] %v9958
    %9991 = vst [vmem:[%s3 + $0xa0] sm:$0xff] %v9959
    %9992 = vst [vmem:[%s3 + $0xa8] sm:$0xff] %v9960
    %9993 = vst [vmem:[%s3 + $0xb0] sm:$0xff] %v9961
    %9994 = vst [vmem:[%s3 + $0xb8] sm:$0xff] %v9962
    %9995 = vst [vmem:[%s3 + $0xc0] sm:$0xff] %v9963
    %9996 = vst [vmem:[%s3 + $0xc8] sm:$0xff] %v9964
    %9997 = vst [vmem:[%s3 + $0xd0] sm:$0xff] %v9965
    %9998 = vst [vmem:[%s3 + $0xd8] sm:$0xff] %v9966
    %9999 = vst [vmem:[%s3 + $0xe0] sm:$0xff] %v9967
    %10000 = vst [vmem:[%s3 + $0xe8] sm:$0xff] %v9968
    %10001 = vst [vmem:[%s3 + $0xf0] sm:$0xff] %v9969
    %10002 = vst [vmem:[%s3 + $0xf8] sm:$0xff] %v9970
    // Predicated region
    $region22: #{_logmel_impl.1} parent=1 // pred_check
      _
    $region23: #{_logmel_impl.1} parent=1 // pred_check_branch
      %10004 = sbr.rel (0) target = $region25
    $region24: #{_logmel_impl.1} parent=1 // pred_region
      _
    $region25: #{_logmel_impl.1} parent=1 // pred_fallthru
      _
    // Predicated region
    $region26: #{_logmel_impl.1} parent=1 // pred_check
      _
    $region27: #{_logmel_impl.1} parent=1 // pred_check_branch
      %10006 = sbr.rel (0) target = $region29
    $region28: #{_logmel_impl.1} parent=1 // pred_region
      _
    $region29: #{_logmel_impl.1} parent=1 // pred_fallthru
      _
    %10007 = vsyncpa [#allocation3], 1
    %10008 = vsyncpa [#allocation5], 1

</llo_original>
